<compile_context>
chip_gen: v5e
topology: v5e:2x2
jax: 0.10.0
libtpu: 0.0.40
codegen_flags: <defaults>
</compile_context>

<pallas_src>
import jax
import jax.numpy as jnp
from jax.experimental import pallas as pl
from jax.experimental.pallas import tpu as pltpu

D_IN = 1024   # feature dim of Text / Image / Text_prime (fixed by the module)
D_HID = 1024  # hidden width of `contact`


def _elu(z):
    # F.elu with alpha = 1.0 : z if z > 0 else exp(z) - 1   (f32 math).
    # (exp(min(z,0)) - 1 kept instead of expm1 for guaranteed Mosaic lowering.)
    return jnp.where(z > 0, z, jnp.exp(jnp.minimum(z, 0.0)) - 1.0)


def kl_loss_kernel(text_ref, image_ref, tprime_ref,
                   w0i_ref, w0t_ref, b0_ref,
                   w1_hbm_ref, b1_ref,
                   w2_ref, b2_ref,
                   loss_ref,
                   w1_vmem, w1_sem):
    b = text_ref.shape[0]

    # Kick off the w1 HBM->VMEM copy immediately; it is only needed at layer 1,
    # so it overlaps with the layer-0 MXU work below.
    w1_copy = pltpu.make_async_copy(w1_hbm_ref, w1_vmem, w1_sem)
    w1_copy.start()

    # Stack the joint (Text) and marginal (Text_prime) branches: (2B, 1024).
    # Concatenate in f32 (tile-aligned 8-row blocks), then cast once for the MXU.
    x_stk = jnp.concatenate([text_ref[...], tprime_ref[...]],
                            axis=0).astype(jnp.bfloat16)          # (2B, 1024)
    img = image_ref[...].astype(jnp.bfloat16)                     # (B, 1024)

    # ---- layer 0: h = cat(Image, X) @ W0 + b0; image half computed once.
    img_proj = jnp.dot(img, w0i_ref[...],
                       preferred_element_type=jnp.float32)        # (B, 1024) f32
    z0 = (jnp.concatenate([img_proj, img_proj], axis=0)
          + jnp.dot(x_stk, w0t_ref[...], preferred_element_type=jnp.float32)
          + b0_ref[...])                                          # (2B, 1024) f32
    a0 = _elu(z0)

    # ---- layer 1 (shared weights, both branches in a single matmul)
    w1_copy.wait()
    z1 = jnp.dot(a0.astype(jnp.bfloat16), w1_vmem[...],
                 preferred_element_type=jnp.float32) + b1_ref[...]
    a1 = _elu(z1)                                                 # (2B, 1024) f32

    # ---- layer 2: Linear(1024, 1) as lane-dense multiply + lane reduction
    w2_row = w2_ref[...].astype(jnp.float32)                      # (1, 1024)
    s = jnp.sum(a1 * w2_row, axis=1, keepdims=True) + b2_ref[...]  # (2B, 1)

    s_j = s[:b]                         # (B, 1)  T_joint          (8-row slice, tile aligned)
    t_marg_exp = jnp.exp(s[b:])         # (B, 1)  exp(T_marginal)

    mean_tj = jnp.sum(s_j, axis=0, keepdims=True) / b             # (1, 1)
    mean_tm = jnp.sum(t_marg_exp, axis=0, keepdims=True) / b      # (1, 1)

    # avg_et = 0.99 * 1.0 + 0.01 * mean(exp(T_marginal))  (reset every forward,
    # exactly as the reference module does).
    avg_et = 0.99 + 0.01 * mean_tm
    mine = mean_tj - (mean_tm / avg_et) * jnp.log(mean_tm)
    loss = -1.0 * mine                                            # (1, 1)
    loss_ref[0, 0] = loss[0, 0]


def kl_loss(text, image, text_prime, params):
    w0_img, w0_txt, b0, w1, b1, w2_row, b2 = params

    vmem = pl.BlockSpec(memory_space=pltpu.MemorySpace.VMEM)
    hbm = pl.BlockSpec(memory_space=pl.ANY)      # w1: manual, overlapped DMA
    smem = pl.BlockSpec(memory_space=pltpu.MemorySpace.SMEM)

    loss = pl.pallas_call(
        kl_loss_kernel,
        out_shape=jax.ShapeDtypeStruct((1, 1), jnp.float32),
        in_specs=[vmem, vmem, vmem,    # text, image, text_prime
                  vmem, vmem, vmem,    # w0_img, w0_txt, b0
                  hbm, vmem,           # w1 (stays in HBM), b1
                  vmem, vmem],         # w2_row, b2
        out_specs=smem,
        scratch_shapes=[pltpu.VMEM((D_HID, D_HID), jnp.bfloat16),
                        pltpu.SemaphoreType.DMA(())],
        compiler_params=pltpu.CompilerParams(vmem_limit_bytes=16 << 20),
    )(text.astype(jnp.float32), image.astype(jnp.float32),
      text_prime.astype(jnp.float32),
      w0_img, w0_txt, b0, w1, b1, w2_row, b2)
    return loss[0, 0]


def init_params(key):
    # Deterministic init mimicking nn.Linear: U(-1/sqrt(fan_in), 1/sqrt(fan_in)).
    # Weights stored as (in_features, out_features) so kernel computes x @ W + b.
    ks = jax.random.split(key, 6)

    def lin(kw, kb, fan_in, fan_out):
        bound = 1.0 / float(fan_in) ** 0.5
        w = jax.random.uniform(kw, (fan_in, fan_out), jnp.float32, -bound, bound)
        b = jax.random.uniform(kb, (1, fan_out), jnp.float32, -bound, bound)
        return w, b

    w0, b0 = lin(ks[0], ks[1], 2 * D_IN, D_HID)   # Linear(2048, 1024)
    w1, b1 = lin(ks[2], ks[3], D_HID, D_HID)      # Linear(1024, 1024)
    w2, b2 = lin(ks[4], ks[5], D_HID, 1)          # Linear(1024, 1)

    # Split w0 by the cat(Image, Text) order: rows [:1024] hit Image,
    # rows [1024:] hit Text / Text_prime. Weights go to bf16; biases stay f32.
    w0_img = w0[:D_IN].astype(jnp.bfloat16)       # (1024, 1024)
    w0_txt = w0[D_IN:].astype(jnp.bfloat16)       # (1024, 1024)
    w1_bf = w1.astype(jnp.bfloat16)               # (1024, 1024)
    w2_row = w2.T.astype(jnp.bfloat16)            # (1, 1024) lane-dense row
    return w0_img, w0_txt, b0, w1_bf, b1, w2_row, b2


if __name__ == "__main__":
    key = jax.random.PRNGKey(0)
    k_p, k_t, k_i, k_tp = jax.random.split(key, 4)
    B = 8

    params = init_params(k_p)
    text = jax.random.normal(k_t, (B, D_IN), jnp.float32)
    image = jax.random.normal(k_i, (B, D_IN), jnp.float32)
    text_prime = jax.random.normal(k_tp, (B, D_IN), jnp.float32)

    loss = jax.jit(kl_loss)(text, image, text_prime, params)
    jax.block_until_ready(loss)
    print("KERNEL_OK")
</pallas_src>

<mosaic_0001>
module attributes {stable_mosaic.version = 11 : i64} {
  func.func @kl_loss_kernel(%arg0: memref<8x1024xf32, #tpu.memory_space<vmem>>, %arg1: memref<8x1024xf32, #tpu.memory_space<vmem>>, %arg2: memref<8x1024xf32, #tpu.memory_space<vmem>>, %arg3: memref<1024x1024xbf16, #tpu.memory_space<vmem>>, %arg4: memref<1024x1024xbf16, #tpu.memory_space<vmem>>, %arg5: memref<1x1024xf32, #tpu.memory_space<vmem>>, %arg6: memref<1024x1024xbf16, #tpu.memory_space<any>>, %arg7: memref<1x1024xf32, #tpu.memory_space<vmem>>, %arg8: memref<1x1024xbf16, #tpu.memory_space<vmem>>, %arg9: memref<1x1xf32, #tpu.memory_space<vmem>>, %arg10: memref<1x1xf32, #tpu.memory_space<smem>>, %arg11: memref<1024x1024xbf16, #tpu.memory_space<vmem>>, %arg12: memref<!tpu.dma_semaphore, #tpu.memory_space<semaphore_mem>>) attributes {dimension_semantics = [], scalar_prefetch = 0 : i64, scratch_operands = 2 : i64, tpu.core_type = #tpu.core_type<tc>} {
    tpu.enqueue_dma source(%arg6 : memref<1024x1024xbf16, #tpu.memory_space<any>>) target(%arg11 : memref<1024x1024xbf16, #tpu.memory_space<vmem>>) target_semaphore(%arg12 : memref<!tpu.dma_semaphore, #tpu.memory_space<semaphore_mem>>)
    %c0 = arith.constant 0 : index
    %c0_0 = arith.constant 0 : index
    %0 = vector.load %arg0[%c0, %c0_0] : memref<8x1024xf32, #tpu.memory_space<vmem>>, vector<8x1024xf32>
    %c0_1 = arith.constant 0 : index
    %c0_2 = arith.constant 0 : index
    %1 = vector.load %arg2[%c0_1, %c0_2] : memref<8x1024xf32, #tpu.memory_space<vmem>>, vector<8x1024xf32>
    %2 = tpu.concatenate %0, %1 in 0 : vector<8x1024xf32>, vector<8x1024xf32> -> vector<16x1024xf32>
    %3 = arith.truncf %2 : vector<16x1024xf32> to vector<16x1024xbf16>
    %c0_3 = arith.constant 0 : index
    %c0_4 = arith.constant 0 : index
    %4 = vector.load %arg1[%c0_3, %c0_4] : memref<8x1024xf32, #tpu.memory_space<vmem>>, vector<8x1024xf32>
    %5 = arith.truncf %4 : vector<8x1024xf32> to vector<8x1024xbf16>
    %c0_5 = arith.constant 0 : index
    %c0_6 = arith.constant 0 : index
    %6 = vector.load %arg3[%c0_5, %c0_6] : memref<1024x1024xbf16, #tpu.memory_space<vmem>>, vector<1024x1024xbf16>
    %cst = arith.constant dense<0.000000e+00> : vector<8x1024xf32>
    %7 = tpu.matmul %5, %6, %cst {dimension_numbers = #tpu.dot_dimension_numbers<[1], [0], [0], [1], [0, 0, 1, 1], [], []>} : vector<8x1024xbf16>, vector<1024x1024xbf16>, vector<8x1024xf32> -> vector<8x1024xf32>
    %8 = tpu.concatenate %7, %7 in 0 : vector<8x1024xf32>, vector<8x1024xf32> -> vector<16x1024xf32>
    %c0_7 = arith.constant 0 : index
    %c0_8 = arith.constant 0 : index
    %9 = vector.load %arg4[%c0_7, %c0_8] : memref<1024x1024xbf16, #tpu.memory_space<vmem>>, vector<1024x1024xbf16>
    %cst_9 = arith.constant dense<0.000000e+00> : vector<16x1024xf32>
    %10 = tpu.matmul %3, %9, %cst_9 {dimension_numbers = #tpu.dot_dimension_numbers<[1], [0], [0], [1], [0, 0, 1, 1], [], []>} : vector<16x1024xbf16>, vector<1024x1024xbf16>, vector<16x1024xf32> -> vector<16x1024xf32>
    %11 = arith.addf %8, %10 : vector<16x1024xf32>
    %c0_10 = arith.constant 0 : index
    %c0_11 = arith.constant 0 : index
    %12 = vector.load %arg5[%c0_10, %c0_11] : memref<1x1024xf32, #tpu.memory_space<vmem>>, vector<1x1024xf32>
    %13 = vector.broadcast %12 : vector<1x1024xf32> to vector<16x1024xf32>
    %14 = arith.addf %11, %13 : vector<16x1024xf32>
    %cst_12 = arith.constant 0.000000e+00 : f32
    %15 = vector.broadcast %cst_12 : f32 to vector<16x1024xf32>
    %16 = arith.cmpf ogt, %14, %15 : vector<16x1024xf32>
    %cst_13 = arith.constant 0.000000e+00 : f32
    %17 = vector.broadcast %cst_13 : f32 to vector<16x1024xf32>
    %18 = arith.minimumf %14, %17 : vector<16x1024xf32>
    %19 = math.exp %18 : vector<16x1024xf32>
    %cst_14 = arith.constant 1.000000e+00 : f32
    %20 = vector.broadcast %cst_14 : f32 to vector<16x1024xf32>
    %21 = arith.subf %19, %20 : vector<16x1024xf32>
    %22 = arith.select %16, %14, %21 : vector<16x1024xi1>, vector<16x1024xf32>
    tpu.wait_dma2 semaphore(%arg12 : memref<!tpu.dma_semaphore, #tpu.memory_space<semaphore_mem>>) src(%arg6 : memref<1024x1024xbf16, #tpu.memory_space<any>>) dst(%arg11 : memref<1024x1024xbf16, #tpu.memory_space<vmem>>)
    %23 = arith.truncf %22 : vector<16x1024xf32> to vector<16x1024xbf16>
    %c0_15 = arith.constant 0 : index
    %c0_16 = arith.constant 0 : index
    %24 = vector.load %arg11[%c0_15, %c0_16] : memref<1024x1024xbf16, #tpu.memory_space<vmem>>, vector<1024x1024xbf16>
    %cst_17 = arith.constant dense<0.000000e+00> : vector<16x1024xf32>
    %25 = tpu.matmul %23, %24, %cst_17 {dimension_numbers = #tpu.dot_dimension_numbers<[1], [0], [0], [1], [0, 0, 1, 1], [], []>} : vector<16x1024xbf16>, vector<1024x1024xbf16>, vector<16x1024xf32> -> vector<16x1024xf32>
    %c0_18 = arith.constant 0 : index
    %c0_19 = arith.constant 0 : index
    %26 = vector.load %arg7[%c0_18, %c0_19] : memref<1x1024xf32, #tpu.memory_space<vmem>>, vector<1x1024xf32>
    %27 = vector.broadcast %26 : vector<1x1024xf32> to vector<16x1024xf32>
    %28 = arith.addf %25, %27 : vector<16x1024xf32>
    %cst_20 = arith.constant 0.000000e+00 : f32
    %29 = vector.broadcast %cst_20 : f32 to vector<16x1024xf32>
    %30 = arith.cmpf ogt, %28, %29 : vector<16x1024xf32>
    %cst_21 = arith.constant 0.000000e+00 : f32
    %31 = vector.broadcast %cst_21 : f32 to vector<16x1024xf32>
    %32 = arith.minimumf %28, %31 : vector<16x1024xf32>
    %33 = math.exp %32 : vector<16x1024xf32>
    %cst_22 = arith.constant 1.000000e+00 : f32
    %34 = vector.broadcast %cst_22 : f32 to vector<16x1024xf32>
    %35 = arith.subf %33, %34 : vector<16x1024xf32>
    %36 = arith.select %30, %28, %35 : vector<16x1024xi1>, vector<16x1024xf32>
    %c0_23 = arith.constant 0 : index
    %c0_24 = arith.constant 0 : index
    %37 = vector.load %arg8[%c0_23, %c0_24] : memref<1x1024xbf16, #tpu.memory_space<vmem>>, vector<1x1024xbf16>
    %38 = arith.extf %37 : vector<1x1024xbf16> to vector<1x1024xf32>
    %39 = vector.broadcast %38 : vector<1x1024xf32> to vector<16x1024xf32>
    %40 = arith.mulf %36, %39 : vector<16x1024xf32>
    %cst_25 = arith.constant dense<0.000000e+00> : vector<16xf32>
    %41 = vector.multi_reduction <add>, %40, %cst_25 [1] : vector<16x1024xf32> to vector<16xf32>
    %42 = vector.shape_cast %41 : vector<16xf32> to vector<16x1xf32>
    %c0_26 = arith.constant 0 : index
    %c0_27 = arith.constant 0 : index
    %43 = vector.load %arg9[%c0_26, %c0_27] : memref<1x1xf32, #tpu.memory_space<vmem>>, vector<1x1xf32>
    %44 = vector.broadcast %43 : vector<1x1xf32> to vector<16x1xf32>
    %45 = arith.addf %42, %44 : vector<16x1xf32>
    %46 = vector.extract_strided_slice %45 {offsets = [0, 0], sizes = [8, 1], strides = [1, 1]} : vector<16x1xf32> to vector<8x1xf32>
    %47 = vector.extract_strided_slice %45 {offsets = [8, 0], sizes = [8, 1], strides = [1, 1]} : vector<16x1xf32> to vector<8x1xf32>
    %48 = math.exp %47 : vector<8x1xf32>
    %cst_28 = arith.constant dense<0.000000e+00> : vector<1xf32>
    %49 = vector.multi_reduction <add>, %46, %cst_28 [0] : vector<8x1xf32> to vector<1xf32>
    %50 = vector.shape_cast %49 : vector<1xf32> to vector<1x1xf32>
    %cst_29 = arith.constant 8.000000e+00 : f32
    %51 = vector.broadcast %cst_29 : f32 to vector<1x1xf32>
    %52 = arith.divf %50, %51 : vector<1x1xf32>
    %cst_30 = arith.constant dense<0.000000e+00> : vector<1xf32>
    %53 = vector.multi_reduction <add>, %48, %cst_30 [0] : vector<8x1xf32> to vector<1xf32>
    %54 = vector.shape_cast %53 : vector<1xf32> to vector<1x1xf32>
    %cst_31 = arith.constant 8.000000e+00 : f32
    %55 = vector.broadcast %cst_31 : f32 to vector<1x1xf32>
    %56 = arith.divf %54, %55 : vector<1x1xf32>
    %cst_32 = arith.constant 0.00999999977 : f32
    %57 = vector.broadcast %cst_32 : f32 to vector<1x1xf32>
    %58 = arith.mulf %57, %56 : vector<1x1xf32>
    %cst_33 = arith.constant 9.900000e-01 : f32
    %59 = vector.broadcast %cst_33 : f32 to vector<1x1xf32>
    %60 = arith.addf %59, %58 : vector<1x1xf32>
    %61 = arith.divf %56, %60 : vector<1x1xf32>
    %62 = math.log %56 : vector<1x1xf32>
    %63 = arith.mulf %61, %62 : vector<1x1xf32>
    %64 = arith.subf %52, %63 : vector<1x1xf32>
    %cst_34 = arith.constant -1.000000e+00 : f32
    %65 = vector.broadcast %cst_34 : f32 to vector<1x1xf32>
    %66 = arith.mulf %65, %64 : vector<1x1xf32>
    %67 = vector.extract %66[0, 0] : f32 from vector<1x1xf32>
    %c0_35 = arith.constant 0 : index
    %c0_36 = arith.constant 0 : index
    %68 = memref.load %arg10[%c0_35, %c0_36] : memref<1x1xf32, #tpu.memory_space<smem>>
    memref.store %67, %arg10[%c0_35, %c0_36] : memref<1x1xf32, #tpu.memory_space<smem>>
    return
  }
}

</mosaic_0001>

<llo_original>
// kernel: kl_loss.1
$region0: #{kl_loss.1}
  #allocation0 [shape = 'u32[]', space=smem, size = 0x4, offset = 0x4, fixed_abs, tag = 'smem constant byte address 0x4 - core index']
  #allocation1 [shape = 'u32[72,128]{1,0:T(1,128)}', space=vmem, size = 0x9000, scoped, tag = 'internal scratch']
  #allocation2 [shape = 'bf16[1024,1024]{1,0:T(8,128)(2,1)}', space=vmem, size = 0x200000, scoped, tag = 'scratch operand']
  #allocation3 [shape = 's32[1]{0}', space=sflag, size = 0x4, scoped, tag = 'scratch operand']
  #allocation4 [shape = 'f32[1,1]{1,0:T(1,128)S(1)}', space=vmem, size = 0x200, scoped, tag = 'scoped memory for kl_loss.1']
  #allocation20 [shape = 's32[]', space=sflag, size = 0x4, offset = 0, fixed_abs, tag = 'sflag constant byte address 0x0 - dummy sync flag']
  #allocation21 [shape = 's32[]', space=sflag, size = 0x4, offset = 0, fixed_abs, tag = 'sflag constant byte address 0x0 - dummy sync flag']
  #allocation22 [shape = 'u32[]', space=smem, size = 0x4, offset = 0x44, fixed_abs, tag = 'smem constant byte address 0x44 - assertion arg 0']
  #allocation23 [shape = 'u32[]', space=smem, size = 0x4, offset = 0x48, fixed_abs, tag = 'smem constant byte address 0x48 - assertion arg 1']
  %s0 = inlined_call_operand.hbm [shape: f32[8,1024], index: 0, kind: input, shape index: {}]
  %s1 = inlined_call_operand.hbm [shape: f32[8,1024], index: 1, kind: input, shape index: {}]
  %s2 = inlined_call_operand.hbm [shape: f32[8,1024], index: 2, kind: input, shape index: {}]
  %s3 = inlined_call_operand.hbm [shape: bf16[1024,1024], index: 3, kind: input, shape index: {}]
  %s4 = inlined_call_operand.hbm [shape: bf16[1024,1024], index: 4, kind: input, shape index: {}]
  %s5 = inlined_call_operand.hbm [shape: f32[1,1024], index: 5, kind: input, shape index: {}]
  %s6 = inlined_call_operand.hbm [shape: bf16[1024,1024], index: 6, kind: input, shape index: {}]
  %s7 = inlined_call_operand.hbm [shape: f32[1,1024], index: 7, kind: input, shape index: {}]
  %s8 = inlined_call_operand.hbm [shape: bf16[1,1024], index: 8, kind: input, shape index: {}]
  %s9 = inlined_call_operand.<no memory space> [shape: f32[1,1], index: 9, kind: input, shape index: {}]
  %s10 = inlined_call_operand.hbm [shape: f32[1,1], index: 10, kind: output, shape index: {}]
  %s11 = sld [smem:[#allocation0]]
  $region82: #{kl_loss.1} parent=0
    _
  %s13 = ssub.s32 1, %s11
  %s14 = scalar_select 0, %s13, %s11
  %v15 = vstv %s9
  %16 = vst [vmem:[#allocation4] sm:$0x1] %v15
  $region1: #{kl_loss.1} parent=0
    #allocation5 [shape = 'u8[32768]{0}', space=vmem, size = 0x8000, scoped, tag = 'input window, operand 0, single buffered']
    #allocation6 [shape = 's32[1]{0}', space=sflag, size = 0x4, scoped, tag = 'scoped memory for kl_loss.1']
    #allocation7 [shape = 's32[1]{0}', space=sflag, size = 0x4, scoped, tag = 'scoped memory for kl_loss.1']
    #allocation8 [shape = 'u8[32768]{0}', space=vmem, size = 0x8000, scoped, tag = 'input window, operand 1, single buffered']
    #allocation9 [shape = 's32[1]{0}', space=sflag, size = 0x4, scoped, tag = 'scoped memory for kl_loss.1']
    #allocation10 [shape = 'u8[32768]{0}', space=vmem, size = 0x8000, scoped, tag = 'input window, operand 2, single buffered']
    #allocation11 [shape = 'u8[2097152]{0}', space=vmem, size = 0x200000, scoped, tag = 'input window, operand 3, single buffered']
    #allocation12 [shape = 's32[1]{0}', space=sflag, size = 0x4, scoped, tag = 'scoped memory for kl_loss.1']
    #allocation13 [shape = 'u8[2097152]{0}', space=vmem, size = 0x200000, scoped, tag = 'input window, operand 4, single buffered']
    #allocation14 [shape = 'u8[4096]{0}', space=vmem, size = 0x1000, scoped, tag = 'input window, operand 5, single buffered']
    #allocation15 [shape = 's32[1]{0}', space=sflag, size = 0x4, scoped, tag = 'scoped memory for kl_loss.1']
    #allocation16 [shape = 'u8[4096]{0}', space=vmem, size = 0x1000, scoped, tag = 'input window, operand 7, single buffered']
    #allocation17 [shape = 'u8[4096]{0}', space=vmem, size = 0x1000, scoped, tag = 'input window, operand 8, single buffered']
    #allocation18 [shape = 's32[1]{0}', space=sflag, size = 0x4, scoped, tag = 'scoped memory for kl_loss.1']
    #allocation19 [shape = 'u8[512]{0}', space=smem, size = 0x200, scoped, tag = 'output window, operand 0, single buffered']
    %17 = vsyncpa [#allocation6], 0
    %18 = vsyncpa [#allocation9], 0
    %19 = vsyncpa [#allocation12], 0
    %20 = vsyncpa [#allocation15], 0
    %21 = vsyncpa [#allocation18], 0
    %22 = vsyncpa [#allocation7], 0
    // Predicated region
    $region2: #{kl_loss.1} parent=1 // pred_check
      _
    $region3: #{kl_loss.1} parent=1 // pred_check_branch
      %24 = sbr.rel (0) target = $region5
    $region4: #{kl_loss.1} parent=1 // pred_region
      %26 = vsyncadd [#allocation6], 0
      %s28 = sshll.u32 %s0, 4
      %s29 = int_to_ptr.hbm [resolvable:$true] %s28
      %s30 = sshll.u32 [#allocation5], 4
      %s31 = int_to_ptr.vmem [resolvable:$true] %s30
      %33 = dma.hbm_to_vmem [thread:$0]  %s29, 1024, %s31, [#allocation6]
    $region5: #{kl_loss.1} parent=1 // pred_fallthru
      _
    // Predicated region
    $region6: #{kl_loss.1} parent=1 // pred_check
      _
    $region7: #{kl_loss.1} parent=1 // pred_check_branch
      %35 = sbr.rel (0) target = $region9
    $region8: #{kl_loss.1} parent=1 // pred_region
      %37 = vsyncadd [#allocation9], 0
      %s39 = sshll.u32 %s1, 4
      %s40 = int_to_ptr.hbm [resolvable:$true] %s39
      %s41 = sshll.u32 [#allocation8], 4
      %s42 = int_to_ptr.vmem [resolvable:$true] %s41
      %44 = dma.hbm_to_vmem [thread:$0]  %s40, 1024, %s42, [#allocation9]
    $region9: #{kl_loss.1} parent=1 // pred_fallthru
      _
    // Predicated region
    $region10: #{kl_loss.1} parent=1 // pred_check
      _
    $region11: #{kl_loss.1} parent=1 // pred_check_branch
      %46 = sbr.rel (0) target = $region13
    $region12: #{kl_loss.1} parent=1 // pred_region
      %48 = vsyncadd [#allocation9], 0
      %s50 = sshll.u32 %s2, 4
      %s51 = int_to_ptr.hbm [resolvable:$true] %s50
      %s52 = sshll.u32 [#allocation10], 4
      %s53 = int_to_ptr.vmem [resolvable:$true] %s52
      %55 = dma.hbm_to_vmem [thread:$0]  %s51, 1024, %s53, [#allocation9]
    $region13: #{kl_loss.1} parent=1 // pred_fallthru
      _
    // Predicated region
    $region14: #{kl_loss.1} parent=1 // pred_check
      _
    $region15: #{kl_loss.1} parent=1 // pred_check_branch
      %57 = sbr.rel (0) target = $region17
    $region16: #{kl_loss.1} parent=1 // pred_region
      %59 = vsyncadd [#allocation12], 0
      %s60 = sshll.u32 %s3, 4
      %s61 = int_to_ptr.hbm [resolvable:$true] %s60
      %s62 = sshll.u32 [#allocation11], 4
      %s63 = int_to_ptr.vmem [resolvable:$true] %s62
      %68 = dma.hbm_to_vmem [thread:$0]  %s61, 65536, %s63, [#allocation12], 512, 512, 32
    $region17: #{kl_loss.1} parent=1 // pred_fallthru
      _
    // Predicated region
    $region18: #{kl_loss.1} parent=1 // pred_check
      _
    $region19: #{kl_loss.1} parent=1 // pred_check_branch
      %70 = sbr.rel (0) target = $region21
    $region20: #{kl_loss.1} parent=1 // pred_region
      %72 = vsyncadd [#allocation12], 0
      %s73 = sshll.u32 %s4, 4
      %s74 = int_to_ptr.hbm [resolvable:$true] %s73
      %s75 = sshll.u32 [#allocation13], 4
      %s76 = int_to_ptr.vmem [resolvable:$true] %s75
      %81 = dma.hbm_to_vmem [thread:$0]  %s74, 65536, %s76, [#allocation12], 512, 512, 32
    $region21: #{kl_loss.1} parent=1 // pred_fallthru
      _
    // Predicated region
    $region22: #{kl_loss.1} parent=1 // pred_check
      _
    $region23: #{kl_loss.1} parent=1 // pred_check_branch
      %83 = sbr.rel (0) target = $region25
    $region24: #{kl_loss.1} parent=1 // pred_region
      %85 = vsyncadd [#allocation15], 0
      %s87 = sshll.u32 %s5, 4
      %s88 = int_to_ptr.hbm [resolvable:$true] %s87
      %s89 = sshll.u32 [#allocation14], 4
      %s90 = int_to_ptr.vmem [resolvable:$true] %s89
      %92 = dma.hbm_to_vmem [thread:$0]  %s88, 128, %s90, [#allocation15]
    $region25: #{kl_loss.1} parent=1 // pred_fallthru
      _
    // Predicated region
    $region26: #{kl_loss.1} parent=1 // pred_check
      _
    $region27: #{kl_loss.1} parent=1 // pred_check_branch
      %94 = sbr.rel (0) target = $region29
    $region28: #{kl_loss.1} parent=1 // pred_region
      %96 = vsyncadd [#allocation15], 0
      %s98 = sshll.u32 %s7, 4
      %s99 = int_to_ptr.hbm [resolvable:$true] %s98
      %s100 = sshll.u32 [#allocation16], 4
      %s101 = int_to_ptr.vmem [resolvable:$true] %s100
      %103 = dma.hbm_to_vmem [thread:$0]  %s99, 128, %s101, [#allocation15]
    $region29: #{kl_loss.1} parent=1 // pred_fallthru
      _
    // Predicated region
    $region30: #{kl_loss.1} parent=1 // pred_check
      _
    $region31: #{kl_loss.1} parent=1 // pred_check_branch
      %105 = sbr.rel (0) target = $region33
    $region32: #{kl_loss.1} parent=1 // pred_region
      %107 = vsyncadd [#allocation18], 0
      %s109 = sshll.u32 %s8, 4
      %s110 = int_to_ptr.hbm [resolvable:$true] %s109
      %s111 = sshll.u32 [#allocation17], 4
      %s112 = int_to_ptr.vmem [resolvable:$true] %s111
      %114 = dma.hbm_to_vmem [thread:$0]  %s110, 128, %s112, [#allocation18]
    $region33: #{kl_loss.1} parent=1 // pred_fallthru
      _
    // Predicated region
    $region34: #{kl_loss.1} parent=1 // pred_check
      _
    $region35: #{kl_loss.1} parent=1 // pred_check_branch
      %116 = sbr.rel (0) target = $region37
    $region36: #{kl_loss.1} parent=1 // pred_region
      _
    $region37: #{kl_loss.1} parent=1 // pred_fallthru
      _
    // Predicated region
    $region38: #{kl_loss.1} parent=1 // pred_check
      _
    $region39: #{kl_loss.1} parent=1 // pred_check_branch
      %118 = sbr.rel (0) target = $region41
    $region40: #{kl_loss.1} parent=1 // pred_region
      %120 = dma.done [#allocation6], 1024
    $region41: #{kl_loss.1} parent=1 // pred_fallthru
      _
    // Predicated region
    $region42: #{kl_loss.1} parent=1 // pred_check
      _
    $region43: #{kl_loss.1} parent=1 // pred_check_branch
      %122 = sbr.rel (0) target = $region45
    $region44: #{kl_loss.1} parent=1 // pred_region
      %124 = dma.done [#allocation9], 1024
    $region45: #{kl_loss.1} parent=1 // pred_fallthru
      _
    // Predicated region
    $region46: #{kl_loss.1} parent=1 // pred_check
      _
    $region47: #{kl_loss.1} parent=1 // pred_check_branch
      %126 = sbr.rel (0) target = $region49
    $region48: #{kl_loss.1} parent=1 // pred_region
      %128 = dma.done [#allocation9], 1024
    $region49: #{kl_loss.1} parent=1 // pred_fallthru
      _
    // Predicated region
    $region50: #{kl_loss.1} parent=1 // pred_check
      _
    $region51: #{kl_loss.1} parent=1 // pred_check_branch
      %130 = sbr.rel (0) target = $region53
    $region52: #{kl_loss.1} parent=1 // pred_region
      %132 = dma.done [#allocation12], 65536
    $region53: #{kl_loss.1} parent=1 // pred_fallthru
      _
    // Predicated region
    $region54: #{kl_loss.1} parent=1 // pred_check
      _
    $region55: #{kl_loss.1} parent=1 // pred_check_branch
      %134 = sbr.rel (0) target = $region57
    $region56: #{kl_loss.1} parent=1 // pred_region
      %136 = dma.done [#allocation12], 65536
    $region57: #{kl_loss.1} parent=1 // pred_fallthru
      _
    // Predicated region
    $region58: #{kl_loss.1} parent=1 // pred_check
      _
    $region59: #{kl_loss.1} parent=1 // pred_check_branch
      %138 = sbr.rel (0) target = $region61
    $region60: #{kl_loss.1} parent=1 // pred_region
      %140 = dma.done [#allocation15], 128
    $region61: #{kl_loss.1} parent=1 // pred_fallthru
      _
    // Predicated region
    $region62: #{kl_loss.1} parent=1 // pred_check
      _
    $region63: #{kl_loss.1} parent=1 // pred_check_branch
      %142 = sbr.rel (0) target = $region65
    $region64: #{kl_loss.1} parent=1 // pred_region
      %144 = dma.done [#allocation15], 128
    $region65: #{kl_loss.1} parent=1 // pred_fallthru
      _
    // Predicated region
    $region66: #{kl_loss.1} parent=1 // pred_check
      _
    $region67: #{kl_loss.1} parent=1 // pred_check_branch
      %146 = sbr.rel (0) target = $region69
    $region68: #{kl_loss.1} parent=1 // pred_region
      %148 = dma.done [#allocation18], 128
    $region69: #{kl_loss.1} parent=1 // pred_fallthru
      _
    // Predicated region
    $region70: #{kl_loss.1} parent=1 // pred_check
      _
    $region71: #{kl_loss.1} parent=1 // pred_check_branch
      %150 = sbr.rel target = $region73
    $region72: #{kl_loss.1} parent=1 // pred_region
      %151 = sst [smem:[#allocation22]] [#allocation21]
      %152 = sst [smem:[#allocation23]] [#allocation20]
    $region73: #{kl_loss.1} parent=1 // pred_fallthru
      _
    %154 = shalt.err (0)
    %s156 = sshll.u32 %s6, 4
    %s157 = int_to_ptr.hbm [resolvable:$true] %s156
    %s158 = sshll.u32 [#allocation2], 4
    %s159 = int_to_ptr.vmem [resolvable:$true] %s158
    %161 = dma.hbm_to_vmem [thread:$0]  %s157, 65536, %s159, [#allocation3]
    %v162 = vld [vmem:[#allocation5] sm:$0xff]
    %v163 = vld [vmem:[#allocation5 + $0x8] sm:$0xff]
    %v164 = vld [vmem:[#allocation5 + $0x10] sm:$0xff]
    %v165 = vld [vmem:[#allocation5 + $0x18] sm:$0xff]
    %v166 = vld [vmem:[#allocation5 + $0x20] sm:$0xff]
    %v167 = vld [vmem:[#allocation5 + $0x28] sm:$0xff]
    %v168 = vld [vmem:[#allocation5 + $0x30] sm:$0xff]
    %v169 = vld [vmem:[#allocation5 + $0x38] sm:$0xff]
    %v170 = vld [vmem:[#allocation10] sm:$0xff]
    %v171 = vld [vmem:[#allocation10 + $0x8] sm:$0xff]
    %v172 = vld [vmem:[#allocation10 + $0x10] sm:$0xff]
    %v173 = vld [vmem:[#allocation10 + $0x18] sm:$0xff]
    %v174 = vld [vmem:[#allocation10 + $0x20] sm:$0xff]
    %v175 = vld [vmem:[#allocation10 + $0x28] sm:$0xff]
    %v176 = vld [vmem:[#allocation10 + $0x30] sm:$0xff]
    %v177 = vld [vmem:[#allocation10 + $0x38] sm:$0xff]
    %v178 = vpack.c.bf16 %v170, %v162
    %v179 = vpack.c.bf16 %v171, %v163
    %v180 = vpack.c.bf16 %v172, %v164
    %v181 = vpack.c.bf16 %v173, %v165
    %v182 = vpack.c.bf16 %v174, %v166
    %v183 = vpack.c.bf16 %v175, %v167
    %v184 = vpack.c.bf16 %v176, %v168
    %v185 = vpack.c.bf16 %v177, %v169
    %v186 = vld [vmem:[#allocation8] sm:$0xff]
    %v187 = vld [vmem:[#allocation8 + $0x8] sm:$0xff]
    %v188 = vld [vmem:[#allocation8 + $0x10] sm:$0xff]
    %v189 = vld [vmem:[#allocation8 + $0x18] sm:$0xff]
    %v190 = vld [vmem:[#allocation8 + $0x20] sm:$0xff]
    %v191 = vld [vmem:[#allocation8 + $0x28] sm:$0xff]
    %v192 = vld [vmem:[#allocation8 + $0x30] sm:$0xff]
    %v193 = vld [vmem:[#allocation8 + $0x38] sm:$0xff]
    %v194 = vpack.c.bf16 %v186, %v186
    %v195 = vpack.c.bf16 %v187, %v187
    %v196 = vpack.c.bf16 %v188, %v188
    %v197 = vpack.c.bf16 %v189, %v189
    %v198 = vpack.c.bf16 %v190, %v190
    %v199 = vpack.c.bf16 %v191, %v191
    %v200 = vpack.c.bf16 %v192, %v192
    %v201 = vpack.c.bf16 %v193, %v193
    %v202 = vld [vmem:[#allocation11] sm:$0xff]
    %v203 = vld [vmem:[#allocation11 + $0x8] sm:$0xff]
    %v204 = vld [vmem:[#allocation11 + $0x10] sm:$0xff]
    %v205 = vld [vmem:[#allocation11 + $0x18] sm:$0xff]
    %v206 = vld [vmem:[#allocation11 + $0x20] sm:$0xff]
    %v207 = vld [vmem:[#allocation11 + $0x28] sm:$0xff]
    %v208 = vld [vmem:[#allocation11 + $0x30] sm:$0xff]
    %v209 = vld [vmem:[#allocation11 + $0x38] sm:$0xff]
    %v210 = vld [vmem:[#allocation11 + $0x40] sm:$0xff]
    %v211 = vld [vmem:[#allocation11 + $0x48] sm:$0xff]
    %v212 = vld [vmem:[#allocation11 + $0x50] sm:$0xff]
    %v213 = vld [vmem:[#allocation11 + $0x58] sm:$0xff]
    %v214 = vld [vmem:[#allocation11 + $0x60] sm:$0xff]
    %v215 = vld [vmem:[#allocation11 + $0x68] sm:$0xff]
    %v216 = vld [vmem:[#allocation11 + $0x70] sm:$0xff]
    %v217 = vld [vmem:[#allocation11 + $0x78] sm:$0xff]
    %v218 = vld [vmem:[#allocation11 + $0x80] sm:$0xff]
    %v219 = vld [vmem:[#allocation11 + $0x88] sm:$0xff]
    %v220 = vld [vmem:[#allocation11 + $0x90] sm:$0xff]
    %v221 = vld [vmem:[#allocation11 + $0x98] sm:$0xff]
    %v222 = vld [vmem:[#allocation11 + $0xa0] sm:$0xff]
    %v223 = vld [vmem:[#allocation11 + $0xa8] sm:$0xff]
    %v224 = vld [vmem:[#allocation11 + $0xb0] sm:$0xff]
    %v225 = vld [vmem:[#allocation11 + $0xb8] sm:$0xff]
    %v226 = vld [vmem:[#allocation11 + $0xc0] sm:$0xff]
    %v227 = vld [vmem:[#allocation11 + $0xc8] sm:$0xff]
    %v228 = vld [vmem:[#allocation11 + $0xd0] sm:$0xff]
    %v229 = vld [vmem:[#allocation11 + $0xd8] sm:$0xff]
    %v230 = vld [vmem:[#allocation11 + $0xe0] sm:$0xff]
    %v231 = vld [vmem:[#allocation11 + $0xe8] sm:$0xff]
    %v232 = vld [vmem:[#allocation11 + $0xf0] sm:$0xff]
    %v233 = vld [vmem:[#allocation11 + $0xf8] sm:$0xff]
    %v234 = vld [vmem:[#allocation11 + $0x100] sm:$0xff]
    %v235 = vld [vmem:[#allocation11 + $0x108] sm:$0xff]
    %v236 = vld [vmem:[#allocation11 + $0x110] sm:$0xff]
    %v237 = vld [vmem:[#allocation11 + $0x118] sm:$0xff]
    %v238 = vld [vmem:[#allocation11 + $0x120] sm:$0xff]
    %v239 = vld [vmem:[#allocation11 + $0x128] sm:$0xff]
    %v240 = vld [vmem:[#allocation11 + $0x130] sm:$0xff]
    %v241 = vld [vmem:[#allocation11 + $0x138] sm:$0xff]
    %v242 = vld [vmem:[#allocation11 + $0x140] sm:$0xff]
    %v243 = vld [vmem:[#allocation11 + $0x148] sm:$0xff]
    %v244 = vld [vmem:[#allocation11 + $0x150] sm:$0xff]
    %v245 = vld [vmem:[#allocation11 + $0x158] sm:$0xff]
    %v246 = vld [vmem:[#allocation11 + $0x160] sm:$0xff]
    %v247 = vld [vmem:[#allocation11 + $0x168] sm:$0xff]
    %v248 = vld [vmem:[#allocation11 + $0x170] sm:$0xff]
    %v249 = vld [vmem:[#allocation11 + $0x178] sm:$0xff]
    %v250 = vld [vmem:[#allocation11 + $0x180] sm:$0xff]
    %v251 = vld [vmem:[#allocation11 + $0x188] sm:$0xff]
    %v252 = vld [vmem:[#allocation11 + $0x190] sm:$0xff]
    %v253 = vld [vmem:[#allocation11 + $0x198] sm:$0xff]
    %v254 = vld [vmem:[#allocation11 + $0x1a0] sm:$0xff]
    %v255 = vld [vmem:[#allocation11 + $0x1a8] sm:$0xff]
    %v256 = vld [vmem:[#allocation11 + $0x1b0] sm:$0xff]
    %v257 = vld [vmem:[#allocation11 + $0x1b8] sm:$0xff]
    %v258 = vld [vmem:[#allocation11 + $0x1c0] sm:$0xff]
    %v259 = vld [vmem:[#allocation11 + $0x1c8] sm:$0xff]
    %v260 = vld [vmem:[#allocation11 + $0x1d0] sm:$0xff]
    %v261 = vld [vmem:[#allocation11 + $0x1d8] sm:$0xff]
    %v262 = vld [vmem:[#allocation11 + $0x1e0] sm:$0xff]
    %v263 = vld [vmem:[#allocation11 + $0x1e8] sm:$0xff]
    %v264 = vld [vmem:[#allocation11 + $0x1f0] sm:$0xff]
    %v265 = vld [vmem:[#allocation11 + $0x1f8] sm:$0xff]
    %v266 = vld [vmem:[#allocation11 + $0x200] sm:$0xff]
    %v267 = vld [vmem:[#allocation11 + $0x208] sm:$0xff]
    %v268 = vld [vmem:[#allocation11 + $0x210] sm:$0xff]
    %v269 = vld [vmem:[#allocation11 + $0x218] sm:$0xff]
    %v270 = vld [vmem:[#allocation11 + $0x220] sm:$0xff]
    %v271 = vld [vmem:[#allocation11 + $0x228] sm:$0xff]
    %v272 = vld [vmem:[#allocation11 + $0x230] sm:$0xff]
    %v273 = vld [vmem:[#allocation11 + $0x238] sm:$0xff]
    %v274 = vld [vmem:[#allocation11 + $0x240] sm:$0xff]
    %v275 = vld [vmem:[#allocation11 + $0x248] sm:$0xff]
    %v276 = vld [vmem:[#allocation11 + $0x250] sm:$0xff]
    %v277 = vld [vmem:[#allocation11 + $0x258] sm:$0xff]
    %v278 = vld [vmem:[#allocation11 + $0x260] sm:$0xff]
    %v279 = vld [vmem:[#allocation11 + $0x268] sm:$0xff]
    %v280 = vld [vmem:[#allocation11 + $0x270] sm:$0xff]
    %v281 = vld [vmem:[#allocation11 + $0x278] sm:$0xff]
    %v282 = vld [vmem:[#allocation11 + $0x280] sm:$0xff]
    %v283 = vld [vmem:[#allocation11 + $0x288] sm:$0xff]
    %v284 = vld [vmem:[#allocation11 + $0x290] sm:$0xff]
    %v285 = vld [vmem:[#allocation11 + $0x298] sm:$0xff]
    %v286 = vld [vmem:[#allocation11 + $0x2a0] sm:$0xff]
    %v287 = vld [vmem:[#allocation11 + $0x2a8] sm:$0xff]
    %v288 = vld [vmem:[#allocation11 + $0x2b0] sm:$0xff]
    %v289 = vld [vmem:[#allocation11 + $0x2b8] sm:$0xff]
    %v290 = vld [vmem:[#allocation11 + $0x2c0] sm:$0xff]
    %v291 = vld [vmem:[#allocation11 + $0x2c8] sm:$0xff]
    %v292 = vld [vmem:[#allocation11 + $0x2d0] sm:$0xff]
    %v293 = vld [vmem:[#allocation11 + $0x2d8] sm:$0xff]
    %v294 = vld [vmem:[#allocation11 + $0x2e0] sm:$0xff]
    %v295 = vld [vmem:[#allocation11 + $0x2e8] sm:$0xff]
    %v296 = vld [vmem:[#allocation11 + $0x2f0] sm:$0xff]
    %v297 = vld [vmem:[#allocation11 + $0x2f8] sm:$0xff]
    %v298 = vld [vmem:[#allocation11 + $0x300] sm:$0xff]
    %v299 = vld [vmem:[#allocation11 + $0x308] sm:$0xff]
    %v300 = vld [vmem:[#allocation11 + $0x310] sm:$0xff]
    %v301 = vld [vmem:[#allocation11 + $0x318] sm:$0xff]
    %v302 = vld [vmem:[#allocation11 + $0x320] sm:$0xff]
    %v303 = vld [vmem:[#allocation11 + $0x328] sm:$0xff]
    %v304 = vld [vmem:[#allocation11 + $0x330] sm:$0xff]
    %v305 = vld [vmem:[#allocation11 + $0x338] sm:$0xff]
    %v306 = vld [vmem:[#allocation11 + $0x340] sm:$0xff]
    %v307 = vld [vmem:[#allocation11 + $0x348] sm:$0xff]
    %v308 = vld [vmem:[#allocation11 + $0x350] sm:$0xff]
    %v309 = vld [vmem:[#allocation11 + $0x358] sm:$0xff]
    %v310 = vld [vmem:[#allocation11 + $0x360] sm:$0xff]
    %v311 = vld [vmem:[#allocation11 + $0x368] sm:$0xff]
    %v312 = vld [vmem:[#allocation11 + $0x370] sm:$0xff]
    %v313 = vld [vmem:[#allocation11 + $0x378] sm:$0xff]
    %v314 = vld [vmem:[#allocation11 + $0x380] sm:$0xff]
    %v315 = vld [vmem:[#allocation11 + $0x388] sm:$0xff]
    %v316 = vld [vmem:[#allocation11 + $0x390] sm:$0xff]
    %v317 = vld [vmem:[#allocation11 + $0x398] sm:$0xff]
    %v318 = vld [vmem:[#allocation11 + $0x3a0] sm:$0xff]
    %v319 = vld [vmem:[#allocation11 + $0x3a8] sm:$0xff]
    %v320 = vld [vmem:[#allocation11 + $0x3b0] sm:$0xff]
    %v321 = vld [vmem:[#allocation11 + $0x3b8] sm:$0xff]
    %v322 = vld [vmem:[#allocation11 + $0x3c0] sm:$0xff]
    %v323 = vld [vmem:[#allocation11 + $0x3c8] sm:$0xff]
    %v324 = vld [vmem:[#allocation11 + $0x3d0] sm:$0xff]
    %v325 = vld [vmem:[#allocation11 + $0x3d8] sm:$0xff]
    %v326 = vld [vmem:[#allocation11 + $0x3e0] sm:$0xff]
    %v327 = vld [vmem:[#allocation11 + $0x3e8] sm:$0xff]
    %v328 = vld [vmem:[#allocation11 + $0x3f0] sm:$0xff]
    %v329 = vld [vmem:[#allocation11 + $0x3f8] sm:$0xff]
    %v330 = vld [vmem:[#allocation11 + $0x400] sm:$0xff]
    %v331 = vld [vmem:[#allocation11 + $0x408] sm:$0xff]
    %v332 = vld [vmem:[#allocation11 + $0x410] sm:$0xff]
    %v333 = vld [vmem:[#allocation11 + $0x418] sm:$0xff]
    %v334 = vld [vmem:[#allocation11 + $0x420] sm:$0xff]
    %v335 = vld [vmem:[#allocation11 + $0x428] sm:$0xff]
    %v336 = vld [vmem:[#allocation11 + $0x430] sm:$0xff]
    %v337 = vld [vmem:[#allocation11 + $0x438] sm:$0xff]
    %v338 = vld [vmem:[#allocation11 + $0x440] sm:$0xff]
    %v339 = vld [vmem:[#allocation11 + $0x448] sm:$0xff]
    %v340 = vld [vmem:[#allocation11 + $0x450] sm:$0xff]
    %v341 = vld [vmem:[#allocation11 + $0x458] sm:$0xff]
    %v342 = vld [vmem:[#allocation11 + $0x460] sm:$0xff]
    %v343 = vld [vmem:[#allocation11 + $0x468] sm:$0xff]
    %v344 = vld [vmem:[#allocation11 + $0x470] sm:$0xff]
    %v345 = vld [vmem:[#allocation11 + $0x478] sm:$0xff]
    %v346 = vld [vmem:[#allocation11 + $0x480] sm:$0xff]
    %v347 = vld [vmem:[#allocation11 + $0x488] sm:$0xff]
    %v348 = vld [vmem:[#allocation11 + $0x490] sm:$0xff]
    %v349 = vld [vmem:[#allocation11 + $0x498] sm:$0xff]
    %v350 = vld [vmem:[#allocation11 + $0x4a0] sm:$0xff]
    %v351 = vld [vmem:[#allocation11 + $0x4a8] sm:$0xff]
    %v352 = vld [vmem:[#allocation11 + $0x4b0] sm:$0xff]
    %v353 = vld [vmem:[#allocation11 + $0x4b8] sm:$0xff]
    %v354 = vld [vmem:[#allocation11 + $0x4c0] sm:$0xff]
    %v355 = vld [vmem:[#allocation11 + $0x4c8] sm:$0xff]
    %v356 = vld [vmem:[#allocation11 + $0x4d0] sm:$0xff]
    %v357 = vld [vmem:[#allocation11 + $0x4d8] sm:$0xff]
    %v358 = vld [vmem:[#allocation11 + $0x4e0] sm:$0xff]
    %v359 = vld [vmem:[#allocation11 + $0x4e8] sm:$0xff]
    %v360 = vld [vmem:[#allocation11 + $0x4f0] sm:$0xff]
    %v361 = vld [vmem:[#allocation11 + $0x4f8] sm:$0xff]
    %v362 = vld [vmem:[#allocation11 + $0x500] sm:$0xff]
    %v363 = vld [vmem:[#allocation11 + $0x508] sm:$0xff]
    %v364 = vld [vmem:[#allocation11 + $0x510] sm:$0xff]
    %v365 = vld [vmem:[#allocation11 + $0x518] sm:$0xff]
    %v366 = vld [vmem:[#allocation11 + $0x520] sm:$0xff]
    %v367 = vld [vmem:[#allocation11 + $0x528] sm:$0xff]
    %v368 = vld [vmem:[#allocation11 + $0x530] sm:$0xff]
    %v369 = vld [vmem:[#allocation11 + $0x538] sm:$0xff]
    %v370 = vld [vmem:[#allocation11 + $0x540] sm:$0xff]
    %v371 = vld [vmem:[#allocation11 + $0x548] sm:$0xff]
    %v372 = vld [vmem:[#allocation11 + $0x550] sm:$0xff]
    %v373 = vld [vmem:[#allocation11 + $0x558] sm:$0xff]
    %v374 = vld [vmem:[#allocation11 + $0x560] sm:$0xff]
    %v375 = vld [vmem:[#allocation11 + $0x568] sm:$0xff]
    %v376 = vld [vmem:[#allocation11 + $0x570] sm:$0xff]
    %v377 = vld [vmem:[#allocation11 + $0x578] sm:$0xff]
    %v378 = vld [vmem:[#allocation11 + $0x580] sm:$0xff]
    %v379 = vld [vmem:[#allocation11 + $0x588] sm:$0xff]
    %v380 = vld [vmem:[#allocation11 + $0x590] sm:$0xff]
    %v381 = vld [vmem:[#allocation11 + $0x598] sm:$0xff]
    %v382 = vld [vmem:[#allocation11 + $0x5a0] sm:$0xff]
    %v383 = vld [vmem:[#allocation11 + $0x5a8] sm:$0xff]
    %v384 = vld [vmem:[#allocation11 + $0x5b0] sm:$0xff]
    %v385 = vld [vmem:[#allocation11 + $0x5b8] sm:$0xff]
    %v386 = vld [vmem:[#allocation11 + $0x5c0] sm:$0xff]
    %v387 = vld [vmem:[#allocation11 + $0x5c8] sm:$0xff]
    %v388 = vld [vmem:[#allocation11 + $0x5d0] sm:$0xff]
    %v389 = vld [vmem:[#allocation11 + $0x5d8] sm:$0xff]
    %v390 = vld [vmem:[#allocation11 + $0x5e0] sm:$0xff]
    %v391 = vld [vmem:[#allocation11 + $0x5e8] sm:$0xff]
    %v392 = vld [vmem:[#allocation11 + $0x5f0] sm:$0xff]
    %v393 = vld [vmem:[#allocation11 + $0x5f8] sm:$0xff]
    %v394 = vld [vmem:[#allocation11 + $0x600] sm:$0xff]
    %v395 = vld [vmem:[#allocation11 + $0x608] sm:$0xff]
    %v396 = vld [vmem:[#allocation11 + $0x610] sm:$0xff]
    %v397 = vld [vmem:[#allocation11 + $0x618] sm:$0xff]
    %v398 = vld [vmem:[#allocation11 + $0x620] sm:$0xff]
    %v399 = vld [vmem:[#allocation11 + $0x628] sm:$0xff]
    %v400 = vld [vmem:[#allocation11 + $0x630] sm:$0xff]
    %v401 = vld [vmem:[#allocation11 + $0x638] sm:$0xff]
    %v402 = vld [vmem:[#allocation11 + $0x640] sm:$0xff]
    %v403 = vld [vmem:[#allocation11 + $0x648] sm:$0xff]
    %v404 = vld [vmem:[#allocation11 + $0x650] sm:$0xff]
    %v405 = vld [vmem:[#allocation11 + $0x658] sm:$0xff]
    %v406 = vld [vmem:[#allocation11 + $0x660] sm:$0xff]
    %v407 = vld [vmem:[#allocation11 + $0x668] sm:$0xff]
    %v408 = vld [vmem:[#allocation11 + $0x670] sm:$0xff]
    %v409 = vld [vmem:[#allocation11 + $0x678] sm:$0xff]
    %v410 = vld [vmem:[#allocation11 + $0x680] sm:$0xff]
    %v411 = vld [vmem:[#allocation11 + $0x688] sm:$0xff]
    %v412 = vld [vmem:[#allocation11 + $0x690] sm:$0xff]
    %v413 = vld [vmem:[#allocation11 + $0x698] sm:$0xff]
    %v414 = vld [vmem:[#allocation11 + $0x6a0] sm:$0xff]
    %v415 = vld [vmem:[#allocation11 + $0x6a8] sm:$0xff]
    %v416 = vld [vmem:[#allocation11 + $0x6b0] sm:$0xff]
    %v417 = vld [vmem:[#allocation11 + $0x6b8] sm:$0xff]
    %v418 = vld [vmem:[#allocation11 + $0x6c0] sm:$0xff]
    %v419 = vld [vmem:[#allocation11 + $0x6c8] sm:$0xff]
    %v420 = vld [vmem:[#allocation11 + $0x6d0] sm:$0xff]
    %v421 = vld [vmem:[#allocation11 + $0x6d8] sm:$0xff]
    %v422 = vld [vmem:[#allocation11 + $0x6e0] sm:$0xff]
    %v423 = vld [vmem:[#allocation11 + $0x6e8] sm:$0xff]
    %v424 = vld [vmem:[#allocation11 + $0x6f0] sm:$0xff]
    %v425 = vld [vmem:[#allocation11 + $0x6f8] sm:$0xff]
    %v426 = vld [vmem:[#allocation11 + $0x700] sm:$0xff]
    %v427 = vld [vmem:[#allocation11 + $0x708] sm:$0xff]
    %v428 = vld [vmem:[#allocation11 + $0x710] sm:$0xff]
    %v429 = vld [vmem:[#allocation11 + $0x718] sm:$0xff]
    %v430 = vld [vmem:[#allocation11 + $0x720] sm:$0xff]
    %v431 = vld [vmem:[#allocation11 + $0x728] sm:$0xff]
    %v432 = vld [vmem:[#allocation11 + $0x730] sm:$0xff]
    %v433 = vld [vmem:[#allocation11 + $0x738] sm:$0xff]
    %v434 = vld [vmem:[#allocation11 + $0x740] sm:$0xff]
    %v435 = vld [vmem:[#allocation11 + $0x748] sm:$0xff]
    %v436 = vld [vmem:[#allocation11 + $0x750] sm:$0xff]
    %v437 = vld [vmem:[#allocation11 + $0x758] sm:$0xff]
    %v438 = vld [vmem:[#allocation11 + $0x760] sm:$0xff]
    %v439 = vld [vmem:[#allocation11 + $0x768] sm:$0xff]
    %v440 = vld [vmem:[#allocation11 + $0x770] sm:$0xff]
    %v441 = vld [vmem:[#allocation11 + $0x778] sm:$0xff]
    %v442 = vld [vmem:[#allocation11 + $0x780] sm:$0xff]
    %v443 = vld [vmem:[#allocation11 + $0x788] sm:$0xff]
    %v444 = vld [vmem:[#allocation11 + $0x790] sm:$0xff]
    %v445 = vld [vmem:[#allocation11 + $0x798] sm:$0xff]
    %v446 = vld [vmem:[#allocation11 + $0x7a0] sm:$0xff]
    %v447 = vld [vmem:[#allocation11 + $0x7a8] sm:$0xff]
    %v448 = vld [vmem:[#allocation11 + $0x7b0] sm:$0xff]
    %v449 = vld [vmem:[#allocation11 + $0x7b8] sm:$0xff]
    %v450 = vld [vmem:[#allocation11 + $0x7c0] sm:$0xff]
    %v451 = vld [vmem:[#allocation11 + $0x7c8] sm:$0xff]
    %v452 = vld [vmem:[#allocation11 + $0x7d0] sm:$0xff]
    %v453 = vld [vmem:[#allocation11 + $0x7d8] sm:$0xff]
    %v454 = vld [vmem:[#allocation11 + $0x7e0] sm:$0xff]
    %v455 = vld [vmem:[#allocation11 + $0x7e8] sm:$0xff]
    %v456 = vld [vmem:[#allocation11 + $0x7f0] sm:$0xff]
    %v457 = vld [vmem:[#allocation11 + $0x7f8] sm:$0xff]
    %v458 = vld [vmem:[#allocation11 + $0x800] sm:$0xff]
    %v459 = vld [vmem:[#allocation11 + $0x808] sm:$0xff]
    %v460 = vld [vmem:[#allocation11 + $0x810] sm:$0xff]
    %v461 = vld [vmem:[#allocation11 + $0x818] sm:$0xff]
    %v462 = vld [vmem:[#allocation11 + $0x820] sm:$0xff]
    %v463 = vld [vmem:[#allocation11 + $0x828] sm:$0xff]
    %v464 = vld [vmem:[#allocation11 + $0x830] sm:$0xff]
    %v465 = vld [vmem:[#allocation11 + $0x838] sm:$0xff]
    %v466 = vld [vmem:[#allocation11 + $0x840] sm:$0xff]
    %v467 = vld [vmem:[#allocation11 + $0x848] sm:$0xff]
    %v468 = vld [vmem:[#allocation11 + $0x850] sm:$0xff]
    %v469 = vld [vmem:[#allocation11 + $0x858] sm:$0xff]
    %v470 = vld [vmem:[#allocation11 + $0x860] sm:$0xff]
    %v471 = vld [vmem:[#allocation11 + $0x868] sm:$0xff]
    %v472 = vld [vmem:[#allocation11 + $0x870] sm:$0xff]
    %v473 = vld [vmem:[#allocation11 + $0x878] sm:$0xff]
    %v474 = vld [vmem:[#allocation11 + $0x880] sm:$0xff]
    %v475 = vld [vmem:[#allocation11 + $0x888] sm:$0xff]
    %v476 = vld [vmem:[#allocation11 + $0x890] sm:$0xff]
    %v477 = vld [vmem:[#allocation11 + $0x898] sm:$0xff]
    %v478 = vld [vmem:[#allocation11 + $0x8a0] sm:$0xff]
    %v479 = vld [vmem:[#allocation11 + $0x8a8] sm:$0xff]
    %v480 = vld [vmem:[#allocation11 + $0x8b0] sm:$0xff]
    %v481 = vld [vmem:[#allocation11 + $0x8b8] sm:$0xff]
    %v482 = vld [vmem:[#allocation11 + $0x8c0] sm:$0xff]
    %v483 = vld [vmem:[#allocation11 + $0x8c8] sm:$0xff]
    %v484 = vld [vmem:[#allocation11 + $0x8d0] sm:$0xff]
    %v485 = vld [vmem:[#allocation11 + $0x8d8] sm:$0xff]
    %v486 = vld [vmem:[#allocation11 + $0x8e0] sm:$0xff]
    %v487 = vld [vmem:[#allocation11 + $0x8e8] sm:$0xff]
    %v488 = vld [vmem:[#allocation11 + $0x8f0] sm:$0xff]
    %v489 = vld [vmem:[#allocation11 + $0x8f8] sm:$0xff]
    %v490 = vld [vmem:[#allocation11 + $0x900] sm:$0xff]
    %v491 = vld [vmem:[#allocation11 + $0x908] sm:$0xff]
    %v492 = vld [vmem:[#allocation11 + $0x910] sm:$0xff]
    %v493 = vld [vmem:[#allocation11 + $0x918] sm:$0xff]
    %v494 = vld [vmem:[#allocation11 + $0x920] sm:$0xff]
    %v495 = vld [vmem:[#allocation11 + $0x928] sm:$0xff]
    %v496 = vld [vmem:[#allocation11 + $0x930] sm:$0xff]
    %v497 = vld [vmem:[#allocation11 + $0x938] sm:$0xff]
    %v498 = vld [vmem:[#allocation11 + $0x940] sm:$0xff]
    %v499 = vld [vmem:[#allocation11 + $0x948] sm:$0xff]
    %v500 = vld [vmem:[#allocation11 + $0x950] sm:$0xff]
    %v501 = vld [vmem:[#allocation11 + $0x958] sm:$0xff]
    %v502 = vld [vmem:[#allocation11 + $0x960] sm:$0xff]
    %v503 = vld [vmem:[#allocation11 + $0x968] sm:$0xff]
    %v504 = vld [vmem:[#allocation11 + $0x970] sm:$0xff]
    %v505 = vld [vmem:[#allocation11 + $0x978] sm:$0xff]
    %v506 = vld [vmem:[#allocation11 + $0x980] sm:$0xff]
    %v507 = vld [vmem:[#allocation11 + $0x988] sm:$0xff]
    %v508 = vld [vmem:[#allocation11 + $0x990] sm:$0xff]
    %v509 = vld [vmem:[#allocation11 + $0x998] sm:$0xff]
    %v510 = vld [vmem:[#allocation11 + $0x9a0] sm:$0xff]
    %v511 = vld [vmem:[#allocation11 + $0x9a8] sm:$0xff]
    %v512 = vld [vmem:[#allocation11 + $0x9b0] sm:$0xff]
    %v513 = vld [vmem:[#allocation11 + $0x9b8] sm:$0xff]
    %v514 = vld [vmem:[#allocation11 + $0x9c0] sm:$0xff]
    %v515 = vld [vmem:[#allocation11 + $0x9c8] sm:$0xff]
    %v516 = vld [vmem:[#allocation11 + $0x9d0] sm:$0xff]
    %v517 = vld [vmem:[#allocation11 + $0x9d8] sm:$0xff]
    %v518 = vld [vmem:[#allocation11 + $0x9e0] sm:$0xff]
    %v519 = vld [vmem:[#allocation11 + $0x9e8] sm:$0xff]
    %v520 = vld [vmem:[#allocation11 + $0x9f0] sm:$0xff]
    %v521 = vld [vmem:[#allocation11 + $0x9f8] sm:$0xff]
    %v522 = vld [vmem:[#allocation11 + $0xa00] sm:$0xff]
    %v523 = vld [vmem:[#allocation11 + $0xa08] sm:$0xff]
    %v524 = vld [vmem:[#allocation11 + $0xa10] sm:$0xff]
    %v525 = vld [vmem:[#allocation11 + $0xa18] sm:$0xff]
    %v526 = vld [vmem:[#allocation11 + $0xa20] sm:$0xff]
    %v527 = vld [vmem:[#allocation11 + $0xa28] sm:$0xff]
    %v528 = vld [vmem:[#allocation11 + $0xa30] sm:$0xff]
    %v529 = vld [vmem:[#allocation11 + $0xa38] sm:$0xff]
    %v530 = vld [vmem:[#allocation11 + $0xa40] sm:$0xff]
    %v531 = vld [vmem:[#allocation11 + $0xa48] sm:$0xff]
    %v532 = vld [vmem:[#allocation11 + $0xa50] sm:$0xff]
    %v533 = vld [vmem:[#allocation11 + $0xa58] sm:$0xff]
    %v534 = vld [vmem:[#allocation11 + $0xa60] sm:$0xff]
    %v535 = vld [vmem:[#allocation11 + $0xa68] sm:$0xff]
    %v536 = vld [vmem:[#allocation11 + $0xa70] sm:$0xff]
    %v537 = vld [vmem:[#allocation11 + $0xa78] sm:$0xff]
    %v538 = vld [vmem:[#allocation11 + $0xa80] sm:$0xff]
    %v539 = vld [vmem:[#allocation11 + $0xa88] sm:$0xff]
    %v540 = vld [vmem:[#allocation11 + $0xa90] sm:$0xff]
    %v541 = vld [vmem:[#allocation11 + $0xa98] sm:$0xff]
    %v542 = vld [vmem:[#allocation11 + $0xaa0] sm:$0xff]
    %v543 = vld [vmem:[#allocation11 + $0xaa8] sm:$0xff]
    %v544 = vld [vmem:[#allocation11 + $0xab0] sm:$0xff]
    %v545 = vld [vmem:[#allocation11 + $0xab8] sm:$0xff]
    %v546 = vld [vmem:[#allocation11 + $0xac0] sm:$0xff]
    %v547 = vld [vmem:[#allocation11 + $0xac8] sm:$0xff]
    %v548 = vld [vmem:[#allocation11 + $0xad0] sm:$0xff]
    %v549 = vld [vmem:[#allocation11 + $0xad8] sm:$0xff]
    %v550 = vld [vmem:[#allocation11 + $0xae0] sm:$0xff]
    %v551 = vld [vmem:[#allocation11 + $0xae8] sm:$0xff]
    %v552 = vld [vmem:[#allocation11 + $0xaf0] sm:$0xff]
    %v553 = vld [vmem:[#allocation11 + $0xaf8] sm:$0xff]
    %v554 = vld [vmem:[#allocation11 + $0xb00] sm:$0xff]
    %v555 = vld [vmem:[#allocation11 + $0xb08] sm:$0xff]
    %v556 = vld [vmem:[#allocation11 + $0xb10] sm:$0xff]
    %v557 = vld [vmem:[#allocation11 + $0xb18] sm:$0xff]
    %v558 = vld [vmem:[#allocation11 + $0xb20] sm:$0xff]
    %v559 = vld [vmem:[#allocation11 + $0xb28] sm:$0xff]
    %v560 = vld [vmem:[#allocation11 + $0xb30] sm:$0xff]
    %v561 = vld [vmem:[#allocation11 + $0xb38] sm:$0xff]
    %v562 = vld [vmem:[#allocation11 + $0xb40] sm:$0xff]
    %v563 = vld [vmem:[#allocation11 + $0xb48] sm:$0xff]
    %v564 = vld [vmem:[#allocation11 + $0xb50] sm:$0xff]
    %v565 = vld [vmem:[#allocation11 + $0xb58] sm:$0xff]
    %v566 = vld [vmem:[#allocation11 + $0xb60] sm:$0xff]
    %v567 = vld [vmem:[#allocation11 + $0xb68] sm:$0xff]
    %v568 = vld [vmem:[#allocation11 + $0xb70] sm:$0xff]
    %v569 = vld [vmem:[#allocation11 + $0xb78] sm:$0xff]
    %v570 = vld [vmem:[#allocation11 + $0xb80] sm:$0xff]
    %v571 = vld [vmem:[#allocation11 + $0xb88] sm:$0xff]
    %v572 = vld [vmem:[#allocation11 + $0xb90] sm:$0xff]
    %v573 = vld [vmem:[#allocation11 + $0xb98] sm:$0xff]
    %v574 = vld [vmem:[#allocation11 + $0xba0] sm:$0xff]
    %v575 = vld [vmem:[#allocation11 + $0xba8] sm:$0xff]
    %v576 = vld [vmem:[#allocation11 + $0xbb0] sm:$0xff]
    %v577 = vld [vmem:[#allocation11 + $0xbb8] sm:$0xff]
    %v578 = vld [vmem:[#allocation11 + $0xbc0] sm:$0xff]
    %v579 = vld [vmem:[#allocation11 + $0xbc8] sm:$0xff]
    %v580 = vld [vmem:[#allocation11 + $0xbd0] sm:$0xff]
    %v581 = vld [vmem:[#allocation11 + $0xbd8] sm:$0xff]
    %v582 = vld [vmem:[#allocation11 + $0xbe0] sm:$0xff]
    %v583 = vld [vmem:[#allocation11 + $0xbe8] sm:$0xff]
    %v584 = vld [vmem:[#allocation11 + $0xbf0] sm:$0xff]
    %v585 = vld [vmem:[#allocation11 + $0xbf8] sm:$0xff]
    %v586 = vld [vmem:[#allocation11 + $0xc00] sm:$0xff]
    %v587 = vld [vmem:[#allocation11 + $0xc08] sm:$0xff]
    %v588 = vld [vmem:[#allocation11 + $0xc10] sm:$0xff]
    %v589 = vld [vmem:[#allocation11 + $0xc18] sm:$0xff]
    %v590 = vld [vmem:[#allocation11 + $0xc20] sm:$0xff]
    %v591 = vld [vmem:[#allocation11 + $0xc28] sm:$0xff]
    %v592 = vld [vmem:[#allocation11 + $0xc30] sm:$0xff]
    %v593 = vld [vmem:[#allocation11 + $0xc38] sm:$0xff]
    %v594 = vld [vmem:[#allocation11 + $0xc40] sm:$0xff]
    %v595 = vld [vmem:[#allocation11 + $0xc48] sm:$0xff]
    %v596 = vld [vmem:[#allocation11 + $0xc50] sm:$0xff]
    %v597 = vld [vmem:[#allocation11 + $0xc58] sm:$0xff]
    %v598 = vld [vmem:[#allocation11 + $0xc60] sm:$0xff]
    %v599 = vld [vmem:[#allocation11 + $0xc68] sm:$0xff]
    %v600 = vld [vmem:[#allocation11 + $0xc70] sm:$0xff]
    %v601 = vld [vmem:[#allocation11 + $0xc78] sm:$0xff]
    %v602 = vld [vmem:[#allocation11 + $0xc80] sm:$0xff]
    %v603 = vld [vmem:[#allocation11 + $0xc88] sm:$0xff]
    %v604 = vld [vmem:[#allocation11 + $0xc90] sm:$0xff]
    %v605 = vld [vmem:[#allocation11 + $0xc98] sm:$0xff]
    %v606 = vld [vmem:[#allocation11 + $0xca0] sm:$0xff]
    %v607 = vld [vmem:[#allocation11 + $0xca8] sm:$0xff]
    %v608 = vld [vmem:[#allocation11 + $0xcb0] sm:$0xff]
    %v609 = vld [vmem:[#allocation11 + $0xcb8] sm:$0xff]
    %v610 = vld [vmem:[#allocation11 + $0xcc0] sm:$0xff]
    %v611 = vld [vmem:[#allocation11 + $0xcc8] sm:$0xff]
    %v612 = vld [vmem:[#allocation11 + $0xcd0] sm:$0xff]
    %v613 = vld [vmem:[#allocation11 + $0xcd8] sm:$0xff]
    %v614 = vld [vmem:[#allocation11 + $0xce0] sm:$0xff]
    %v615 = vld [vmem:[#allocation11 + $0xce8] sm:$0xff]
    %v616 = vld [vmem:[#allocation11 + $0xcf0] sm:$0xff]
    %v617 = vld [vmem:[#allocation11 + $0xcf8] sm:$0xff]
    %v618 = vld [vmem:[#allocation11 + $0xd00] sm:$0xff]
    %v619 = vld [vmem:[#allocation11 + $0xd08] sm:$0xff]
    %v620 = vld [vmem:[#allocation11 + $0xd10] sm:$0xff]
    %v621 = vld [vmem:[#allocation11 + $0xd18] sm:$0xff]
    %v622 = vld [vmem:[#allocation11 + $0xd20] sm:$0xff]
    %v623 = vld [vmem:[#allocation11 + $0xd28] sm:$0xff]
    %v624 = vld [vmem:[#allocation11 + $0xd30] sm:$0xff]
    %v625 = vld [vmem:[#allocation11 + $0xd38] sm:$0xff]
    %v626 = vld [vmem:[#allocation11 + $0xd40] sm:$0xff]
    %v627 = vld [vmem:[#allocation11 + $0xd48] sm:$0xff]
    %v628 = vld [vmem:[#allocation11 + $0xd50] sm:$0xff]
    %v629 = vld [vmem:[#allocation11 + $0xd58] sm:$0xff]
    %v630 = vld [vmem:[#allocation11 + $0xd60] sm:$0xff]
    %v631 = vld [vmem:[#allocation11 + $0xd68] sm:$0xff]
    %v632 = vld [vmem:[#allocation11 + $0xd70] sm:$0xff]
    %v633 = vld [vmem:[#allocation11 + $0xd78] sm:$0xff]
    %v634 = vld [vmem:[#allocation11 + $0xd80] sm:$0xff]
    %v635 = vld [vmem:[#allocation11 + $0xd88] sm:$0xff]
    %v636 = vld [vmem:[#allocation11 + $0xd90] sm:$0xff]
    %v637 = vld [vmem:[#allocation11 + $0xd98] sm:$0xff]
    %v638 = vld [vmem:[#allocation11 + $0xda0] sm:$0xff]
    %v639 = vld [vmem:[#allocation11 + $0xda8] sm:$0xff]
    %v640 = vld [vmem:[#allocation11 + $0xdb0] sm:$0xff]
    %v641 = vld [vmem:[#allocation11 + $0xdb8] sm:$0xff]
    %v642 = vld [vmem:[#allocation11 + $0xdc0] sm:$0xff]
    %v643 = vld [vmem:[#allocation11 + $0xdc8] sm:$0xff]
    %v644 = vld [vmem:[#allocation11 + $0xdd0] sm:$0xff]
    %v645 = vld [vmem:[#allocation11 + $0xdd8] sm:$0xff]
    %v646 = vld [vmem:[#allocation11 + $0xde0] sm:$0xff]
    %v647 = vld [vmem:[#allocation11 + $0xde8] sm:$0xff]
    %v648 = vld [vmem:[#allocation11 + $0xdf0] sm:$0xff]
    %v649 = vld [vmem:[#allocation11 + $0xdf8] sm:$0xff]
    %v650 = vld [vmem:[#allocation11 + $0xe00] sm:$0xff]
    %v651 = vld [vmem:[#allocation11 + $0xe08] sm:$0xff]
    %v652 = vld [vmem:[#allocation11 + $0xe10] sm:$0xff]
    %v653 = vld [vmem:[#allocation11 + $0xe18] sm:$0xff]
    %v654 = vld [vmem:[#allocation11 + $0xe20] sm:$0xff]
    %v655 = vld [vmem:[#allocation11 + $0xe28] sm:$0xff]
    %v656 = vld [vmem:[#allocation11 + $0xe30] sm:$0xff]
    %v657 = vld [vmem:[#allocation11 + $0xe38] sm:$0xff]
    %v658 = vld [vmem:[#allocation11 + $0xe40] sm:$0xff]
    %v659 = vld [vmem:[#allocation11 + $0xe48] sm:$0xff]
    %v660 = vld [vmem:[#allocation11 + $0xe50] sm:$0xff]
    %v661 = vld [vmem:[#allocation11 + $0xe58] sm:$0xff]
    %v662 = vld [vmem:[#allocation11 + $0xe60] sm:$0xff]
    %v663 = vld [vmem:[#allocation11 + $0xe68] sm:$0xff]
    %v664 = vld [vmem:[#allocation11 + $0xe70] sm:$0xff]
    %v665 = vld [vmem:[#allocation11 + $0xe78] sm:$0xff]
    %v666 = vld [vmem:[#allocation11 + $0xe80] sm:$0xff]
    %v667 = vld [vmem:[#allocation11 + $0xe88] sm:$0xff]
    %v668 = vld [vmem:[#allocation11 + $0xe90] sm:$0xff]
    %v669 = vld [vmem:[#allocation11 + $0xe98] sm:$0xff]
    %v670 = vld [vmem:[#allocation11 + $0xea0] sm:$0xff]
    %v671 = vld [vmem:[#allocation11 + $0xea8] sm:$0xff]
    %v672 = vld [vmem:[#allocation11 + $0xeb0] sm:$0xff]
    %v673 = vld [vmem:[#allocation11 + $0xeb8] sm:$0xff]
    %v674 = vld [vmem:[#allocation11 + $0xec0] sm:$0xff]
    %v675 = vld [vmem:[#allocation11 + $0xec8] sm:$0xff]
    %v676 = vld [vmem:[#allocation11 + $0xed0] sm:$0xff]
    %v677 = vld [vmem:[#allocation11 + $0xed8] sm:$0xff]
    %v678 = vld [vmem:[#allocation11 + $0xee0] sm:$0xff]
    %v679 = vld [vmem:[#allocation11 + $0xee8] sm:$0xff]
    %v680 = vld [vmem:[#allocation11 + $0xef0] sm:$0xff]
    %v681 = vld [vmem:[#allocation11 + $0xef8] sm:$0xff]
    %v682 = vld [vmem:[#allocation11 + $0xf00] sm:$0xff]
    %v683 = vld [vmem:[#allocation11 + $0xf08] sm:$0xff]
    %v684 = vld [vmem:[#allocation11 + $0xf10] sm:$0xff]
    %v685 = vld [vmem:[#allocation11 + $0xf18] sm:$0xff]
    %v686 = vld [vmem:[#allocation11 + $0xf20] sm:$0xff]
    %v687 = vld [vmem:[#allocation11 + $0xf28] sm:$0xff]
    %v688 = vld [vmem:[#allocation11 + $0xf30] sm:$0xff]
    %v689 = vld [vmem:[#allocation11 + $0xf38] sm:$0xff]
    %v690 = vld [vmem:[#allocation11 + $0xf40] sm:$0xff]
    %v691 = vld [vmem:[#allocation11 + $0xf48] sm:$0xff]
    %v692 = vld [vmem:[#allocation11 + $0xf50] sm:$0xff]
    %v693 = vld [vmem:[#allocation11 + $0xf58] sm:$0xff]
    %v694 = vld [vmem:[#allocation11 + $0xf60] sm:$0xff]
    %v695 = vld [vmem:[#allocation11 + $0xf68] sm:$0xff]
    %v696 = vld [vmem:[#allocation11 + $0xf70] sm:$0xff]
    %v697 = vld [vmem:[#allocation11 + $0xf78] sm:$0xff]
    %v698 = vld [vmem:[#allocation11 + $0xf80] sm:$0xff]
    %v699 = vld [vmem:[#allocation11 + $0xf88] sm:$0xff]
    %v700 = vld [vmem:[#allocation11 + $0xf90] sm:$0xff]
    %v701 = vld [vmem:[#allocation11 + $0xf98] sm:$0xff]
    %v702 = vld [vmem:[#allocation11 + $0xfa0] sm:$0xff]
    %v703 = vld [vmem:[#allocation11 + $0xfa8] sm:$0xff]
    %v704 = vld [vmem:[#allocation11 + $0xfb0] sm:$0xff]
    %v705 = vld [vmem:[#allocation11 + $0xfb8] sm:$0xff]
    %v706 = vld [vmem:[#allocation11 + $0xfc0] sm:$0xff]
    %v707 = vld [vmem:[#allocation11 + $0xfc8] sm:$0xff]
    %v708 = vld [vmem:[#allocation11 + $0xfd0] sm:$0xff]
    %v709 = vld [vmem:[#allocation11 + $0xfd8] sm:$0xff]
    %v710 = vld [vmem:[#allocation11 + $0xfe0] sm:$0xff]
    %v711 = vld [vmem:[#allocation11 + $0xfe8] sm:$0xff]
    %v712 = vld [vmem:[#allocation11 + $0xff0] sm:$0xff]
    %v713 = vld [vmem:[#allocation11 + $0xff8] sm:$0xff]
    %v1226 = vunpack.c.l.b16 %v202
    %v1227 = vunpack.c.h.b16 %v202
    %v1228 = vunpack.c.l.b16 %v203
    %v1229 = vunpack.c.h.b16 %v203
    %v1230 = vunpack.c.l.b16 %v204
    %v1231 = vunpack.c.h.b16 %v204
    %v1232 = vunpack.c.l.b16 %v205
    %v1233 = vunpack.c.h.b16 %v205
    %v1234 = vunpack.c.l.b16 %v206
    %v1235 = vunpack.c.h.b16 %v206
    %v1236 = vunpack.c.l.b16 %v207
    %v1237 = vunpack.c.h.b16 %v207
    %v1238 = vunpack.c.l.b16 %v208
    %v1239 = vunpack.c.h.b16 %v208
    %v1240 = vunpack.c.l.b16 %v209
    %v1241 = vunpack.c.h.b16 %v209
    %v1242 = vunpack.c.l.b16 %v210
    %v1243 = vunpack.c.h.b16 %v210
    %v1244 = vunpack.c.l.b16 %v211
    %v1245 = vunpack.c.h.b16 %v211
    %v1246 = vunpack.c.l.b16 %v212
    %v1247 = vunpack.c.h.b16 %v212
    %v1248 = vunpack.c.l.b16 %v213
    %v1249 = vunpack.c.h.b16 %v213
    %v1250 = vunpack.c.l.b16 %v214
    %v1251 = vunpack.c.h.b16 %v214
    %v1252 = vunpack.c.l.b16 %v215
    %v1253 = vunpack.c.h.b16 %v215
    %v1254 = vunpack.c.l.b16 %v216
    %v1255 = vunpack.c.h.b16 %v216
    %v1256 = vunpack.c.l.b16 %v217
    %v1257 = vunpack.c.h.b16 %v217
    %v1258 = vunpack.c.l.b16 %v218
    %v1259 = vunpack.c.h.b16 %v218
    %v1260 = vunpack.c.l.b16 %v219
    %v1261 = vunpack.c.h.b16 %v219
    %v1262 = vunpack.c.l.b16 %v220
    %v1263 = vunpack.c.h.b16 %v220
    %v1264 = vunpack.c.l.b16 %v221
    %v1265 = vunpack.c.h.b16 %v221
    %v1266 = vunpack.c.l.b16 %v222
    %v1267 = vunpack.c.h.b16 %v222
    %v1268 = vunpack.c.l.b16 %v223
    %v1269 = vunpack.c.h.b16 %v223
    %v1270 = vunpack.c.l.b16 %v224
    %v1271 = vunpack.c.h.b16 %v224
    %v1272 = vunpack.c.l.b16 %v225
    %v1273 = vunpack.c.h.b16 %v225
    %v1274 = vunpack.c.l.b16 %v226
    %v1275 = vunpack.c.h.b16 %v226
    %v1276 = vunpack.c.l.b16 %v227
    %v1277 = vunpack.c.h.b16 %v227
    %v1278 = vunpack.c.l.b16 %v228
    %v1279 = vunpack.c.h.b16 %v228
    %v1280 = vunpack.c.l.b16 %v229
    %v1281 = vunpack.c.h.b16 %v229
    %v1282 = vunpack.c.l.b16 %v230
    %v1283 = vunpack.c.h.b16 %v230
    %v1284 = vunpack.c.l.b16 %v231
    %v1285 = vunpack.c.h.b16 %v231
    %v1286 = vunpack.c.l.b16 %v232
    %v1287 = vunpack.c.h.b16 %v232
    %v1288 = vunpack.c.l.b16 %v233
    %v1289 = vunpack.c.h.b16 %v233
    %v1290 = vunpack.c.l.b16 %v234
    %v1291 = vunpack.c.h.b16 %v234
    %v1292 = vunpack.c.l.b16 %v235
    %v1293 = vunpack.c.h.b16 %v235
    %v1294 = vunpack.c.l.b16 %v236
    %v1295 = vunpack.c.h.b16 %v236
    %v1296 = vunpack.c.l.b16 %v237
    %v1297 = vunpack.c.h.b16 %v237
    %v1298 = vunpack.c.l.b16 %v238
    %v1299 = vunpack.c.h.b16 %v238
    %v1300 = vunpack.c.l.b16 %v239
    %v1301 = vunpack.c.h.b16 %v239
    %v1302 = vunpack.c.l.b16 %v240
    %v1303 = vunpack.c.h.b16 %v240
    %v1304 = vunpack.c.l.b16 %v241
    %v1305 = vunpack.c.h.b16 %v241
    %v1306 = vunpack.c.l.b16 %v242
    %v1307 = vunpack.c.h.b16 %v242
    %v1308 = vunpack.c.l.b16 %v243
    %v1309 = vunpack.c.h.b16 %v243
    %v1310 = vunpack.c.l.b16 %v244
    %v1311 = vunpack.c.h.b16 %v244
    %v1312 = vunpack.c.l.b16 %v245
    %v1313 = vunpack.c.h.b16 %v245
    %v1314 = vunpack.c.l.b16 %v246
    %v1315 = vunpack.c.h.b16 %v246
    %v1316 = vunpack.c.l.b16 %v247
    %v1317 = vunpack.c.h.b16 %v247
    %v1318 = vunpack.c.l.b16 %v248
    %v1319 = vunpack.c.h.b16 %v248
    %v1320 = vunpack.c.l.b16 %v249
    %v1321 = vunpack.c.h.b16 %v249
    %v1322 = vunpack.c.l.b16 %v250
    %v1323 = vunpack.c.h.b16 %v250
    %v1324 = vunpack.c.l.b16 %v251
    %v1325 = vunpack.c.h.b16 %v251
    %v1326 = vunpack.c.l.b16 %v252
    %v1327 = vunpack.c.h.b16 %v252
    %v1328 = vunpack.c.l.b16 %v253
    %v1329 = vunpack.c.h.b16 %v253
    %v1330 = vunpack.c.l.b16 %v254
    %v1331 = vunpack.c.h.b16 %v254
    %v1332 = vunpack.c.l.b16 %v255
    %v1333 = vunpack.c.h.b16 %v255
    %v1334 = vunpack.c.l.b16 %v256
    %v1335 = vunpack.c.h.b16 %v256
    %v1336 = vunpack.c.l.b16 %v257
    %v1337 = vunpack.c.h.b16 %v257
    %v1338 = vunpack.c.l.b16 %v258
    %v1339 = vunpack.c.h.b16 %v258
    %v1340 = vunpack.c.l.b16 %v259
    %v1341 = vunpack.c.h.b16 %v259
    %v1342 = vunpack.c.l.b16 %v260
    %v1343 = vunpack.c.h.b16 %v260
    %v1344 = vunpack.c.l.b16 %v261
    %v1345 = vunpack.c.h.b16 %v261
    %v1346 = vunpack.c.l.b16 %v262
    %v1347 = vunpack.c.h.b16 %v262
    %v1348 = vunpack.c.l.b16 %v263
    %v1349 = vunpack.c.h.b16 %v263
    %v1350 = vunpack.c.l.b16 %v264
    %v1351 = vunpack.c.h.b16 %v264
    %v1352 = vunpack.c.l.b16 %v265
    %v1353 = vunpack.c.h.b16 %v265
    %v1354 = vunpack.c.l.b16 %v266
    %v1355 = vunpack.c.h.b16 %v266
    %v1356 = vunpack.c.l.b16 %v267
    %v1357 = vunpack.c.h.b16 %v267
    %v1358 = vunpack.c.l.b16 %v268
    %v1359 = vunpack.c.h.b16 %v268
    %v1360 = vunpack.c.l.b16 %v269
    %v1361 = vunpack.c.h.b16 %v269
    %v1362 = vunpack.c.l.b16 %v270
    %v1363 = vunpack.c.h.b16 %v270
    %v1364 = vunpack.c.l.b16 %v271
    %v1365 = vunpack.c.h.b16 %v271
    %v1366 = vunpack.c.l.b16 %v272
    %v1367 = vunpack.c.h.b16 %v272
    %v1368 = vunpack.c.l.b16 %v273
    %v1369 = vunpack.c.h.b16 %v273
    %v1370 = vunpack.c.l.b16 %v274
    %v1371 = vunpack.c.h.b16 %v274
    %v1372 = vunpack.c.l.b16 %v275
    %v1373 = vunpack.c.h.b16 %v275
    %v1374 = vunpack.c.l.b16 %v276
    %v1375 = vunpack.c.h.b16 %v276
    %v1376 = vunpack.c.l.b16 %v277
    %v1377 = vunpack.c.h.b16 %v277
    %v1378 = vunpack.c.l.b16 %v278
    %v1379 = vunpack.c.h.b16 %v278
    %v1380 = vunpack.c.l.b16 %v279
    %v1381 = vunpack.c.h.b16 %v279
    %v1382 = vunpack.c.l.b16 %v280
    %v1383 = vunpack.c.h.b16 %v280
    %v1384 = vunpack.c.l.b16 %v281
    %v1385 = vunpack.c.h.b16 %v281
    %v1386 = vunpack.c.l.b16 %v282
    %v1387 = vunpack.c.h.b16 %v282
    %v1388 = vunpack.c.l.b16 %v283
    %v1389 = vunpack.c.h.b16 %v283
    %v1390 = vunpack.c.l.b16 %v284
    %v1391 = vunpack.c.h.b16 %v284
    %v1392 = vunpack.c.l.b16 %v285
    %v1393 = vunpack.c.h.b16 %v285
    %v1394 = vunpack.c.l.b16 %v286
    %v1395 = vunpack.c.h.b16 %v286
    %v1396 = vunpack.c.l.b16 %v287
    %v1397 = vunpack.c.h.b16 %v287
    %v1398 = vunpack.c.l.b16 %v288
    %v1399 = vunpack.c.h.b16 %v288
    %v1400 = vunpack.c.l.b16 %v289
    %v1401 = vunpack.c.h.b16 %v289
    %v1402 = vunpack.c.l.b16 %v290
    %v1403 = vunpack.c.h.b16 %v290
    %v1404 = vunpack.c.l.b16 %v291
    %v1405 = vunpack.c.h.b16 %v291
    %v1406 = vunpack.c.l.b16 %v292
    %v1407 = vunpack.c.h.b16 %v292
    %v1408 = vunpack.c.l.b16 %v293
    %v1409 = vunpack.c.h.b16 %v293
    %v1410 = vunpack.c.l.b16 %v294
    %v1411 = vunpack.c.h.b16 %v294
    %v1412 = vunpack.c.l.b16 %v295
    %v1413 = vunpack.c.h.b16 %v295
    %v1414 = vunpack.c.l.b16 %v296
    %v1415 = vunpack.c.h.b16 %v296
    %v1416 = vunpack.c.l.b16 %v297
    %v1417 = vunpack.c.h.b16 %v297
    %v1418 = vunpack.c.l.b16 %v298
    %v1419 = vunpack.c.h.b16 %v298
    %v1420 = vunpack.c.l.b16 %v299
    %v1421 = vunpack.c.h.b16 %v299
    %v1422 = vunpack.c.l.b16 %v300
    %v1423 = vunpack.c.h.b16 %v300
    %v1424 = vunpack.c.l.b16 %v301
    %v1425 = vunpack.c.h.b16 %v301
    %v1426 = vunpack.c.l.b16 %v302
    %v1427 = vunpack.c.h.b16 %v302
    %v1428 = vunpack.c.l.b16 %v303
    %v1429 = vunpack.c.h.b16 %v303
    %v1430 = vunpack.c.l.b16 %v304
    %v1431 = vunpack.c.h.b16 %v304
    %v1432 = vunpack.c.l.b16 %v305
    %v1433 = vunpack.c.h.b16 %v305
    %v1434 = vunpack.c.l.b16 %v306
    %v1435 = vunpack.c.h.b16 %v306
    %v1436 = vunpack.c.l.b16 %v307
    %v1437 = vunpack.c.h.b16 %v307
    %v1438 = vunpack.c.l.b16 %v308
    %v1439 = vunpack.c.h.b16 %v308
    %v1440 = vunpack.c.l.b16 %v309
    %v1441 = vunpack.c.h.b16 %v309
    %v1442 = vunpack.c.l.b16 %v310
    %v1443 = vunpack.c.h.b16 %v310
    %v1444 = vunpack.c.l.b16 %v311
    %v1445 = vunpack.c.h.b16 %v311
    %v1446 = vunpack.c.l.b16 %v312
    %v1447 = vunpack.c.h.b16 %v312
    %v1448 = vunpack.c.l.b16 %v313
    %v1449 = vunpack.c.h.b16 %v313
    %v1450 = vunpack.c.l.b16 %v314
    %v1451 = vunpack.c.h.b16 %v314
    %v1452 = vunpack.c.l.b16 %v315
    %v1453 = vunpack.c.h.b16 %v315
    %v1454 = vunpack.c.l.b16 %v316
    %v1455 = vunpack.c.h.b16 %v316
    %v1456 = vunpack.c.l.b16 %v317
    %v1457 = vunpack.c.h.b16 %v317
    %v1458 = vunpack.c.l.b16 %v318
    %v1459 = vunpack.c.h.b16 %v318
    %v1460 = vunpack.c.l.b16 %v319
    %v1461 = vunpack.c.h.b16 %v319
    %v1462 = vunpack.c.l.b16 %v320
    %v1463 = vunpack.c.h.b16 %v320
    %v1464 = vunpack.c.l.b16 %v321
    %v1465 = vunpack.c.h.b16 %v321
    %v1466 = vunpack.c.l.b16 %v322
    %v1467 = vunpack.c.h.b16 %v322
    %v1468 = vunpack.c.l.b16 %v323
    %v1469 = vunpack.c.h.b16 %v323
    %v1470 = vunpack.c.l.b16 %v324
    %v1471 = vunpack.c.h.b16 %v324
    %v1472 = vunpack.c.l.b16 %v325
    %v1473 = vunpack.c.h.b16 %v325
    %v1474 = vunpack.c.l.b16 %v326
    %v1475 = vunpack.c.h.b16 %v326
    %v1476 = vunpack.c.l.b16 %v327
    %v1477 = vunpack.c.h.b16 %v327
    %v1478 = vunpack.c.l.b16 %v328
    %v1479 = vunpack.c.h.b16 %v328
    %v1480 = vunpack.c.l.b16 %v329
    %v1481 = vunpack.c.h.b16 %v329
    %v1482 = vunpack.c.l.b16 %v330
    %v1483 = vunpack.c.h.b16 %v330
    %v1484 = vunpack.c.l.b16 %v331
    %v1485 = vunpack.c.h.b16 %v331
    %v1486 = vunpack.c.l.b16 %v332
    %v1487 = vunpack.c.h.b16 %v332
    %v1488 = vunpack.c.l.b16 %v333
    %v1489 = vunpack.c.h.b16 %v333
    %v1490 = vunpack.c.l.b16 %v334
    %v1491 = vunpack.c.h.b16 %v334
    %v1492 = vunpack.c.l.b16 %v335
    %v1493 = vunpack.c.h.b16 %v335
    %v1494 = vunpack.c.l.b16 %v336
    %v1495 = vunpack.c.h.b16 %v336
    %v1496 = vunpack.c.l.b16 %v337
    %v1497 = vunpack.c.h.b16 %v337
    %v1498 = vunpack.c.l.b16 %v338
    %v1499 = vunpack.c.h.b16 %v338
    %v1500 = vunpack.c.l.b16 %v339
    %v1501 = vunpack.c.h.b16 %v339
    %v1502 = vunpack.c.l.b16 %v340
    %v1503 = vunpack.c.h.b16 %v340
    %v1504 = vunpack.c.l.b16 %v341
    %v1505 = vunpack.c.h.b16 %v341
    %v1506 = vunpack.c.l.b16 %v342
    %v1507 = vunpack.c.h.b16 %v342
    %v1508 = vunpack.c.l.b16 %v343
    %v1509 = vunpack.c.h.b16 %v343
    %v1510 = vunpack.c.l.b16 %v344
    %v1511 = vunpack.c.h.b16 %v344
    %v1512 = vunpack.c.l.b16 %v345
    %v1513 = vunpack.c.h.b16 %v345
    %v1514 = vunpack.c.l.b16 %v346
    %v1515 = vunpack.c.h.b16 %v346
    %v1516 = vunpack.c.l.b16 %v347
    %v1517 = vunpack.c.h.b16 %v347
    %v1518 = vunpack.c.l.b16 %v348
    %v1519 = vunpack.c.h.b16 %v348
    %v1520 = vunpack.c.l.b16 %v349
    %v1521 = vunpack.c.h.b16 %v349
    %v1522 = vunpack.c.l.b16 %v350
    %v1523 = vunpack.c.h.b16 %v350
    %v1524 = vunpack.c.l.b16 %v351
    %v1525 = vunpack.c.h.b16 %v351
    %v1526 = vunpack.c.l.b16 %v352
    %v1527 = vunpack.c.h.b16 %v352
    %v1528 = vunpack.c.l.b16 %v353
    %v1529 = vunpack.c.h.b16 %v353
    %v1530 = vunpack.c.l.b16 %v354
    %v1531 = vunpack.c.h.b16 %v354
    %v1532 = vunpack.c.l.b16 %v355
    %v1533 = vunpack.c.h.b16 %v355
    %v1534 = vunpack.c.l.b16 %v356
    %v1535 = vunpack.c.h.b16 %v356
    %v1536 = vunpack.c.l.b16 %v357
    %v1537 = vunpack.c.h.b16 %v357
    %v1538 = vunpack.c.l.b16 %v358
    %v1539 = vunpack.c.h.b16 %v358
    %v1540 = vunpack.c.l.b16 %v359
    %v1541 = vunpack.c.h.b16 %v359
    %v1542 = vunpack.c.l.b16 %v360
    %v1543 = vunpack.c.h.b16 %v360
    %v1544 = vunpack.c.l.b16 %v361
    %v1545 = vunpack.c.h.b16 %v361
    %v1546 = vunpack.c.l.b16 %v362
    %v1547 = vunpack.c.h.b16 %v362
    %v1548 = vunpack.c.l.b16 %v363
    %v1549 = vunpack.c.h.b16 %v363
    %v1550 = vunpack.c.l.b16 %v364
    %v1551 = vunpack.c.h.b16 %v364
    %v1552 = vunpack.c.l.b16 %v365
    %v1553 = vunpack.c.h.b16 %v365
    %v1554 = vunpack.c.l.b16 %v366
    %v1555 = vunpack.c.h.b16 %v366
    %v1556 = vunpack.c.l.b16 %v367
    %v1557 = vunpack.c.h.b16 %v367
    %v1558 = vunpack.c.l.b16 %v368
    %v1559 = vunpack.c.h.b16 %v368
    %v1560 = vunpack.c.l.b16 %v369
    %v1561 = vunpack.c.h.b16 %v369
    %v1562 = vunpack.c.l.b16 %v370
    %v1563 = vunpack.c.h.b16 %v370
    %v1564 = vunpack.c.l.b16 %v371
    %v1565 = vunpack.c.h.b16 %v371
    %v1566 = vunpack.c.l.b16 %v372
    %v1567 = vunpack.c.h.b16 %v372
    %v1568 = vunpack.c.l.b16 %v373
    %v1569 = vunpack.c.h.b16 %v373
    %v1570 = vunpack.c.l.b16 %v374
    %v1571 = vunpack.c.h.b16 %v374
    %v1572 = vunpack.c.l.b16 %v375
    %v1573 = vunpack.c.h.b16 %v375
    %v1574 = vunpack.c.l.b16 %v376
    %v1575 = vunpack.c.h.b16 %v376
    %v1576 = vunpack.c.l.b16 %v377
    %v1577 = vunpack.c.h.b16 %v377
    %v1578 = vunpack.c.l.b16 %v378
    %v1579 = vunpack.c.h.b16 %v378
    %v1580 = vunpack.c.l.b16 %v379
    %v1581 = vunpack.c.h.b16 %v379
    %v1582 = vunpack.c.l.b16 %v380
    %v1583 = vunpack.c.h.b16 %v380
    %v1584 = vunpack.c.l.b16 %v381
    %v1585 = vunpack.c.h.b16 %v381
    %v1586 = vunpack.c.l.b16 %v382
    %v1587 = vunpack.c.h.b16 %v382
    %v1588 = vunpack.c.l.b16 %v383
    %v1589 = vunpack.c.h.b16 %v383
    %v1590 = vunpack.c.l.b16 %v384
    %v1591 = vunpack.c.h.b16 %v384
    %v1592 = vunpack.c.l.b16 %v385
    %v1593 = vunpack.c.h.b16 %v385
    %v1594 = vunpack.c.l.b16 %v386
    %v1595 = vunpack.c.h.b16 %v386
    %v1596 = vunpack.c.l.b16 %v387
    %v1597 = vunpack.c.h.b16 %v387
    %v1598 = vunpack.c.l.b16 %v388
    %v1599 = vunpack.c.h.b16 %v388
    %v1600 = vunpack.c.l.b16 %v389
    %v1601 = vunpack.c.h.b16 %v389
    %v1602 = vunpack.c.l.b16 %v390
    %v1603 = vunpack.c.h.b16 %v390
    %v1604 = vunpack.c.l.b16 %v391
    %v1605 = vunpack.c.h.b16 %v391
    %v1606 = vunpack.c.l.b16 %v392
    %v1607 = vunpack.c.h.b16 %v392
    %v1608 = vunpack.c.l.b16 %v393
    %v1609 = vunpack.c.h.b16 %v393
    %v1610 = vunpack.c.l.b16 %v394
    %v1611 = vunpack.c.h.b16 %v394
    %v1612 = vunpack.c.l.b16 %v395
    %v1613 = vunpack.c.h.b16 %v395
    %v1614 = vunpack.c.l.b16 %v396
    %v1615 = vunpack.c.h.b16 %v396
    %v1616 = vunpack.c.l.b16 %v397
    %v1617 = vunpack.c.h.b16 %v397
    %v1618 = vunpack.c.l.b16 %v398
    %v1619 = vunpack.c.h.b16 %v398
    %v1620 = vunpack.c.l.b16 %v399
    %v1621 = vunpack.c.h.b16 %v399
    %v1622 = vunpack.c.l.b16 %v400
    %v1623 = vunpack.c.h.b16 %v400
    %v1624 = vunpack.c.l.b16 %v401
    %v1625 = vunpack.c.h.b16 %v401
    %v1626 = vunpack.c.l.b16 %v402
    %v1627 = vunpack.c.h.b16 %v402
    %v1628 = vunpack.c.l.b16 %v403
    %v1629 = vunpack.c.h.b16 %v403
    %v1630 = vunpack.c.l.b16 %v404
    %v1631 = vunpack.c.h.b16 %v404
    %v1632 = vunpack.c.l.b16 %v405
    %v1633 = vunpack.c.h.b16 %v405
    %v1634 = vunpack.c.l.b16 %v406
    %v1635 = vunpack.c.h.b16 %v406
    %v1636 = vunpack.c.l.b16 %v407
    %v1637 = vunpack.c.h.b16 %v407
    %v1638 = vunpack.c.l.b16 %v408
    %v1639 = vunpack.c.h.b16 %v408
    %v1640 = vunpack.c.l.b16 %v409
    %v1641 = vunpack.c.h.b16 %v409
    %v1642 = vunpack.c.l.b16 %v410
    %v1643 = vunpack.c.h.b16 %v410
    %v1644 = vunpack.c.l.b16 %v411
    %v1645 = vunpack.c.h.b16 %v411
    %v1646 = vunpack.c.l.b16 %v412
    %v1647 = vunpack.c.h.b16 %v412
    %v1648 = vunpack.c.l.b16 %v413
    %v1649 = vunpack.c.h.b16 %v413
    %v1650 = vunpack.c.l.b16 %v414
    %v1651 = vunpack.c.h.b16 %v414
    %v1652 = vunpack.c.l.b16 %v415
    %v1653 = vunpack.c.h.b16 %v415
    %v1654 = vunpack.c.l.b16 %v416
    %v1655 = vunpack.c.h.b16 %v416
    %v1656 = vunpack.c.l.b16 %v417
    %v1657 = vunpack.c.h.b16 %v417
    %v1658 = vunpack.c.l.b16 %v418
    %v1659 = vunpack.c.h.b16 %v418
    %v1660 = vunpack.c.l.b16 %v419
    %v1661 = vunpack.c.h.b16 %v419
    %v1662 = vunpack.c.l.b16 %v420
    %v1663 = vunpack.c.h.b16 %v420
    %v1664 = vunpack.c.l.b16 %v421
    %v1665 = vunpack.c.h.b16 %v421
    %v1666 = vunpack.c.l.b16 %v422
    %v1667 = vunpack.c.h.b16 %v422
    %v1668 = vunpack.c.l.b16 %v423
    %v1669 = vunpack.c.h.b16 %v423
    %v1670 = vunpack.c.l.b16 %v424
    %v1671 = vunpack.c.h.b16 %v424
    %v1672 = vunpack.c.l.b16 %v425
    %v1673 = vunpack.c.h.b16 %v425
    %v1674 = vunpack.c.l.b16 %v426
    %v1675 = vunpack.c.h.b16 %v426
    %v1676 = vunpack.c.l.b16 %v427
    %v1677 = vunpack.c.h.b16 %v427
    %v1678 = vunpack.c.l.b16 %v428
    %v1679 = vunpack.c.h.b16 %v428
    %v1680 = vunpack.c.l.b16 %v429
    %v1681 = vunpack.c.h.b16 %v429
    %v1682 = vunpack.c.l.b16 %v430
    %v1683 = vunpack.c.h.b16 %v430
    %v1684 = vunpack.c.l.b16 %v431
    %v1685 = vunpack.c.h.b16 %v431
    %v1686 = vunpack.c.l.b16 %v432
    %v1687 = vunpack.c.h.b16 %v432
    %v1688 = vunpack.c.l.b16 %v433
    %v1689 = vunpack.c.h.b16 %v433
    %v1690 = vunpack.c.l.b16 %v434
    %v1691 = vunpack.c.h.b16 %v434
    %v1692 = vunpack.c.l.b16 %v435
    %v1693 = vunpack.c.h.b16 %v435
    %v1694 = vunpack.c.l.b16 %v436
    %v1695 = vunpack.c.h.b16 %v436
    %v1696 = vunpack.c.l.b16 %v437
    %v1697 = vunpack.c.h.b16 %v437
    %v1698 = vunpack.c.l.b16 %v438
    %v1699 = vunpack.c.h.b16 %v438
    %v1700 = vunpack.c.l.b16 %v439
    %v1701 = vunpack.c.h.b16 %v439
    %v1702 = vunpack.c.l.b16 %v440
    %v1703 = vunpack.c.h.b16 %v440
    %v1704 = vunpack.c.l.b16 %v441
    %v1705 = vunpack.c.h.b16 %v441
    %v1706 = vunpack.c.l.b16 %v442
    %v1707 = vunpack.c.h.b16 %v442
    %v1708 = vunpack.c.l.b16 %v443
    %v1709 = vunpack.c.h.b16 %v443
    %v1710 = vunpack.c.l.b16 %v444
    %v1711 = vunpack.c.h.b16 %v444
    %v1712 = vunpack.c.l.b16 %v445
    %v1713 = vunpack.c.h.b16 %v445
    %v1714 = vunpack.c.l.b16 %v446
    %v1715 = vunpack.c.h.b16 %v446
    %v1716 = vunpack.c.l.b16 %v447
    %v1717 = vunpack.c.h.b16 %v447
    %v1718 = vunpack.c.l.b16 %v448
    %v1719 = vunpack.c.h.b16 %v448
    %v1720 = vunpack.c.l.b16 %v449
    %v1721 = vunpack.c.h.b16 %v449
    %v1722 = vunpack.c.l.b16 %v450
    %v1723 = vunpack.c.h.b16 %v450
    %v1724 = vunpack.c.l.b16 %v451
    %v1725 = vunpack.c.h.b16 %v451
    %v1726 = vunpack.c.l.b16 %v452
    %v1727 = vunpack.c.h.b16 %v452
    %v1728 = vunpack.c.l.b16 %v453
    %v1729 = vunpack.c.h.b16 %v453
    %v1730 = vunpack.c.l.b16 %v454
    %v1731 = vunpack.c.h.b16 %v454
    %v1732 = vunpack.c.l.b16 %v455
    %v1733 = vunpack.c.h.b16 %v455
    %v1734 = vunpack.c.l.b16 %v456
    %v1735 = vunpack.c.h.b16 %v456
    %v1736 = vunpack.c.l.b16 %v457
    %v1737 = vunpack.c.h.b16 %v457
    %v1738 = vunpack.c.l.b16 %v458
    %v1739 = vunpack.c.h.b16 %v458
    %v1740 = vunpack.c.l.b16 %v459
    %v1741 = vunpack.c.h.b16 %v459
    %v1742 = vunpack.c.l.b16 %v460
    %v1743 = vunpack.c.h.b16 %v460
    %v1744 = vunpack.c.l.b16 %v461
    %v1745 = vunpack.c.h.b16 %v461
    %v1746 = vunpack.c.l.b16 %v462
    %v1747 = vunpack.c.h.b16 %v462
    %v1748 = vunpack.c.l.b16 %v463
    %v1749 = vunpack.c.h.b16 %v463
    %v1750 = vunpack.c.l.b16 %v464
    %v1751 = vunpack.c.h.b16 %v464
    %v1752 = vunpack.c.l.b16 %v465
    %v1753 = vunpack.c.h.b16 %v465
    %v1754 = vunpack.c.l.b16 %v466
    %v1755 = vunpack.c.h.b16 %v466
    %v1756 = vunpack.c.l.b16 %v467
    %v1757 = vunpack.c.h.b16 %v467
    %v1758 = vunpack.c.l.b16 %v468
    %v1759 = vunpack.c.h.b16 %v468
    %v1760 = vunpack.c.l.b16 %v469
    %v1761 = vunpack.c.h.b16 %v469
    %v1762 = vunpack.c.l.b16 %v470
    %v1763 = vunpack.c.h.b16 %v470
    %v1764 = vunpack.c.l.b16 %v471
    %v1765 = vunpack.c.h.b16 %v471
    %v1766 = vunpack.c.l.b16 %v472
    %v1767 = vunpack.c.h.b16 %v472
    %v1768 = vunpack.c.l.b16 %v473
    %v1769 = vunpack.c.h.b16 %v473
    %v1770 = vunpack.c.l.b16 %v474
    %v1771 = vunpack.c.h.b16 %v474
    %v1772 = vunpack.c.l.b16 %v475
    %v1773 = vunpack.c.h.b16 %v475
    %v1774 = vunpack.c.l.b16 %v476
    %v1775 = vunpack.c.h.b16 %v476
    %v1776 = vunpack.c.l.b16 %v477
    %v1777 = vunpack.c.h.b16 %v477
    %v1778 = vunpack.c.l.b16 %v478
    %v1779 = vunpack.c.h.b16 %v478
    %v1780 = vunpack.c.l.b16 %v479
    %v1781 = vunpack.c.h.b16 %v479
    %v1782 = vunpack.c.l.b16 %v480
    %v1783 = vunpack.c.h.b16 %v480
    %v1784 = vunpack.c.l.b16 %v481
    %v1785 = vunpack.c.h.b16 %v481
    %v1786 = vunpack.c.l.b16 %v482
    %v1787 = vunpack.c.h.b16 %v482
    %v1788 = vunpack.c.l.b16 %v483
    %v1789 = vunpack.c.h.b16 %v483
    %v1790 = vunpack.c.l.b16 %v484
    %v1791 = vunpack.c.h.b16 %v484
    %v1792 = vunpack.c.l.b16 %v485
    %v1793 = vunpack.c.h.b16 %v485
    %v1794 = vunpack.c.l.b16 %v486
    %v1795 = vunpack.c.h.b16 %v486
    %v1796 = vunpack.c.l.b16 %v487
    %v1797 = vunpack.c.h.b16 %v487
    %v1798 = vunpack.c.l.b16 %v488
    %v1799 = vunpack.c.h.b16 %v488
    %v1800 = vunpack.c.l.b16 %v489
    %v1801 = vunpack.c.h.b16 %v489
    %v1802 = vunpack.c.l.b16 %v490
    %v1803 = vunpack.c.h.b16 %v490
    %v1804 = vunpack.c.l.b16 %v491
    %v1805 = vunpack.c.h.b16 %v491
    %v1806 = vunpack.c.l.b16 %v492
    %v1807 = vunpack.c.h.b16 %v492
    %v1808 = vunpack.c.l.b16 %v493
    %v1809 = vunpack.c.h.b16 %v493
    %v1810 = vunpack.c.l.b16 %v494
    %v1811 = vunpack.c.h.b16 %v494
    %v1812 = vunpack.c.l.b16 %v495
    %v1813 = vunpack.c.h.b16 %v495
    %v1814 = vunpack.c.l.b16 %v496
    %v1815 = vunpack.c.h.b16 %v496
    %v1816 = vunpack.c.l.b16 %v497
    %v1817 = vunpack.c.h.b16 %v497
    %v1818 = vunpack.c.l.b16 %v498
    %v1819 = vunpack.c.h.b16 %v498
    %v1820 = vunpack.c.l.b16 %v499
    %v1821 = vunpack.c.h.b16 %v499
    %v1822 = vunpack.c.l.b16 %v500
    %v1823 = vunpack.c.h.b16 %v500
    %v1824 = vunpack.c.l.b16 %v501
    %v1825 = vunpack.c.h.b16 %v501
    %v1826 = vunpack.c.l.b16 %v502
    %v1827 = vunpack.c.h.b16 %v502
    %v1828 = vunpack.c.l.b16 %v503
    %v1829 = vunpack.c.h.b16 %v503
    %v1830 = vunpack.c.l.b16 %v504
    %v1831 = vunpack.c.h.b16 %v504
    %v1832 = vunpack.c.l.b16 %v505
    %v1833 = vunpack.c.h.b16 %v505
    %v1834 = vunpack.c.l.b16 %v506
    %v1835 = vunpack.c.h.b16 %v506
    %v1836 = vunpack.c.l.b16 %v507
    %v1837 = vunpack.c.h.b16 %v507
    %v1838 = vunpack.c.l.b16 %v508
    %v1839 = vunpack.c.h.b16 %v508
    %v1840 = vunpack.c.l.b16 %v509
    %v1841 = vunpack.c.h.b16 %v509
    %v1842 = vunpack.c.l.b16 %v510
    %v1843 = vunpack.c.h.b16 %v510
    %v1844 = vunpack.c.l.b16 %v511
    %v1845 = vunpack.c.h.b16 %v511
    %v1846 = vunpack.c.l.b16 %v512
    %v1847 = vunpack.c.h.b16 %v512
    %v1848 = vunpack.c.l.b16 %v513
    %v1849 = vunpack.c.h.b16 %v513
    %v1850 = vunpack.c.l.b16 %v514
    %v1851 = vunpack.c.h.b16 %v514
    %v1852 = vunpack.c.l.b16 %v515
    %v1853 = vunpack.c.h.b16 %v515
    %v1854 = vunpack.c.l.b16 %v516
    %v1855 = vunpack.c.h.b16 %v516
    %v1856 = vunpack.c.l.b16 %v517
    %v1857 = vunpack.c.h.b16 %v517
    %v1858 = vunpack.c.l.b16 %v518
    %v1859 = vunpack.c.h.b16 %v518
    %v1860 = vunpack.c.l.b16 %v519
    %v1861 = vunpack.c.h.b16 %v519
    %v1862 = vunpack.c.l.b16 %v520
    %v1863 = vunpack.c.h.b16 %v520
    %v1864 = vunpack.c.l.b16 %v521
    %v1865 = vunpack.c.h.b16 %v521
    %v1866 = vunpack.c.l.b16 %v522
    %v1867 = vunpack.c.h.b16 %v522
    %v1868 = vunpack.c.l.b16 %v523
    %v1869 = vunpack.c.h.b16 %v523
    %v1870 = vunpack.c.l.b16 %v524
    %v1871 = vunpack.c.h.b16 %v524
    %v1872 = vunpack.c.l.b16 %v525
    %v1873 = vunpack.c.h.b16 %v525
    %v1874 = vunpack.c.l.b16 %v526
    %v1875 = vunpack.c.h.b16 %v526
    %v1876 = vunpack.c.l.b16 %v527
    %v1877 = vunpack.c.h.b16 %v527
    %v1878 = vunpack.c.l.b16 %v528
    %v1879 = vunpack.c.h.b16 %v528
    %v1880 = vunpack.c.l.b16 %v529
    %v1881 = vunpack.c.h.b16 %v529
    %v1882 = vunpack.c.l.b16 %v530
    %v1883 = vunpack.c.h.b16 %v530
    %v1884 = vunpack.c.l.b16 %v531
    %v1885 = vunpack.c.h.b16 %v531
    %v1886 = vunpack.c.l.b16 %v532
    %v1887 = vunpack.c.h.b16 %v532
    %v1888 = vunpack.c.l.b16 %v533
    %v1889 = vunpack.c.h.b16 %v533
    %v1890 = vunpack.c.l.b16 %v534
    %v1891 = vunpack.c.h.b16 %v534
    %v1892 = vunpack.c.l.b16 %v535
    %v1893 = vunpack.c.h.b16 %v535
    %v1894 = vunpack.c.l.b16 %v536
    %v1895 = vunpack.c.h.b16 %v536
    %v1896 = vunpack.c.l.b16 %v537
    %v1897 = vunpack.c.h.b16 %v537
    %v1898 = vunpack.c.l.b16 %v538
    %v1899 = vunpack.c.h.b16 %v538
    %v1900 = vunpack.c.l.b16 %v539
    %v1901 = vunpack.c.h.b16 %v539
    %v1902 = vunpack.c.l.b16 %v540
    %v1903 = vunpack.c.h.b16 %v540
    %v1904 = vunpack.c.l.b16 %v541
    %v1905 = vunpack.c.h.b16 %v541
    %v1906 = vunpack.c.l.b16 %v542
    %v1907 = vunpack.c.h.b16 %v542
    %v1908 = vunpack.c.l.b16 %v543
    %v1909 = vunpack.c.h.b16 %v543
    %v1910 = vunpack.c.l.b16 %v544
    %v1911 = vunpack.c.h.b16 %v544
    %v1912 = vunpack.c.l.b16 %v545
    %v1913 = vunpack.c.h.b16 %v545
    %v1914 = vunpack.c.l.b16 %v546
    %v1915 = vunpack.c.h.b16 %v546
    %v1916 = vunpack.c.l.b16 %v547
    %v1917 = vunpack.c.h.b16 %v547
    %v1918 = vunpack.c.l.b16 %v548
    %v1919 = vunpack.c.h.b16 %v548
    %v1920 = vunpack.c.l.b16 %v549
    %v1921 = vunpack.c.h.b16 %v549
    %v1922 = vunpack.c.l.b16 %v550
    %v1923 = vunpack.c.h.b16 %v550
    %v1924 = vunpack.c.l.b16 %v551
    %v1925 = vunpack.c.h.b16 %v551
    %v1926 = vunpack.c.l.b16 %v552
    %v1927 = vunpack.c.h.b16 %v552
    %v1928 = vunpack.c.l.b16 %v553
    %v1929 = vunpack.c.h.b16 %v553
    %v1930 = vunpack.c.l.b16 %v554
    %v1931 = vunpack.c.h.b16 %v554
    %v1932 = vunpack.c.l.b16 %v555
    %v1933 = vunpack.c.h.b16 %v555
    %v1934 = vunpack.c.l.b16 %v556
    %v1935 = vunpack.c.h.b16 %v556
    %v1936 = vunpack.c.l.b16 %v557
    %v1937 = vunpack.c.h.b16 %v557
    %v1938 = vunpack.c.l.b16 %v558
    %v1939 = vunpack.c.h.b16 %v558
    %v1940 = vunpack.c.l.b16 %v559
    %v1941 = vunpack.c.h.b16 %v559
    %v1942 = vunpack.c.l.b16 %v560
    %v1943 = vunpack.c.h.b16 %v560
    %v1944 = vunpack.c.l.b16 %v561
    %v1945 = vunpack.c.h.b16 %v561
    %v1946 = vunpack.c.l.b16 %v562
    %v1947 = vunpack.c.h.b16 %v562
    %v1948 = vunpack.c.l.b16 %v563
    %v1949 = vunpack.c.h.b16 %v563
    %v1950 = vunpack.c.l.b16 %v564
    %v1951 = vunpack.c.h.b16 %v564
    %v1952 = vunpack.c.l.b16 %v565
    %v1953 = vunpack.c.h.b16 %v565
    %v1954 = vunpack.c.l.b16 %v566
    %v1955 = vunpack.c.h.b16 %v566
    %v1956 = vunpack.c.l.b16 %v567
    %v1957 = vunpack.c.h.b16 %v567
    %v1958 = vunpack.c.l.b16 %v568
    %v1959 = vunpack.c.h.b16 %v568
    %v1960 = vunpack.c.l.b16 %v569
    %v1961 = vunpack.c.h.b16 %v569
    %v1962 = vunpack.c.l.b16 %v570
    %v1963 = vunpack.c.h.b16 %v570
    %v1964 = vunpack.c.l.b16 %v571
    %v1965 = vunpack.c.h.b16 %v571
    %v1966 = vunpack.c.l.b16 %v572
    %v1967 = vunpack.c.h.b16 %v572
    %v1968 = vunpack.c.l.b16 %v573
    %v1969 = vunpack.c.h.b16 %v573
    %v1970 = vunpack.c.l.b16 %v574
    %v1971 = vunpack.c.h.b16 %v574
    %v1972 = vunpack.c.l.b16 %v575
    %v1973 = vunpack.c.h.b16 %v575
    %v1974 = vunpack.c.l.b16 %v576
    %v1975 = vunpack.c.h.b16 %v576
    %v1976 = vunpack.c.l.b16 %v577
    %v1977 = vunpack.c.h.b16 %v577
    %v1978 = vunpack.c.l.b16 %v578
    %v1979 = vunpack.c.h.b16 %v578
    %v1980 = vunpack.c.l.b16 %v579
    %v1981 = vunpack.c.h.b16 %v579
    %v1982 = vunpack.c.l.b16 %v580
    %v1983 = vunpack.c.h.b16 %v580
    %v1984 = vunpack.c.l.b16 %v581
    %v1985 = vunpack.c.h.b16 %v581
    %v1986 = vunpack.c.l.b16 %v582
    %v1987 = vunpack.c.h.b16 %v582
    %v1988 = vunpack.c.l.b16 %v583
    %v1989 = vunpack.c.h.b16 %v583
    %v1990 = vunpack.c.l.b16 %v584
    %v1991 = vunpack.c.h.b16 %v584
    %v1992 = vunpack.c.l.b16 %v585
    %v1993 = vunpack.c.h.b16 %v585
    %v1994 = vunpack.c.l.b16 %v586
    %v1995 = vunpack.c.h.b16 %v586
    %v1996 = vunpack.c.l.b16 %v587
    %v1997 = vunpack.c.h.b16 %v587
    %v1998 = vunpack.c.l.b16 %v588
    %v1999 = vunpack.c.h.b16 %v588
    %v2000 = vunpack.c.l.b16 %v589
    %v2001 = vunpack.c.h.b16 %v589
    %v2002 = vunpack.c.l.b16 %v590
    %v2003 = vunpack.c.h.b16 %v590
    %v2004 = vunpack.c.l.b16 %v591
    %v2005 = vunpack.c.h.b16 %v591
    %v2006 = vunpack.c.l.b16 %v592
    %v2007 = vunpack.c.h.b16 %v592
    %v2008 = vunpack.c.l.b16 %v593
    %v2009 = vunpack.c.h.b16 %v593
    %v2010 = vunpack.c.l.b16 %v594
    %v2011 = vunpack.c.h.b16 %v594
    %v2012 = vunpack.c.l.b16 %v595
    %v2013 = vunpack.c.h.b16 %v595
    %v2014 = vunpack.c.l.b16 %v596
    %v2015 = vunpack.c.h.b16 %v596
    %v2016 = vunpack.c.l.b16 %v597
    %v2017 = vunpack.c.h.b16 %v597
    %v2018 = vunpack.c.l.b16 %v598
    %v2019 = vunpack.c.h.b16 %v598
    %v2020 = vunpack.c.l.b16 %v599
    %v2021 = vunpack.c.h.b16 %v599
    %v2022 = vunpack.c.l.b16 %v600
    %v2023 = vunpack.c.h.b16 %v600
    %v2024 = vunpack.c.l.b16 %v601
    %v2025 = vunpack.c.h.b16 %v601
    %v2026 = vunpack.c.l.b16 %v602
    %v2027 = vunpack.c.h.b16 %v602
    %v2028 = vunpack.c.l.b16 %v603
    %v2029 = vunpack.c.h.b16 %v603
    %v2030 = vunpack.c.l.b16 %v604
    %v2031 = vunpack.c.h.b16 %v604
    %v2032 = vunpack.c.l.b16 %v605
    %v2033 = vunpack.c.h.b16 %v605
    %v2034 = vunpack.c.l.b16 %v606
    %v2035 = vunpack.c.h.b16 %v606
    %v2036 = vunpack.c.l.b16 %v607
    %v2037 = vunpack.c.h.b16 %v607
    %v2038 = vunpack.c.l.b16 %v608
    %v2039 = vunpack.c.h.b16 %v608
    %v2040 = vunpack.c.l.b16 %v609
    %v2041 = vunpack.c.h.b16 %v609
    %v2042 = vunpack.c.l.b16 %v610
    %v2043 = vunpack.c.h.b16 %v610
    %v2044 = vunpack.c.l.b16 %v611
    %v2045 = vunpack.c.h.b16 %v611
    %v2046 = vunpack.c.l.b16 %v612
    %v2047 = vunpack.c.h.b16 %v612
    %v2048 = vunpack.c.l.b16 %v613
    %v2049 = vunpack.c.h.b16 %v613
    %v2050 = vunpack.c.l.b16 %v614
    %v2051 = vunpack.c.h.b16 %v614
    %v2052 = vunpack.c.l.b16 %v615
    %v2053 = vunpack.c.h.b16 %v615
    %v2054 = vunpack.c.l.b16 %v616
    %v2055 = vunpack.c.h.b16 %v616
    %v2056 = vunpack.c.l.b16 %v617
    %v2057 = vunpack.c.h.b16 %v617
    %v2058 = vunpack.c.l.b16 %v618
    %v2059 = vunpack.c.h.b16 %v618
    %v2060 = vunpack.c.l.b16 %v619
    %v2061 = vunpack.c.h.b16 %v619
    %v2062 = vunpack.c.l.b16 %v620
    %v2063 = vunpack.c.h.b16 %v620
    %v2064 = vunpack.c.l.b16 %v621
    %v2065 = vunpack.c.h.b16 %v621
    %v2066 = vunpack.c.l.b16 %v622
    %v2067 = vunpack.c.h.b16 %v622
    %v2068 = vunpack.c.l.b16 %v623
    %v2069 = vunpack.c.h.b16 %v623
    %v2070 = vunpack.c.l.b16 %v624
    %v2071 = vunpack.c.h.b16 %v624
    %v2072 = vunpack.c.l.b16 %v625
    %v2073 = vunpack.c.h.b16 %v625
    %v2074 = vunpack.c.l.b16 %v626
    %v2075 = vunpack.c.h.b16 %v626
    %v2076 = vunpack.c.l.b16 %v627
    %v2077 = vunpack.c.h.b16 %v627
    %v2078 = vunpack.c.l.b16 %v628
    %v2079 = vunpack.c.h.b16 %v628
    %v2080 = vunpack.c.l.b16 %v629
    %v2081 = vunpack.c.h.b16 %v629
    %v2082 = vunpack.c.l.b16 %v630
    %v2083 = vunpack.c.h.b16 %v630
    %v2084 = vunpack.c.l.b16 %v631
    %v2085 = vunpack.c.h.b16 %v631
    %v2086 = vunpack.c.l.b16 %v632
    %v2087 = vunpack.c.h.b16 %v632
    %v2088 = vunpack.c.l.b16 %v633
    %v2089 = vunpack.c.h.b16 %v633
    %v2090 = vunpack.c.l.b16 %v634
    %v2091 = vunpack.c.h.b16 %v634
    %v2092 = vunpack.c.l.b16 %v635
    %v2093 = vunpack.c.h.b16 %v635
    %v2094 = vunpack.c.l.b16 %v636
    %v2095 = vunpack.c.h.b16 %v636
    %v2096 = vunpack.c.l.b16 %v637
    %v2097 = vunpack.c.h.b16 %v637
    %v2098 = vunpack.c.l.b16 %v638
    %v2099 = vunpack.c.h.b16 %v638
    %v2100 = vunpack.c.l.b16 %v639
    %v2101 = vunpack.c.h.b16 %v639
    %v2102 = vunpack.c.l.b16 %v640
    %v2103 = vunpack.c.h.b16 %v640
    %v2104 = vunpack.c.l.b16 %v641
    %v2105 = vunpack.c.h.b16 %v641
    %v2106 = vunpack.c.l.b16 %v642
    %v2107 = vunpack.c.h.b16 %v642
    %v2108 = vunpack.c.l.b16 %v643
    %v2109 = vunpack.c.h.b16 %v643
    %v2110 = vunpack.c.l.b16 %v644
    %v2111 = vunpack.c.h.b16 %v644
    %v2112 = vunpack.c.l.b16 %v645
    %v2113 = vunpack.c.h.b16 %v645
    %v2114 = vunpack.c.l.b16 %v646
    %v2115 = vunpack.c.h.b16 %v646
    %v2116 = vunpack.c.l.b16 %v647
    %v2117 = vunpack.c.h.b16 %v647
    %v2118 = vunpack.c.l.b16 %v648
    %v2119 = vunpack.c.h.b16 %v648
    %v2120 = vunpack.c.l.b16 %v649
    %v2121 = vunpack.c.h.b16 %v649
    %v2122 = vunpack.c.l.b16 %v650
    %v2123 = vunpack.c.h.b16 %v650
    %v2124 = vunpack.c.l.b16 %v651
    %v2125 = vunpack.c.h.b16 %v651
    %v2126 = vunpack.c.l.b16 %v652
    %v2127 = vunpack.c.h.b16 %v652
    %v2128 = vunpack.c.l.b16 %v653
    %v2129 = vunpack.c.h.b16 %v653
    %v2130 = vunpack.c.l.b16 %v654
    %v2131 = vunpack.c.h.b16 %v654
    %v2132 = vunpack.c.l.b16 %v655
    %v2133 = vunpack.c.h.b16 %v655
    %v2134 = vunpack.c.l.b16 %v656
    %v2135 = vunpack.c.h.b16 %v656
    %v2136 = vunpack.c.l.b16 %v657
    %v2137 = vunpack.c.h.b16 %v657
    %v2138 = vunpack.c.l.b16 %v658
    %v2139 = vunpack.c.h.b16 %v658
    %v2140 = vunpack.c.l.b16 %v659
    %v2141 = vunpack.c.h.b16 %v659
    %v2142 = vunpack.c.l.b16 %v660
    %v2143 = vunpack.c.h.b16 %v660
    %v2144 = vunpack.c.l.b16 %v661
    %v2145 = vunpack.c.h.b16 %v661
    %v2146 = vunpack.c.l.b16 %v662
    %v2147 = vunpack.c.h.b16 %v662
    %v2148 = vunpack.c.l.b16 %v663
    %v2149 = vunpack.c.h.b16 %v663
    %v2150 = vunpack.c.l.b16 %v664
    %v2151 = vunpack.c.h.b16 %v664
    %v2152 = vunpack.c.l.b16 %v665
    %v2153 = vunpack.c.h.b16 %v665
    %v2154 = vunpack.c.l.b16 %v666
    %v2155 = vunpack.c.h.b16 %v666
    %v2156 = vunpack.c.l.b16 %v667
    %v2157 = vunpack.c.h.b16 %v667
    %v2158 = vunpack.c.l.b16 %v668
    %v2159 = vunpack.c.h.b16 %v668
    %v2160 = vunpack.c.l.b16 %v669
    %v2161 = vunpack.c.h.b16 %v669
    %v2162 = vunpack.c.l.b16 %v670
    %v2163 = vunpack.c.h.b16 %v670
    %v2164 = vunpack.c.l.b16 %v671
    %v2165 = vunpack.c.h.b16 %v671
    %v2166 = vunpack.c.l.b16 %v672
    %v2167 = vunpack.c.h.b16 %v672
    %v2168 = vunpack.c.l.b16 %v673
    %v2169 = vunpack.c.h.b16 %v673
    %v2170 = vunpack.c.l.b16 %v674
    %v2171 = vunpack.c.h.b16 %v674
    %v2172 = vunpack.c.l.b16 %v675
    %v2173 = vunpack.c.h.b16 %v675
    %v2174 = vunpack.c.l.b16 %v676
    %v2175 = vunpack.c.h.b16 %v676
    %v2176 = vunpack.c.l.b16 %v677
    %v2177 = vunpack.c.h.b16 %v677
    %v2178 = vunpack.c.l.b16 %v678
    %v2179 = vunpack.c.h.b16 %v678
    %v2180 = vunpack.c.l.b16 %v679
    %v2181 = vunpack.c.h.b16 %v679
    %v2182 = vunpack.c.l.b16 %v680
    %v2183 = vunpack.c.h.b16 %v680
    %v2184 = vunpack.c.l.b16 %v681
    %v2185 = vunpack.c.h.b16 %v681
    %v2186 = vunpack.c.l.b16 %v682
    %v2187 = vunpack.c.h.b16 %v682
    %v2188 = vunpack.c.l.b16 %v683
    %v2189 = vunpack.c.h.b16 %v683
    %v2190 = vunpack.c.l.b16 %v684
    %v2191 = vunpack.c.h.b16 %v684
    %v2192 = vunpack.c.l.b16 %v685
    %v2193 = vunpack.c.h.b16 %v685
    %v2194 = vunpack.c.l.b16 %v686
    %v2195 = vunpack.c.h.b16 %v686
    %v2196 = vunpack.c.l.b16 %v687
    %v2197 = vunpack.c.h.b16 %v687
    %v2198 = vunpack.c.l.b16 %v688
    %v2199 = vunpack.c.h.b16 %v688
    %v2200 = vunpack.c.l.b16 %v689
    %v2201 = vunpack.c.h.b16 %v689
    %v2202 = vunpack.c.l.b16 %v690
    %v2203 = vunpack.c.h.b16 %v690
    %v2204 = vunpack.c.l.b16 %v691
    %v2205 = vunpack.c.h.b16 %v691
    %v2206 = vunpack.c.l.b16 %v692
    %v2207 = vunpack.c.h.b16 %v692
    %v2208 = vunpack.c.l.b16 %v693
    %v2209 = vunpack.c.h.b16 %v693
    %v2210 = vunpack.c.l.b16 %v694
    %v2211 = vunpack.c.h.b16 %v694
    %v2212 = vunpack.c.l.b16 %v695
    %v2213 = vunpack.c.h.b16 %v695
    %v2214 = vunpack.c.l.b16 %v696
    %v2215 = vunpack.c.h.b16 %v696
    %v2216 = vunpack.c.l.b16 %v697
    %v2217 = vunpack.c.h.b16 %v697
    %v2218 = vunpack.c.l.b16 %v698
    %v2219 = vunpack.c.h.b16 %v698
    %v2220 = vunpack.c.l.b16 %v699
    %v2221 = vunpack.c.h.b16 %v699
    %v2222 = vunpack.c.l.b16 %v700
    %v2223 = vunpack.c.h.b16 %v700
    %v2224 = vunpack.c.l.b16 %v701
    %v2225 = vunpack.c.h.b16 %v701
    %v2226 = vunpack.c.l.b16 %v702
    %v2227 = vunpack.c.h.b16 %v702
    %v2228 = vunpack.c.l.b16 %v703
    %v2229 = vunpack.c.h.b16 %v703
    %v2230 = vunpack.c.l.b16 %v704
    %v2231 = vunpack.c.h.b16 %v704
    %v2232 = vunpack.c.l.b16 %v705
    %v2233 = vunpack.c.h.b16 %v705
    %v2234 = vunpack.c.l.b16 %v706
    %v2235 = vunpack.c.h.b16 %v706
    %v2236 = vunpack.c.l.b16 %v707
    %v2237 = vunpack.c.h.b16 %v707
    %v2238 = vunpack.c.l.b16 %v708
    %v2239 = vunpack.c.h.b16 %v708
    %v2240 = vunpack.c.l.b16 %v709
    %v2241 = vunpack.c.h.b16 %v709
    %v2242 = vunpack.c.l.b16 %v710
    %v2243 = vunpack.c.h.b16 %v710
    %v2244 = vunpack.c.l.b16 %v711
    %v2245 = vunpack.c.h.b16 %v711
    %v2246 = vunpack.c.l.b16 %v712
    %v2247 = vunpack.c.h.b16 %v712
    %v2248 = vunpack.c.l.b16 %v713
    %v2249 = vunpack.c.h.b16 %v713
    %v2250 = vpack.c.b16 %v1234, %v1226
    %v2251 = vpack.c.b16 %v1235, %v1227
    %v2252 = vpack.c.b16 %v1236, %v1228
    %v2253 = vpack.c.b16 %v1237, %v1229
    %v2254 = vpack.c.b16 %v1238, %v1230
    %v2255 = vpack.c.b16 %v1239, %v1231
    %v2256 = vpack.c.b16 %v1240, %v1232
    %v2257 = vpack.c.b16 %v1241, %v1233
    %v2258 = vpack.c.b16 %v1250, %v1242
    %v2259 = vpack.c.b16 %v1251, %v1243
    %v2260 = vpack.c.b16 %v1252, %v1244
    %v2261 = vpack.c.b16 %v1253, %v1245
    %v2262 = vpack.c.b16 %v1254, %v1246
    %v2263 = vpack.c.b16 %v1255, %v1247
    %v2264 = vpack.c.b16 %v1256, %v1248
    %v2265 = vpack.c.b16 %v1257, %v1249
    %v2266 = vpack.c.b16 %v1266, %v1258
    %v2267 = vpack.c.b16 %v1267, %v1259
    %v2268 = vpack.c.b16 %v1268, %v1260
    %v2269 = vpack.c.b16 %v1269, %v1261
    %v2270 = vpack.c.b16 %v1270, %v1262
    %v2271 = vpack.c.b16 %v1271, %v1263
    %v2272 = vpack.c.b16 %v1272, %v1264
    %v2273 = vpack.c.b16 %v1273, %v1265
    %v2274 = vpack.c.b16 %v1282, %v1274
    %v2275 = vpack.c.b16 %v1283, %v1275
    %v2276 = vpack.c.b16 %v1284, %v1276
    %v2277 = vpack.c.b16 %v1285, %v1277
    %v2278 = vpack.c.b16 %v1286, %v1278
    %v2279 = vpack.c.b16 %v1287, %v1279
    %v2280 = vpack.c.b16 %v1288, %v1280
    %v2281 = vpack.c.b16 %v1289, %v1281
    %v2282 = vpack.c.b16 %v1298, %v1290
    %v2283 = vpack.c.b16 %v1299, %v1291
    %v2284 = vpack.c.b16 %v1300, %v1292
    %v2285 = vpack.c.b16 %v1301, %v1293
    %v2286 = vpack.c.b16 %v1302, %v1294
    %v2287 = vpack.c.b16 %v1303, %v1295
    %v2288 = vpack.c.b16 %v1304, %v1296
    %v2289 = vpack.c.b16 %v1305, %v1297
    %v2290 = vpack.c.b16 %v1314, %v1306
    %v2291 = vpack.c.b16 %v1315, %v1307
    %v2292 = vpack.c.b16 %v1316, %v1308
    %v2293 = vpack.c.b16 %v1317, %v1309
    %v2294 = vpack.c.b16 %v1318, %v1310
    %v2295 = vpack.c.b16 %v1319, %v1311
    %v2296 = vpack.c.b16 %v1320, %v1312
    %v2297 = vpack.c.b16 %v1321, %v1313
    %v2298 = vpack.c.b16 %v1330, %v1322
    %v2299 = vpack.c.b16 %v1331, %v1323
    %v2300 = vpack.c.b16 %v1332, %v1324
    %v2301 = vpack.c.b16 %v1333, %v1325
    %v2302 = vpack.c.b16 %v1334, %v1326
    %v2303 = vpack.c.b16 %v1335, %v1327
    %v2304 = vpack.c.b16 %v1336, %v1328
    %v2305 = vpack.c.b16 %v1337, %v1329
    %v2306 = vpack.c.b16 %v1346, %v1338
    %v2307 = vpack.c.b16 %v1347, %v1339
    %v2308 = vpack.c.b16 %v1348, %v1340
    %v2309 = vpack.c.b16 %v1349, %v1341
    %v2310 = vpack.c.b16 %v1350, %v1342
    %v2311 = vpack.c.b16 %v1351, %v1343
    %v2312 = vpack.c.b16 %v1352, %v1344
    %v2313 = vpack.c.b16 %v1353, %v1345
    %v2314 = vpack.c.b16 %v1362, %v1354
    %v2315 = vpack.c.b16 %v1363, %v1355
    %v2316 = vpack.c.b16 %v1364, %v1356
    %v2317 = vpack.c.b16 %v1365, %v1357
    %v2318 = vpack.c.b16 %v1366, %v1358
    %v2319 = vpack.c.b16 %v1367, %v1359
    %v2320 = vpack.c.b16 %v1368, %v1360
    %v2321 = vpack.c.b16 %v1369, %v1361
    %v2322 = vpack.c.b16 %v1378, %v1370
    %v2323 = vpack.c.b16 %v1379, %v1371
    %v2324 = vpack.c.b16 %v1380, %v1372
    %v2325 = vpack.c.b16 %v1381, %v1373
    %v2326 = vpack.c.b16 %v1382, %v1374
    %v2327 = vpack.c.b16 %v1383, %v1375
    %v2328 = vpack.c.b16 %v1384, %v1376
    %v2329 = vpack.c.b16 %v1385, %v1377
    %v2330 = vpack.c.b16 %v1394, %v1386
    %v2331 = vpack.c.b16 %v1395, %v1387
    %v2332 = vpack.c.b16 %v1396, %v1388
    %v2333 = vpack.c.b16 %v1397, %v1389
    %v2334 = vpack.c.b16 %v1398, %v1390
    %v2335 = vpack.c.b16 %v1399, %v1391
    %v2336 = vpack.c.b16 %v1400, %v1392
    %v2337 = vpack.c.b16 %v1401, %v1393
    %v2338 = vpack.c.b16 %v1410, %v1402
    %v2339 = vpack.c.b16 %v1411, %v1403
    %v2340 = vpack.c.b16 %v1412, %v1404
    %v2341 = vpack.c.b16 %v1413, %v1405
    %v2342 = vpack.c.b16 %v1414, %v1406
    %v2343 = vpack.c.b16 %v1415, %v1407
    %v2344 = vpack.c.b16 %v1416, %v1408
    %v2345 = vpack.c.b16 %v1417, %v1409
    %v2346 = vpack.c.b16 %v1426, %v1418
    %v2347 = vpack.c.b16 %v1427, %v1419
    %v2348 = vpack.c.b16 %v1428, %v1420
    %v2349 = vpack.c.b16 %v1429, %v1421
    %v2350 = vpack.c.b16 %v1430, %v1422
    %v2351 = vpack.c.b16 %v1431, %v1423
    %v2352 = vpack.c.b16 %v1432, %v1424
    %v2353 = vpack.c.b16 %v1433, %v1425
    %v2354 = vpack.c.b16 %v1442, %v1434
    %v2355 = vpack.c.b16 %v1443, %v1435
    %v2356 = vpack.c.b16 %v1444, %v1436
    %v2357 = vpack.c.b16 %v1445, %v1437
    %v2358 = vpack.c.b16 %v1446, %v1438
    %v2359 = vpack.c.b16 %v1447, %v1439
    %v2360 = vpack.c.b16 %v1448, %v1440
    %v2361 = vpack.c.b16 %v1449, %v1441
    %v2362 = vpack.c.b16 %v1458, %v1450
    %v2363 = vpack.c.b16 %v1459, %v1451
    %v2364 = vpack.c.b16 %v1460, %v1452
    %v2365 = vpack.c.b16 %v1461, %v1453
    %v2366 = vpack.c.b16 %v1462, %v1454
    %v2367 = vpack.c.b16 %v1463, %v1455
    %v2368 = vpack.c.b16 %v1464, %v1456
    %v2369 = vpack.c.b16 %v1465, %v1457
    %v2370 = vpack.c.b16 %v1474, %v1466
    %v2371 = vpack.c.b16 %v1475, %v1467
    %v2372 = vpack.c.b16 %v1476, %v1468
    %v2373 = vpack.c.b16 %v1477, %v1469
    %v2374 = vpack.c.b16 %v1478, %v1470
    %v2375 = vpack.c.b16 %v1479, %v1471
    %v2376 = vpack.c.b16 %v1480, %v1472
    %v2377 = vpack.c.b16 %v1481, %v1473
    %v2378 = vpack.c.b16 %v1490, %v1482
    %v2379 = vpack.c.b16 %v1491, %v1483
    %v2380 = vpack.c.b16 %v1492, %v1484
    %v2381 = vpack.c.b16 %v1493, %v1485
    %v2382 = vpack.c.b16 %v1494, %v1486
    %v2383 = vpack.c.b16 %v1495, %v1487
    %v2384 = vpack.c.b16 %v1496, %v1488
    %v2385 = vpack.c.b16 %v1497, %v1489
    %v2386 = vpack.c.b16 %v1506, %v1498
    %v2387 = vpack.c.b16 %v1507, %v1499
    %v2388 = vpack.c.b16 %v1508, %v1500
    %v2389 = vpack.c.b16 %v1509, %v1501
    %v2390 = vpack.c.b16 %v1510, %v1502
    %v2391 = vpack.c.b16 %v1511, %v1503
    %v2392 = vpack.c.b16 %v1512, %v1504
    %v2393 = vpack.c.b16 %v1513, %v1505
    %v2394 = vpack.c.b16 %v1522, %v1514
    %v2395 = vpack.c.b16 %v1523, %v1515
    %v2396 = vpack.c.b16 %v1524, %v1516
    %v2397 = vpack.c.b16 %v1525, %v1517
    %v2398 = vpack.c.b16 %v1526, %v1518
    %v2399 = vpack.c.b16 %v1527, %v1519
    %v2400 = vpack.c.b16 %v1528, %v1520
    %v2401 = vpack.c.b16 %v1529, %v1521
    %v2402 = vpack.c.b16 %v1538, %v1530
    %v2403 = vpack.c.b16 %v1539, %v1531
    %v2404 = vpack.c.b16 %v1540, %v1532
    %v2405 = vpack.c.b16 %v1541, %v1533
    %v2406 = vpack.c.b16 %v1542, %v1534
    %v2407 = vpack.c.b16 %v1543, %v1535
    %v2408 = vpack.c.b16 %v1544, %v1536
    %v2409 = vpack.c.b16 %v1545, %v1537
    %v2410 = vpack.c.b16 %v1554, %v1546
    %v2411 = vpack.c.b16 %v1555, %v1547
    %v2412 = vpack.c.b16 %v1556, %v1548
    %v2413 = vpack.c.b16 %v1557, %v1549
    %v2414 = vpack.c.b16 %v1558, %v1550
    %v2415 = vpack.c.b16 %v1559, %v1551
    %v2416 = vpack.c.b16 %v1560, %v1552
    %v2417 = vpack.c.b16 %v1561, %v1553
    %v2418 = vpack.c.b16 %v1570, %v1562
    %v2419 = vpack.c.b16 %v1571, %v1563
    %v2420 = vpack.c.b16 %v1572, %v1564
    %v2421 = vpack.c.b16 %v1573, %v1565
    %v2422 = vpack.c.b16 %v1574, %v1566
    %v2423 = vpack.c.b16 %v1575, %v1567
    %v2424 = vpack.c.b16 %v1576, %v1568
    %v2425 = vpack.c.b16 %v1577, %v1569
    %v2426 = vpack.c.b16 %v1586, %v1578
    %v2427 = vpack.c.b16 %v1587, %v1579
    %v2428 = vpack.c.b16 %v1588, %v1580
    %v2429 = vpack.c.b16 %v1589, %v1581
    %v2430 = vpack.c.b16 %v1590, %v1582
    %v2431 = vpack.c.b16 %v1591, %v1583
    %v2432 = vpack.c.b16 %v1592, %v1584
    %v2433 = vpack.c.b16 %v1593, %v1585
    %v2434 = vpack.c.b16 %v1602, %v1594
    %v2435 = vpack.c.b16 %v1603, %v1595
    %v2436 = vpack.c.b16 %v1604, %v1596
    %v2437 = vpack.c.b16 %v1605, %v1597
    %v2438 = vpack.c.b16 %v1606, %v1598
    %v2439 = vpack.c.b16 %v1607, %v1599
    %v2440 = vpack.c.b16 %v1608, %v1600
    %v2441 = vpack.c.b16 %v1609, %v1601
    %v2442 = vpack.c.b16 %v1618, %v1610
    %v2443 = vpack.c.b16 %v1619, %v1611
    %v2444 = vpack.c.b16 %v1620, %v1612
    %v2445 = vpack.c.b16 %v1621, %v1613
    %v2446 = vpack.c.b16 %v1622, %v1614
    %v2447 = vpack.c.b16 %v1623, %v1615
    %v2448 = vpack.c.b16 %v1624, %v1616
    %v2449 = vpack.c.b16 %v1625, %v1617
    %v2450 = vpack.c.b16 %v1634, %v1626
    %v2451 = vpack.c.b16 %v1635, %v1627
    %v2452 = vpack.c.b16 %v1636, %v1628
    %v2453 = vpack.c.b16 %v1637, %v1629
    %v2454 = vpack.c.b16 %v1638, %v1630
    %v2455 = vpack.c.b16 %v1639, %v1631
    %v2456 = vpack.c.b16 %v1640, %v1632
    %v2457 = vpack.c.b16 %v1641, %v1633
    %v2458 = vpack.c.b16 %v1650, %v1642
    %v2459 = vpack.c.b16 %v1651, %v1643
    %v2460 = vpack.c.b16 %v1652, %v1644
    %v2461 = vpack.c.b16 %v1653, %v1645
    %v2462 = vpack.c.b16 %v1654, %v1646
    %v2463 = vpack.c.b16 %v1655, %v1647
    %v2464 = vpack.c.b16 %v1656, %v1648
    %v2465 = vpack.c.b16 %v1657, %v1649
    %v2466 = vpack.c.b16 %v1666, %v1658
    %v2467 = vpack.c.b16 %v1667, %v1659
    %v2468 = vpack.c.b16 %v1668, %v1660
    %v2469 = vpack.c.b16 %v1669, %v1661
    %v2470 = vpack.c.b16 %v1670, %v1662
    %v2471 = vpack.c.b16 %v1671, %v1663
    %v2472 = vpack.c.b16 %v1672, %v1664
    %v2473 = vpack.c.b16 %v1673, %v1665
    %v2474 = vpack.c.b16 %v1682, %v1674
    %v2475 = vpack.c.b16 %v1683, %v1675
    %v2476 = vpack.c.b16 %v1684, %v1676
    %v2477 = vpack.c.b16 %v1685, %v1677
    %v2478 = vpack.c.b16 %v1686, %v1678
    %v2479 = vpack.c.b16 %v1687, %v1679
    %v2480 = vpack.c.b16 %v1688, %v1680
    %v2481 = vpack.c.b16 %v1689, %v1681
    %v2482 = vpack.c.b16 %v1698, %v1690
    %v2483 = vpack.c.b16 %v1699, %v1691
    %v2484 = vpack.c.b16 %v1700, %v1692
    %v2485 = vpack.c.b16 %v1701, %v1693
    %v2486 = vpack.c.b16 %v1702, %v1694
    %v2487 = vpack.c.b16 %v1703, %v1695
    %v2488 = vpack.c.b16 %v1704, %v1696
    %v2489 = vpack.c.b16 %v1705, %v1697
    %v2490 = vpack.c.b16 %v1714, %v1706
    %v2491 = vpack.c.b16 %v1715, %v1707
    %v2492 = vpack.c.b16 %v1716, %v1708
    %v2493 = vpack.c.b16 %v1717, %v1709
    %v2494 = vpack.c.b16 %v1718, %v1710
    %v2495 = vpack.c.b16 %v1719, %v1711
    %v2496 = vpack.c.b16 %v1720, %v1712
    %v2497 = vpack.c.b16 %v1721, %v1713
    %v2498 = vpack.c.b16 %v1730, %v1722
    %v2499 = vpack.c.b16 %v1731, %v1723
    %v2500 = vpack.c.b16 %v1732, %v1724
    %v2501 = vpack.c.b16 %v1733, %v1725
    %v2502 = vpack.c.b16 %v1734, %v1726
    %v2503 = vpack.c.b16 %v1735, %v1727
    %v2504 = vpack.c.b16 %v1736, %v1728
    %v2505 = vpack.c.b16 %v1737, %v1729
    %v2506 = vpack.c.b16 %v1746, %v1738
    %v2507 = vpack.c.b16 %v1747, %v1739
    %v2508 = vpack.c.b16 %v1748, %v1740
    %v2509 = vpack.c.b16 %v1749, %v1741
    %v2510 = vpack.c.b16 %v1750, %v1742
    %v2511 = vpack.c.b16 %v1751, %v1743
    %v2512 = vpack.c.b16 %v1752, %v1744
    %v2513 = vpack.c.b16 %v1753, %v1745
    %v2514 = vpack.c.b16 %v1762, %v1754
    %v2515 = vpack.c.b16 %v1763, %v1755
    %v2516 = vpack.c.b16 %v1764, %v1756
    %v2517 = vpack.c.b16 %v1765, %v1757
    %v2518 = vpack.c.b16 %v1766, %v1758
    %v2519 = vpack.c.b16 %v1767, %v1759
    %v2520 = vpack.c.b16 %v1768, %v1760
    %v2521 = vpack.c.b16 %v1769, %v1761
    %v2522 = vpack.c.b16 %v1778, %v1770
    %v2523 = vpack.c.b16 %v1779, %v1771
    %v2524 = vpack.c.b16 %v1780, %v1772
    %v2525 = vpack.c.b16 %v1781, %v1773
    %v2526 = vpack.c.b16 %v1782, %v1774
    %v2527 = vpack.c.b16 %v1783, %v1775
    %v2528 = vpack.c.b16 %v1784, %v1776
    %v2529 = vpack.c.b16 %v1785, %v1777
    %v2530 = vpack.c.b16 %v1794, %v1786
    %v2531 = vpack.c.b16 %v1795, %v1787
    %v2532 = vpack.c.b16 %v1796, %v1788
    %v2533 = vpack.c.b16 %v1797, %v1789
    %v2534 = vpack.c.b16 %v1798, %v1790
    %v2535 = vpack.c.b16 %v1799, %v1791
    %v2536 = vpack.c.b16 %v1800, %v1792
    %v2537 = vpack.c.b16 %v1801, %v1793
    %v2538 = vpack.c.b16 %v1810, %v1802
    %v2539 = vpack.c.b16 %v1811, %v1803
    %v2540 = vpack.c.b16 %v1812, %v1804
    %v2541 = vpack.c.b16 %v1813, %v1805
    %v2542 = vpack.c.b16 %v1814, %v1806
    %v2543 = vpack.c.b16 %v1815, %v1807
    %v2544 = vpack.c.b16 %v1816, %v1808
    %v2545 = vpack.c.b16 %v1817, %v1809
    %v2546 = vpack.c.b16 %v1826, %v1818
    %v2547 = vpack.c.b16 %v1827, %v1819
    %v2548 = vpack.c.b16 %v1828, %v1820
    %v2549 = vpack.c.b16 %v1829, %v1821
    %v2550 = vpack.c.b16 %v1830, %v1822
    %v2551 = vpack.c.b16 %v1831, %v1823
    %v2552 = vpack.c.b16 %v1832, %v1824
    %v2553 = vpack.c.b16 %v1833, %v1825
    %v2554 = vpack.c.b16 %v1842, %v1834
    %v2555 = vpack.c.b16 %v1843, %v1835
    %v2556 = vpack.c.b16 %v1844, %v1836
    %v2557 = vpack.c.b16 %v1845, %v1837
    %v2558 = vpack.c.b16 %v1846, %v1838
    %v2559 = vpack.c.b16 %v1847, %v1839
    %v2560 = vpack.c.b16 %v1848, %v1840
    %v2561 = vpack.c.b16 %v1849, %v1841
    %v2562 = vpack.c.b16 %v1858, %v1850
    %v2563 = vpack.c.b16 %v1859, %v1851
    %v2564 = vpack.c.b16 %v1860, %v1852
    %v2565 = vpack.c.b16 %v1861, %v1853
    %v2566 = vpack.c.b16 %v1862, %v1854
    %v2567 = vpack.c.b16 %v1863, %v1855
    %v2568 = vpack.c.b16 %v1864, %v1856
    %v2569 = vpack.c.b16 %v1865, %v1857
    %v2570 = vpack.c.b16 %v1874, %v1866
    %v2571 = vpack.c.b16 %v1875, %v1867
    %v2572 = vpack.c.b16 %v1876, %v1868
    %v2573 = vpack.c.b16 %v1877, %v1869
    %v2574 = vpack.c.b16 %v1878, %v1870
    %v2575 = vpack.c.b16 %v1879, %v1871
    %v2576 = vpack.c.b16 %v1880, %v1872
    %v2577 = vpack.c.b16 %v1881, %v1873
    %v2578 = vpack.c.b16 %v1890, %v1882
    %v2579 = vpack.c.b16 %v1891, %v1883
    %v2580 = vpack.c.b16 %v1892, %v1884
    %v2581 = vpack.c.b16 %v1893, %v1885
    %v2582 = vpack.c.b16 %v1894, %v1886
    %v2583 = vpack.c.b16 %v1895, %v1887
    %v2584 = vpack.c.b16 %v1896, %v1888
    %v2585 = vpack.c.b16 %v1897, %v1889
    %v2586 = vpack.c.b16 %v1906, %v1898
    %v2587 = vpack.c.b16 %v1907, %v1899
    %v2588 = vpack.c.b16 %v1908, %v1900
    %v2589 = vpack.c.b16 %v1909, %v1901
    %v2590 = vpack.c.b16 %v1910, %v1902
    %v2591 = vpack.c.b16 %v1911, %v1903
    %v2592 = vpack.c.b16 %v1912, %v1904
    %v2593 = vpack.c.b16 %v1913, %v1905
    %v2594 = vpack.c.b16 %v1922, %v1914
    %v2595 = vpack.c.b16 %v1923, %v1915
    %v2596 = vpack.c.b16 %v1924, %v1916
    %v2597 = vpack.c.b16 %v1925, %v1917
    %v2598 = vpack.c.b16 %v1926, %v1918
    %v2599 = vpack.c.b16 %v1927, %v1919
    %v2600 = vpack.c.b16 %v1928, %v1920
    %v2601 = vpack.c.b16 %v1929, %v1921
    %v2602 = vpack.c.b16 %v1938, %v1930
    %v2603 = vpack.c.b16 %v1939, %v1931
    %v2604 = vpack.c.b16 %v1940, %v1932
    %v2605 = vpack.c.b16 %v1941, %v1933
    %v2606 = vpack.c.b16 %v1942, %v1934
    %v2607 = vpack.c.b16 %v1943, %v1935
    %v2608 = vpack.c.b16 %v1944, %v1936
    %v2609 = vpack.c.b16 %v1945, %v1937
    %v2610 = vpack.c.b16 %v1954, %v1946
    %v2611 = vpack.c.b16 %v1955, %v1947
    %v2612 = vpack.c.b16 %v1956, %v1948
    %v2613 = vpack.c.b16 %v1957, %v1949
    %v2614 = vpack.c.b16 %v1958, %v1950
    %v2615 = vpack.c.b16 %v1959, %v1951
    %v2616 = vpack.c.b16 %v1960, %v1952
    %v2617 = vpack.c.b16 %v1961, %v1953
    %v2618 = vpack.c.b16 %v1970, %v1962
    %v2619 = vpack.c.b16 %v1971, %v1963
    %v2620 = vpack.c.b16 %v1972, %v1964
    %v2621 = vpack.c.b16 %v1973, %v1965
    %v2622 = vpack.c.b16 %v1974, %v1966
    %v2623 = vpack.c.b16 %v1975, %v1967
    %v2624 = vpack.c.b16 %v1976, %v1968
    %v2625 = vpack.c.b16 %v1977, %v1969
    %v2626 = vpack.c.b16 %v1986, %v1978
    %v2627 = vpack.c.b16 %v1987, %v1979
    %v2628 = vpack.c.b16 %v1988, %v1980
    %v2629 = vpack.c.b16 %v1989, %v1981
    %v2630 = vpack.c.b16 %v1990, %v1982
    %v2631 = vpack.c.b16 %v1991, %v1983
    %v2632 = vpack.c.b16 %v1992, %v1984
    %v2633 = vpack.c.b16 %v1993, %v1985
    %v2634 = vpack.c.b16 %v2002, %v1994
    %v2635 = vpack.c.b16 %v2003, %v1995
    %v2636 = vpack.c.b16 %v2004, %v1996
    %v2637 = vpack.c.b16 %v2005, %v1997
    %v2638 = vpack.c.b16 %v2006, %v1998
    %v2639 = vpack.c.b16 %v2007, %v1999
    %v2640 = vpack.c.b16 %v2008, %v2000
    %v2641 = vpack.c.b16 %v2009, %v2001
    %v2642 = vpack.c.b16 %v2018, %v2010
    %v2643 = vpack.c.b16 %v2019, %v2011
    %v2644 = vpack.c.b16 %v2020, %v2012
    %v2645 = vpack.c.b16 %v2021, %v2013
    %v2646 = vpack.c.b16 %v2022, %v2014
    %v2647 = vpack.c.b16 %v2023, %v2015
    %v2648 = vpack.c.b16 %v2024, %v2016
    %v2649 = vpack.c.b16 %v2025, %v2017
    %v2650 = vpack.c.b16 %v2034, %v2026
    %v2651 = vpack.c.b16 %v2035, %v2027
    %v2652 = vpack.c.b16 %v2036, %v2028
    %v2653 = vpack.c.b16 %v2037, %v2029
    %v2654 = vpack.c.b16 %v2038, %v2030
    %v2655 = vpack.c.b16 %v2039, %v2031
    %v2656 = vpack.c.b16 %v2040, %v2032
    %v2657 = vpack.c.b16 %v2041, %v2033
    %v2658 = vpack.c.b16 %v2050, %v2042
    %v2659 = vpack.c.b16 %v2051, %v2043
    %v2660 = vpack.c.b16 %v2052, %v2044
    %v2661 = vpack.c.b16 %v2053, %v2045
    %v2662 = vpack.c.b16 %v2054, %v2046
    %v2663 = vpack.c.b16 %v2055, %v2047
    %v2664 = vpack.c.b16 %v2056, %v2048
    %v2665 = vpack.c.b16 %v2057, %v2049
    %v2666 = vpack.c.b16 %v2066, %v2058
    %v2667 = vpack.c.b16 %v2067, %v2059
    %v2668 = vpack.c.b16 %v2068, %v2060
    %v2669 = vpack.c.b16 %v2069, %v2061
    %v2670 = vpack.c.b16 %v2070, %v2062
    %v2671 = vpack.c.b16 %v2071, %v2063
    %v2672 = vpack.c.b16 %v2072, %v2064
    %v2673 = vpack.c.b16 %v2073, %v2065
    %v2674 = vpack.c.b16 %v2082, %v2074
    %v2675 = vpack.c.b16 %v2083, %v2075
    %v2676 = vpack.c.b16 %v2084, %v2076
    %v2677 = vpack.c.b16 %v2085, %v2077
    %v2678 = vpack.c.b16 %v2086, %v2078
    %v2679 = vpack.c.b16 %v2087, %v2079
    %v2680 = vpack.c.b16 %v2088, %v2080
    %v2681 = vpack.c.b16 %v2089, %v2081
    %v2682 = vpack.c.b16 %v2098, %v2090
    %v2683 = vpack.c.b16 %v2099, %v2091
    %v2684 = vpack.c.b16 %v2100, %v2092
    %v2685 = vpack.c.b16 %v2101, %v2093
    %v2686 = vpack.c.b16 %v2102, %v2094
    %v2687 = vpack.c.b16 %v2103, %v2095
    %v2688 = vpack.c.b16 %v2104, %v2096
    %v2689 = vpack.c.b16 %v2105, %v2097
    %v2690 = vpack.c.b16 %v2114, %v2106
    %v2691 = vpack.c.b16 %v2115, %v2107
    %v2692 = vpack.c.b16 %v2116, %v2108
    %v2693 = vpack.c.b16 %v2117, %v2109
    %v2694 = vpack.c.b16 %v2118, %v2110
    %v2695 = vpack.c.b16 %v2119, %v2111
    %v2696 = vpack.c.b16 %v2120, %v2112
    %v2697 = vpack.c.b16 %v2121, %v2113
    %v2698 = vpack.c.b16 %v2130, %v2122
    %v2699 = vpack.c.b16 %v2131, %v2123
    %v2700 = vpack.c.b16 %v2132, %v2124
    %v2701 = vpack.c.b16 %v2133, %v2125
    %v2702 = vpack.c.b16 %v2134, %v2126
    %v2703 = vpack.c.b16 %v2135, %v2127
    %v2704 = vpack.c.b16 %v2136, %v2128
    %v2705 = vpack.c.b16 %v2137, %v2129
    %v2706 = vpack.c.b16 %v2146, %v2138
    %v2707 = vpack.c.b16 %v2147, %v2139
    %v2708 = vpack.c.b16 %v2148, %v2140
    %v2709 = vpack.c.b16 %v2149, %v2141
    %v2710 = vpack.c.b16 %v2150, %v2142
    %v2711 = vpack.c.b16 %v2151, %v2143
    %v2712 = vpack.c.b16 %v2152, %v2144
    %v2713 = vpack.c.b16 %v2153, %v2145
    %v2714 = vpack.c.b16 %v2162, %v2154
    %v2715 = vpack.c.b16 %v2163, %v2155
    %v2716 = vpack.c.b16 %v2164, %v2156
    %v2717 = vpack.c.b16 %v2165, %v2157
    %v2718 = vpack.c.b16 %v2166, %v2158
    %v2719 = vpack.c.b16 %v2167, %v2159
    %v2720 = vpack.c.b16 %v2168, %v2160
    %v2721 = vpack.c.b16 %v2169, %v2161
    %v2722 = vpack.c.b16 %v2178, %v2170
    %v2723 = vpack.c.b16 %v2179, %v2171
    %v2724 = vpack.c.b16 %v2180, %v2172
    %v2725 = vpack.c.b16 %v2181, %v2173
    %v2726 = vpack.c.b16 %v2182, %v2174
    %v2727 = vpack.c.b16 %v2183, %v2175
    %v2728 = vpack.c.b16 %v2184, %v2176
    %v2729 = vpack.c.b16 %v2185, %v2177
    %v2730 = vpack.c.b16 %v2194, %v2186
    %v2731 = vpack.c.b16 %v2195, %v2187
    %v2732 = vpack.c.b16 %v2196, %v2188
    %v2733 = vpack.c.b16 %v2197, %v2189
    %v2734 = vpack.c.b16 %v2198, %v2190
    %v2735 = vpack.c.b16 %v2199, %v2191
    %v2736 = vpack.c.b16 %v2200, %v2192
    %v2737 = vpack.c.b16 %v2201, %v2193
    %v2738 = vpack.c.b16 %v2210, %v2202
    %v2739 = vpack.c.b16 %v2211, %v2203
    %v2740 = vpack.c.b16 %v2212, %v2204
    %v2741 = vpack.c.b16 %v2213, %v2205
    %v2742 = vpack.c.b16 %v2214, %v2206
    %v2743 = vpack.c.b16 %v2215, %v2207
    %v2744 = vpack.c.b16 %v2216, %v2208
    %v2745 = vpack.c.b16 %v2217, %v2209
    %v2746 = vpack.c.b16 %v2226, %v2218
    %v2747 = vpack.c.b16 %v2227, %v2219
    %v2748 = vpack.c.b16 %v2228, %v2220
    %v2749 = vpack.c.b16 %v2229, %v2221
    %v2750 = vpack.c.b16 %v2230, %v2222
    %v2751 = vpack.c.b16 %v2231, %v2223
    %v2752 = vpack.c.b16 %v2232, %v2224
    %v2753 = vpack.c.b16 %v2233, %v2225
    %v2754 = vpack.c.b16 %v2242, %v2234
    %v2755 = vpack.c.b16 %v2243, %v2235
    %v2756 = vpack.c.b16 %v2244, %v2236
    %v2757 = vpack.c.b16 %v2245, %v2237
    %v2758 = vpack.c.b16 %v2246, %v2238
    %v2759 = vpack.c.b16 %v2247, %v2239
    %v2760 = vpack.c.b16 %v2248, %v2240
    %v2761 = vpack.c.b16 %v2249, %v2241
    %3274 = vmatpush.bf16.msra.mxu0 %v2306
    %3275 = vmatpush.bf16.msra.mxu0 %v2298
    %3276 = vmatpush.bf16.msra.mxu0 %v2290
    %3277 = vmatpush.bf16.msra.mxu0 %v2282
    %3278 = vmatpush.bf16.msra.mxu0 %v2274
    %3279 = vmatpush.bf16.msra.mxu0 %v2266
    %3280 = vmatpush.bf16.msra.mxu0 %v2258
    %3281 = vmatpush.bf16.msra.mxu0 %v2250
    %3282 = vmatmul.bf16.gmra.mxu0 %v194
    %v3283 = vpop.f32.mrf.mxu0
    %v3284 = vadd.f32 0.0, %v3283
    %v3285 = vpop.f32.mrf.mxu0
    %3286 = vdwg.mxu0
    %3287 = vmatpush.bf16.msra.mxu0 %v2370
    %3288 = vmatpush.bf16.msra.mxu0 %v2362
    %3289 = vmatpush.bf16.msra.mxu0 %v2354
    %3290 = vmatpush.bf16.msra.mxu0 %v2346
    %3291 = vmatpush.bf16.msra.mxu0 %v2338
    %3292 = vmatpush.bf16.msra.mxu0 %v2330
    %3293 = vmatpush.bf16.msra.mxu0 %v2322
    %3294 = vmatpush.bf16.msra.mxu0 %v2314
    %3295 = vmatmul.bf16.gmra.mxu0 %v195
    %v3296 = vpop.f32.mrf.mxu0
    %v3297 = vadd.f32 %v3284, %v3296
    %v3298 = vpop.f32.mrf.mxu0
    %3299 = vdwg.mxu0
    %3300 = vmatpush.bf16.msra.mxu0 %v2434
    %3301 = vmatpush.bf16.msra.mxu0 %v2426
    %3302 = vmatpush.bf16.msra.mxu0 %v2418
    %3303 = vmatpush.bf16.msra.mxu0 %v2410
    %3304 = vmatpush.bf16.msra.mxu0 %v2402
    %3305 = vmatpush.bf16.msra.mxu0 %v2394
    %3306 = vmatpush.bf16.msra.mxu0 %v2386
    %3307 = vmatpush.bf16.msra.mxu0 %v2378
    %3308 = vmatmul.bf16.gmra.mxu0 %v196
    %v3309 = vpop.f32.mrf.mxu0
    %v3310 = vadd.f32 %v3297, %v3309
    %v3311 = vpop.f32.mrf.mxu0
    %3312 = vdwg.mxu0
    %3313 = vmatpush.bf16.msra.mxu0 %v2498
    %3314 = vmatpush.bf16.msra.mxu0 %v2490
    %3315 = vmatpush.bf16.msra.mxu0 %v2482
    %3316 = vmatpush.bf16.msra.mxu0 %v2474
    %3317 = vmatpush.bf16.msra.mxu0 %v2466
    %3318 = vmatpush.bf16.msra.mxu0 %v2458
    %3319 = vmatpush.bf16.msra.mxu0 %v2450
    %3320 = vmatpush.bf16.msra.mxu0 %v2442
    %3321 = vmatmul.bf16.gmra.mxu0 %v197
    %v3322 = vpop.f32.mrf.mxu0
    %v3323 = vadd.f32 %v3310, %v3322
    %v3324 = vpop.f32.mrf.mxu0
    %3325 = vdwg.mxu0
    %3326 = vmatpush.bf16.msra.mxu0 %v2562
    %3327 = vmatpush.bf16.msra.mxu0 %v2554
    %3328 = vmatpush.bf16.msra.mxu0 %v2546
    %3329 = vmatpush.bf16.msra.mxu0 %v2538
    %3330 = vmatpush.bf16.msra.mxu0 %v2530
    %3331 = vmatpush.bf16.msra.mxu0 %v2522
    %3332 = vmatpush.bf16.msra.mxu0 %v2514
    %3333 = vmatpush.bf16.msra.mxu0 %v2506
    %3334 = vmatmul.bf16.gmra.mxu0 %v198
    %v3335 = vpop.f32.mrf.mxu0
    %v3336 = vadd.f32 %v3323, %v3335
    %v3337 = vpop.f32.mrf.mxu0
    %3338 = vdwg.mxu0
    %3339 = vmatpush.bf16.msra.mxu0 %v2626
    %3340 = vmatpush.bf16.msra.mxu0 %v2618
    %3341 = vmatpush.bf16.msra.mxu0 %v2610
    %3342 = vmatpush.bf16.msra.mxu0 %v2602
    %3343 = vmatpush.bf16.msra.mxu0 %v2594
    %3344 = vmatpush.bf16.msra.mxu0 %v2586
    %3345 = vmatpush.bf16.msra.mxu0 %v2578
    %3346 = vmatpush.bf16.msra.mxu0 %v2570
    %3347 = vmatmul.bf16.gmra.mxu0 %v199
    %v3348 = vpop.f32.mrf.mxu0
    %v3349 = vadd.f32 %v3336, %v3348
    %v3350 = vpop.f32.mrf.mxu0
    %3351 = vdwg.mxu0
    %3352 = vmatpush.bf16.msra.mxu0 %v2690
    %3353 = vmatpush.bf16.msra.mxu0 %v2682
    %3354 = vmatpush.bf16.msra.mxu0 %v2674
    %3355 = vmatpush.bf16.msra.mxu0 %v2666
    %3356 = vmatpush.bf16.msra.mxu0 %v2658
    %3357 = vmatpush.bf16.msra.mxu0 %v2650
    %3358 = vmatpush.bf16.msra.mxu0 %v2642
    %3359 = vmatpush.bf16.msra.mxu0 %v2634
    %3360 = vmatmul.bf16.gmra.mxu0 %v200
    %v3361 = vpop.f32.mrf.mxu0
    %v3362 = vadd.f32 %v3349, %v3361
    %v3363 = vpop.f32.mrf.mxu0
    %3364 = vdwg.mxu0
    %3365 = vmatpush.bf16.msra.mxu0 %v2754
    %3366 = vmatpush.bf16.msra.mxu0 %v2746
    %3367 = vmatpush.bf16.msra.mxu0 %v2738
    %3368 = vmatpush.bf16.msra.mxu0 %v2730
    %3369 = vmatpush.bf16.msra.mxu0 %v2722
    %3370 = vmatpush.bf16.msra.mxu0 %v2714
    %3371 = vmatpush.bf16.msra.mxu0 %v2706
    %3372 = vmatpush.bf16.msra.mxu0 %v2698
    %3373 = vmatmul.bf16.gmra.mxu0 %v201
    %v3374 = vpop.f32.mrf.mxu0
    %v3375 = vadd.f32 %v3362, %v3374
    %v3376 = vpop.f32.mrf.mxu0
    %3377 = vdwg.mxu0
    %3378 = vmatpush.bf16.msra.mxu0 %v2307
    %3379 = vmatpush.bf16.msra.mxu0 %v2299
    %3380 = vmatpush.bf16.msra.mxu0 %v2291
    %3381 = vmatpush.bf16.msra.mxu0 %v2283
    %3382 = vmatpush.bf16.msra.mxu0 %v2275
    %3383 = vmatpush.bf16.msra.mxu0 %v2267
    %3384 = vmatpush.bf16.msra.mxu0 %v2259
    %3385 = vmatpush.bf16.msra.mxu0 %v2251
    %3386 = vmatmul.bf16.gmra.mxu0 %v194
    %v3387 = vpop.f32.mrf.mxu0
    %v3388 = vadd.f32 0.0, %v3387
    %v3389 = vpop.f32.mrf.mxu0
    %3390 = vdwg.mxu0
    %3391 = vmatpush.bf16.msra.mxu0 %v2371
    %3392 = vmatpush.bf16.msra.mxu0 %v2363
    %3393 = vmatpush.bf16.msra.mxu0 %v2355
    %3394 = vmatpush.bf16.msra.mxu0 %v2347
    %3395 = vmatpush.bf16.msra.mxu0 %v2339
    %3396 = vmatpush.bf16.msra.mxu0 %v2331
    %3397 = vmatpush.bf16.msra.mxu0 %v2323
    %3398 = vmatpush.bf16.msra.mxu0 %v2315
    %3399 = vmatmul.bf16.gmra.mxu0 %v195
    %v3400 = vpop.f32.mrf.mxu0
    %v3401 = vadd.f32 %v3388, %v3400
    %v3402 = vpop.f32.mrf.mxu0
    %3403 = vdwg.mxu0
    %3404 = vmatpush.bf16.msra.mxu0 %v2435
    %3405 = vmatpush.bf16.msra.mxu0 %v2427
    %3406 = vmatpush.bf16.msra.mxu0 %v2419
    %3407 = vmatpush.bf16.msra.mxu0 %v2411
    %3408 = vmatpush.bf16.msra.mxu0 %v2403
    %3409 = vmatpush.bf16.msra.mxu0 %v2395
    %3410 = vmatpush.bf16.msra.mxu0 %v2387
    %3411 = vmatpush.bf16.msra.mxu0 %v2379
    %3412 = vmatmul.bf16.gmra.mxu0 %v196
    %v3413 = vpop.f32.mrf.mxu0
    %v3414 = vadd.f32 %v3401, %v3413
    %v3415 = vpop.f32.mrf.mxu0
    %3416 = vdwg.mxu0
    %3417 = vmatpush.bf16.msra.mxu0 %v2499
    %3418 = vmatpush.bf16.msra.mxu0 %v2491
    %3419 = vmatpush.bf16.msra.mxu0 %v2483
    %3420 = vmatpush.bf16.msra.mxu0 %v2475
    %3421 = vmatpush.bf16.msra.mxu0 %v2467
    %3422 = vmatpush.bf16.msra.mxu0 %v2459
    %3423 = vmatpush.bf16.msra.mxu0 %v2451
    %3424 = vmatpush.bf16.msra.mxu0 %v2443
    %3425 = vmatmul.bf16.gmra.mxu0 %v197
    %v3426 = vpop.f32.mrf.mxu0
    %v3427 = vadd.f32 %v3414, %v3426
    %v3428 = vpop.f32.mrf.mxu0
    %3429 = vdwg.mxu0
    %3430 = vmatpush.bf16.msra.mxu0 %v2563
    %3431 = vmatpush.bf16.msra.mxu0 %v2555
    %3432 = vmatpush.bf16.msra.mxu0 %v2547
    %3433 = vmatpush.bf16.msra.mxu0 %v2539
    %3434 = vmatpush.bf16.msra.mxu0 %v2531
    %3435 = vmatpush.bf16.msra.mxu0 %v2523
    %3436 = vmatpush.bf16.msra.mxu0 %v2515
    %3437 = vmatpush.bf16.msra.mxu0 %v2507
    %3438 = vmatmul.bf16.gmra.mxu0 %v198
    %v3439 = vpop.f32.mrf.mxu0
    %v3440 = vadd.f32 %v3427, %v3439
    %v3441 = vpop.f32.mrf.mxu0
    %3442 = vdwg.mxu0
    %3443 = vmatpush.bf16.msra.mxu0 %v2627
    %3444 = vmatpush.bf16.msra.mxu0 %v2619
    %3445 = vmatpush.bf16.msra.mxu0 %v2611
    %3446 = vmatpush.bf16.msra.mxu0 %v2603
    %3447 = vmatpush.bf16.msra.mxu0 %v2595
    %3448 = vmatpush.bf16.msra.mxu0 %v2587
    %3449 = vmatpush.bf16.msra.mxu0 %v2579
    %3450 = vmatpush.bf16.msra.mxu0 %v2571
    %3451 = vmatmul.bf16.gmra.mxu0 %v199
    %v3452 = vpop.f32.mrf.mxu0
    %v3453 = vadd.f32 %v3440, %v3452
    %v3454 = vpop.f32.mrf.mxu0
    %3455 = vdwg.mxu0
    %3456 = vmatpush.bf16.msra.mxu0 %v2691
    %3457 = vmatpush.bf16.msra.mxu0 %v2683
    %3458 = vmatpush.bf16.msra.mxu0 %v2675
    %3459 = vmatpush.bf16.msra.mxu0 %v2667
    %3460 = vmatpush.bf16.msra.mxu0 %v2659
    %3461 = vmatpush.bf16.msra.mxu0 %v2651
    %3462 = vmatpush.bf16.msra.mxu0 %v2643
    %3463 = vmatpush.bf16.msra.mxu0 %v2635
    %3464 = vmatmul.bf16.gmra.mxu0 %v200
    %v3465 = vpop.f32.mrf.mxu0
    %v3466 = vadd.f32 %v3453, %v3465
    %v3467 = vpop.f32.mrf.mxu0
    %3468 = vdwg.mxu0
    %3469 = vmatpush.bf16.msra.mxu0 %v2755
    %3470 = vmatpush.bf16.msra.mxu0 %v2747
    %3471 = vmatpush.bf16.msra.mxu0 %v2739
    %3472 = vmatpush.bf16.msra.mxu0 %v2731
    %3473 = vmatpush.bf16.msra.mxu0 %v2723
    %3474 = vmatpush.bf16.msra.mxu0 %v2715
    %3475 = vmatpush.bf16.msra.mxu0 %v2707
    %3476 = vmatpush.bf16.msra.mxu0 %v2699
    %3477 = vmatmul.bf16.gmra.mxu0 %v201
    %v3478 = vpop.f32.mrf.mxu0
    %v3479 = vadd.f32 %v3466, %v3478
    %v3480 = vpop.f32.mrf.mxu0
    %3481 = vdwg.mxu0
    %3482 = vmatpush.bf16.msra.mxu0 %v2308
    %3483 = vmatpush.bf16.msra.mxu0 %v2300
    %3484 = vmatpush.bf16.msra.mxu0 %v2292
    %3485 = vmatpush.bf16.msra.mxu0 %v2284
    %3486 = vmatpush.bf16.msra.mxu0 %v2276
    %3487 = vmatpush.bf16.msra.mxu0 %v2268
    %3488 = vmatpush.bf16.msra.mxu0 %v2260
    %3489 = vmatpush.bf16.msra.mxu0 %v2252
    %3490 = vmatmul.bf16.gmra.mxu0 %v194
    %v3491 = vpop.f32.mrf.mxu0
    %v3492 = vadd.f32 0.0, %v3491
    %v3493 = vpop.f32.mrf.mxu0
    %3494 = vdwg.mxu0
    %3495 = vmatpush.bf16.msra.mxu0 %v2372
    %3496 = vmatpush.bf16.msra.mxu0 %v2364
    %3497 = vmatpush.bf16.msra.mxu0 %v2356
    %3498 = vmatpush.bf16.msra.mxu0 %v2348
    %3499 = vmatpush.bf16.msra.mxu0 %v2340
    %3500 = vmatpush.bf16.msra.mxu0 %v2332
    %3501 = vmatpush.bf16.msra.mxu0 %v2324
    %3502 = vmatpush.bf16.msra.mxu0 %v2316
    %3503 = vmatmul.bf16.gmra.mxu0 %v195
    %v3504 = vpop.f32.mrf.mxu0
    %v3505 = vadd.f32 %v3492, %v3504
    %v3506 = vpop.f32.mrf.mxu0
    %3507 = vdwg.mxu0
    %3508 = vmatpush.bf16.msra.mxu0 %v2436
    %3509 = vmatpush.bf16.msra.mxu0 %v2428
    %3510 = vmatpush.bf16.msra.mxu0 %v2420
    %3511 = vmatpush.bf16.msra.mxu0 %v2412
    %3512 = vmatpush.bf16.msra.mxu0 %v2404
    %3513 = vmatpush.bf16.msra.mxu0 %v2396
    %3514 = vmatpush.bf16.msra.mxu0 %v2388
    %3515 = vmatpush.bf16.msra.mxu0 %v2380
    %3516 = vmatmul.bf16.gmra.mxu0 %v196
    %v3517 = vpop.f32.mrf.mxu0
    %v3518 = vadd.f32 %v3505, %v3517
    %v3519 = vpop.f32.mrf.mxu0
    %3520 = vdwg.mxu0
    %3521 = vmatpush.bf16.msra.mxu0 %v2500
    %3522 = vmatpush.bf16.msra.mxu0 %v2492
    %3523 = vmatpush.bf16.msra.mxu0 %v2484
    %3524 = vmatpush.bf16.msra.mxu0 %v2476
    %3525 = vmatpush.bf16.msra.mxu0 %v2468
    %3526 = vmatpush.bf16.msra.mxu0 %v2460
    %3527 = vmatpush.bf16.msra.mxu0 %v2452
    %3528 = vmatpush.bf16.msra.mxu0 %v2444
    %3529 = vmatmul.bf16.gmra.mxu0 %v197
    %v3530 = vpop.f32.mrf.mxu0
    %v3531 = vadd.f32 %v3518, %v3530
    %v3532 = vpop.f32.mrf.mxu0
    %3533 = vdwg.mxu0
    %3534 = vmatpush.bf16.msra.mxu0 %v2564
    %3535 = vmatpush.bf16.msra.mxu0 %v2556
    %3536 = vmatpush.bf16.msra.mxu0 %v2548
    %3537 = vmatpush.bf16.msra.mxu0 %v2540
    %3538 = vmatpush.bf16.msra.mxu0 %v2532
    %3539 = vmatpush.bf16.msra.mxu0 %v2524
    %3540 = vmatpush.bf16.msra.mxu0 %v2516
    %3541 = vmatpush.bf16.msra.mxu0 %v2508
    %3542 = vmatmul.bf16.gmra.mxu0 %v198
    %v3543 = vpop.f32.mrf.mxu0
    %v3544 = vadd.f32 %v3531, %v3543
    %v3545 = vpop.f32.mrf.mxu0
    %3546 = vdwg.mxu0
    %3547 = vmatpush.bf16.msra.mxu0 %v2628
    %3548 = vmatpush.bf16.msra.mxu0 %v2620
    %3549 = vmatpush.bf16.msra.mxu0 %v2612
    %3550 = vmatpush.bf16.msra.mxu0 %v2604
    %3551 = vmatpush.bf16.msra.mxu0 %v2596
    %3552 = vmatpush.bf16.msra.mxu0 %v2588
    %3553 = vmatpush.bf16.msra.mxu0 %v2580
    %3554 = vmatpush.bf16.msra.mxu0 %v2572
    %3555 = vmatmul.bf16.gmra.mxu0 %v199
    %v3556 = vpop.f32.mrf.mxu0
    %v3557 = vadd.f32 %v3544, %v3556
    %v3558 = vpop.f32.mrf.mxu0
    %3559 = vdwg.mxu0
    %3560 = vmatpush.bf16.msra.mxu0 %v2692
    %3561 = vmatpush.bf16.msra.mxu0 %v2684
    %3562 = vmatpush.bf16.msra.mxu0 %v2676
    %3563 = vmatpush.bf16.msra.mxu0 %v2668
    %3564 = vmatpush.bf16.msra.mxu0 %v2660
    %3565 = vmatpush.bf16.msra.mxu0 %v2652
    %3566 = vmatpush.bf16.msra.mxu0 %v2644
    %3567 = vmatpush.bf16.msra.mxu0 %v2636
    %3568 = vmatmul.bf16.gmra.mxu0 %v200
    %v3569 = vpop.f32.mrf.mxu0
    %v3570 = vadd.f32 %v3557, %v3569
    %v3571 = vpop.f32.mrf.mxu0
    %3572 = vdwg.mxu0
    %3573 = vmatpush.bf16.msra.mxu0 %v2756
    %3574 = vmatpush.bf16.msra.mxu0 %v2748
    %3575 = vmatpush.bf16.msra.mxu0 %v2740
    %3576 = vmatpush.bf16.msra.mxu0 %v2732
    %3577 = vmatpush.bf16.msra.mxu0 %v2724
    %3578 = vmatpush.bf16.msra.mxu0 %v2716
    %3579 = vmatpush.bf16.msra.mxu0 %v2708
    %3580 = vmatpush.bf16.msra.mxu0 %v2700
    %3581 = vmatmul.bf16.gmra.mxu0 %v201
    %v3582 = vpop.f32.mrf.mxu0
    %v3583 = vadd.f32 %v3570, %v3582
    %v3584 = vpop.f32.mrf.mxu0
    %3585 = vdwg.mxu0
    %3586 = vmatpush.bf16.msra.mxu0 %v2309
    %3587 = vmatpush.bf16.msra.mxu0 %v2301
    %3588 = vmatpush.bf16.msra.mxu0 %v2293
    %3589 = vmatpush.bf16.msra.mxu0 %v2285
    %3590 = vmatpush.bf16.msra.mxu0 %v2277
    %3591 = vmatpush.bf16.msra.mxu0 %v2269
    %3592 = vmatpush.bf16.msra.mxu0 %v2261
    %3593 = vmatpush.bf16.msra.mxu0 %v2253
    %3594 = vmatmul.bf16.gmra.mxu0 %v194
    %v3595 = vpop.f32.mrf.mxu0
    %v3596 = vadd.f32 0.0, %v3595
    %v3597 = vpop.f32.mrf.mxu0
    %3598 = vdwg.mxu0
    %3599 = vmatpush.bf16.msra.mxu0 %v2373
    %3600 = vmatpush.bf16.msra.mxu0 %v2365
    %3601 = vmatpush.bf16.msra.mxu0 %v2357
    %3602 = vmatpush.bf16.msra.mxu0 %v2349
    %3603 = vmatpush.bf16.msra.mxu0 %v2341
    %3604 = vmatpush.bf16.msra.mxu0 %v2333
    %3605 = vmatpush.bf16.msra.mxu0 %v2325
    %3606 = vmatpush.bf16.msra.mxu0 %v2317
    %3607 = vmatmul.bf16.gmra.mxu0 %v195
    %v3608 = vpop.f32.mrf.mxu0
    %v3609 = vadd.f32 %v3596, %v3608
    %v3610 = vpop.f32.mrf.mxu0
    %3611 = vdwg.mxu0
    %3612 = vmatpush.bf16.msra.mxu0 %v2437
    %3613 = vmatpush.bf16.msra.mxu0 %v2429
    %3614 = vmatpush.bf16.msra.mxu0 %v2421
    %3615 = vmatpush.bf16.msra.mxu0 %v2413
    %3616 = vmatpush.bf16.msra.mxu0 %v2405
    %3617 = vmatpush.bf16.msra.mxu0 %v2397
    %3618 = vmatpush.bf16.msra.mxu0 %v2389
    %3619 = vmatpush.bf16.msra.mxu0 %v2381
    %3620 = vmatmul.bf16.gmra.mxu0 %v196
    %v3621 = vpop.f32.mrf.mxu0
    %v3622 = vadd.f32 %v3609, %v3621
    %v3623 = vpop.f32.mrf.mxu0
    %3624 = vdwg.mxu0
    %3625 = vmatpush.bf16.msra.mxu0 %v2501
    %3626 = vmatpush.bf16.msra.mxu0 %v2493
    %3627 = vmatpush.bf16.msra.mxu0 %v2485
    %3628 = vmatpush.bf16.msra.mxu0 %v2477
    %3629 = vmatpush.bf16.msra.mxu0 %v2469
    %3630 = vmatpush.bf16.msra.mxu0 %v2461
    %3631 = vmatpush.bf16.msra.mxu0 %v2453
    %3632 = vmatpush.bf16.msra.mxu0 %v2445
    %3633 = vmatmul.bf16.gmra.mxu0 %v197
    %v3634 = vpop.f32.mrf.mxu0
    %v3635 = vadd.f32 %v3622, %v3634
    %v3636 = vpop.f32.mrf.mxu0
    %3637 = vdwg.mxu0
    %3638 = vmatpush.bf16.msra.mxu0 %v2565
    %3639 = vmatpush.bf16.msra.mxu0 %v2557
    %3640 = vmatpush.bf16.msra.mxu0 %v2549
    %3641 = vmatpush.bf16.msra.mxu0 %v2541
    %3642 = vmatpush.bf16.msra.mxu0 %v2533
    %3643 = vmatpush.bf16.msra.mxu0 %v2525
    %3644 = vmatpush.bf16.msra.mxu0 %v2517
    %3645 = vmatpush.bf16.msra.mxu0 %v2509
    %3646 = vmatmul.bf16.gmra.mxu0 %v198
    %v3647 = vpop.f32.mrf.mxu0
    %v3648 = vadd.f32 %v3635, %v3647
    %v3649 = vpop.f32.mrf.mxu0
    %3650 = vdwg.mxu0
    %3651 = vmatpush.bf16.msra.mxu0 %v2629
    %3652 = vmatpush.bf16.msra.mxu0 %v2621
    %3653 = vmatpush.bf16.msra.mxu0 %v2613
    %3654 = vmatpush.bf16.msra.mxu0 %v2605
    %3655 = vmatpush.bf16.msra.mxu0 %v2597
    %3656 = vmatpush.bf16.msra.mxu0 %v2589
    %3657 = vmatpush.bf16.msra.mxu0 %v2581
    %3658 = vmatpush.bf16.msra.mxu0 %v2573
    %3659 = vmatmul.bf16.gmra.mxu0 %v199
    %v3660 = vpop.f32.mrf.mxu0
    %v3661 = vadd.f32 %v3648, %v3660
    %v3662 = vpop.f32.mrf.mxu0
    %3663 = vdwg.mxu0
    %3664 = vmatpush.bf16.msra.mxu0 %v2693
    %3665 = vmatpush.bf16.msra.mxu0 %v2685
    %3666 = vmatpush.bf16.msra.mxu0 %v2677
    %3667 = vmatpush.bf16.msra.mxu0 %v2669
    %3668 = vmatpush.bf16.msra.mxu0 %v2661
    %3669 = vmatpush.bf16.msra.mxu0 %v2653
    %3670 = vmatpush.bf16.msra.mxu0 %v2645
    %3671 = vmatpush.bf16.msra.mxu0 %v2637
    %3672 = vmatmul.bf16.gmra.mxu0 %v200
    %v3673 = vpop.f32.mrf.mxu0
    %v3674 = vadd.f32 %v3661, %v3673
    %v3675 = vpop.f32.mrf.mxu0
    %3676 = vdwg.mxu0
    %3677 = vmatpush.bf16.msra.mxu0 %v2757
    %3678 = vmatpush.bf16.msra.mxu0 %v2749
    %3679 = vmatpush.bf16.msra.mxu0 %v2741
    %3680 = vmatpush.bf16.msra.mxu0 %v2733
    %3681 = vmatpush.bf16.msra.mxu0 %v2725
    %3682 = vmatpush.bf16.msra.mxu0 %v2717
    %3683 = vmatpush.bf16.msra.mxu0 %v2709
    %3684 = vmatpush.bf16.msra.mxu0 %v2701
    %3685 = vmatmul.bf16.gmra.mxu0 %v201
    %v3686 = vpop.f32.mrf.mxu0
    %v3687 = vadd.f32 %v3674, %v3686
    %v3688 = vpop.f32.mrf.mxu0
    %3689 = vdwg.mxu0
    %3690 = vmatpush.bf16.msra.mxu0 %v2310
    %3691 = vmatpush.bf16.msra.mxu0 %v2302
    %3692 = vmatpush.bf16.msra.mxu0 %v2294
    %3693 = vmatpush.bf16.msra.mxu0 %v2286
    %3694 = vmatpush.bf16.msra.mxu0 %v2278
    %3695 = vmatpush.bf16.msra.mxu0 %v2270
    %3696 = vmatpush.bf16.msra.mxu0 %v2262
    %3697 = vmatpush.bf16.msra.mxu0 %v2254
    %3698 = vmatmul.bf16.gmra.mxu0 %v194
    %v3699 = vpop.f32.mrf.mxu0
    %v3700 = vadd.f32 0.0, %v3699
    %v3701 = vpop.f32.mrf.mxu0
    %3702 = vdwg.mxu0
    %3703 = vmatpush.bf16.msra.mxu0 %v2374
    %3704 = vmatpush.bf16.msra.mxu0 %v2366
    %3705 = vmatpush.bf16.msra.mxu0 %v2358
    %3706 = vmatpush.bf16.msra.mxu0 %v2350
    %3707 = vmatpush.bf16.msra.mxu0 %v2342
    %3708 = vmatpush.bf16.msra.mxu0 %v2334
    %3709 = vmatpush.bf16.msra.mxu0 %v2326
    %3710 = vmatpush.bf16.msra.mxu0 %v2318
    %3711 = vmatmul.bf16.gmra.mxu0 %v195
    %v3712 = vpop.f32.mrf.mxu0
    %v3713 = vadd.f32 %v3700, %v3712
    %v3714 = vpop.f32.mrf.mxu0
    %3715 = vdwg.mxu0
    %3716 = vmatpush.bf16.msra.mxu0 %v2438
    %3717 = vmatpush.bf16.msra.mxu0 %v2430
    %3718 = vmatpush.bf16.msra.mxu0 %v2422
    %3719 = vmatpush.bf16.msra.mxu0 %v2414
    %3720 = vmatpush.bf16.msra.mxu0 %v2406
    %3721 = vmatpush.bf16.msra.mxu0 %v2398
    %3722 = vmatpush.bf16.msra.mxu0 %v2390
    %3723 = vmatpush.bf16.msra.mxu0 %v2382
    %3724 = vmatmul.bf16.gmra.mxu0 %v196
    %v3725 = vpop.f32.mrf.mxu0
    %v3726 = vadd.f32 %v3713, %v3725
    %v3727 = vpop.f32.mrf.mxu0
    %3728 = vdwg.mxu0
    %3729 = vmatpush.bf16.msra.mxu0 %v2502
    %3730 = vmatpush.bf16.msra.mxu0 %v2494
    %3731 = vmatpush.bf16.msra.mxu0 %v2486
    %3732 = vmatpush.bf16.msra.mxu0 %v2478
    %3733 = vmatpush.bf16.msra.mxu0 %v2470
    %3734 = vmatpush.bf16.msra.mxu0 %v2462
    %3735 = vmatpush.bf16.msra.mxu0 %v2454
    %3736 = vmatpush.bf16.msra.mxu0 %v2446
    %3737 = vmatmul.bf16.gmra.mxu0 %v197
    %v3738 = vpop.f32.mrf.mxu0
    %v3739 = vadd.f32 %v3726, %v3738
    %v3740 = vpop.f32.mrf.mxu0
    %3741 = vdwg.mxu0
    %3742 = vmatpush.bf16.msra.mxu0 %v2566
    %3743 = vmatpush.bf16.msra.mxu0 %v2558
    %3744 = vmatpush.bf16.msra.mxu0 %v2550
    %3745 = vmatpush.bf16.msra.mxu0 %v2542
    %3746 = vmatpush.bf16.msra.mxu0 %v2534
    %3747 = vmatpush.bf16.msra.mxu0 %v2526
    %3748 = vmatpush.bf16.msra.mxu0 %v2518
    %3749 = vmatpush.bf16.msra.mxu0 %v2510
    %3750 = vmatmul.bf16.gmra.mxu0 %v198
    %v3751 = vpop.f32.mrf.mxu0
    %v3752 = vadd.f32 %v3739, %v3751
    %v3753 = vpop.f32.mrf.mxu0
    %3754 = vdwg.mxu0
    %3755 = vmatpush.bf16.msra.mxu0 %v2630
    %3756 = vmatpush.bf16.msra.mxu0 %v2622
    %3757 = vmatpush.bf16.msra.mxu0 %v2614
    %3758 = vmatpush.bf16.msra.mxu0 %v2606
    %3759 = vmatpush.bf16.msra.mxu0 %v2598
    %3760 = vmatpush.bf16.msra.mxu0 %v2590
    %3761 = vmatpush.bf16.msra.mxu0 %v2582
    %3762 = vmatpush.bf16.msra.mxu0 %v2574
    %3763 = vmatmul.bf16.gmra.mxu0 %v199
    %v3764 = vpop.f32.mrf.mxu0
    %v3765 = vadd.f32 %v3752, %v3764
    %v3766 = vpop.f32.mrf.mxu0
    %3767 = vdwg.mxu0
    %3768 = vmatpush.bf16.msra.mxu0 %v2694
    %3769 = vmatpush.bf16.msra.mxu0 %v2686
    %3770 = vmatpush.bf16.msra.mxu0 %v2678
    %3771 = vmatpush.bf16.msra.mxu0 %v2670
    %3772 = vmatpush.bf16.msra.mxu0 %v2662
    %3773 = vmatpush.bf16.msra.mxu0 %v2654
    %3774 = vmatpush.bf16.msra.mxu0 %v2646
    %3775 = vmatpush.bf16.msra.mxu0 %v2638
    %3776 = vmatmul.bf16.gmra.mxu0 %v200
    %v3777 = vpop.f32.mrf.mxu0
    %v3778 = vadd.f32 %v3765, %v3777
    %v3779 = vpop.f32.mrf.mxu0
    %3780 = vdwg.mxu0
    %3781 = vmatpush.bf16.msra.mxu0 %v2758
    %3782 = vmatpush.bf16.msra.mxu0 %v2750
    %3783 = vmatpush.bf16.msra.mxu0 %v2742
    %3784 = vmatpush.bf16.msra.mxu0 %v2734
    %3785 = vmatpush.bf16.msra.mxu0 %v2726
    %3786 = vmatpush.bf16.msra.mxu0 %v2718
    %3787 = vmatpush.bf16.msra.mxu0 %v2710
    %3788 = vmatpush.bf16.msra.mxu0 %v2702
    %3789 = vmatmul.bf16.gmra.mxu0 %v201
    %v3790 = vpop.f32.mrf.mxu0
    %v3791 = vadd.f32 %v3778, %v3790
    %v3792 = vpop.f32.mrf.mxu0
    %3793 = vdwg.mxu0
    %3794 = vmatpush.bf16.msra.mxu0 %v2311
    %3795 = vmatpush.bf16.msra.mxu0 %v2303
    %3796 = vmatpush.bf16.msra.mxu0 %v2295
    %3797 = vmatpush.bf16.msra.mxu0 %v2287
    %3798 = vmatpush.bf16.msra.mxu0 %v2279
    %3799 = vmatpush.bf16.msra.mxu0 %v2271
    %3800 = vmatpush.bf16.msra.mxu0 %v2263
    %3801 = vmatpush.bf16.msra.mxu0 %v2255
    %3802 = vmatmul.bf16.gmra.mxu0 %v194
    %v3803 = vpop.f32.mrf.mxu0
    %v3804 = vadd.f32 0.0, %v3803
    %v3805 = vpop.f32.mrf.mxu0
    %3806 = vdwg.mxu0
    %3807 = vmatpush.bf16.msra.mxu0 %v2375
    %3808 = vmatpush.bf16.msra.mxu0 %v2367
    %3809 = vmatpush.bf16.msra.mxu0 %v2359
    %3810 = vmatpush.bf16.msra.mxu0 %v2351
    %3811 = vmatpush.bf16.msra.mxu0 %v2343
    %3812 = vmatpush.bf16.msra.mxu0 %v2335
    %3813 = vmatpush.bf16.msra.mxu0 %v2327
    %3814 = vmatpush.bf16.msra.mxu0 %v2319
    %3815 = vmatmul.bf16.gmra.mxu0 %v195
    %v3816 = vpop.f32.mrf.mxu0
    %v3817 = vadd.f32 %v3804, %v3816
    %v3818 = vpop.f32.mrf.mxu0
    %3819 = vdwg.mxu0
    %3820 = vmatpush.bf16.msra.mxu0 %v2439
    %3821 = vmatpush.bf16.msra.mxu0 %v2431
    %3822 = vmatpush.bf16.msra.mxu0 %v2423
    %3823 = vmatpush.bf16.msra.mxu0 %v2415
    %3824 = vmatpush.bf16.msra.mxu0 %v2407
    %3825 = vmatpush.bf16.msra.mxu0 %v2399
    %3826 = vmatpush.bf16.msra.mxu0 %v2391
    %3827 = vmatpush.bf16.msra.mxu0 %v2383
    %3828 = vmatmul.bf16.gmra.mxu0 %v196
    %v3829 = vpop.f32.mrf.mxu0
    %v3830 = vadd.f32 %v3817, %v3829
    %v3831 = vpop.f32.mrf.mxu0
    %3832 = vdwg.mxu0
    %3833 = vmatpush.bf16.msra.mxu0 %v2503
    %3834 = vmatpush.bf16.msra.mxu0 %v2495
    %3835 = vmatpush.bf16.msra.mxu0 %v2487
    %3836 = vmatpush.bf16.msra.mxu0 %v2479
    %3837 = vmatpush.bf16.msra.mxu0 %v2471
    %3838 = vmatpush.bf16.msra.mxu0 %v2463
    %3839 = vmatpush.bf16.msra.mxu0 %v2455
    %3840 = vmatpush.bf16.msra.mxu0 %v2447
    %3841 = vmatmul.bf16.gmra.mxu0 %v197
    %v3842 = vpop.f32.mrf.mxu0
    %v3843 = vadd.f32 %v3830, %v3842
    %v3844 = vpop.f32.mrf.mxu0
    %3845 = vdwg.mxu0
    %3846 = vmatpush.bf16.msra.mxu0 %v2567
    %3847 = vmatpush.bf16.msra.mxu0 %v2559
    %3848 = vmatpush.bf16.msra.mxu0 %v2551
    %3849 = vmatpush.bf16.msra.mxu0 %v2543
    %3850 = vmatpush.bf16.msra.mxu0 %v2535
    %3851 = vmatpush.bf16.msra.mxu0 %v2527
    %3852 = vmatpush.bf16.msra.mxu0 %v2519
    %3853 = vmatpush.bf16.msra.mxu0 %v2511
    %3854 = vmatmul.bf16.gmra.mxu0 %v198
    %v3855 = vpop.f32.mrf.mxu0
    %v3856 = vadd.f32 %v3843, %v3855
    %v3857 = vpop.f32.mrf.mxu0
    %3858 = vdwg.mxu0
    %3859 = vmatpush.bf16.msra.mxu0 %v2631
    %3860 = vmatpush.bf16.msra.mxu0 %v2623
    %3861 = vmatpush.bf16.msra.mxu0 %v2615
    %3862 = vmatpush.bf16.msra.mxu0 %v2607
    %3863 = vmatpush.bf16.msra.mxu0 %v2599
    %3864 = vmatpush.bf16.msra.mxu0 %v2591
    %3865 = vmatpush.bf16.msra.mxu0 %v2583
    %3866 = vmatpush.bf16.msra.mxu0 %v2575
    %3867 = vmatmul.bf16.gmra.mxu0 %v199
    %v3868 = vpop.f32.mrf.mxu0
    %v3869 = vadd.f32 %v3856, %v3868
    %v3870 = vpop.f32.mrf.mxu0
    %3871 = vdwg.mxu0
    %3872 = vmatpush.bf16.msra.mxu0 %v2695
    %3873 = vmatpush.bf16.msra.mxu0 %v2687
    %3874 = vmatpush.bf16.msra.mxu0 %v2679
    %3875 = vmatpush.bf16.msra.mxu0 %v2671
    %3876 = vmatpush.bf16.msra.mxu0 %v2663
    %3877 = vmatpush.bf16.msra.mxu0 %v2655
    %3878 = vmatpush.bf16.msra.mxu0 %v2647
    %3879 = vmatpush.bf16.msra.mxu0 %v2639
    %3880 = vmatmul.bf16.gmra.mxu0 %v200
    %v3881 = vpop.f32.mrf.mxu0
    %v3882 = vadd.f32 %v3869, %v3881
    %v3883 = vpop.f32.mrf.mxu0
    %3884 = vdwg.mxu0
    %3885 = vmatpush.bf16.msra.mxu0 %v2759
    %3886 = vmatpush.bf16.msra.mxu0 %v2751
    %3887 = vmatpush.bf16.msra.mxu0 %v2743
    %3888 = vmatpush.bf16.msra.mxu0 %v2735
    %3889 = vmatpush.bf16.msra.mxu0 %v2727
    %3890 = vmatpush.bf16.msra.mxu0 %v2719
    %3891 = vmatpush.bf16.msra.mxu0 %v2711
    %3892 = vmatpush.bf16.msra.mxu0 %v2703
    %3893 = vmatmul.bf16.gmra.mxu0 %v201
    %v3894 = vpop.f32.mrf.mxu0
    %v3895 = vadd.f32 %v3882, %v3894
    %v3896 = vpop.f32.mrf.mxu0
    %3897 = vdwg.mxu0
    %3898 = vmatpush.bf16.msra.mxu0 %v2312
    %3899 = vmatpush.bf16.msra.mxu0 %v2304
    %3900 = vmatpush.bf16.msra.mxu0 %v2296
    %3901 = vmatpush.bf16.msra.mxu0 %v2288
    %3902 = vmatpush.bf16.msra.mxu0 %v2280
    %3903 = vmatpush.bf16.msra.mxu0 %v2272
    %3904 = vmatpush.bf16.msra.mxu0 %v2264
    %3905 = vmatpush.bf16.msra.mxu0 %v2256
    %3906 = vmatmul.bf16.gmra.mxu0 %v194
    %v3907 = vpop.f32.mrf.mxu0
    %v3908 = vadd.f32 0.0, %v3907
    %v3909 = vpop.f32.mrf.mxu0
    %3910 = vdwg.mxu0
    %3911 = vmatpush.bf16.msra.mxu0 %v2376
    %3912 = vmatpush.bf16.msra.mxu0 %v2368
    %3913 = vmatpush.bf16.msra.mxu0 %v2360
    %3914 = vmatpush.bf16.msra.mxu0 %v2352
    %3915 = vmatpush.bf16.msra.mxu0 %v2344
    %3916 = vmatpush.bf16.msra.mxu0 %v2336
    %3917 = vmatpush.bf16.msra.mxu0 %v2328
    %3918 = vmatpush.bf16.msra.mxu0 %v2320
    %3919 = vmatmul.bf16.gmra.mxu0 %v195
    %v3920 = vpop.f32.mrf.mxu0
    %v3921 = vadd.f32 %v3908, %v3920
    %v3922 = vpop.f32.mrf.mxu0
    %3923 = vdwg.mxu0
    %3924 = vmatpush.bf16.msra.mxu0 %v2440
    %3925 = vmatpush.bf16.msra.mxu0 %v2432
    %3926 = vmatpush.bf16.msra.mxu0 %v2424
    %3927 = vmatpush.bf16.msra.mxu0 %v2416
    %3928 = vmatpush.bf16.msra.mxu0 %v2408
    %3929 = vmatpush.bf16.msra.mxu0 %v2400
    %3930 = vmatpush.bf16.msra.mxu0 %v2392
    %3931 = vmatpush.bf16.msra.mxu0 %v2384
    %3932 = vmatmul.bf16.gmra.mxu0 %v196
    %v3933 = vpop.f32.mrf.mxu0
    %v3934 = vadd.f32 %v3921, %v3933
    %v3935 = vpop.f32.mrf.mxu0
    %3936 = vdwg.mxu0
    %3937 = vmatpush.bf16.msra.mxu0 %v2504
    %3938 = vmatpush.bf16.msra.mxu0 %v2496
    %3939 = vmatpush.bf16.msra.mxu0 %v2488
    %3940 = vmatpush.bf16.msra.mxu0 %v2480
    %3941 = vmatpush.bf16.msra.mxu0 %v2472
    %3942 = vmatpush.bf16.msra.mxu0 %v2464
    %3943 = vmatpush.bf16.msra.mxu0 %v2456
    %3944 = vmatpush.bf16.msra.mxu0 %v2448
    %3945 = vmatmul.bf16.gmra.mxu0 %v197
    %v3946 = vpop.f32.mrf.mxu0
    %v3947 = vadd.f32 %v3934, %v3946
    %v3948 = vpop.f32.mrf.mxu0
    %3949 = vdwg.mxu0
    %3950 = vmatpush.bf16.msra.mxu0 %v2568
    %3951 = vmatpush.bf16.msra.mxu0 %v2560
    %3952 = vmatpush.bf16.msra.mxu0 %v2552
    %3953 = vmatpush.bf16.msra.mxu0 %v2544
    %3954 = vmatpush.bf16.msra.mxu0 %v2536
    %3955 = vmatpush.bf16.msra.mxu0 %v2528
    %3956 = vmatpush.bf16.msra.mxu0 %v2520
    %3957 = vmatpush.bf16.msra.mxu0 %v2512
    %3958 = vmatmul.bf16.gmra.mxu0 %v198
    %v3959 = vpop.f32.mrf.mxu0
    %v3960 = vadd.f32 %v3947, %v3959
    %v3961 = vpop.f32.mrf.mxu0
    %3962 = vdwg.mxu0
    %3963 = vmatpush.bf16.msra.mxu0 %v2632
    %3964 = vmatpush.bf16.msra.mxu0 %v2624
    %3965 = vmatpush.bf16.msra.mxu0 %v2616
    %3966 = vmatpush.bf16.msra.mxu0 %v2608
    %3967 = vmatpush.bf16.msra.mxu0 %v2600
    %3968 = vmatpush.bf16.msra.mxu0 %v2592
    %3969 = vmatpush.bf16.msra.mxu0 %v2584
    %3970 = vmatpush.bf16.msra.mxu0 %v2576
    %3971 = vmatmul.bf16.gmra.mxu0 %v199
    %v3972 = vpop.f32.mrf.mxu0
    %v3973 = vadd.f32 %v3960, %v3972
    %v3974 = vpop.f32.mrf.mxu0
    %3975 = vdwg.mxu0
    %3976 = vmatpush.bf16.msra.mxu0 %v2696
    %3977 = vmatpush.bf16.msra.mxu0 %v2688
    %3978 = vmatpush.bf16.msra.mxu0 %v2680
    %3979 = vmatpush.bf16.msra.mxu0 %v2672
    %3980 = vmatpush.bf16.msra.mxu0 %v2664
    %3981 = vmatpush.bf16.msra.mxu0 %v2656
    %3982 = vmatpush.bf16.msra.mxu0 %v2648
    %3983 = vmatpush.bf16.msra.mxu0 %v2640
    %3984 = vmatmul.bf16.gmra.mxu0 %v200
    %v3985 = vpop.f32.mrf.mxu0
    %v3986 = vadd.f32 %v3973, %v3985
    %v3987 = vpop.f32.mrf.mxu0
    %3988 = vdwg.mxu0
    %3989 = vmatpush.bf16.msra.mxu0 %v2760
    %3990 = vmatpush.bf16.msra.mxu0 %v2752
    %3991 = vmatpush.bf16.msra.mxu0 %v2744
    %3992 = vmatpush.bf16.msra.mxu0 %v2736
    %3993 = vmatpush.bf16.msra.mxu0 %v2728
    %3994 = vmatpush.bf16.msra.mxu0 %v2720
    %3995 = vmatpush.bf16.msra.mxu0 %v2712
    %3996 = vmatpush.bf16.msra.mxu0 %v2704
    %3997 = vmatmul.bf16.gmra.mxu0 %v201
    %v3998 = vpop.f32.mrf.mxu0
    %v3999 = vadd.f32 %v3986, %v3998
    %v4000 = vpop.f32.mrf.mxu0
    %4001 = vdwg.mxu0
    %4002 = vmatpush.bf16.msra.mxu0 %v2313
    %4003 = vmatpush.bf16.msra.mxu0 %v2305
    %4004 = vmatpush.bf16.msra.mxu0 %v2297
    %4005 = vmatpush.bf16.msra.mxu0 %v2289
    %4006 = vmatpush.bf16.msra.mxu0 %v2281
    %4007 = vmatpush.bf16.msra.mxu0 %v2273
    %4008 = vmatpush.bf16.msra.mxu0 %v2265
    %4009 = vmatpush.bf16.msra.mxu0 %v2257
    %4010 = vmatmul.bf16.gmra.mxu0 %v194
    %v4011 = vpop.f32.mrf.mxu0
    %v4012 = vadd.f32 0.0, %v4011
    %v4013 = vpop.f32.mrf.mxu0
    %4014 = vdwg.mxu0
    %4015 = vmatpush.bf16.msra.mxu0 %v2377
    %4016 = vmatpush.bf16.msra.mxu0 %v2369
    %4017 = vmatpush.bf16.msra.mxu0 %v2361
    %4018 = vmatpush.bf16.msra.mxu0 %v2353
    %4019 = vmatpush.bf16.msra.mxu0 %v2345
    %4020 = vmatpush.bf16.msra.mxu0 %v2337
    %4021 = vmatpush.bf16.msra.mxu0 %v2329
    %4022 = vmatpush.bf16.msra.mxu0 %v2321
    %4023 = vmatmul.bf16.gmra.mxu0 %v195
    %v4024 = vpop.f32.mrf.mxu0
    %v4025 = vadd.f32 %v4012, %v4024
    %v4026 = vpop.f32.mrf.mxu0
    %4027 = vdwg.mxu0
    %4028 = vmatpush.bf16.msra.mxu0 %v2441
    %4029 = vmatpush.bf16.msra.mxu0 %v2433
    %4030 = vmatpush.bf16.msra.mxu0 %v2425
    %4031 = vmatpush.bf16.msra.mxu0 %v2417
    %4032 = vmatpush.bf16.msra.mxu0 %v2409
    %4033 = vmatpush.bf16.msra.mxu0 %v2401
    %4034 = vmatpush.bf16.msra.mxu0 %v2393
    %4035 = vmatpush.bf16.msra.mxu0 %v2385
    %4036 = vmatmul.bf16.gmra.mxu0 %v196
    %v4037 = vpop.f32.mrf.mxu0
    %v4038 = vadd.f32 %v4025, %v4037
    %v4039 = vpop.f32.mrf.mxu0
    %4040 = vdwg.mxu0
    %4041 = vmatpush.bf16.msra.mxu0 %v2505
    %4042 = vmatpush.bf16.msra.mxu0 %v2497
    %4043 = vmatpush.bf16.msra.mxu0 %v2489
    %4044 = vmatpush.bf16.msra.mxu0 %v2481
    %4045 = vmatpush.bf16.msra.mxu0 %v2473
    %4046 = vmatpush.bf16.msra.mxu0 %v2465
    %4047 = vmatpush.bf16.msra.mxu0 %v2457
    %4048 = vmatpush.bf16.msra.mxu0 %v2449
    %4049 = vmatmul.bf16.gmra.mxu0 %v197
    %v4050 = vpop.f32.mrf.mxu0
    %v4051 = vadd.f32 %v4038, %v4050
    %v4052 = vpop.f32.mrf.mxu0
    %4053 = vdwg.mxu0
    %4054 = vmatpush.bf16.msra.mxu0 %v2569
    %4055 = vmatpush.bf16.msra.mxu0 %v2561
    %4056 = vmatpush.bf16.msra.mxu0 %v2553
    %4057 = vmatpush.bf16.msra.mxu0 %v2545
    %4058 = vmatpush.bf16.msra.mxu0 %v2537
    %4059 = vmatpush.bf16.msra.mxu0 %v2529
    %4060 = vmatpush.bf16.msra.mxu0 %v2521
    %4061 = vmatpush.bf16.msra.mxu0 %v2513
    %4062 = vmatmul.bf16.gmra.mxu0 %v198
    %v4063 = vpop.f32.mrf.mxu0
    %v4064 = vadd.f32 %v4051, %v4063
    %v4065 = vpop.f32.mrf.mxu0
    %4066 = vdwg.mxu0
    %4067 = vmatpush.bf16.msra.mxu0 %v2633
    %4068 = vmatpush.bf16.msra.mxu0 %v2625
    %4069 = vmatpush.bf16.msra.mxu0 %v2617
    %4070 = vmatpush.bf16.msra.mxu0 %v2609
    %4071 = vmatpush.bf16.msra.mxu0 %v2601
    %4072 = vmatpush.bf16.msra.mxu0 %v2593
    %4073 = vmatpush.bf16.msra.mxu0 %v2585
    %4074 = vmatpush.bf16.msra.mxu0 %v2577
    %4075 = vmatmul.bf16.gmra.mxu0 %v199
    %v4076 = vpop.f32.mrf.mxu0
    %v4077 = vadd.f32 %v4064, %v4076
    %v4078 = vpop.f32.mrf.mxu0
    %4079 = vdwg.mxu0
    %4080 = vmatpush.bf16.msra.mxu0 %v2697
    %4081 = vmatpush.bf16.msra.mxu0 %v2689
    %4082 = vmatpush.bf16.msra.mxu0 %v2681
    %4083 = vmatpush.bf16.msra.mxu0 %v2673
    %4084 = vmatpush.bf16.msra.mxu0 %v2665
    %4085 = vmatpush.bf16.msra.mxu0 %v2657
    %4086 = vmatpush.bf16.msra.mxu0 %v2649
    %4087 = vmatpush.bf16.msra.mxu0 %v2641
    %4088 = vmatmul.bf16.gmra.mxu0 %v200
    %v4089 = vpop.f32.mrf.mxu0
    %v4090 = vadd.f32 %v4077, %v4089
    %v4091 = vpop.f32.mrf.mxu0
    %4092 = vdwg.mxu0
    %4093 = vmatpush.bf16.msra.mxu0 %v2761
    %4094 = vmatpush.bf16.msra.mxu0 %v2753
    %4095 = vmatpush.bf16.msra.mxu0 %v2745
    %4096 = vmatpush.bf16.msra.mxu0 %v2737
    %4097 = vmatpush.bf16.msra.mxu0 %v2729
    %4098 = vmatpush.bf16.msra.mxu0 %v2721
    %4099 = vmatpush.bf16.msra.mxu0 %v2713
    %4100 = vmatpush.bf16.msra.mxu0 %v2705
    %4101 = vmatmul.bf16.gmra.mxu0 %v201
    %v4102 = vpop.f32.mrf.mxu0
    %v4103 = vadd.f32 %v4090, %v4102
    %v4104 = vpop.f32.mrf.mxu0
    %4105 = vdwg.mxu0
    %v4106 = vld [vmem:[#allocation13] sm:$0xff]
    %v4107 = vld [vmem:[#allocation13 + $0x8] sm:$0xff]
    %v4108 = vld [vmem:[#allocation13 + $0x10] sm:$0xff]
    %v4109 = vld [vmem:[#allocation13 + $0x18] sm:$0xff]
    %v4110 = vld [vmem:[#allocation13 + $0x20] sm:$0xff]
    %v4111 = vld [vmem:[#allocation13 + $0x28] sm:$0xff]
    %v4112 = vld [vmem:[#allocation13 + $0x30] sm:$0xff]
    %v4113 = vld [vmem:[#allocation13 + $0x38] sm:$0xff]
    %v4114 = vld [vmem:[#allocation13 + $0x40] sm:$0xff]
    %v4115 = vld [vmem:[#allocation13 + $0x48] sm:$0xff]
    %v4116 = vld [vmem:[#allocation13 + $0x50] sm:$0xff]
    %v4117 = vld [vmem:[#allocation13 + $0x58] sm:$0xff]
    %v4118 = vld [vmem:[#allocation13 + $0x60] sm:$0xff]
    %v4119 = vld [vmem:[#allocation13 + $0x68] sm:$0xff]
    %v4120 = vld [vmem:[#allocation13 + $0x70] sm:$0xff]
    %v4121 = vld [vmem:[#allocation13 + $0x78] sm:$0xff]
    %v4122 = vld [vmem:[#allocation13 + $0x80] sm:$0xff]
    %v4123 = vld [vmem:[#allocation13 + $0x88] sm:$0xff]
    %v4124 = vld [vmem:[#allocation13 + $0x90] sm:$0xff]
    %v4125 = vld [vmem:[#allocation13 + $0x98] sm:$0xff]
    %v4126 = vld [vmem:[#allocation13 + $0xa0] sm:$0xff]
    %v4127 = vld [vmem:[#allocation13 + $0xa8] sm:$0xff]
    %v4128 = vld [vmem:[#allocation13 + $0xb0] sm:$0xff]
    %v4129 = vld [vmem:[#allocation13 + $0xb8] sm:$0xff]
    %v4130 = vld [vmem:[#allocation13 + $0xc0] sm:$0xff]
    %v4131 = vld [vmem:[#allocation13 + $0xc8] sm:$0xff]
    %v4132 = vld [vmem:[#allocation13 + $0xd0] sm:$0xff]
    %v4133 = vld [vmem:[#allocation13 + $0xd8] sm:$0xff]
    %v4134 = vld [vmem:[#allocation13 + $0xe0] sm:$0xff]
    %v4135 = vld [vmem:[#allocation13 + $0xe8] sm:$0xff]
    %v4136 = vld [vmem:[#allocation13 + $0xf0] sm:$0xff]
    %v4137 = vld [vmem:[#allocation13 + $0xf8] sm:$0xff]
    %v4138 = vld [vmem:[#allocation13 + $0x100] sm:$0xff]
    %v4139 = vld [vmem:[#allocation13 + $0x108] sm:$0xff]
    %v4140 = vld [vmem:[#allocation13 + $0x110] sm:$0xff]
    %v4141 = vld [vmem:[#allocation13 + $0x118] sm:$0xff]
    %v4142 = vld [vmem:[#allocation13 + $0x120] sm:$0xff]
    %v4143 = vld [vmem:[#allocation13 + $0x128] sm:$0xff]
    %v4144 = vld [vmem:[#allocation13 + $0x130] sm:$0xff]
    %v4145 = vld [vmem:[#allocation13 + $0x138] sm:$0xff]
    %v4146 = vld [vmem:[#allocation13 + $0x140] sm:$0xff]
    %v4147 = vld [vmem:[#allocation13 + $0x148] sm:$0xff]
    %v4148 = vld [vmem:[#allocation13 + $0x150] sm:$0xff]
    %v4149 = vld [vmem:[#allocation13 + $0x158] sm:$0xff]
    %v4150 = vld [vmem:[#allocation13 + $0x160] sm:$0xff]
    %v4151 = vld [vmem:[#allocation13 + $0x168] sm:$0xff]
    %v4152 = vld [vmem:[#allocation13 + $0x170] sm:$0xff]
    %v4153 = vld [vmem:[#allocation13 + $0x178] sm:$0xff]
    %v4154 = vld [vmem:[#allocation13 + $0x180] sm:$0xff]
    %v4155 = vld [vmem:[#allocation13 + $0x188] sm:$0xff]
    %v4156 = vld [vmem:[#allocation13 + $0x190] sm:$0xff]
    %v4157 = vld [vmem:[#allocation13 + $0x198] sm:$0xff]
    %v4158 = vld [vmem:[#allocation13 + $0x1a0] sm:$0xff]
    %v4159 = vld [vmem:[#allocation13 + $0x1a8] sm:$0xff]
    %v4160 = vld [vmem:[#allocation13 + $0x1b0] sm:$0xff]
    %v4161 = vld [vmem:[#allocation13 + $0x1b8] sm:$0xff]
    %v4162 = vld [vmem:[#allocation13 + $0x1c0] sm:$0xff]
    %v4163 = vld [vmem:[#allocation13 + $0x1c8] sm:$0xff]
    %v4164 = vld [vmem:[#allocation13 + $0x1d0] sm:$0xff]
    %v4165 = vld [vmem:[#allocation13 + $0x1d8] sm:$0xff]
    %v4166 = vld [vmem:[#allocation13 + $0x1e0] sm:$0xff]
    %v4167 = vld [vmem:[#allocation13 + $0x1e8] sm:$0xff]
    %v4168 = vld [vmem:[#allocation13 + $0x1f0] sm:$0xff]
    %v4169 = vld [vmem:[#allocation13 + $0x1f8] sm:$0xff]
    %v4170 = vld [vmem:[#allocation13 + $0x200] sm:$0xff]
    %v4171 = vld [vmem:[#allocation13 + $0x208] sm:$0xff]
    %v4172 = vld [vmem:[#allocation13 + $0x210] sm:$0xff]
    %v4173 = vld [vmem:[#allocation13 + $0x218] sm:$0xff]
    %v4174 = vld [vmem:[#allocation13 + $0x220] sm:$0xff]
    %v4175 = vld [vmem:[#allocation13 + $0x228] sm:$0xff]
    %v4176 = vld [vmem:[#allocation13 + $0x230] sm:$0xff]
    %v4177 = vld [vmem:[#allocation13 + $0x238] sm:$0xff]
    %v4178 = vld [vmem:[#allocation13 + $0x240] sm:$0xff]
    %v4179 = vld [vmem:[#allocation13 + $0x248] sm:$0xff]
    %v4180 = vld [vmem:[#allocation13 + $0x250] sm:$0xff]
    %v4181 = vld [vmem:[#allocation13 + $0x258] sm:$0xff]
    %v4182 = vld [vmem:[#allocation13 + $0x260] sm:$0xff]
    %v4183 = vld [vmem:[#allocation13 + $0x268] sm:$0xff]
    %v4184 = vld [vmem:[#allocation13 + $0x270] sm:$0xff]
    %v4185 = vld [vmem:[#allocation13 + $0x278] sm:$0xff]
    %v4186 = vld [vmem:[#allocation13 + $0x280] sm:$0xff]
    %v4187 = vld [vmem:[#allocation13 + $0x288] sm:$0xff]
    %v4188 = vld [vmem:[#allocation13 + $0x290] sm:$0xff]
    %v4189 = vld [vmem:[#allocation13 + $0x298] sm:$0xff]
    %v4190 = vld [vmem:[#allocation13 + $0x2a0] sm:$0xff]
    %v4191 = vld [vmem:[#allocation13 + $0x2a8] sm:$0xff]
    %v4192 = vld [vmem:[#allocation13 + $0x2b0] sm:$0xff]
    %v4193 = vld [vmem:[#allocation13 + $0x2b8] sm:$0xff]
    %v4194 = vld [vmem:[#allocation13 + $0x2c0] sm:$0xff]
    %v4195 = vld [vmem:[#allocation13 + $0x2c8] sm:$0xff]
    %v4196 = vld [vmem:[#allocation13 + $0x2d0] sm:$0xff]
    %v4197 = vld [vmem:[#allocation13 + $0x2d8] sm:$0xff]
    %v4198 = vld [vmem:[#allocation13 + $0x2e0] sm:$0xff]
    %v4199 = vld [vmem:[#allocation13 + $0x2e8] sm:$0xff]
    %v4200 = vld [vmem:[#allocation13 + $0x2f0] sm:$0xff]
    %v4201 = vld [vmem:[#allocation13 + $0x2f8] sm:$0xff]
    %v4202 = vld [vmem:[#allocation13 + $0x300] sm:$0xff]
    %v4203 = vld [vmem:[#allocation13 + $0x308] sm:$0xff]
    %v4204 = vld [vmem:[#allocation13 + $0x310] sm:$0xff]
    %v4205 = vld [vmem:[#allocation13 + $0x318] sm:$0xff]
    %v4206 = vld [vmem:[#allocation13 + $0x320] sm:$0xff]
    %v4207 = vld [vmem:[#allocation13 + $0x328] sm:$0xff]
    %v4208 = vld [vmem:[#allocation13 + $0x330] sm:$0xff]
    %v4209 = vld [vmem:[#allocation13 + $0x338] sm:$0xff]
    %v4210 = vld [vmem:[#allocation13 + $0x340] sm:$0xff]
    %v4211 = vld [vmem:[#allocation13 + $0x348] sm:$0xff]
    %v4212 = vld [vmem:[#allocation13 + $0x350] sm:$0xff]
    %v4213 = vld [vmem:[#allocation13 + $0x358] sm:$0xff]
    %v4214 = vld [vmem:[#allocation13 + $0x360] sm:$0xff]
    %v4215 = vld [vmem:[#allocation13 + $0x368] sm:$0xff]
    %v4216 = vld [vmem:[#allocation13 + $0x370] sm:$0xff]
    %v4217 = vld [vmem:[#allocation13 + $0x378] sm:$0xff]
    %v4218 = vld [vmem:[#allocation13 + $0x380] sm:$0xff]
    %v4219 = vld [vmem:[#allocation13 + $0x388] sm:$0xff]
    %v4220 = vld [vmem:[#allocation13 + $0x390] sm:$0xff]
    %v4221 = vld [vmem:[#allocation13 + $0x398] sm:$0xff]
    %v4222 = vld [vmem:[#allocation13 + $0x3a0] sm:$0xff]
    %v4223 = vld [vmem:[#allocation13 + $0x3a8] sm:$0xff]
    %v4224 = vld [vmem:[#allocation13 + $0x3b0] sm:$0xff]
    %v4225 = vld [vmem:[#allocation13 + $0x3b8] sm:$0xff]
    %v4226 = vld [vmem:[#allocation13 + $0x3c0] sm:$0xff]
    %v4227 = vld [vmem:[#allocation13 + $0x3c8] sm:$0xff]
    %v4228 = vld [vmem:[#allocation13 + $0x3d0] sm:$0xff]
    %v4229 = vld [vmem:[#allocation13 + $0x3d8] sm:$0xff]
    %v4230 = vld [vmem:[#allocation13 + $0x3e0] sm:$0xff]
    %v4231 = vld [vmem:[#allocation13 + $0x3e8] sm:$0xff]
    %v4232 = vld [vmem:[#allocation13 + $0x3f0] sm:$0xff]
    %v4233 = vld [vmem:[#allocation13 + $0x3f8] sm:$0xff]
    %v4234 = vld [vmem:[#allocation13 + $0x400] sm:$0xff]
    %v4235 = vld [vmem:[#allocation13 + $0x408] sm:$0xff]
    %v4236 = vld [vmem:[#allocation13 + $0x410] sm:$0xff]
    %v4237 = vld [vmem:[#allocation13 + $0x418] sm:$0xff]
    %v4238 = vld [vmem:[#allocation13 + $0x420] sm:$0xff]
    %v4239 = vld [vmem:[#allocation13 + $0x428] sm:$0xff]
    %v4240 = vld [vmem:[#allocation13 + $0x430] sm:$0xff]
    %v4241 = vld [vmem:[#allocation13 + $0x438] sm:$0xff]
    %v4242 = vld [vmem:[#allocation13 + $0x440] sm:$0xff]
    %v4243 = vld [vmem:[#allocation13 + $0x448] sm:$0xff]
    %v4244 = vld [vmem:[#allocation13 + $0x450] sm:$0xff]
    %v4245 = vld [vmem:[#allocation13 + $0x458] sm:$0xff]
    %v4246 = vld [vmem:[#allocation13 + $0x460] sm:$0xff]
    %v4247 = vld [vmem:[#allocation13 + $0x468] sm:$0xff]
    %v4248 = vld [vmem:[#allocation13 + $0x470] sm:$0xff]
    %v4249 = vld [vmem:[#allocation13 + $0x478] sm:$0xff]
    %v4250 = vld [vmem:[#allocation13 + $0x480] sm:$0xff]
    %v4251 = vld [vmem:[#allocation13 + $0x488] sm:$0xff]
    %v4252 = vld [vmem:[#allocation13 + $0x490] sm:$0xff]
    %v4253 = vld [vmem:[#allocation13 + $0x498] sm:$0xff]
    %v4254 = vld [vmem:[#allocation13 + $0x4a0] sm:$0xff]
    %v4255 = vld [vmem:[#allocation13 + $0x4a8] sm:$0xff]
    %v4256 = vld [vmem:[#allocation13 + $0x4b0] sm:$0xff]
    %v4257 = vld [vmem:[#allocation13 + $0x4b8] sm:$0xff]
    %v4258 = vld [vmem:[#allocation13 + $0x4c0] sm:$0xff]
    %v4259 = vld [vmem:[#allocation13 + $0x4c8] sm:$0xff]
    %v4260 = vld [vmem:[#allocation13 + $0x4d0] sm:$0xff]
    %v4261 = vld [vmem:[#allocation13 + $0x4d8] sm:$0xff]
    %v4262 = vld [vmem:[#allocation13 + $0x4e0] sm:$0xff]
    %v4263 = vld [vmem:[#allocation13 + $0x4e8] sm:$0xff]
    %v4264 = vld [vmem:[#allocation13 + $0x4f0] sm:$0xff]
    %v4265 = vld [vmem:[#allocation13 + $0x4f8] sm:$0xff]
    %v4266 = vld [vmem:[#allocation13 + $0x500] sm:$0xff]
    %v4267 = vld [vmem:[#allocation13 + $0x508] sm:$0xff]
    %v4268 = vld [vmem:[#allocation13 + $0x510] sm:$0xff]
    %v4269 = vld [vmem:[#allocation13 + $0x518] sm:$0xff]
    %v4270 = vld [vmem:[#allocation13 + $0x520] sm:$0xff]
    %v4271 = vld [vmem:[#allocation13 + $0x528] sm:$0xff]
    %v4272 = vld [vmem:[#allocation13 + $0x530] sm:$0xff]
    %v4273 = vld [vmem:[#allocation13 + $0x538] sm:$0xff]
    %v4274 = vld [vmem:[#allocation13 + $0x540] sm:$0xff]
    %v4275 = vld [vmem:[#allocation13 + $0x548] sm:$0xff]
    %v4276 = vld [vmem:[#allocation13 + $0x550] sm:$0xff]
    %v4277 = vld [vmem:[#allocation13 + $0x558] sm:$0xff]
    %v4278 = vld [vmem:[#allocation13 + $0x560] sm:$0xff]
    %v4279 = vld [vmem:[#allocation13 + $0x568] sm:$0xff]
    %v4280 = vld [vmem:[#allocation13 + $0x570] sm:$0xff]
    %v4281 = vld [vmem:[#allocation13 + $0x578] sm:$0xff]
    %v4282 = vld [vmem:[#allocation13 + $0x580] sm:$0xff]
    %v4283 = vld [vmem:[#allocation13 + $0x588] sm:$0xff]
    %v4284 = vld [vmem:[#allocation13 + $0x590] sm:$0xff]
    %v4285 = vld [vmem:[#allocation13 + $0x598] sm:$0xff]
    %v4286 = vld [vmem:[#allocation13 + $0x5a0] sm:$0xff]
    %v4287 = vld [vmem:[#allocation13 + $0x5a8] sm:$0xff]
    %v4288 = vld [vmem:[#allocation13 + $0x5b0] sm:$0xff]
    %v4289 = vld [vmem:[#allocation13 + $0x5b8] sm:$0xff]
    %v4290 = vld [vmem:[#allocation13 + $0x5c0] sm:$0xff]
    %v4291 = vld [vmem:[#allocation13 + $0x5c8] sm:$0xff]
    %v4292 = vld [vmem:[#allocation13 + $0x5d0] sm:$0xff]
    %v4293 = vld [vmem:[#allocation13 + $0x5d8] sm:$0xff]
    %v4294 = vld [vmem:[#allocation13 + $0x5e0] sm:$0xff]
    %v4295 = vld [vmem:[#allocation13 + $0x5e8] sm:$0xff]
    %v4296 = vld [vmem:[#allocation13 + $0x5f0] sm:$0xff]
    %v4297 = vld [vmem:[#allocation13 + $0x5f8] sm:$0xff]
    %v4298 = vld [vmem:[#allocation13 + $0x600] sm:$0xff]
    %v4299 = vld [vmem:[#allocation13 + $0x608] sm:$0xff]
    %v4300 = vld [vmem:[#allocation13 + $0x610] sm:$0xff]
    %v4301 = vld [vmem:[#allocation13 + $0x618] sm:$0xff]
    %v4302 = vld [vmem:[#allocation13 + $0x620] sm:$0xff]
    %v4303 = vld [vmem:[#allocation13 + $0x628] sm:$0xff]
    %v4304 = vld [vmem:[#allocation13 + $0x630] sm:$0xff]
    %v4305 = vld [vmem:[#allocation13 + $0x638] sm:$0xff]
    %v4306 = vld [vmem:[#allocation13 + $0x640] sm:$0xff]
    %v4307 = vld [vmem:[#allocation13 + $0x648] sm:$0xff]
    %v4308 = vld [vmem:[#allocation13 + $0x650] sm:$0xff]
    %v4309 = vld [vmem:[#allocation13 + $0x658] sm:$0xff]
    %v4310 = vld [vmem:[#allocation13 + $0x660] sm:$0xff]
    %v4311 = vld [vmem:[#allocation13 + $0x668] sm:$0xff]
    %v4312 = vld [vmem:[#allocation13 + $0x670] sm:$0xff]
    %v4313 = vld [vmem:[#allocation13 + $0x678] sm:$0xff]
    %v4314 = vld [vmem:[#allocation13 + $0x680] sm:$0xff]
    %v4315 = vld [vmem:[#allocation13 + $0x688] sm:$0xff]
    %v4316 = vld [vmem:[#allocation13 + $0x690] sm:$0xff]
    %v4317 = vld [vmem:[#allocation13 + $0x698] sm:$0xff]
    %v4318 = vld [vmem:[#allocation13 + $0x6a0] sm:$0xff]
    %v4319 = vld [vmem:[#allocation13 + $0x6a8] sm:$0xff]
    %v4320 = vld [vmem:[#allocation13 + $0x6b0] sm:$0xff]
    %v4321 = vld [vmem:[#allocation13 + $0x6b8] sm:$0xff]
    %v4322 = vld [vmem:[#allocation13 + $0x6c0] sm:$0xff]
    %v4323 = vld [vmem:[#allocation13 + $0x6c8] sm:$0xff]
    %v4324 = vld [vmem:[#allocation13 + $0x6d0] sm:$0xff]
    %v4325 = vld [vmem:[#allocation13 + $0x6d8] sm:$0xff]
    %v4326 = vld [vmem:[#allocation13 + $0x6e0] sm:$0xff]
    %v4327 = vld [vmem:[#allocation13 + $0x6e8] sm:$0xff]
    %v4328 = vld [vmem:[#allocation13 + $0x6f0] sm:$0xff]
    %v4329 = vld [vmem:[#allocation13 + $0x6f8] sm:$0xff]
    %v4330 = vld [vmem:[#allocation13 + $0x700] sm:$0xff]
    %v4331 = vld [vmem:[#allocation13 + $0x708] sm:$0xff]
    %v4332 = vld [vmem:[#allocation13 + $0x710] sm:$0xff]
    %v4333 = vld [vmem:[#allocation13 + $0x718] sm:$0xff]
    %v4334 = vld [vmem:[#allocation13 + $0x720] sm:$0xff]
    %v4335 = vld [vmem:[#allocation13 + $0x728] sm:$0xff]
    %v4336 = vld [vmem:[#allocation13 + $0x730] sm:$0xff]
    %v4337 = vld [vmem:[#allocation13 + $0x738] sm:$0xff]
    %v4338 = vld [vmem:[#allocation13 + $0x740] sm:$0xff]
    %v4339 = vld [vmem:[#allocation13 + $0x748] sm:$0xff]
    %v4340 = vld [vmem:[#allocation13 + $0x750] sm:$0xff]
    %v4341 = vld [vmem:[#allocation13 + $0x758] sm:$0xff]
    %v4342 = vld [vmem:[#allocation13 + $0x760] sm:$0xff]
    %v4343 = vld [vmem:[#allocation13 + $0x768] sm:$0xff]
    %v4344 = vld [vmem:[#allocation13 + $0x770] sm:$0xff]
    %v4345 = vld [vmem:[#allocation13 + $0x778] sm:$0xff]
    %v4346 = vld [vmem:[#allocation13 + $0x780] sm:$0xff]
    %v4347 = vld [vmem:[#allocation13 + $0x788] sm:$0xff]
    %v4348 = vld [vmem:[#allocation13 + $0x790] sm:$0xff]
    %v4349 = vld [vmem:[#allocation13 + $0x798] sm:$0xff]
    %v4350 = vld [vmem:[#allocation13 + $0x7a0] sm:$0xff]
    %v4351 = vld [vmem:[#allocation13 + $0x7a8] sm:$0xff]
    %v4352 = vld [vmem:[#allocation13 + $0x7b0] sm:$0xff]
    %v4353 = vld [vmem:[#allocation13 + $0x7b8] sm:$0xff]
    %v4354 = vld [vmem:[#allocation13 + $0x7c0] sm:$0xff]
    %v4355 = vld [vmem:[#allocation13 + $0x7c8] sm:$0xff]
    %v4356 = vld [vmem:[#allocation13 + $0x7d0] sm:$0xff]
    %v4357 = vld [vmem:[#allocation13 + $0x7d8] sm:$0xff]
    %v4358 = vld [vmem:[#allocation13 + $0x7e0] sm:$0xff]
    %v4359 = vld [vmem:[#allocation13 + $0x7e8] sm:$0xff]
    %v4360 = vld [vmem:[#allocation13 + $0x7f0] sm:$0xff]
    %v4361 = vld [vmem:[#allocation13 + $0x7f8] sm:$0xff]
    %v4362 = vld [vmem:[#allocation13 + $0x800] sm:$0xff]
    %v4363 = vld [vmem:[#allocation13 + $0x808] sm:$0xff]
    %v4364 = vld [vmem:[#allocation13 + $0x810] sm:$0xff]
    %v4365 = vld [vmem:[#allocation13 + $0x818] sm:$0xff]
    %v4366 = vld [vmem:[#allocation13 + $0x820] sm:$0xff]
    %v4367 = vld [vmem:[#allocation13 + $0x828] sm:$0xff]
    %v4368 = vld [vmem:[#allocation13 + $0x830] sm:$0xff]
    %v4369 = vld [vmem:[#allocation13 + $0x838] sm:$0xff]
    %v4370 = vld [vmem:[#allocation13 + $0x840] sm:$0xff]
    %v4371 = vld [vmem:[#allocation13 + $0x848] sm:$0xff]
    %v4372 = vld [vmem:[#allocation13 + $0x850] sm:$0xff]
    %v4373 = vld [vmem:[#allocation13 + $0x858] sm:$0xff]
    %v4374 = vld [vmem:[#allocation13 + $0x860] sm:$0xff]
    %v4375 = vld [vmem:[#allocation13 + $0x868] sm:$0xff]
    %v4376 = vld [vmem:[#allocation13 + $0x870] sm:$0xff]
    %v4377 = vld [vmem:[#allocation13 + $0x878] sm:$0xff]
    %v4378 = vld [vmem:[#allocation13 + $0x880] sm:$0xff]
    %v4379 = vld [vmem:[#allocation13 + $0x888] sm:$0xff]
    %v4380 = vld [vmem:[#allocation13 + $0x890] sm:$0xff]
    %v4381 = vld [vmem:[#allocation13 + $0x898] sm:$0xff]
    %v4382 = vld [vmem:[#allocation13 + $0x8a0] sm:$0xff]
    %v4383 = vld [vmem:[#allocation13 + $0x8a8] sm:$0xff]
    %v4384 = vld [vmem:[#allocation13 + $0x8b0] sm:$0xff]
    %v4385 = vld [vmem:[#allocation13 + $0x8b8] sm:$0xff]
    %v4386 = vld [vmem:[#allocation13 + $0x8c0] sm:$0xff]
    %v4387 = vld [vmem:[#allocation13 + $0x8c8] sm:$0xff]
    %v4388 = vld [vmem:[#allocation13 + $0x8d0] sm:$0xff]
    %v4389 = vld [vmem:[#allocation13 + $0x8d8] sm:$0xff]
    %v4390 = vld [vmem:[#allocation13 + $0x8e0] sm:$0xff]
    %v4391 = vld [vmem:[#allocation13 + $0x8e8] sm:$0xff]
    %v4392 = vld [vmem:[#allocation13 + $0x8f0] sm:$0xff]
    %v4393 = vld [vmem:[#allocation13 + $0x8f8] sm:$0xff]
    %v4394 = vld [vmem:[#allocation13 + $0x900] sm:$0xff]
    %v4395 = vld [vmem:[#allocation13 + $0x908] sm:$0xff]
    %v4396 = vld [vmem:[#allocation13 + $0x910] sm:$0xff]
    %v4397 = vld [vmem:[#allocation13 + $0x918] sm:$0xff]
    %v4398 = vld [vmem:[#allocation13 + $0x920] sm:$0xff]
    %v4399 = vld [vmem:[#allocation13 + $0x928] sm:$0xff]
    %v4400 = vld [vmem:[#allocation13 + $0x930] sm:$0xff]
    %v4401 = vld [vmem:[#allocation13 + $0x938] sm:$0xff]
    %v4402 = vld [vmem:[#allocation13 + $0x940] sm:$0xff]
    %v4403 = vld [vmem:[#allocation13 + $0x948] sm:$0xff]
    %v4404 = vld [vmem:[#allocation13 + $0x950] sm:$0xff]
    %v4405 = vld [vmem:[#allocation13 + $0x958] sm:$0xff]
    %v4406 = vld [vmem:[#allocation13 + $0x960] sm:$0xff]
    %v4407 = vld [vmem:[#allocation13 + $0x968] sm:$0xff]
    %v4408 = vld [vmem:[#allocation13 + $0x970] sm:$0xff]
    %v4409 = vld [vmem:[#allocation13 + $0x978] sm:$0xff]
    %v4410 = vld [vmem:[#allocation13 + $0x980] sm:$0xff]
    %v4411 = vld [vmem:[#allocation13 + $0x988] sm:$0xff]
    %v4412 = vld [vmem:[#allocation13 + $0x990] sm:$0xff]
    %v4413 = vld [vmem:[#allocation13 + $0x998] sm:$0xff]
    %v4414 = vld [vmem:[#allocation13 + $0x9a0] sm:$0xff]
    %v4415 = vld [vmem:[#allocation13 + $0x9a8] sm:$0xff]
    %v4416 = vld [vmem:[#allocation13 + $0x9b0] sm:$0xff]
    %v4417 = vld [vmem:[#allocation13 + $0x9b8] sm:$0xff]
    %v4418 = vld [vmem:[#allocation13 + $0x9c0] sm:$0xff]
    %v4419 = vld [vmem:[#allocation13 + $0x9c8] sm:$0xff]
    %v4420 = vld [vmem:[#allocation13 + $0x9d0] sm:$0xff]
    %v4421 = vld [vmem:[#allocation13 + $0x9d8] sm:$0xff]
    %v4422 = vld [vmem:[#allocation13 + $0x9e0] sm:$0xff]
    %v4423 = vld [vmem:[#allocation13 + $0x9e8] sm:$0xff]
    %v4424 = vld [vmem:[#allocation13 + $0x9f0] sm:$0xff]
    %v4425 = vld [vmem:[#allocation13 + $0x9f8] sm:$0xff]
    %v4426 = vld [vmem:[#allocation13 + $0xa00] sm:$0xff]
    %v4427 = vld [vmem:[#allocation13 + $0xa08] sm:$0xff]
    %v4428 = vld [vmem:[#allocation13 + $0xa10] sm:$0xff]
    %v4429 = vld [vmem:[#allocation13 + $0xa18] sm:$0xff]
    %v4430 = vld [vmem:[#allocation13 + $0xa20] sm:$0xff]
    %v4431 = vld [vmem:[#allocation13 + $0xa28] sm:$0xff]
    %v4432 = vld [vmem:[#allocation13 + $0xa30] sm:$0xff]
    %v4433 = vld [vmem:[#allocation13 + $0xa38] sm:$0xff]
    %v4434 = vld [vmem:[#allocation13 + $0xa40] sm:$0xff]
    %v4435 = vld [vmem:[#allocation13 + $0xa48] sm:$0xff]
    %v4436 = vld [vmem:[#allocation13 + $0xa50] sm:$0xff]
    %v4437 = vld [vmem:[#allocation13 + $0xa58] sm:$0xff]
    %v4438 = vld [vmem:[#allocation13 + $0xa60] sm:$0xff]
    %v4439 = vld [vmem:[#allocation13 + $0xa68] sm:$0xff]
    %v4440 = vld [vmem:[#allocation13 + $0xa70] sm:$0xff]
    %v4441 = vld [vmem:[#allocation13 + $0xa78] sm:$0xff]
    %v4442 = vld [vmem:[#allocation13 + $0xa80] sm:$0xff]
    %v4443 = vld [vmem:[#allocation13 + $0xa88] sm:$0xff]
    %v4444 = vld [vmem:[#allocation13 + $0xa90] sm:$0xff]
    %v4445 = vld [vmem:[#allocation13 + $0xa98] sm:$0xff]
    %v4446 = vld [vmem:[#allocation13 + $0xaa0] sm:$0xff]
    %v4447 = vld [vmem:[#allocation13 + $0xaa8] sm:$0xff]
    %v4448 = vld [vmem:[#allocation13 + $0xab0] sm:$0xff]
    %v4449 = vld [vmem:[#allocation13 + $0xab8] sm:$0xff]
    %v4450 = vld [vmem:[#allocation13 + $0xac0] sm:$0xff]
    %v4451 = vld [vmem:[#allocation13 + $0xac8] sm:$0xff]
    %v4452 = vld [vmem:[#allocation13 + $0xad0] sm:$0xff]
    %v4453 = vld [vmem:[#allocation13 + $0xad8] sm:$0xff]
    %v4454 = vld [vmem:[#allocation13 + $0xae0] sm:$0xff]
    %v4455 = vld [vmem:[#allocation13 + $0xae8] sm:$0xff]
    %v4456 = vld [vmem:[#allocation13 + $0xaf0] sm:$0xff]
    %v4457 = vld [vmem:[#allocation13 + $0xaf8] sm:$0xff]
    %v4458 = vld [vmem:[#allocation13 + $0xb00] sm:$0xff]
    %v4459 = vld [vmem:[#allocation13 + $0xb08] sm:$0xff]
    %v4460 = vld [vmem:[#allocation13 + $0xb10] sm:$0xff]
    %v4461 = vld [vmem:[#allocation13 + $0xb18] sm:$0xff]
    %v4462 = vld [vmem:[#allocation13 + $0xb20] sm:$0xff]
    %v4463 = vld [vmem:[#allocation13 + $0xb28] sm:$0xff]
    %v4464 = vld [vmem:[#allocation13 + $0xb30] sm:$0xff]
    %v4465 = vld [vmem:[#allocation13 + $0xb38] sm:$0xff]
    %v4466 = vld [vmem:[#allocation13 + $0xb40] sm:$0xff]
    %v4467 = vld [vmem:[#allocation13 + $0xb48] sm:$0xff]
    %v4468 = vld [vmem:[#allocation13 + $0xb50] sm:$0xff]
    %v4469 = vld [vmem:[#allocation13 + $0xb58] sm:$0xff]
    %v4470 = vld [vmem:[#allocation13 + $0xb60] sm:$0xff]
    %v4471 = vld [vmem:[#allocation13 + $0xb68] sm:$0xff]
    %v4472 = vld [vmem:[#allocation13 + $0xb70] sm:$0xff]
    %v4473 = vld [vmem:[#allocation13 + $0xb78] sm:$0xff]
    %v4474 = vld [vmem:[#allocation13 + $0xb80] sm:$0xff]
    %v4475 = vld [vmem:[#allocation13 + $0xb88] sm:$0xff]
    %v4476 = vld [vmem:[#allocation13 + $0xb90] sm:$0xff]
    %v4477 = vld [vmem:[#allocation13 + $0xb98] sm:$0xff]
    %v4478 = vld [vmem:[#allocation13 + $0xba0] sm:$0xff]
    %v4479 = vld [vmem:[#allocation13 + $0xba8] sm:$0xff]
    %v4480 = vld [vmem:[#allocation13 + $0xbb0] sm:$0xff]
    %v4481 = vld [vmem:[#allocation13 + $0xbb8] sm:$0xff]
    %v4482 = vld [vmem:[#allocation13 + $0xbc0] sm:$0xff]
    %v4483 = vld [vmem:[#allocation13 + $0xbc8] sm:$0xff]
    %v4484 = vld [vmem:[#allocation13 + $0xbd0] sm:$0xff]
    %v4485 = vld [vmem:[#allocation13 + $0xbd8] sm:$0xff]
    %v4486 = vld [vmem:[#allocation13 + $0xbe0] sm:$0xff]
    %v4487 = vld [vmem:[#allocation13 + $0xbe8] sm:$0xff]
    %v4488 = vld [vmem:[#allocation13 + $0xbf0] sm:$0xff]
    %v4489 = vld [vmem:[#allocation13 + $0xbf8] sm:$0xff]
    %v4490 = vld [vmem:[#allocation13 + $0xc00] sm:$0xff]
    %v4491 = vld [vmem:[#allocation13 + $0xc08] sm:$0xff]
    %v4492 = vld [vmem:[#allocation13 + $0xc10] sm:$0xff]
    %v4493 = vld [vmem:[#allocation13 + $0xc18] sm:$0xff]
    %v4494 = vld [vmem:[#allocation13 + $0xc20] sm:$0xff]
    %v4495 = vld [vmem:[#allocation13 + $0xc28] sm:$0xff]
    %v4496 = vld [vmem:[#allocation13 + $0xc30] sm:$0xff]
    %v4497 = vld [vmem:[#allocation13 + $0xc38] sm:$0xff]
    %v4498 = vld [vmem:[#allocation13 + $0xc40] sm:$0xff]
    %v4499 = vld [vmem:[#allocation13 + $0xc48] sm:$0xff]
    %v4500 = vld [vmem:[#allocation13 + $0xc50] sm:$0xff]
    %v4501 = vld [vmem:[#allocation13 + $0xc58] sm:$0xff]
    %v4502 = vld [vmem:[#allocation13 + $0xc60] sm:$0xff]
    %v4503 = vld [vmem:[#allocation13 + $0xc68] sm:$0xff]
    %v4504 = vld [vmem:[#allocation13 + $0xc70] sm:$0xff]
    %v4505 = vld [vmem:[#allocation13 + $0xc78] sm:$0xff]
    %v4506 = vld [vmem:[#allocation13 + $0xc80] sm:$0xff]
    %v4507 = vld [vmem:[#allocation13 + $0xc88] sm:$0xff]
    %v4508 = vld [vmem:[#allocation13 + $0xc90] sm:$0xff]
    %v4509 = vld [vmem:[#allocation13 + $0xc98] sm:$0xff]
    %v4510 = vld [vmem:[#allocation13 + $0xca0] sm:$0xff]
    %v4511 = vld [vmem:[#allocation13 + $0xca8] sm:$0xff]
    %v4512 = vld [vmem:[#allocation13 + $0xcb0] sm:$0xff]
    %v4513 = vld [vmem:[#allocation13 + $0xcb8] sm:$0xff]
    %v4514 = vld [vmem:[#allocation13 + $0xcc0] sm:$0xff]
    %v4515 = vld [vmem:[#allocation13 + $0xcc8] sm:$0xff]
    %v4516 = vld [vmem:[#allocation13 + $0xcd0] sm:$0xff]
    %v4517 = vld [vmem:[#allocation13 + $0xcd8] sm:$0xff]
    %v4518 = vld [vmem:[#allocation13 + $0xce0] sm:$0xff]
    %v4519 = vld [vmem:[#allocation13 + $0xce8] sm:$0xff]
    %v4520 = vld [vmem:[#allocation13 + $0xcf0] sm:$0xff]
    %v4521 = vld [vmem:[#allocation13 + $0xcf8] sm:$0xff]
    %v4522 = vld [vmem:[#allocation13 + $0xd00] sm:$0xff]
    %v4523 = vld [vmem:[#allocation13 + $0xd08] sm:$0xff]
    %v4524 = vld [vmem:[#allocation13 + $0xd10] sm:$0xff]
    %v4525 = vld [vmem:[#allocation13 + $0xd18] sm:$0xff]
    %v4526 = vld [vmem:[#allocation13 + $0xd20] sm:$0xff]
    %v4527 = vld [vmem:[#allocation13 + $0xd28] sm:$0xff]
    %v4528 = vld [vmem:[#allocation13 + $0xd30] sm:$0xff]
    %v4529 = vld [vmem:[#allocation13 + $0xd38] sm:$0xff]
    %v4530 = vld [vmem:[#allocation13 + $0xd40] sm:$0xff]
    %v4531 = vld [vmem:[#allocation13 + $0xd48] sm:$0xff]
    %v4532 = vld [vmem:[#allocation13 + $0xd50] sm:$0xff]
    %v4533 = vld [vmem:[#allocation13 + $0xd58] sm:$0xff]
    %v4534 = vld [vmem:[#allocation13 + $0xd60] sm:$0xff]
    %v4535 = vld [vmem:[#allocation13 + $0xd68] sm:$0xff]
    %v4536 = vld [vmem:[#allocation13 + $0xd70] sm:$0xff]
    %v4537 = vld [vmem:[#allocation13 + $0xd78] sm:$0xff]
    %v4538 = vld [vmem:[#allocation13 + $0xd80] sm:$0xff]
    %v4539 = vld [vmem:[#allocation13 + $0xd88] sm:$0xff]
    %v4540 = vld [vmem:[#allocation13 + $0xd90] sm:$0xff]
    %v4541 = vld [vmem:[#allocation13 + $0xd98] sm:$0xff]
    %v4542 = vld [vmem:[#allocation13 + $0xda0] sm:$0xff]
    %v4543 = vld [vmem:[#allocation13 + $0xda8] sm:$0xff]
    %v4544 = vld [vmem:[#allocation13 + $0xdb0] sm:$0xff]
    %v4545 = vld [vmem:[#allocation13 + $0xdb8] sm:$0xff]
    %v4546 = vld [vmem:[#allocation13 + $0xdc0] sm:$0xff]
    %v4547 = vld [vmem:[#allocation13 + $0xdc8] sm:$0xff]
    %v4548 = vld [vmem:[#allocation13 + $0xdd0] sm:$0xff]
    %v4549 = vld [vmem:[#allocation13 + $0xdd8] sm:$0xff]
    %v4550 = vld [vmem:[#allocation13 + $0xde0] sm:$0xff]
    %v4551 = vld [vmem:[#allocation13 + $0xde8] sm:$0xff]
    %v4552 = vld [vmem:[#allocation13 + $0xdf0] sm:$0xff]
    %v4553 = vld [vmem:[#allocation13 + $0xdf8] sm:$0xff]
    %v4554 = vld [vmem:[#allocation13 + $0xe00] sm:$0xff]
    %v4555 = vld [vmem:[#allocation13 + $0xe08] sm:$0xff]
    %v4556 = vld [vmem:[#allocation13 + $0xe10] sm:$0xff]
    %v4557 = vld [vmem:[#allocation13 + $0xe18] sm:$0xff]
    %v4558 = vld [vmem:[#allocation13 + $0xe20] sm:$0xff]
    %v4559 = vld [vmem:[#allocation13 + $0xe28] sm:$0xff]
    %v4560 = vld [vmem:[#allocation13 + $0xe30] sm:$0xff]
    %v4561 = vld [vmem:[#allocation13 + $0xe38] sm:$0xff]
    %v4562 = vld [vmem:[#allocation13 + $0xe40] sm:$0xff]
    %v4563 = vld [vmem:[#allocation13 + $0xe48] sm:$0xff]
    %v4564 = vld [vmem:[#allocation13 + $0xe50] sm:$0xff]
    %v4565 = vld [vmem:[#allocation13 + $0xe58] sm:$0xff]
    %v4566 = vld [vmem:[#allocation13 + $0xe60] sm:$0xff]
    %v4567 = vld [vmem:[#allocation13 + $0xe68] sm:$0xff]
    %v4568 = vld [vmem:[#allocation13 + $0xe70] sm:$0xff]
    %v4569 = vld [vmem:[#allocation13 + $0xe78] sm:$0xff]
    %v4570 = vld [vmem:[#allocation13 + $0xe80] sm:$0xff]
    %v4571 = vld [vmem:[#allocation13 + $0xe88] sm:$0xff]
    %v4572 = vld [vmem:[#allocation13 + $0xe90] sm:$0xff]
    %v4573 = vld [vmem:[#allocation13 + $0xe98] sm:$0xff]
    %v4574 = vld [vmem:[#allocation13 + $0xea0] sm:$0xff]
    %v4575 = vld [vmem:[#allocation13 + $0xea8] sm:$0xff]
    %v4576 = vld [vmem:[#allocation13 + $0xeb0] sm:$0xff]
    %v4577 = vld [vmem:[#allocation13 + $0xeb8] sm:$0xff]
    %v4578 = vld [vmem:[#allocation13 + $0xec0] sm:$0xff]
    %v4579 = vld [vmem:[#allocation13 + $0xec8] sm:$0xff]
    %v4580 = vld [vmem:[#allocation13 + $0xed0] sm:$0xff]
    %v4581 = vld [vmem:[#allocation13 + $0xed8] sm:$0xff]
    %v4582 = vld [vmem:[#allocation13 + $0xee0] sm:$0xff]
    %v4583 = vld [vmem:[#allocation13 + $0xee8] sm:$0xff]
    %v4584 = vld [vmem:[#allocation13 + $0xef0] sm:$0xff]
    %v4585 = vld [vmem:[#allocation13 + $0xef8] sm:$0xff]
    %v4586 = vld [vmem:[#allocation13 + $0xf00] sm:$0xff]
    %v4587 = vld [vmem:[#allocation13 + $0xf08] sm:$0xff]
    %v4588 = vld [vmem:[#allocation13 + $0xf10] sm:$0xff]
    %v4589 = vld [vmem:[#allocation13 + $0xf18] sm:$0xff]
    %v4590 = vld [vmem:[#allocation13 + $0xf20] sm:$0xff]
    %v4591 = vld [vmem:[#allocation13 + $0xf28] sm:$0xff]
    %v4592 = vld [vmem:[#allocation13 + $0xf30] sm:$0xff]
    %v4593 = vld [vmem:[#allocation13 + $0xf38] sm:$0xff]
    %v4594 = vld [vmem:[#allocation13 + $0xf40] sm:$0xff]
    %v4595 = vld [vmem:[#allocation13 + $0xf48] sm:$0xff]
    %v4596 = vld [vmem:[#allocation13 + $0xf50] sm:$0xff]
    %v4597 = vld [vmem:[#allocation13 + $0xf58] sm:$0xff]
    %v4598 = vld [vmem:[#allocation13 + $0xf60] sm:$0xff]
    %v4599 = vld [vmem:[#allocation13 + $0xf68] sm:$0xff]
    %v4600 = vld [vmem:[#allocation13 + $0xf70] sm:$0xff]
    %v4601 = vld [vmem:[#allocation13 + $0xf78] sm:$0xff]
    %v4602 = vld [vmem:[#allocation13 + $0xf80] sm:$0xff]
    %v4603 = vld [vmem:[#allocation13 + $0xf88] sm:$0xff]
    %v4604 = vld [vmem:[#allocation13 + $0xf90] sm:$0xff]
    %v4605 = vld [vmem:[#allocation13 + $0xf98] sm:$0xff]
    %v4606 = vld [vmem:[#allocation13 + $0xfa0] sm:$0xff]
    %v4607 = vld [vmem:[#allocation13 + $0xfa8] sm:$0xff]
    %v4608 = vld [vmem:[#allocation13 + $0xfb0] sm:$0xff]
    %v4609 = vld [vmem:[#allocation13 + $0xfb8] sm:$0xff]
    %v4610 = vld [vmem:[#allocation13 + $0xfc0] sm:$0xff]
    %v4611 = vld [vmem:[#allocation13 + $0xfc8] sm:$0xff]
    %v4612 = vld [vmem:[#allocation13 + $0xfd0] sm:$0xff]
    %v4613 = vld [vmem:[#allocation13 + $0xfd8] sm:$0xff]
    %v4614 = vld [vmem:[#allocation13 + $0xfe0] sm:$0xff]
    %v4615 = vld [vmem:[#allocation13 + $0xfe8] sm:$0xff]
    %v4616 = vld [vmem:[#allocation13 + $0xff0] sm:$0xff]
    %v4617 = vld [vmem:[#allocation13 + $0xff8] sm:$0xff]
    %v5130 = vunpack.c.l.b16 %v4106
    %v5131 = vunpack.c.h.b16 %v4106
    %v5132 = vunpack.c.l.b16 %v4107
    %v5133 = vunpack.c.h.b16 %v4107
    %v5134 = vunpack.c.l.b16 %v4108
    %v5135 = vunpack.c.h.b16 %v4108
    %v5136 = vunpack.c.l.b16 %v4109
    %v5137 = vunpack.c.h.b16 %v4109
    %v5138 = vunpack.c.l.b16 %v4110
    %v5139 = vunpack.c.h.b16 %v4110
    %v5140 = vunpack.c.l.b16 %v4111
    %v5141 = vunpack.c.h.b16 %v4111
    %v5142 = vunpack.c.l.b16 %v4112
    %v5143 = vunpack.c.h.b16 %v4112
    %v5144 = vunpack.c.l.b16 %v4113
    %v5145 = vunpack.c.h.b16 %v4113
    %v5146 = vunpack.c.l.b16 %v4114
    %v5147 = vunpack.c.h.b16 %v4114
    %v5148 = vunpack.c.l.b16 %v4115
    %v5149 = vunpack.c.h.b16 %v4115
    %v5150 = vunpack.c.l.b16 %v4116
    %v5151 = vunpack.c.h.b16 %v4116
    %v5152 = vunpack.c.l.b16 %v4117
    %v5153 = vunpack.c.h.b16 %v4117
    %v5154 = vunpack.c.l.b16 %v4118
    %v5155 = vunpack.c.h.b16 %v4118
    %v5156 = vunpack.c.l.b16 %v4119
    %v5157 = vunpack.c.h.b16 %v4119
    %v5158 = vunpack.c.l.b16 %v4120
    %v5159 = vunpack.c.h.b16 %v4120
    %v5160 = vunpack.c.l.b16 %v4121
    %v5161 = vunpack.c.h.b16 %v4121
    %v5162 = vunpack.c.l.b16 %v4122
    %v5163 = vunpack.c.h.b16 %v4122
    %v5164 = vunpack.c.l.b16 %v4123
    %v5165 = vunpack.c.h.b16 %v4123
    %v5166 = vunpack.c.l.b16 %v4124
    %v5167 = vunpack.c.h.b16 %v4124
    %v5168 = vunpack.c.l.b16 %v4125
    %v5169 = vunpack.c.h.b16 %v4125
    %v5170 = vunpack.c.l.b16 %v4126
    %v5171 = vunpack.c.h.b16 %v4126
    %v5172 = vunpack.c.l.b16 %v4127
    %v5173 = vunpack.c.h.b16 %v4127
    %v5174 = vunpack.c.l.b16 %v4128
    %v5175 = vunpack.c.h.b16 %v4128
    %v5176 = vunpack.c.l.b16 %v4129
    %v5177 = vunpack.c.h.b16 %v4129
    %v5178 = vunpack.c.l.b16 %v4130
    %v5179 = vunpack.c.h.b16 %v4130
    %v5180 = vunpack.c.l.b16 %v4131
    %v5181 = vunpack.c.h.b16 %v4131
    %v5182 = vunpack.c.l.b16 %v4132
    %v5183 = vunpack.c.h.b16 %v4132
    %v5184 = vunpack.c.l.b16 %v4133
    %v5185 = vunpack.c.h.b16 %v4133
    %v5186 = vunpack.c.l.b16 %v4134
    %v5187 = vunpack.c.h.b16 %v4134
    %v5188 = vunpack.c.l.b16 %v4135
    %v5189 = vunpack.c.h.b16 %v4135
    %v5190 = vunpack.c.l.b16 %v4136
    %v5191 = vunpack.c.h.b16 %v4136
    %v5192 = vunpack.c.l.b16 %v4137
    %v5193 = vunpack.c.h.b16 %v4137
    %v5194 = vunpack.c.l.b16 %v4138
    %v5195 = vunpack.c.h.b16 %v4138
    %v5196 = vunpack.c.l.b16 %v4139
    %v5197 = vunpack.c.h.b16 %v4139
    %v5198 = vunpack.c.l.b16 %v4140
    %v5199 = vunpack.c.h.b16 %v4140
    %v5200 = vunpack.c.l.b16 %v4141
    %v5201 = vunpack.c.h.b16 %v4141
    %v5202 = vunpack.c.l.b16 %v4142
    %v5203 = vunpack.c.h.b16 %v4142
    %v5204 = vunpack.c.l.b16 %v4143
    %v5205 = vunpack.c.h.b16 %v4143
    %v5206 = vunpack.c.l.b16 %v4144
    %v5207 = vunpack.c.h.b16 %v4144
    %v5208 = vunpack.c.l.b16 %v4145
    %v5209 = vunpack.c.h.b16 %v4145
    %v5210 = vunpack.c.l.b16 %v4146
    %v5211 = vunpack.c.h.b16 %v4146
    %v5212 = vunpack.c.l.b16 %v4147
    %v5213 = vunpack.c.h.b16 %v4147
    %v5214 = vunpack.c.l.b16 %v4148
    %v5215 = vunpack.c.h.b16 %v4148
    %v5216 = vunpack.c.l.b16 %v4149
    %v5217 = vunpack.c.h.b16 %v4149
    %v5218 = vunpack.c.l.b16 %v4150
    %v5219 = vunpack.c.h.b16 %v4150
    %v5220 = vunpack.c.l.b16 %v4151
    %v5221 = vunpack.c.h.b16 %v4151
    %v5222 = vunpack.c.l.b16 %v4152
    %v5223 = vunpack.c.h.b16 %v4152
    %v5224 = vunpack.c.l.b16 %v4153
    %v5225 = vunpack.c.h.b16 %v4153
    %v5226 = vunpack.c.l.b16 %v4154
    %v5227 = vunpack.c.h.b16 %v4154
    %v5228 = vunpack.c.l.b16 %v4155
    %v5229 = vunpack.c.h.b16 %v4155
    %v5230 = vunpack.c.l.b16 %v4156
    %v5231 = vunpack.c.h.b16 %v4156
    %v5232 = vunpack.c.l.b16 %v4157
    %v5233 = vunpack.c.h.b16 %v4157
    %v5234 = vunpack.c.l.b16 %v4158
    %v5235 = vunpack.c.h.b16 %v4158
    %v5236 = vunpack.c.l.b16 %v4159
    %v5237 = vunpack.c.h.b16 %v4159
    %v5238 = vunpack.c.l.b16 %v4160
    %v5239 = vunpack.c.h.b16 %v4160
    %v5240 = vunpack.c.l.b16 %v4161
    %v5241 = vunpack.c.h.b16 %v4161
    %v5242 = vunpack.c.l.b16 %v4162
    %v5243 = vunpack.c.h.b16 %v4162
    %v5244 = vunpack.c.l.b16 %v4163
    %v5245 = vunpack.c.h.b16 %v4163
    %v5246 = vunpack.c.l.b16 %v4164
    %v5247 = vunpack.c.h.b16 %v4164
    %v5248 = vunpack.c.l.b16 %v4165
    %v5249 = vunpack.c.h.b16 %v4165
    %v5250 = vunpack.c.l.b16 %v4166
    %v5251 = vunpack.c.h.b16 %v4166
    %v5252 = vunpack.c.l.b16 %v4167
    %v5253 = vunpack.c.h.b16 %v4167
    %v5254 = vunpack.c.l.b16 %v4168
    %v5255 = vunpack.c.h.b16 %v4168
    %v5256 = vunpack.c.l.b16 %v4169
    %v5257 = vunpack.c.h.b16 %v4169
    %v5258 = vunpack.c.l.b16 %v4170
    %v5259 = vunpack.c.h.b16 %v4170
    %v5260 = vunpack.c.l.b16 %v4171
    %v5261 = vunpack.c.h.b16 %v4171
    %v5262 = vunpack.c.l.b16 %v4172
    %v5263 = vunpack.c.h.b16 %v4172
    %v5264 = vunpack.c.l.b16 %v4173
    %v5265 = vunpack.c.h.b16 %v4173
    %v5266 = vunpack.c.l.b16 %v4174
    %v5267 = vunpack.c.h.b16 %v4174
    %v5268 = vunpack.c.l.b16 %v4175
    %v5269 = vunpack.c.h.b16 %v4175
    %v5270 = vunpack.c.l.b16 %v4176
    %v5271 = vunpack.c.h.b16 %v4176
    %v5272 = vunpack.c.l.b16 %v4177
    %v5273 = vunpack.c.h.b16 %v4177
    %v5274 = vunpack.c.l.b16 %v4178
    %v5275 = vunpack.c.h.b16 %v4178
    %v5276 = vunpack.c.l.b16 %v4179
    %v5277 = vunpack.c.h.b16 %v4179
    %v5278 = vunpack.c.l.b16 %v4180
    %v5279 = vunpack.c.h.b16 %v4180
    %v5280 = vunpack.c.l.b16 %v4181
    %v5281 = vunpack.c.h.b16 %v4181
    %v5282 = vunpack.c.l.b16 %v4182
    %v5283 = vunpack.c.h.b16 %v4182
    %v5284 = vunpack.c.l.b16 %v4183
    %v5285 = vunpack.c.h.b16 %v4183
    %v5286 = vunpack.c.l.b16 %v4184
    %v5287 = vunpack.c.h.b16 %v4184
    %v5288 = vunpack.c.l.b16 %v4185
    %v5289 = vunpack.c.h.b16 %v4185
    %v5290 = vunpack.c.l.b16 %v4186
    %v5291 = vunpack.c.h.b16 %v4186
    %v5292 = vunpack.c.l.b16 %v4187
    %v5293 = vunpack.c.h.b16 %v4187
    %v5294 = vunpack.c.l.b16 %v4188
    %v5295 = vunpack.c.h.b16 %v4188
    %v5296 = vunpack.c.l.b16 %v4189
    %v5297 = vunpack.c.h.b16 %v4189
    %v5298 = vunpack.c.l.b16 %v4190
    %v5299 = vunpack.c.h.b16 %v4190
    %v5300 = vunpack.c.l.b16 %v4191
    %v5301 = vunpack.c.h.b16 %v4191
    %v5302 = vunpack.c.l.b16 %v4192
    %v5303 = vunpack.c.h.b16 %v4192
    %v5304 = vunpack.c.l.b16 %v4193
    %v5305 = vunpack.c.h.b16 %v4193
    %v5306 = vunpack.c.l.b16 %v4194
    %v5307 = vunpack.c.h.b16 %v4194
    %v5308 = vunpack.c.l.b16 %v4195
    %v5309 = vunpack.c.h.b16 %v4195
    %v5310 = vunpack.c.l.b16 %v4196
    %v5311 = vunpack.c.h.b16 %v4196
    %v5312 = vunpack.c.l.b16 %v4197
    %v5313 = vunpack.c.h.b16 %v4197
    %v5314 = vunpack.c.l.b16 %v4198
    %v5315 = vunpack.c.h.b16 %v4198
    %v5316 = vunpack.c.l.b16 %v4199
    %v5317 = vunpack.c.h.b16 %v4199
    %v5318 = vunpack.c.l.b16 %v4200
    %v5319 = vunpack.c.h.b16 %v4200
    %v5320 = vunpack.c.l.b16 %v4201
    %v5321 = vunpack.c.h.b16 %v4201
    %v5322 = vunpack.c.l.b16 %v4202
    %v5323 = vunpack.c.h.b16 %v4202
    %v5324 = vunpack.c.l.b16 %v4203
    %v5325 = vunpack.c.h.b16 %v4203
    %v5326 = vunpack.c.l.b16 %v4204
    %v5327 = vunpack.c.h.b16 %v4204
    %v5328 = vunpack.c.l.b16 %v4205
    %v5329 = vunpack.c.h.b16 %v4205
    %v5330 = vunpack.c.l.b16 %v4206
    %v5331 = vunpack.c.h.b16 %v4206
    %v5332 = vunpack.c.l.b16 %v4207
    %v5333 = vunpack.c.h.b16 %v4207
    %v5334 = vunpack.c.l.b16 %v4208
    %v5335 = vunpack.c.h.b16 %v4208
    %v5336 = vunpack.c.l.b16 %v4209
    %v5337 = vunpack.c.h.b16 %v4209
    %v5338 = vunpack.c.l.b16 %v4210
    %v5339 = vunpack.c.h.b16 %v4210
    %v5340 = vunpack.c.l.b16 %v4211
    %v5341 = vunpack.c.h.b16 %v4211
    %v5342 = vunpack.c.l.b16 %v4212
    %v5343 = vunpack.c.h.b16 %v4212
    %v5344 = vunpack.c.l.b16 %v4213
    %v5345 = vunpack.c.h.b16 %v4213
    %v5346 = vunpack.c.l.b16 %v4214
    %v5347 = vunpack.c.h.b16 %v4214
    %v5348 = vunpack.c.l.b16 %v4215
    %v5349 = vunpack.c.h.b16 %v4215
    %v5350 = vunpack.c.l.b16 %v4216
    %v5351 = vunpack.c.h.b16 %v4216
    %v5352 = vunpack.c.l.b16 %v4217
    %v5353 = vunpack.c.h.b16 %v4217
    %v5354 = vunpack.c.l.b16 %v4218
    %v5355 = vunpack.c.h.b16 %v4218
    %v5356 = vunpack.c.l.b16 %v4219
    %v5357 = vunpack.c.h.b16 %v4219
    %v5358 = vunpack.c.l.b16 %v4220
    %v5359 = vunpack.c.h.b16 %v4220
    %v5360 = vunpack.c.l.b16 %v4221
    %v5361 = vunpack.c.h.b16 %v4221
    %v5362 = vunpack.c.l.b16 %v4222
    %v5363 = vunpack.c.h.b16 %v4222
    %v5364 = vunpack.c.l.b16 %v4223
    %v5365 = vunpack.c.h.b16 %v4223
    %v5366 = vunpack.c.l.b16 %v4224
    %v5367 = vunpack.c.h.b16 %v4224
    %v5368 = vunpack.c.l.b16 %v4225
    %v5369 = vunpack.c.h.b16 %v4225
    %v5370 = vunpack.c.l.b16 %v4226
    %v5371 = vunpack.c.h.b16 %v4226
    %v5372 = vunpack.c.l.b16 %v4227
    %v5373 = vunpack.c.h.b16 %v4227
    %v5374 = vunpack.c.l.b16 %v4228
    %v5375 = vunpack.c.h.b16 %v4228
    %v5376 = vunpack.c.l.b16 %v4229
    %v5377 = vunpack.c.h.b16 %v4229
    %v5378 = vunpack.c.l.b16 %v4230
    %v5379 = vunpack.c.h.b16 %v4230
    %v5380 = vunpack.c.l.b16 %v4231
    %v5381 = vunpack.c.h.b16 %v4231
    %v5382 = vunpack.c.l.b16 %v4232
    %v5383 = vunpack.c.h.b16 %v4232
    %v5384 = vunpack.c.l.b16 %v4233
    %v5385 = vunpack.c.h.b16 %v4233
    %v5386 = vunpack.c.l.b16 %v4234
    %v5387 = vunpack.c.h.b16 %v4234
    %v5388 = vunpack.c.l.b16 %v4235
    %v5389 = vunpack.c.h.b16 %v4235
    %v5390 = vunpack.c.l.b16 %v4236
    %v5391 = vunpack.c.h.b16 %v4236
    %v5392 = vunpack.c.l.b16 %v4237
    %v5393 = vunpack.c.h.b16 %v4237
    %v5394 = vunpack.c.l.b16 %v4238
    %v5395 = vunpack.c.h.b16 %v4238
    %v5396 = vunpack.c.l.b16 %v4239
    %v5397 = vunpack.c.h.b16 %v4239
    %v5398 = vunpack.c.l.b16 %v4240
    %v5399 = vunpack.c.h.b16 %v4240
    %v5400 = vunpack.c.l.b16 %v4241
    %v5401 = vunpack.c.h.b16 %v4241
    %v5402 = vunpack.c.l.b16 %v4242
    %v5403 = vunpack.c.h.b16 %v4242
    %v5404 = vunpack.c.l.b16 %v4243
    %v5405 = vunpack.c.h.b16 %v4243
    %v5406 = vunpack.c.l.b16 %v4244
    %v5407 = vunpack.c.h.b16 %v4244
    %v5408 = vunpack.c.l.b16 %v4245
    %v5409 = vunpack.c.h.b16 %v4245
    %v5410 = vunpack.c.l.b16 %v4246
    %v5411 = vunpack.c.h.b16 %v4246
    %v5412 = vunpack.c.l.b16 %v4247
    %v5413 = vunpack.c.h.b16 %v4247
    %v5414 = vunpack.c.l.b16 %v4248
    %v5415 = vunpack.c.h.b16 %v4248
    %v5416 = vunpack.c.l.b16 %v4249
    %v5417 = vunpack.c.h.b16 %v4249
    %v5418 = vunpack.c.l.b16 %v4250
    %v5419 = vunpack.c.h.b16 %v4250
    %v5420 = vunpack.c.l.b16 %v4251
    %v5421 = vunpack.c.h.b16 %v4251
    %v5422 = vunpack.c.l.b16 %v4252
    %v5423 = vunpack.c.h.b16 %v4252
    %v5424 = vunpack.c.l.b16 %v4253
    %v5425 = vunpack.c.h.b16 %v4253
    %v5426 = vunpack.c.l.b16 %v4254
    %v5427 = vunpack.c.h.b16 %v4254
    %v5428 = vunpack.c.l.b16 %v4255
    %v5429 = vunpack.c.h.b16 %v4255
    %v5430 = vunpack.c.l.b16 %v4256
    %v5431 = vunpack.c.h.b16 %v4256
    %v5432 = vunpack.c.l.b16 %v4257
    %v5433 = vunpack.c.h.b16 %v4257
    %v5434 = vunpack.c.l.b16 %v4258
    %v5435 = vunpack.c.h.b16 %v4258
    %v5436 = vunpack.c.l.b16 %v4259
    %v5437 = vunpack.c.h.b16 %v4259
    %v5438 = vunpack.c.l.b16 %v4260
    %v5439 = vunpack.c.h.b16 %v4260
    %v5440 = vunpack.c.l.b16 %v4261
    %v5441 = vunpack.c.h.b16 %v4261
    %v5442 = vunpack.c.l.b16 %v4262
    %v5443 = vunpack.c.h.b16 %v4262
    %v5444 = vunpack.c.l.b16 %v4263
    %v5445 = vunpack.c.h.b16 %v4263
    %v5446 = vunpack.c.l.b16 %v4264
    %v5447 = vunpack.c.h.b16 %v4264
    %v5448 = vunpack.c.l.b16 %v4265
    %v5449 = vunpack.c.h.b16 %v4265
    %v5450 = vunpack.c.l.b16 %v4266
    %v5451 = vunpack.c.h.b16 %v4266
    %v5452 = vunpack.c.l.b16 %v4267
    %v5453 = vunpack.c.h.b16 %v4267
    %v5454 = vunpack.c.l.b16 %v4268
    %v5455 = vunpack.c.h.b16 %v4268
    %v5456 = vunpack.c.l.b16 %v4269
    %v5457 = vunpack.c.h.b16 %v4269
    %v5458 = vunpack.c.l.b16 %v4270
    %v5459 = vunpack.c.h.b16 %v4270
    %v5460 = vunpack.c.l.b16 %v4271
    %v5461 = vunpack.c.h.b16 %v4271
    %v5462 = vunpack.c.l.b16 %v4272
    %v5463 = vunpack.c.h.b16 %v4272
    %v5464 = vunpack.c.l.b16 %v4273
    %v5465 = vunpack.c.h.b16 %v4273
    %v5466 = vunpack.c.l.b16 %v4274
    %v5467 = vunpack.c.h.b16 %v4274
    %v5468 = vunpack.c.l.b16 %v4275
    %v5469 = vunpack.c.h.b16 %v4275
    %v5470 = vunpack.c.l.b16 %v4276
    %v5471 = vunpack.c.h.b16 %v4276
    %v5472 = vunpack.c.l.b16 %v4277
    %v5473 = vunpack.c.h.b16 %v4277
    %v5474 = vunpack.c.l.b16 %v4278
    %v5475 = vunpack.c.h.b16 %v4278
    %v5476 = vunpack.c.l.b16 %v4279
    %v5477 = vunpack.c.h.b16 %v4279
    %v5478 = vunpack.c.l.b16 %v4280
    %v5479 = vunpack.c.h.b16 %v4280
    %v5480 = vunpack.c.l.b16 %v4281
    %v5481 = vunpack.c.h.b16 %v4281
    %v5482 = vunpack.c.l.b16 %v4282
    %v5483 = vunpack.c.h.b16 %v4282
    %v5484 = vunpack.c.l.b16 %v4283
    %v5485 = vunpack.c.h.b16 %v4283
    %v5486 = vunpack.c.l.b16 %v4284
    %v5487 = vunpack.c.h.b16 %v4284
    %v5488 = vunpack.c.l.b16 %v4285
    %v5489 = vunpack.c.h.b16 %v4285
    %v5490 = vunpack.c.l.b16 %v4286
    %v5491 = vunpack.c.h.b16 %v4286
    %v5492 = vunpack.c.l.b16 %v4287
    %v5493 = vunpack.c.h.b16 %v4287
    %v5494 = vunpack.c.l.b16 %v4288
    %v5495 = vunpack.c.h.b16 %v4288
    %v5496 = vunpack.c.l.b16 %v4289
    %v5497 = vunpack.c.h.b16 %v4289
    %v5498 = vunpack.c.l.b16 %v4290
    %v5499 = vunpack.c.h.b16 %v4290
    %v5500 = vunpack.c.l.b16 %v4291
    %v5501 = vunpack.c.h.b16 %v4291
    %v5502 = vunpack.c.l.b16 %v4292
    %v5503 = vunpack.c.h.b16 %v4292
    %v5504 = vunpack.c.l.b16 %v4293
    %v5505 = vunpack.c.h.b16 %v4293
    %v5506 = vunpack.c.l.b16 %v4294
    %v5507 = vunpack.c.h.b16 %v4294
    %v5508 = vunpack.c.l.b16 %v4295
    %v5509 = vunpack.c.h.b16 %v4295
    %v5510 = vunpack.c.l.b16 %v4296
    %v5511 = vunpack.c.h.b16 %v4296
    %v5512 = vunpack.c.l.b16 %v4297
    %v5513 = vunpack.c.h.b16 %v4297
    %v5514 = vunpack.c.l.b16 %v4298
    %v5515 = vunpack.c.h.b16 %v4298
    %v5516 = vunpack.c.l.b16 %v4299
    %v5517 = vunpack.c.h.b16 %v4299
    %v5518 = vunpack.c.l.b16 %v4300
    %v5519 = vunpack.c.h.b16 %v4300
    %v5520 = vunpack.c.l.b16 %v4301
    %v5521 = vunpack.c.h.b16 %v4301
    %v5522 = vunpack.c.l.b16 %v4302
    %v5523 = vunpack.c.h.b16 %v4302
    %v5524 = vunpack.c.l.b16 %v4303
    %v5525 = vunpack.c.h.b16 %v4303
    %v5526 = vunpack.c.l.b16 %v4304
    %v5527 = vunpack.c.h.b16 %v4304
    %v5528 = vunpack.c.l.b16 %v4305
    %v5529 = vunpack.c.h.b16 %v4305
    %v5530 = vunpack.c.l.b16 %v4306
    %v5531 = vunpack.c.h.b16 %v4306
    %v5532 = vunpack.c.l.b16 %v4307
    %v5533 = vunpack.c.h.b16 %v4307
    %v5534 = vunpack.c.l.b16 %v4308
    %v5535 = vunpack.c.h.b16 %v4308
    %v5536 = vunpack.c.l.b16 %v4309
    %v5537 = vunpack.c.h.b16 %v4309
    %v5538 = vunpack.c.l.b16 %v4310
    %v5539 = vunpack.c.h.b16 %v4310
    %v5540 = vunpack.c.l.b16 %v4311
    %v5541 = vunpack.c.h.b16 %v4311
    %v5542 = vunpack.c.l.b16 %v4312
    %v5543 = vunpack.c.h.b16 %v4312
    %v5544 = vunpack.c.l.b16 %v4313
    %v5545 = vunpack.c.h.b16 %v4313
    %v5546 = vunpack.c.l.b16 %v4314
    %v5547 = vunpack.c.h.b16 %v4314
    %v5548 = vunpack.c.l.b16 %v4315
    %v5549 = vunpack.c.h.b16 %v4315
    %v5550 = vunpack.c.l.b16 %v4316
    %v5551 = vunpack.c.h.b16 %v4316
    %v5552 = vunpack.c.l.b16 %v4317
    %v5553 = vunpack.c.h.b16 %v4317
    %v5554 = vunpack.c.l.b16 %v4318
    %v5555 = vunpack.c.h.b16 %v4318
    %v5556 = vunpack.c.l.b16 %v4319
    %v5557 = vunpack.c.h.b16 %v4319
    %v5558 = vunpack.c.l.b16 %v4320
    %v5559 = vunpack.c.h.b16 %v4320
    %v5560 = vunpack.c.l.b16 %v4321
    %v5561 = vunpack.c.h.b16 %v4321
    %v5562 = vunpack.c.l.b16 %v4322
    %v5563 = vunpack.c.h.b16 %v4322
    %v5564 = vunpack.c.l.b16 %v4323
    %v5565 = vunpack.c.h.b16 %v4323
    %v5566 = vunpack.c.l.b16 %v4324
    %v5567 = vunpack.c.h.b16 %v4324
    %v5568 = vunpack.c.l.b16 %v4325
    %v5569 = vunpack.c.h.b16 %v4325
    %v5570 = vunpack.c.l.b16 %v4326
    %v5571 = vunpack.c.h.b16 %v4326
    %v5572 = vunpack.c.l.b16 %v4327
    %v5573 = vunpack.c.h.b16 %v4327
    %v5574 = vunpack.c.l.b16 %v4328
    %v5575 = vunpack.c.h.b16 %v4328
    %v5576 = vunpack.c.l.b16 %v4329
    %v5577 = vunpack.c.h.b16 %v4329
    %v5578 = vunpack.c.l.b16 %v4330
    %v5579 = vunpack.c.h.b16 %v4330
    %v5580 = vunpack.c.l.b16 %v4331
    %v5581 = vunpack.c.h.b16 %v4331
    %v5582 = vunpack.c.l.b16 %v4332
    %v5583 = vunpack.c.h.b16 %v4332
    %v5584 = vunpack.c.l.b16 %v4333
    %v5585 = vunpack.c.h.b16 %v4333
    %v5586 = vunpack.c.l.b16 %v4334
    %v5587 = vunpack.c.h.b16 %v4334
    %v5588 = vunpack.c.l.b16 %v4335
    %v5589 = vunpack.c.h.b16 %v4335
    %v5590 = vunpack.c.l.b16 %v4336
    %v5591 = vunpack.c.h.b16 %v4336
    %v5592 = vunpack.c.l.b16 %v4337
    %v5593 = vunpack.c.h.b16 %v4337
    %v5594 = vunpack.c.l.b16 %v4338
    %v5595 = vunpack.c.h.b16 %v4338
    %v5596 = vunpack.c.l.b16 %v4339
    %v5597 = vunpack.c.h.b16 %v4339
    %v5598 = vunpack.c.l.b16 %v4340
    %v5599 = vunpack.c.h.b16 %v4340
    %v5600 = vunpack.c.l.b16 %v4341
    %v5601 = vunpack.c.h.b16 %v4341
    %v5602 = vunpack.c.l.b16 %v4342
    %v5603 = vunpack.c.h.b16 %v4342
    %v5604 = vunpack.c.l.b16 %v4343
    %v5605 = vunpack.c.h.b16 %v4343
    %v5606 = vunpack.c.l.b16 %v4344
    %v5607 = vunpack.c.h.b16 %v4344
    %v5608 = vunpack.c.l.b16 %v4345
    %v5609 = vunpack.c.h.b16 %v4345
    %v5610 = vunpack.c.l.b16 %v4346
    %v5611 = vunpack.c.h.b16 %v4346
    %v5612 = vunpack.c.l.b16 %v4347
    %v5613 = vunpack.c.h.b16 %v4347
    %v5614 = vunpack.c.l.b16 %v4348
    %v5615 = vunpack.c.h.b16 %v4348
    %v5616 = vunpack.c.l.b16 %v4349
    %v5617 = vunpack.c.h.b16 %v4349
    %v5618 = vunpack.c.l.b16 %v4350
    %v5619 = vunpack.c.h.b16 %v4350
    %v5620 = vunpack.c.l.b16 %v4351
    %v5621 = vunpack.c.h.b16 %v4351
    %v5622 = vunpack.c.l.b16 %v4352
    %v5623 = vunpack.c.h.b16 %v4352
    %v5624 = vunpack.c.l.b16 %v4353
    %v5625 = vunpack.c.h.b16 %v4353
    %v5626 = vunpack.c.l.b16 %v4354
    %v5627 = vunpack.c.h.b16 %v4354
    %v5628 = vunpack.c.l.b16 %v4355
    %v5629 = vunpack.c.h.b16 %v4355
    %v5630 = vunpack.c.l.b16 %v4356
    %v5631 = vunpack.c.h.b16 %v4356
    %v5632 = vunpack.c.l.b16 %v4357
    %v5633 = vunpack.c.h.b16 %v4357
    %v5634 = vunpack.c.l.b16 %v4358
    %v5635 = vunpack.c.h.b16 %v4358
    %v5636 = vunpack.c.l.b16 %v4359
    %v5637 = vunpack.c.h.b16 %v4359
    %v5638 = vunpack.c.l.b16 %v4360
    %v5639 = vunpack.c.h.b16 %v4360
    %v5640 = vunpack.c.l.b16 %v4361
    %v5641 = vunpack.c.h.b16 %v4361
    %v5642 = vunpack.c.l.b16 %v4362
    %v5643 = vunpack.c.h.b16 %v4362
    %v5644 = vunpack.c.l.b16 %v4363
    %v5645 = vunpack.c.h.b16 %v4363
    %v5646 = vunpack.c.l.b16 %v4364
    %v5647 = vunpack.c.h.b16 %v4364
    %v5648 = vunpack.c.l.b16 %v4365
    %v5649 = vunpack.c.h.b16 %v4365
    %v5650 = vunpack.c.l.b16 %v4366
    %v5651 = vunpack.c.h.b16 %v4366
    %v5652 = vunpack.c.l.b16 %v4367
    %v5653 = vunpack.c.h.b16 %v4367
    %v5654 = vunpack.c.l.b16 %v4368
    %v5655 = vunpack.c.h.b16 %v4368
    %v5656 = vunpack.c.l.b16 %v4369
    %v5657 = vunpack.c.h.b16 %v4369
    %v5658 = vunpack.c.l.b16 %v4370
    %v5659 = vunpack.c.h.b16 %v4370
    %v5660 = vunpack.c.l.b16 %v4371
    %v5661 = vunpack.c.h.b16 %v4371
    %v5662 = vunpack.c.l.b16 %v4372
    %v5663 = vunpack.c.h.b16 %v4372
    %v5664 = vunpack.c.l.b16 %v4373
    %v5665 = vunpack.c.h.b16 %v4373
    %v5666 = vunpack.c.l.b16 %v4374
    %v5667 = vunpack.c.h.b16 %v4374
    %v5668 = vunpack.c.l.b16 %v4375
    %v5669 = vunpack.c.h.b16 %v4375
    %v5670 = vunpack.c.l.b16 %v4376
    %v5671 = vunpack.c.h.b16 %v4376
    %v5672 = vunpack.c.l.b16 %v4377
    %v5673 = vunpack.c.h.b16 %v4377
    %v5674 = vunpack.c.l.b16 %v4378
    %v5675 = vunpack.c.h.b16 %v4378
    %v5676 = vunpack.c.l.b16 %v4379
    %v5677 = vunpack.c.h.b16 %v4379
    %v5678 = vunpack.c.l.b16 %v4380
    %v5679 = vunpack.c.h.b16 %v4380
    %v5680 = vunpack.c.l.b16 %v4381
    %v5681 = vunpack.c.h.b16 %v4381
    %v5682 = vunpack.c.l.b16 %v4382
    %v5683 = vunpack.c.h.b16 %v4382
    %v5684 = vunpack.c.l.b16 %v4383
    %v5685 = vunpack.c.h.b16 %v4383
    %v5686 = vunpack.c.l.b16 %v4384
    %v5687 = vunpack.c.h.b16 %v4384
    %v5688 = vunpack.c.l.b16 %v4385
    %v5689 = vunpack.c.h.b16 %v4385
    %v5690 = vunpack.c.l.b16 %v4386
    %v5691 = vunpack.c.h.b16 %v4386
    %v5692 = vunpack.c.l.b16 %v4387
    %v5693 = vunpack.c.h.b16 %v4387
    %v5694 = vunpack.c.l.b16 %v4388
    %v5695 = vunpack.c.h.b16 %v4388
    %v5696 = vunpack.c.l.b16 %v4389
    %v5697 = vunpack.c.h.b16 %v4389
    %v5698 = vunpack.c.l.b16 %v4390
    %v5699 = vunpack.c.h.b16 %v4390
    %v5700 = vunpack.c.l.b16 %v4391
    %v5701 = vunpack.c.h.b16 %v4391
    %v5702 = vunpack.c.l.b16 %v4392
    %v5703 = vunpack.c.h.b16 %v4392
    %v5704 = vunpack.c.l.b16 %v4393
    %v5705 = vunpack.c.h.b16 %v4393
    %v5706 = vunpack.c.l.b16 %v4394
    %v5707 = vunpack.c.h.b16 %v4394
    %v5708 = vunpack.c.l.b16 %v4395
    %v5709 = vunpack.c.h.b16 %v4395
    %v5710 = vunpack.c.l.b16 %v4396
    %v5711 = vunpack.c.h.b16 %v4396
    %v5712 = vunpack.c.l.b16 %v4397
    %v5713 = vunpack.c.h.b16 %v4397
    %v5714 = vunpack.c.l.b16 %v4398
    %v5715 = vunpack.c.h.b16 %v4398
    %v5716 = vunpack.c.l.b16 %v4399
    %v5717 = vunpack.c.h.b16 %v4399
    %v5718 = vunpack.c.l.b16 %v4400
    %v5719 = vunpack.c.h.b16 %v4400
    %v5720 = vunpack.c.l.b16 %v4401
    %v5721 = vunpack.c.h.b16 %v4401
    %v5722 = vunpack.c.l.b16 %v4402
    %v5723 = vunpack.c.h.b16 %v4402
    %v5724 = vunpack.c.l.b16 %v4403
    %v5725 = vunpack.c.h.b16 %v4403
    %v5726 = vunpack.c.l.b16 %v4404
    %v5727 = vunpack.c.h.b16 %v4404
    %v5728 = vunpack.c.l.b16 %v4405
    %v5729 = vunpack.c.h.b16 %v4405
    %v5730 = vunpack.c.l.b16 %v4406
    %v5731 = vunpack.c.h.b16 %v4406
    %v5732 = vunpack.c.l.b16 %v4407
    %v5733 = vunpack.c.h.b16 %v4407
    %v5734 = vunpack.c.l.b16 %v4408
    %v5735 = vunpack.c.h.b16 %v4408
    %v5736 = vunpack.c.l.b16 %v4409
    %v5737 = vunpack.c.h.b16 %v4409
    %v5738 = vunpack.c.l.b16 %v4410
    %v5739 = vunpack.c.h.b16 %v4410
    %v5740 = vunpack.c.l.b16 %v4411
    %v5741 = vunpack.c.h.b16 %v4411
    %v5742 = vunpack.c.l.b16 %v4412
    %v5743 = vunpack.c.h.b16 %v4412
    %v5744 = vunpack.c.l.b16 %v4413
    %v5745 = vunpack.c.h.b16 %v4413
    %v5746 = vunpack.c.l.b16 %v4414
    %v5747 = vunpack.c.h.b16 %v4414
    %v5748 = vunpack.c.l.b16 %v4415
    %v5749 = vunpack.c.h.b16 %v4415
    %v5750 = vunpack.c.l.b16 %v4416
    %v5751 = vunpack.c.h.b16 %v4416
    %v5752 = vunpack.c.l.b16 %v4417
    %v5753 = vunpack.c.h.b16 %v4417
    %v5754 = vunpack.c.l.b16 %v4418
    %v5755 = vunpack.c.h.b16 %v4418
    %v5756 = vunpack.c.l.b16 %v4419
    %v5757 = vunpack.c.h.b16 %v4419
    %v5758 = vunpack.c.l.b16 %v4420
    %v5759 = vunpack.c.h.b16 %v4420
    %v5760 = vunpack.c.l.b16 %v4421
    %v5761 = vunpack.c.h.b16 %v4421
    %v5762 = vunpack.c.l.b16 %v4422
    %v5763 = vunpack.c.h.b16 %v4422
    %v5764 = vunpack.c.l.b16 %v4423
    %v5765 = vunpack.c.h.b16 %v4423
    %v5766 = vunpack.c.l.b16 %v4424
    %v5767 = vunpack.c.h.b16 %v4424
    %v5768 = vunpack.c.l.b16 %v4425
    %v5769 = vunpack.c.h.b16 %v4425
    %v5770 = vunpack.c.l.b16 %v4426
    %v5771 = vunpack.c.h.b16 %v4426
    %v5772 = vunpack.c.l.b16 %v4427
    %v5773 = vunpack.c.h.b16 %v4427
    %v5774 = vunpack.c.l.b16 %v4428
    %v5775 = vunpack.c.h.b16 %v4428
    %v5776 = vunpack.c.l.b16 %v4429
    %v5777 = vunpack.c.h.b16 %v4429
    %v5778 = vunpack.c.l.b16 %v4430
    %v5779 = vunpack.c.h.b16 %v4430
    %v5780 = vunpack.c.l.b16 %v4431
    %v5781 = vunpack.c.h.b16 %v4431
    %v5782 = vunpack.c.l.b16 %v4432
    %v5783 = vunpack.c.h.b16 %v4432
    %v5784 = vunpack.c.l.b16 %v4433
    %v5785 = vunpack.c.h.b16 %v4433
    %v5786 = vunpack.c.l.b16 %v4434
    %v5787 = vunpack.c.h.b16 %v4434
    %v5788 = vunpack.c.l.b16 %v4435
    %v5789 = vunpack.c.h.b16 %v4435
    %v5790 = vunpack.c.l.b16 %v4436
    %v5791 = vunpack.c.h.b16 %v4436
    %v5792 = vunpack.c.l.b16 %v4437
    %v5793 = vunpack.c.h.b16 %v4437
    %v5794 = vunpack.c.l.b16 %v4438
    %v5795 = vunpack.c.h.b16 %v4438
    %v5796 = vunpack.c.l.b16 %v4439
    %v5797 = vunpack.c.h.b16 %v4439
    %v5798 = vunpack.c.l.b16 %v4440
    %v5799 = vunpack.c.h.b16 %v4440
    %v5800 = vunpack.c.l.b16 %v4441
    %v5801 = vunpack.c.h.b16 %v4441
    %v5802 = vunpack.c.l.b16 %v4442
    %v5803 = vunpack.c.h.b16 %v4442
    %v5804 = vunpack.c.l.b16 %v4443
    %v5805 = vunpack.c.h.b16 %v4443
    %v5806 = vunpack.c.l.b16 %v4444
    %v5807 = vunpack.c.h.b16 %v4444
    %v5808 = vunpack.c.l.b16 %v4445
    %v5809 = vunpack.c.h.b16 %v4445
    %v5810 = vunpack.c.l.b16 %v4446
    %v5811 = vunpack.c.h.b16 %v4446
    %v5812 = vunpack.c.l.b16 %v4447
    %v5813 = vunpack.c.h.b16 %v4447
    %v5814 = vunpack.c.l.b16 %v4448
    %v5815 = vunpack.c.h.b16 %v4448
    %v5816 = vunpack.c.l.b16 %v4449
    %v5817 = vunpack.c.h.b16 %v4449
    %v5818 = vunpack.c.l.b16 %v4450
    %v5819 = vunpack.c.h.b16 %v4450
    %v5820 = vunpack.c.l.b16 %v4451
    %v5821 = vunpack.c.h.b16 %v4451
    %v5822 = vunpack.c.l.b16 %v4452
    %v5823 = vunpack.c.h.b16 %v4452
    %v5824 = vunpack.c.l.b16 %v4453
    %v5825 = vunpack.c.h.b16 %v4453
    %v5826 = vunpack.c.l.b16 %v4454
    %v5827 = vunpack.c.h.b16 %v4454
    %v5828 = vunpack.c.l.b16 %v4455
    %v5829 = vunpack.c.h.b16 %v4455
    %v5830 = vunpack.c.l.b16 %v4456
    %v5831 = vunpack.c.h.b16 %v4456
    %v5832 = vunpack.c.l.b16 %v4457
    %v5833 = vunpack.c.h.b16 %v4457
    %v5834 = vunpack.c.l.b16 %v4458
    %v5835 = vunpack.c.h.b16 %v4458
    %v5836 = vunpack.c.l.b16 %v4459
    %v5837 = vunpack.c.h.b16 %v4459
    %v5838 = vunpack.c.l.b16 %v4460
    %v5839 = vunpack.c.h.b16 %v4460
    %v5840 = vunpack.c.l.b16 %v4461
    %v5841 = vunpack.c.h.b16 %v4461
    %v5842 = vunpack.c.l.b16 %v4462
    %v5843 = vunpack.c.h.b16 %v4462
    %v5844 = vunpack.c.l.b16 %v4463
    %v5845 = vunpack.c.h.b16 %v4463
    %v5846 = vunpack.c.l.b16 %v4464
    %v5847 = vunpack.c.h.b16 %v4464
    %v5848 = vunpack.c.l.b16 %v4465
    %v5849 = vunpack.c.h.b16 %v4465
    %v5850 = vunpack.c.l.b16 %v4466
    %v5851 = vunpack.c.h.b16 %v4466
    %v5852 = vunpack.c.l.b16 %v4467
    %v5853 = vunpack.c.h.b16 %v4467
    %v5854 = vunpack.c.l.b16 %v4468
    %v5855 = vunpack.c.h.b16 %v4468
    %v5856 = vunpack.c.l.b16 %v4469
    %v5857 = vunpack.c.h.b16 %v4469
    %v5858 = vunpack.c.l.b16 %v4470
    %v5859 = vunpack.c.h.b16 %v4470
    %v5860 = vunpack.c.l.b16 %v4471
    %v5861 = vunpack.c.h.b16 %v4471
    %v5862 = vunpack.c.l.b16 %v4472
    %v5863 = vunpack.c.h.b16 %v4472
    %v5864 = vunpack.c.l.b16 %v4473
    %v5865 = vunpack.c.h.b16 %v4473
    %v5866 = vunpack.c.l.b16 %v4474
    %v5867 = vunpack.c.h.b16 %v4474
    %v5868 = vunpack.c.l.b16 %v4475
    %v5869 = vunpack.c.h.b16 %v4475
    %v5870 = vunpack.c.l.b16 %v4476
    %v5871 = vunpack.c.h.b16 %v4476
    %v5872 = vunpack.c.l.b16 %v4477
    %v5873 = vunpack.c.h.b16 %v4477
    %v5874 = vunpack.c.l.b16 %v4478
    %v5875 = vunpack.c.h.b16 %v4478
    %v5876 = vunpack.c.l.b16 %v4479
    %v5877 = vunpack.c.h.b16 %v4479
    %v5878 = vunpack.c.l.b16 %v4480
    %v5879 = vunpack.c.h.b16 %v4480
    %v5880 = vunpack.c.l.b16 %v4481
    %v5881 = vunpack.c.h.b16 %v4481
    %v5882 = vunpack.c.l.b16 %v4482
    %v5883 = vunpack.c.h.b16 %v4482
    %v5884 = vunpack.c.l.b16 %v4483
    %v5885 = vunpack.c.h.b16 %v4483
    %v5886 = vunpack.c.l.b16 %v4484
    %v5887 = vunpack.c.h.b16 %v4484
    %v5888 = vunpack.c.l.b16 %v4485
    %v5889 = vunpack.c.h.b16 %v4485
    %v5890 = vunpack.c.l.b16 %v4486
    %v5891 = vunpack.c.h.b16 %v4486
    %v5892 = vunpack.c.l.b16 %v4487
    %v5893 = vunpack.c.h.b16 %v4487
    %v5894 = vunpack.c.l.b16 %v4488
    %v5895 = vunpack.c.h.b16 %v4488
    %v5896 = vunpack.c.l.b16 %v4489
    %v5897 = vunpack.c.h.b16 %v4489
    %v5898 = vunpack.c.l.b16 %v4490
    %v5899 = vunpack.c.h.b16 %v4490
    %v5900 = vunpack.c.l.b16 %v4491
    %v5901 = vunpack.c.h.b16 %v4491
    %v5902 = vunpack.c.l.b16 %v4492
    %v5903 = vunpack.c.h.b16 %v4492
    %v5904 = vunpack.c.l.b16 %v4493
    %v5905 = vunpack.c.h.b16 %v4493
    %v5906 = vunpack.c.l.b16 %v4494
    %v5907 = vunpack.c.h.b16 %v4494
    %v5908 = vunpack.c.l.b16 %v4495
    %v5909 = vunpack.c.h.b16 %v4495
    %v5910 = vunpack.c.l.b16 %v4496
    %v5911 = vunpack.c.h.b16 %v4496
    %v5912 = vunpack.c.l.b16 %v4497
    %v5913 = vunpack.c.h.b16 %v4497
    %v5914 = vunpack.c.l.b16 %v4498
    %v5915 = vunpack.c.h.b16 %v4498
    %v5916 = vunpack.c.l.b16 %v4499
    %v5917 = vunpack.c.h.b16 %v4499
    %v5918 = vunpack.c.l.b16 %v4500
    %v5919 = vunpack.c.h.b16 %v4500
    %v5920 = vunpack.c.l.b16 %v4501
    %v5921 = vunpack.c.h.b16 %v4501
    %v5922 = vunpack.c.l.b16 %v4502
    %v5923 = vunpack.c.h.b16 %v4502
    %v5924 = vunpack.c.l.b16 %v4503
    %v5925 = vunpack.c.h.b16 %v4503
    %v5926 = vunpack.c.l.b16 %v4504
    %v5927 = vunpack.c.h.b16 %v4504
    %v5928 = vunpack.c.l.b16 %v4505
    %v5929 = vunpack.c.h.b16 %v4505
    %v5930 = vunpack.c.l.b16 %v4506
    %v5931 = vunpack.c.h.b16 %v4506
    %v5932 = vunpack.c.l.b16 %v4507
    %v5933 = vunpack.c.h.b16 %v4507
    %v5934 = vunpack.c.l.b16 %v4508
    %v5935 = vunpack.c.h.b16 %v4508
    %v5936 = vunpack.c.l.b16 %v4509
    %v5937 = vunpack.c.h.b16 %v4509
    %v5938 = vunpack.c.l.b16 %v4510
    %v5939 = vunpack.c.h.b16 %v4510
    %v5940 = vunpack.c.l.b16 %v4511
    %v5941 = vunpack.c.h.b16 %v4511
    %v5942 = vunpack.c.l.b16 %v4512
    %v5943 = vunpack.c.h.b16 %v4512
    %v5944 = vunpack.c.l.b16 %v4513
    %v5945 = vunpack.c.h.b16 %v4513
    %v5946 = vunpack.c.l.b16 %v4514
    %v5947 = vunpack.c.h.b16 %v4514
    %v5948 = vunpack.c.l.b16 %v4515
    %v5949 = vunpack.c.h.b16 %v4515
    %v5950 = vunpack.c.l.b16 %v4516
    %v5951 = vunpack.c.h.b16 %v4516
    %v5952 = vunpack.c.l.b16 %v4517
    %v5953 = vunpack.c.h.b16 %v4517
    %v5954 = vunpack.c.l.b16 %v4518
    %v5955 = vunpack.c.h.b16 %v4518
    %v5956 = vunpack.c.l.b16 %v4519
    %v5957 = vunpack.c.h.b16 %v4519
    %v5958 = vunpack.c.l.b16 %v4520
    %v5959 = vunpack.c.h.b16 %v4520
    %v5960 = vunpack.c.l.b16 %v4521
    %v5961 = vunpack.c.h.b16 %v4521
    %v5962 = vunpack.c.l.b16 %v4522
    %v5963 = vunpack.c.h.b16 %v4522
    %v5964 = vunpack.c.l.b16 %v4523
    %v5965 = vunpack.c.h.b16 %v4523
    %v5966 = vunpack.c.l.b16 %v4524
    %v5967 = vunpack.c.h.b16 %v4524
    %v5968 = vunpack.c.l.b16 %v4525
    %v5969 = vunpack.c.h.b16 %v4525
    %v5970 = vunpack.c.l.b16 %v4526
    %v5971 = vunpack.c.h.b16 %v4526
    %v5972 = vunpack.c.l.b16 %v4527
    %v5973 = vunpack.c.h.b16 %v4527
    %v5974 = vunpack.c.l.b16 %v4528
    %v5975 = vunpack.c.h.b16 %v4528
    %v5976 = vunpack.c.l.b16 %v4529
    %v5977 = vunpack.c.h.b16 %v4529
    %v5978 = vunpack.c.l.b16 %v4530
    %v5979 = vunpack.c.h.b16 %v4530
    %v5980 = vunpack.c.l.b16 %v4531
    %v5981 = vunpack.c.h.b16 %v4531
    %v5982 = vunpack.c.l.b16 %v4532
    %v5983 = vunpack.c.h.b16 %v4532
    %v5984 = vunpack.c.l.b16 %v4533
    %v5985 = vunpack.c.h.b16 %v4533
    %v5986 = vunpack.c.l.b16 %v4534
    %v5987 = vunpack.c.h.b16 %v4534
    %v5988 = vunpack.c.l.b16 %v4535
    %v5989 = vunpack.c.h.b16 %v4535
    %v5990 = vunpack.c.l.b16 %v4536
    %v5991 = vunpack.c.h.b16 %v4536
    %v5992 = vunpack.c.l.b16 %v4537
    %v5993 = vunpack.c.h.b16 %v4537
    %v5994 = vunpack.c.l.b16 %v4538
    %v5995 = vunpack.c.h.b16 %v4538
    %v5996 = vunpack.c.l.b16 %v4539
    %v5997 = vunpack.c.h.b16 %v4539
    %v5998 = vunpack.c.l.b16 %v4540
    %v5999 = vunpack.c.h.b16 %v4540
    %v6000 = vunpack.c.l.b16 %v4541
    %v6001 = vunpack.c.h.b16 %v4541
    %v6002 = vunpack.c.l.b16 %v4542
    %v6003 = vunpack.c.h.b16 %v4542
    %v6004 = vunpack.c.l.b16 %v4543
    %v6005 = vunpack.c.h.b16 %v4543
    %v6006 = vunpack.c.l.b16 %v4544
    %v6007 = vunpack.c.h.b16 %v4544
    %v6008 = vunpack.c.l.b16 %v4545
    %v6009 = vunpack.c.h.b16 %v4545
    %v6010 = vunpack.c.l.b16 %v4546
    %v6011 = vunpack.c.h.b16 %v4546
    %v6012 = vunpack.c.l.b16 %v4547
    %v6013 = vunpack.c.h.b16 %v4547
    %v6014 = vunpack.c.l.b16 %v4548
    %v6015 = vunpack.c.h.b16 %v4548
    %v6016 = vunpack.c.l.b16 %v4549
    %v6017 = vunpack.c.h.b16 %v4549
    %v6018 = vunpack.c.l.b16 %v4550
    %v6019 = vunpack.c.h.b16 %v4550
    %v6020 = vunpack.c.l.b16 %v4551
    %v6021 = vunpack.c.h.b16 %v4551
    %v6022 = vunpack.c.l.b16 %v4552
    %v6023 = vunpack.c.h.b16 %v4552
    %v6024 = vunpack.c.l.b16 %v4553
    %v6025 = vunpack.c.h.b16 %v4553
    %v6026 = vunpack.c.l.b16 %v4554
    %v6027 = vunpack.c.h.b16 %v4554
    %v6028 = vunpack.c.l.b16 %v4555
    %v6029 = vunpack.c.h.b16 %v4555
    %v6030 = vunpack.c.l.b16 %v4556
    %v6031 = vunpack.c.h.b16 %v4556
    %v6032 = vunpack.c.l.b16 %v4557
    %v6033 = vunpack.c.h.b16 %v4557
    %v6034 = vunpack.c.l.b16 %v4558
    %v6035 = vunpack.c.h.b16 %v4558
    %v6036 = vunpack.c.l.b16 %v4559
    %v6037 = vunpack.c.h.b16 %v4559
    %v6038 = vunpack.c.l.b16 %v4560
    %v6039 = vunpack.c.h.b16 %v4560
    %v6040 = vunpack.c.l.b16 %v4561
    %v6041 = vunpack.c.h.b16 %v4561
    %v6042 = vunpack.c.l.b16 %v4562
    %v6043 = vunpack.c.h.b16 %v4562
    %v6044 = vunpack.c.l.b16 %v4563
    %v6045 = vunpack.c.h.b16 %v4563
    %v6046 = vunpack.c.l.b16 %v4564
    %v6047 = vunpack.c.h.b16 %v4564
    %v6048 = vunpack.c.l.b16 %v4565
    %v6049 = vunpack.c.h.b16 %v4565
    %v6050 = vunpack.c.l.b16 %v4566
    %v6051 = vunpack.c.h.b16 %v4566
    %v6052 = vunpack.c.l.b16 %v4567
    %v6053 = vunpack.c.h.b16 %v4567
    %v6054 = vunpack.c.l.b16 %v4568
    %v6055 = vunpack.c.h.b16 %v4568
    %v6056 = vunpack.c.l.b16 %v4569
    %v6057 = vunpack.c.h.b16 %v4569
    %v6058 = vunpack.c.l.b16 %v4570
    %v6059 = vunpack.c.h.b16 %v4570
    %v6060 = vunpack.c.l.b16 %v4571
    %v6061 = vunpack.c.h.b16 %v4571
    %v6062 = vunpack.c.l.b16 %v4572
    %v6063 = vunpack.c.h.b16 %v4572
    %v6064 = vunpack.c.l.b16 %v4573
    %v6065 = vunpack.c.h.b16 %v4573
    %v6066 = vunpack.c.l.b16 %v4574
    %v6067 = vunpack.c.h.b16 %v4574
    %v6068 = vunpack.c.l.b16 %v4575
    %v6069 = vunpack.c.h.b16 %v4575
    %v6070 = vunpack.c.l.b16 %v4576
    %v6071 = vunpack.c.h.b16 %v4576
    %v6072 = vunpack.c.l.b16 %v4577
    %v6073 = vunpack.c.h.b16 %v4577
    %v6074 = vunpack.c.l.b16 %v4578
    %v6075 = vunpack.c.h.b16 %v4578
    %v6076 = vunpack.c.l.b16 %v4579
    %v6077 = vunpack.c.h.b16 %v4579
    %v6078 = vunpack.c.l.b16 %v4580
    %v6079 = vunpack.c.h.b16 %v4580
    %v6080 = vunpack.c.l.b16 %v4581
    %v6081 = vunpack.c.h.b16 %v4581
    %v6082 = vunpack.c.l.b16 %v4582
    %v6083 = vunpack.c.h.b16 %v4582
    %v6084 = vunpack.c.l.b16 %v4583
    %v6085 = vunpack.c.h.b16 %v4583
    %v6086 = vunpack.c.l.b16 %v4584
    %v6087 = vunpack.c.h.b16 %v4584
    %v6088 = vunpack.c.l.b16 %v4585
    %v6089 = vunpack.c.h.b16 %v4585
    %v6090 = vunpack.c.l.b16 %v4586
    %v6091 = vunpack.c.h.b16 %v4586
    %v6092 = vunpack.c.l.b16 %v4587
    %v6093 = vunpack.c.h.b16 %v4587
    %v6094 = vunpack.c.l.b16 %v4588
    %v6095 = vunpack.c.h.b16 %v4588
    %v6096 = vunpack.c.l.b16 %v4589
    %v6097 = vunpack.c.h.b16 %v4589
    %v6098 = vunpack.c.l.b16 %v4590
    %v6099 = vunpack.c.h.b16 %v4590
    %v6100 = vunpack.c.l.b16 %v4591
    %v6101 = vunpack.c.h.b16 %v4591
    %v6102 = vunpack.c.l.b16 %v4592
    %v6103 = vunpack.c.h.b16 %v4592
    %v6104 = vunpack.c.l.b16 %v4593
    %v6105 = vunpack.c.h.b16 %v4593
    %v6106 = vunpack.c.l.b16 %v4594
    %v6107 = vunpack.c.h.b16 %v4594
    %v6108 = vunpack.c.l.b16 %v4595
    %v6109 = vunpack.c.h.b16 %v4595
    %v6110 = vunpack.c.l.b16 %v4596
    %v6111 = vunpack.c.h.b16 %v4596
    %v6112 = vunpack.c.l.b16 %v4597
    %v6113 = vunpack.c.h.b16 %v4597
    %v6114 = vunpack.c.l.b16 %v4598
    %v6115 = vunpack.c.h.b16 %v4598
    %v6116 = vunpack.c.l.b16 %v4599
    %v6117 = vunpack.c.h.b16 %v4599
    %v6118 = vunpack.c.l.b16 %v4600
    %v6119 = vunpack.c.h.b16 %v4600
    %v6120 = vunpack.c.l.b16 %v4601
    %v6121 = vunpack.c.h.b16 %v4601
    %v6122 = vunpack.c.l.b16 %v4602
    %v6123 = vunpack.c.h.b16 %v4602
    %v6124 = vunpack.c.l.b16 %v4603
    %v6125 = vunpack.c.h.b16 %v4603
    %v6126 = vunpack.c.l.b16 %v4604
    %v6127 = vunpack.c.h.b16 %v4604
    %v6128 = vunpack.c.l.b16 %v4605
    %v6129 = vunpack.c.h.b16 %v4605
    %v6130 = vunpack.c.l.b16 %v4606
    %v6131 = vunpack.c.h.b16 %v4606
    %v6132 = vunpack.c.l.b16 %v4607
    %v6133 = vunpack.c.h.b16 %v4607
    %v6134 = vunpack.c.l.b16 %v4608
    %v6135 = vunpack.c.h.b16 %v4608
    %v6136 = vunpack.c.l.b16 %v4609
    %v6137 = vunpack.c.h.b16 %v4609
    %v6138 = vunpack.c.l.b16 %v4610
    %v6139 = vunpack.c.h.b16 %v4610
    %v6140 = vunpack.c.l.b16 %v4611
    %v6141 = vunpack.c.h.b16 %v4611
    %v6142 = vunpack.c.l.b16 %v4612
    %v6143 = vunpack.c.h.b16 %v4612
    %v6144 = vunpack.c.l.b16 %v4613
    %v6145 = vunpack.c.h.b16 %v4613
    %v6146 = vunpack.c.l.b16 %v4614
    %v6147 = vunpack.c.h.b16 %v4614
    %v6148 = vunpack.c.l.b16 %v4615
    %v6149 = vunpack.c.h.b16 %v4615
    %v6150 = vunpack.c.l.b16 %v4616
    %v6151 = vunpack.c.h.b16 %v4616
    %v6152 = vunpack.c.l.b16 %v4617
    %v6153 = vunpack.c.h.b16 %v4617
    %v6154 = vpack.c.b16 %v5138, %v5130
    %v6155 = vpack.c.b16 %v5139, %v5131
    %v6156 = vpack.c.b16 %v5140, %v5132
    %v6157 = vpack.c.b16 %v5141, %v5133
    %v6158 = vpack.c.b16 %v5142, %v5134
    %v6159 = vpack.c.b16 %v5143, %v5135
    %v6160 = vpack.c.b16 %v5144, %v5136
    %v6161 = vpack.c.b16 %v5145, %v5137
    %v6162 = vpack.c.b16 %v5154, %v5146
    %v6163 = vpack.c.b16 %v5155, %v5147
    %v6164 = vpack.c.b16 %v5156, %v5148
    %v6165 = vpack.c.b16 %v5157, %v5149
    %v6166 = vpack.c.b16 %v5158, %v5150
    %v6167 = vpack.c.b16 %v5159, %v5151
    %v6168 = vpack.c.b16 %v5160, %v5152
    %v6169 = vpack.c.b16 %v5161, %v5153
    %v6170 = vpack.c.b16 %v5170, %v5162
    %v6171 = vpack.c.b16 %v5171, %v5163
    %v6172 = vpack.c.b16 %v5172, %v5164
    %v6173 = vpack.c.b16 %v5173, %v5165
    %v6174 = vpack.c.b16 %v5174, %v5166
    %v6175 = vpack.c.b16 %v5175, %v5167
    %v6176 = vpack.c.b16 %v5176, %v5168
    %v6177 = vpack.c.b16 %v5177, %v5169
    %v6178 = vpack.c.b16 %v5186, %v5178
    %v6179 = vpack.c.b16 %v5187, %v5179
    %v6180 = vpack.c.b16 %v5188, %v5180
    %v6181 = vpack.c.b16 %v5189, %v5181
    %v6182 = vpack.c.b16 %v5190, %v5182
    %v6183 = vpack.c.b16 %v5191, %v5183
    %v6184 = vpack.c.b16 %v5192, %v5184
    %v6185 = vpack.c.b16 %v5193, %v5185
    %v6186 = vpack.c.b16 %v5202, %v5194
    %v6187 = vpack.c.b16 %v5203, %v5195
    %v6188 = vpack.c.b16 %v5204, %v5196
    %v6189 = vpack.c.b16 %v5205, %v5197
    %v6190 = vpack.c.b16 %v5206, %v5198
    %v6191 = vpack.c.b16 %v5207, %v5199
    %v6192 = vpack.c.b16 %v5208, %v5200
    %v6193 = vpack.c.b16 %v5209, %v5201
    %v6194 = vpack.c.b16 %v5218, %v5210
    %v6195 = vpack.c.b16 %v5219, %v5211
    %v6196 = vpack.c.b16 %v5220, %v5212
    %v6197 = vpack.c.b16 %v5221, %v5213
    %v6198 = vpack.c.b16 %v5222, %v5214
    %v6199 = vpack.c.b16 %v5223, %v5215
    %v6200 = vpack.c.b16 %v5224, %v5216
    %v6201 = vpack.c.b16 %v5225, %v5217
    %v6202 = vpack.c.b16 %v5234, %v5226
    %v6203 = vpack.c.b16 %v5235, %v5227
    %v6204 = vpack.c.b16 %v5236, %v5228
    %v6205 = vpack.c.b16 %v5237, %v5229
    %v6206 = vpack.c.b16 %v5238, %v5230
    %v6207 = vpack.c.b16 %v5239, %v5231
    %v6208 = vpack.c.b16 %v5240, %v5232
    %v6209 = vpack.c.b16 %v5241, %v5233
    %v6210 = vpack.c.b16 %v5250, %v5242
    %v6211 = vpack.c.b16 %v5251, %v5243
    %v6212 = vpack.c.b16 %v5252, %v5244
    %v6213 = vpack.c.b16 %v5253, %v5245
    %v6214 = vpack.c.b16 %v5254, %v5246
    %v6215 = vpack.c.b16 %v5255, %v5247
    %v6216 = vpack.c.b16 %v5256, %v5248
    %v6217 = vpack.c.b16 %v5257, %v5249
    %v6218 = vpack.c.b16 %v5266, %v5258
    %v6219 = vpack.c.b16 %v5267, %v5259
    %v6220 = vpack.c.b16 %v5268, %v5260
    %v6221 = vpack.c.b16 %v5269, %v5261
    %v6222 = vpack.c.b16 %v5270, %v5262
    %v6223 = vpack.c.b16 %v5271, %v5263
    %v6224 = vpack.c.b16 %v5272, %v5264
    %v6225 = vpack.c.b16 %v5273, %v5265
    %v6226 = vpack.c.b16 %v5282, %v5274
    %v6227 = vpack.c.b16 %v5283, %v5275
    %v6228 = vpack.c.b16 %v5284, %v5276
    %v6229 = vpack.c.b16 %v5285, %v5277
    %v6230 = vpack.c.b16 %v5286, %v5278
    %v6231 = vpack.c.b16 %v5287, %v5279
    %v6232 = vpack.c.b16 %v5288, %v5280
    %v6233 = vpack.c.b16 %v5289, %v5281
    %v6234 = vpack.c.b16 %v5298, %v5290
    %v6235 = vpack.c.b16 %v5299, %v5291
    %v6236 = vpack.c.b16 %v5300, %v5292
    %v6237 = vpack.c.b16 %v5301, %v5293
    %v6238 = vpack.c.b16 %v5302, %v5294
    %v6239 = vpack.c.b16 %v5303, %v5295
    %v6240 = vpack.c.b16 %v5304, %v5296
    %v6241 = vpack.c.b16 %v5305, %v5297
    %v6242 = vpack.c.b16 %v5314, %v5306
    %v6243 = vpack.c.b16 %v5315, %v5307
    %v6244 = vpack.c.b16 %v5316, %v5308
    %v6245 = vpack.c.b16 %v5317, %v5309
    %v6246 = vpack.c.b16 %v5318, %v5310
    %v6247 = vpack.c.b16 %v5319, %v5311
    %v6248 = vpack.c.b16 %v5320, %v5312
    %v6249 = vpack.c.b16 %v5321, %v5313
    %v6250 = vpack.c.b16 %v5330, %v5322
    %v6251 = vpack.c.b16 %v5331, %v5323
    %v6252 = vpack.c.b16 %v5332, %v5324
    %v6253 = vpack.c.b16 %v5333, %v5325
    %v6254 = vpack.c.b16 %v5334, %v5326
    %v6255 = vpack.c.b16 %v5335, %v5327
    %v6256 = vpack.c.b16 %v5336, %v5328
    %v6257 = vpack.c.b16 %v5337, %v5329
    %v6258 = vpack.c.b16 %v5346, %v5338
    %v6259 = vpack.c.b16 %v5347, %v5339
    %v6260 = vpack.c.b16 %v5348, %v5340
    %v6261 = vpack.c.b16 %v5349, %v5341
    %v6262 = vpack.c.b16 %v5350, %v5342
    %v6263 = vpack.c.b16 %v5351, %v5343
    %v6264 = vpack.c.b16 %v5352, %v5344
    %v6265 = vpack.c.b16 %v5353, %v5345
    %v6266 = vpack.c.b16 %v5362, %v5354
    %v6267 = vpack.c.b16 %v5363, %v5355
    %v6268 = vpack.c.b16 %v5364, %v5356
    %v6269 = vpack.c.b16 %v5365, %v5357
    %v6270 = vpack.c.b16 %v5366, %v5358
    %v6271 = vpack.c.b16 %v5367, %v5359
    %v6272 = vpack.c.b16 %v5368, %v5360
    %v6273 = vpack.c.b16 %v5369, %v5361
    %v6274 = vpack.c.b16 %v5378, %v5370
    %v6275 = vpack.c.b16 %v5379, %v5371
    %v6276 = vpack.c.b16 %v5380, %v5372
    %v6277 = vpack.c.b16 %v5381, %v5373
    %v6278 = vpack.c.b16 %v5382, %v5374
    %v6279 = vpack.c.b16 %v5383, %v5375
    %v6280 = vpack.c.b16 %v5384, %v5376
    %v6281 = vpack.c.b16 %v5385, %v5377
    %v6282 = vpack.c.b16 %v5394, %v5386
    %v6283 = vpack.c.b16 %v5395, %v5387
    %v6284 = vpack.c.b16 %v5396, %v5388
    %v6285 = vpack.c.b16 %v5397, %v5389
    %v6286 = vpack.c.b16 %v5398, %v5390
    %v6287 = vpack.c.b16 %v5399, %v5391
    %v6288 = vpack.c.b16 %v5400, %v5392
    %v6289 = vpack.c.b16 %v5401, %v5393
    %v6290 = vpack.c.b16 %v5410, %v5402
    %v6291 = vpack.c.b16 %v5411, %v5403
    %v6292 = vpack.c.b16 %v5412, %v5404
    %v6293 = vpack.c.b16 %v5413, %v5405
    %v6294 = vpack.c.b16 %v5414, %v5406
    %v6295 = vpack.c.b16 %v5415, %v5407
    %v6296 = vpack.c.b16 %v5416, %v5408
    %v6297 = vpack.c.b16 %v5417, %v5409
    %v6298 = vpack.c.b16 %v5426, %v5418
    %v6299 = vpack.c.b16 %v5427, %v5419
    %v6300 = vpack.c.b16 %v5428, %v5420
    %v6301 = vpack.c.b16 %v5429, %v5421
    %v6302 = vpack.c.b16 %v5430, %v5422
    %v6303 = vpack.c.b16 %v5431, %v5423
    %v6304 = vpack.c.b16 %v5432, %v5424
    %v6305 = vpack.c.b16 %v5433, %v5425
    %v6306 = vpack.c.b16 %v5442, %v5434
    %v6307 = vpack.c.b16 %v5443, %v5435
    %v6308 = vpack.c.b16 %v5444, %v5436
    %v6309 = vpack.c.b16 %v5445, %v5437
    %v6310 = vpack.c.b16 %v5446, %v5438
    %v6311 = vpack.c.b16 %v5447, %v5439
    %v6312 = vpack.c.b16 %v5448, %v5440
    %v6313 = vpack.c.b16 %v5449, %v5441
    %v6314 = vpack.c.b16 %v5458, %v5450
    %v6315 = vpack.c.b16 %v5459, %v5451
    %v6316 = vpack.c.b16 %v5460, %v5452
    %v6317 = vpack.c.b16 %v5461, %v5453
    %v6318 = vpack.c.b16 %v5462, %v5454
    %v6319 = vpack.c.b16 %v5463, %v5455
    %v6320 = vpack.c.b16 %v5464, %v5456
    %v6321 = vpack.c.b16 %v5465, %v5457
    %v6322 = vpack.c.b16 %v5474, %v5466
    %v6323 = vpack.c.b16 %v5475, %v5467
    %v6324 = vpack.c.b16 %v5476, %v5468
    %v6325 = vpack.c.b16 %v5477, %v5469
    %v6326 = vpack.c.b16 %v5478, %v5470
    %v6327 = vpack.c.b16 %v5479, %v5471
    %v6328 = vpack.c.b16 %v5480, %v5472
    %v6329 = vpack.c.b16 %v5481, %v5473
    %v6330 = vpack.c.b16 %v5490, %v5482
    %v6331 = vpack.c.b16 %v5491, %v5483
    %v6332 = vpack.c.b16 %v5492, %v5484
    %v6333 = vpack.c.b16 %v5493, %v5485
    %v6334 = vpack.c.b16 %v5494, %v5486
    %v6335 = vpack.c.b16 %v5495, %v5487
    %v6336 = vpack.c.b16 %v5496, %v5488
    %v6337 = vpack.c.b16 %v5497, %v5489
    %v6338 = vpack.c.b16 %v5506, %v5498
    %v6339 = vpack.c.b16 %v5507, %v5499
    %v6340 = vpack.c.b16 %v5508, %v5500
    %v6341 = vpack.c.b16 %v5509, %v5501
    %v6342 = vpack.c.b16 %v5510, %v5502
    %v6343 = vpack.c.b16 %v5511, %v5503
    %v6344 = vpack.c.b16 %v5512, %v5504
    %v6345 = vpack.c.b16 %v5513, %v5505
    %v6346 = vpack.c.b16 %v5522, %v5514
    %v6347 = vpack.c.b16 %v5523, %v5515
    %v6348 = vpack.c.b16 %v5524, %v5516
    %v6349 = vpack.c.b16 %v5525, %v5517
    %v6350 = vpack.c.b16 %v5526, %v5518
    %v6351 = vpack.c.b16 %v5527, %v5519
    %v6352 = vpack.c.b16 %v5528, %v5520
    %v6353 = vpack.c.b16 %v5529, %v5521
    %v6354 = vpack.c.b16 %v5538, %v5530
    %v6355 = vpack.c.b16 %v5539, %v5531
    %v6356 = vpack.c.b16 %v5540, %v5532
    %v6357 = vpack.c.b16 %v5541, %v5533
    %v6358 = vpack.c.b16 %v5542, %v5534
    %v6359 = vpack.c.b16 %v5543, %v5535
    %v6360 = vpack.c.b16 %v5544, %v5536
    %v6361 = vpack.c.b16 %v5545, %v5537
    %v6362 = vpack.c.b16 %v5554, %v5546
    %v6363 = vpack.c.b16 %v5555, %v5547
    %v6364 = vpack.c.b16 %v5556, %v5548
    %v6365 = vpack.c.b16 %v5557, %v5549
    %v6366 = vpack.c.b16 %v5558, %v5550
    %v6367 = vpack.c.b16 %v5559, %v5551
    %v6368 = vpack.c.b16 %v5560, %v5552
    %v6369 = vpack.c.b16 %v5561, %v5553
    %v6370 = vpack.c.b16 %v5570, %v5562
    %v6371 = vpack.c.b16 %v5571, %v5563
    %v6372 = vpack.c.b16 %v5572, %v5564
    %v6373 = vpack.c.b16 %v5573, %v5565
    %v6374 = vpack.c.b16 %v5574, %v5566
    %v6375 = vpack.c.b16 %v5575, %v5567
    %v6376 = vpack.c.b16 %v5576, %v5568
    %v6377 = vpack.c.b16 %v5577, %v5569
    %v6378 = vpack.c.b16 %v5586, %v5578
    %v6379 = vpack.c.b16 %v5587, %v5579
    %v6380 = vpack.c.b16 %v5588, %v5580
    %v6381 = vpack.c.b16 %v5589, %v5581
    %v6382 = vpack.c.b16 %v5590, %v5582
    %v6383 = vpack.c.b16 %v5591, %v5583
    %v6384 = vpack.c.b16 %v5592, %v5584
    %v6385 = vpack.c.b16 %v5593, %v5585
    %v6386 = vpack.c.b16 %v5602, %v5594
    %v6387 = vpack.c.b16 %v5603, %v5595
    %v6388 = vpack.c.b16 %v5604, %v5596
    %v6389 = vpack.c.b16 %v5605, %v5597
    %v6390 = vpack.c.b16 %v5606, %v5598
    %v6391 = vpack.c.b16 %v5607, %v5599
    %v6392 = vpack.c.b16 %v5608, %v5600
    %v6393 = vpack.c.b16 %v5609, %v5601
    %v6394 = vpack.c.b16 %v5618, %v5610
    %v6395 = vpack.c.b16 %v5619, %v5611
    %v6396 = vpack.c.b16 %v5620, %v5612
    %v6397 = vpack.c.b16 %v5621, %v5613
    %v6398 = vpack.c.b16 %v5622, %v5614
    %v6399 = vpack.c.b16 %v5623, %v5615
    %v6400 = vpack.c.b16 %v5624, %v5616
    %v6401 = vpack.c.b16 %v5625, %v5617
    %v6402 = vpack.c.b16 %v5634, %v5626
    %v6403 = vpack.c.b16 %v5635, %v5627
    %v6404 = vpack.c.b16 %v5636, %v5628
    %v6405 = vpack.c.b16 %v5637, %v5629
    %v6406 = vpack.c.b16 %v5638, %v5630
    %v6407 = vpack.c.b16 %v5639, %v5631
    %v6408 = vpack.c.b16 %v5640, %v5632
    %v6409 = vpack.c.b16 %v5641, %v5633
    %v6410 = vpack.c.b16 %v5650, %v5642
    %v6411 = vpack.c.b16 %v5651, %v5643
    %v6412 = vpack.c.b16 %v5652, %v5644
    %v6413 = vpack.c.b16 %v5653, %v5645
    %v6414 = vpack.c.b16 %v5654, %v5646
    %v6415 = vpack.c.b16 %v5655, %v5647
    %v6416 = vpack.c.b16 %v5656, %v5648
    %v6417 = vpack.c.b16 %v5657, %v5649
    %v6418 = vpack.c.b16 %v5666, %v5658
    %v6419 = vpack.c.b16 %v5667, %v5659
    %v6420 = vpack.c.b16 %v5668, %v5660
    %v6421 = vpack.c.b16 %v5669, %v5661
    %v6422 = vpack.c.b16 %v5670, %v5662
    %v6423 = vpack.c.b16 %v5671, %v5663
    %v6424 = vpack.c.b16 %v5672, %v5664
    %v6425 = vpack.c.b16 %v5673, %v5665
    %v6426 = vpack.c.b16 %v5682, %v5674
    %v6427 = vpack.c.b16 %v5683, %v5675
    %v6428 = vpack.c.b16 %v5684, %v5676
    %v6429 = vpack.c.b16 %v5685, %v5677
    %v6430 = vpack.c.b16 %v5686, %v5678
    %v6431 = vpack.c.b16 %v5687, %v5679
    %v6432 = vpack.c.b16 %v5688, %v5680
    %v6433 = vpack.c.b16 %v5689, %v5681
    %v6434 = vpack.c.b16 %v5698, %v5690
    %v6435 = vpack.c.b16 %v5699, %v5691
    %v6436 = vpack.c.b16 %v5700, %v5692
    %v6437 = vpack.c.b16 %v5701, %v5693
    %v6438 = vpack.c.b16 %v5702, %v5694
    %v6439 = vpack.c.b16 %v5703, %v5695
    %v6440 = vpack.c.b16 %v5704, %v5696
    %v6441 = vpack.c.b16 %v5705, %v5697
    %v6442 = vpack.c.b16 %v5714, %v5706
    %v6443 = vpack.c.b16 %v5715, %v5707
    %v6444 = vpack.c.b16 %v5716, %v5708
    %v6445 = vpack.c.b16 %v5717, %v5709
    %v6446 = vpack.c.b16 %v5718, %v5710
    %v6447 = vpack.c.b16 %v5719, %v5711
    %v6448 = vpack.c.b16 %v5720, %v5712
    %v6449 = vpack.c.b16 %v5721, %v5713
    %v6450 = vpack.c.b16 %v5730, %v5722
    %v6451 = vpack.c.b16 %v5731, %v5723
    %v6452 = vpack.c.b16 %v5732, %v5724
    %v6453 = vpack.c.b16 %v5733, %v5725
    %v6454 = vpack.c.b16 %v5734, %v5726
    %v6455 = vpack.c.b16 %v5735, %v5727
    %v6456 = vpack.c.b16 %v5736, %v5728
    %v6457 = vpack.c.b16 %v5737, %v5729
    %v6458 = vpack.c.b16 %v5746, %v5738
    %v6459 = vpack.c.b16 %v5747, %v5739
    %v6460 = vpack.c.b16 %v5748, %v5740
    %v6461 = vpack.c.b16 %v5749, %v5741
    %v6462 = vpack.c.b16 %v5750, %v5742
    %v6463 = vpack.c.b16 %v5751, %v5743
    %v6464 = vpack.c.b16 %v5752, %v5744
    %v6465 = vpack.c.b16 %v5753, %v5745
    %v6466 = vpack.c.b16 %v5762, %v5754
    %v6467 = vpack.c.b16 %v5763, %v5755
    %v6468 = vpack.c.b16 %v5764, %v5756
    %v6469 = vpack.c.b16 %v5765, %v5757
    %v6470 = vpack.c.b16 %v5766, %v5758
    %v6471 = vpack.c.b16 %v5767, %v5759
    %v6472 = vpack.c.b16 %v5768, %v5760
    %v6473 = vpack.c.b16 %v5769, %v5761
    %v6474 = vpack.c.b16 %v5778, %v5770
    %v6475 = vpack.c.b16 %v5779, %v5771
    %v6476 = vpack.c.b16 %v5780, %v5772
    %v6477 = vpack.c.b16 %v5781, %v5773
    %v6478 = vpack.c.b16 %v5782, %v5774
    %v6479 = vpack.c.b16 %v5783, %v5775
    %v6480 = vpack.c.b16 %v5784, %v5776
    %v6481 = vpack.c.b16 %v5785, %v5777
    %v6482 = vpack.c.b16 %v5794, %v5786
    %v6483 = vpack.c.b16 %v5795, %v5787
    %v6484 = vpack.c.b16 %v5796, %v5788
    %v6485 = vpack.c.b16 %v5797, %v5789
    %v6486 = vpack.c.b16 %v5798, %v5790
    %v6487 = vpack.c.b16 %v5799, %v5791
    %v6488 = vpack.c.b16 %v5800, %v5792
    %v6489 = vpack.c.b16 %v5801, %v5793
    %v6490 = vpack.c.b16 %v5810, %v5802
    %v6491 = vpack.c.b16 %v5811, %v5803
    %v6492 = vpack.c.b16 %v5812, %v5804
    %v6493 = vpack.c.b16 %v5813, %v5805
    %v6494 = vpack.c.b16 %v5814, %v5806
    %v6495 = vpack.c.b16 %v5815, %v5807
    %v6496 = vpack.c.b16 %v5816, %v5808
    %v6497 = vpack.c.b16 %v5817, %v5809
    %v6498 = vpack.c.b16 %v5826, %v5818
    %v6499 = vpack.c.b16 %v5827, %v5819
    %v6500 = vpack.c.b16 %v5828, %v5820
    %v6501 = vpack.c.b16 %v5829, %v5821
    %v6502 = vpack.c.b16 %v5830, %v5822
    %v6503 = vpack.c.b16 %v5831, %v5823
    %v6504 = vpack.c.b16 %v5832, %v5824
    %v6505 = vpack.c.b16 %v5833, %v5825
    %v6506 = vpack.c.b16 %v5842, %v5834
    %v6507 = vpack.c.b16 %v5843, %v5835
    %v6508 = vpack.c.b16 %v5844, %v5836
    %v6509 = vpack.c.b16 %v5845, %v5837
    %v6510 = vpack.c.b16 %v5846, %v5838
    %v6511 = vpack.c.b16 %v5847, %v5839
    %v6512 = vpack.c.b16 %v5848, %v5840
    %v6513 = vpack.c.b16 %v5849, %v5841
    %v6514 = vpack.c.b16 %v5858, %v5850
    %v6515 = vpack.c.b16 %v5859, %v5851
    %v6516 = vpack.c.b16 %v5860, %v5852
    %v6517 = vpack.c.b16 %v5861, %v5853
    %v6518 = vpack.c.b16 %v5862, %v5854
    %v6519 = vpack.c.b16 %v5863, %v5855
    %v6520 = vpack.c.b16 %v5864, %v5856
    %v6521 = vpack.c.b16 %v5865, %v5857
    %v6522 = vpack.c.b16 %v5874, %v5866
    %v6523 = vpack.c.b16 %v5875, %v5867
    %v6524 = vpack.c.b16 %v5876, %v5868
    %v6525 = vpack.c.b16 %v5877, %v5869
    %v6526 = vpack.c.b16 %v5878, %v5870
    %v6527 = vpack.c.b16 %v5879, %v5871
    %v6528 = vpack.c.b16 %v5880, %v5872
    %v6529 = vpack.c.b16 %v5881, %v5873
    %v6530 = vpack.c.b16 %v5890, %v5882
    %v6531 = vpack.c.b16 %v5891, %v5883
    %v6532 = vpack.c.b16 %v5892, %v5884
    %v6533 = vpack.c.b16 %v5893, %v5885
    %v6534 = vpack.c.b16 %v5894, %v5886
    %v6535 = vpack.c.b16 %v5895, %v5887
    %v6536 = vpack.c.b16 %v5896, %v5888
    %v6537 = vpack.c.b16 %v5897, %v5889
    %v6538 = vpack.c.b16 %v5906, %v5898
    %v6539 = vpack.c.b16 %v5907, %v5899
    %v6540 = vpack.c.b16 %v5908, %v5900
    %v6541 = vpack.c.b16 %v5909, %v5901
    %v6542 = vpack.c.b16 %v5910, %v5902
    %v6543 = vpack.c.b16 %v5911, %v5903
    %v6544 = vpack.c.b16 %v5912, %v5904
    %v6545 = vpack.c.b16 %v5913, %v5905
    %v6546 = vpack.c.b16 %v5922, %v5914
    %v6547 = vpack.c.b16 %v5923, %v5915
    %v6548 = vpack.c.b16 %v5924, %v5916
    %v6549 = vpack.c.b16 %v5925, %v5917
    %v6550 = vpack.c.b16 %v5926, %v5918
    %v6551 = vpack.c.b16 %v5927, %v5919
    %v6552 = vpack.c.b16 %v5928, %v5920
    %v6553 = vpack.c.b16 %v5929, %v5921
    %v6554 = vpack.c.b16 %v5938, %v5930
    %v6555 = vpack.c.b16 %v5939, %v5931
    %v6556 = vpack.c.b16 %v5940, %v5932
    %v6557 = vpack.c.b16 %v5941, %v5933
    %v6558 = vpack.c.b16 %v5942, %v5934
    %v6559 = vpack.c.b16 %v5943, %v5935
    %v6560 = vpack.c.b16 %v5944, %v5936
    %v6561 = vpack.c.b16 %v5945, %v5937
    %v6562 = vpack.c.b16 %v5954, %v5946
    %v6563 = vpack.c.b16 %v5955, %v5947
    %v6564 = vpack.c.b16 %v5956, %v5948
    %v6565 = vpack.c.b16 %v5957, %v5949
    %v6566 = vpack.c.b16 %v5958, %v5950
    %v6567 = vpack.c.b16 %v5959, %v5951
    %v6568 = vpack.c.b16 %v5960, %v5952
    %v6569 = vpack.c.b16 %v5961, %v5953
    %v6570 = vpack.c.b16 %v5970, %v5962
    %v6571 = vpack.c.b16 %v5971, %v5963
    %v6572 = vpack.c.b16 %v5972, %v5964
    %v6573 = vpack.c.b16 %v5973, %v5965
    %v6574 = vpack.c.b16 %v5974, %v5966
    %v6575 = vpack.c.b16 %v5975, %v5967
    %v6576 = vpack.c.b16 %v5976, %v5968
    %v6577 = vpack.c.b16 %v5977, %v5969
    %v6578 = vpack.c.b16 %v5986, %v5978
    %v6579 = vpack.c.b16 %v5987, %v5979
    %v6580 = vpack.c.b16 %v5988, %v5980
    %v6581 = vpack.c.b16 %v5989, %v5981
    %v6582 = vpack.c.b16 %v5990, %v5982
    %v6583 = vpack.c.b16 %v5991, %v5983
    %v6584 = vpack.c.b16 %v5992, %v5984
    %v6585 = vpack.c.b16 %v5993, %v5985
    %v6586 = vpack.c.b16 %v6002, %v5994
    %v6587 = vpack.c.b16 %v6003, %v5995
    %v6588 = vpack.c.b16 %v6004, %v5996
    %v6589 = vpack.c.b16 %v6005, %v5997
    %v6590 = vpack.c.b16 %v6006, %v5998
    %v6591 = vpack.c.b16 %v6007, %v5999
    %v6592 = vpack.c.b16 %v6008, %v6000
    %v6593 = vpack.c.b16 %v6009, %v6001
    %v6594 = vpack.c.b16 %v6018, %v6010
    %v6595 = vpack.c.b16 %v6019, %v6011
    %v6596 = vpack.c.b16 %v6020, %v6012
    %v6597 = vpack.c.b16 %v6021, %v6013
    %v6598 = vpack.c.b16 %v6022, %v6014
    %v6599 = vpack.c.b16 %v6023, %v6015
    %v6600 = vpack.c.b16 %v6024, %v6016
    %v6601 = vpack.c.b16 %v6025, %v6017
    %v6602 = vpack.c.b16 %v6034, %v6026
    %v6603 = vpack.c.b16 %v6035, %v6027
    %v6604 = vpack.c.b16 %v6036, %v6028
    %v6605 = vpack.c.b16 %v6037, %v6029
    %v6606 = vpack.c.b16 %v6038, %v6030
    %v6607 = vpack.c.b16 %v6039, %v6031
    %v6608 = vpack.c.b16 %v6040, %v6032
    %v6609 = vpack.c.b16 %v6041, %v6033
    %v6610 = vpack.c.b16 %v6050, %v6042
    %v6611 = vpack.c.b16 %v6051, %v6043
    %v6612 = vpack.c.b16 %v6052, %v6044
    %v6613 = vpack.c.b16 %v6053, %v6045
    %v6614 = vpack.c.b16 %v6054, %v6046
    %v6615 = vpack.c.b16 %v6055, %v6047
    %v6616 = vpack.c.b16 %v6056, %v6048
    %v6617 = vpack.c.b16 %v6057, %v6049
    %v6618 = vpack.c.b16 %v6066, %v6058
    %v6619 = vpack.c.b16 %v6067, %v6059
    %v6620 = vpack.c.b16 %v6068, %v6060
    %v6621 = vpack.c.b16 %v6069, %v6061
    %v6622 = vpack.c.b16 %v6070, %v6062
    %v6623 = vpack.c.b16 %v6071, %v6063
    %v6624 = vpack.c.b16 %v6072, %v6064
    %v6625 = vpack.c.b16 %v6073, %v6065
    %v6626 = vpack.c.b16 %v6082, %v6074
    %v6627 = vpack.c.b16 %v6083, %v6075
    %v6628 = vpack.c.b16 %v6084, %v6076
    %v6629 = vpack.c.b16 %v6085, %v6077
    %v6630 = vpack.c.b16 %v6086, %v6078
    %v6631 = vpack.c.b16 %v6087, %v6079
    %v6632 = vpack.c.b16 %v6088, %v6080
    %v6633 = vpack.c.b16 %v6089, %v6081
    %v6634 = vpack.c.b16 %v6098, %v6090
    %v6635 = vpack.c.b16 %v6099, %v6091
    %v6636 = vpack.c.b16 %v6100, %v6092
    %v6637 = vpack.c.b16 %v6101, %v6093
    %v6638 = vpack.c.b16 %v6102, %v6094
    %v6639 = vpack.c.b16 %v6103, %v6095
    %v6640 = vpack.c.b16 %v6104, %v6096
    %v6641 = vpack.c.b16 %v6105, %v6097
    %v6642 = vpack.c.b16 %v6114, %v6106
    %v6643 = vpack.c.b16 %v6115, %v6107
    %v6644 = vpack.c.b16 %v6116, %v6108
    %v6645 = vpack.c.b16 %v6117, %v6109
    %v6646 = vpack.c.b16 %v6118, %v6110
    %v6647 = vpack.c.b16 %v6119, %v6111
    %v6648 = vpack.c.b16 %v6120, %v6112
    %v6649 = vpack.c.b16 %v6121, %v6113
    %v6650 = vpack.c.b16 %v6130, %v6122
    %v6651 = vpack.c.b16 %v6131, %v6123
    %v6652 = vpack.c.b16 %v6132, %v6124
    %v6653 = vpack.c.b16 %v6133, %v6125
    %v6654 = vpack.c.b16 %v6134, %v6126
    %v6655 = vpack.c.b16 %v6135, %v6127
    %v6656 = vpack.c.b16 %v6136, %v6128
    %v6657 = vpack.c.b16 %v6137, %v6129
    %v6658 = vpack.c.b16 %v6146, %v6138
    %v6659 = vpack.c.b16 %v6147, %v6139
    %v6660 = vpack.c.b16 %v6148, %v6140
    %v6661 = vpack.c.b16 %v6149, %v6141
    %v6662 = vpack.c.b16 %v6150, %v6142
    %v6663 = vpack.c.b16 %v6151, %v6143
    %v6664 = vpack.c.b16 %v6152, %v6144
    %v6665 = vpack.c.b16 %v6153, %v6145
    %7178 = vmatpush.bf16.msra.mxu0 %v6210
    %7179 = vmatpush.bf16.msra.mxu0 %v6202
    %7180 = vmatpush.bf16.msra.mxu0 %v6194
    %7181 = vmatpush.bf16.msra.mxu0 %v6186
    %7182 = vmatpush.bf16.msra.mxu0 %v6178
    %7183 = vmatpush.bf16.msra.mxu0 %v6170
    %7184 = vmatpush.bf16.msra.mxu0 %v6162
    %7185 = vmatpush.bf16.msra.mxu0 %v6154
    %7186 = vmatmul.bf16.gmra.mxu0 %v178
    %v7187 = vpop.f32.mrf.mxu0
    %v7188 = vadd.f32 0.0, %v7187
    %v7189 = vpop.f32.mrf.mxu0
    %v7190 = vadd.f32 0.0, %v7189
    %7191 = vdwg.mxu0
    %7192 = vmatpush.bf16.msra.mxu0 %v6274
    %7193 = vmatpush.bf16.msra.mxu0 %v6266
    %7194 = vmatpush.bf16.msra.mxu0 %v6258
    %7195 = vmatpush.bf16.msra.mxu0 %v6250
    %7196 = vmatpush.bf16.msra.mxu0 %v6242
    %7197 = vmatpush.bf16.msra.mxu0 %v6234
    %7198 = vmatpush.bf16.msra.mxu0 %v6226
    %7199 = vmatpush.bf16.msra.mxu0 %v6218
    %7200 = vmatmul.bf16.gmra.mxu0 %v179
    %v7201 = vpop.f32.mrf.mxu0
    %v7202 = vadd.f32 %v7188, %v7201
    %v7203 = vpop.f32.mrf.mxu0
    %v7204 = vadd.f32 %v7190, %v7203
    %7205 = vdwg.mxu0
    %7206 = vmatpush.bf16.msra.mxu0 %v6338
    %7207 = vmatpush.bf16.msra.mxu0 %v6330
    %7208 = vmatpush.bf16.msra.mxu0 %v6322
    %7209 = vmatpush.bf16.msra.mxu0 %v6314
    %7210 = vmatpush.bf16.msra.mxu0 %v6306
    %7211 = vmatpush.bf16.msra.mxu0 %v6298
    %7212 = vmatpush.bf16.msra.mxu0 %v6290
    %7213 = vmatpush.bf16.msra.mxu0 %v6282
    %7214 = vmatmul.bf16.gmra.mxu0 %v180
    %v7215 = vpop.f32.mrf.mxu0
    %v7216 = vadd.f32 %v7202, %v7215
    %v7217 = vpop.f32.mrf.mxu0
    %v7218 = vadd.f32 %v7204, %v7217
    %7219 = vdwg.mxu0
    %7220 = vmatpush.bf16.msra.mxu0 %v6402
    %7221 = vmatpush.bf16.msra.mxu0 %v6394
    %7222 = vmatpush.bf16.msra.mxu0 %v6386
    %7223 = vmatpush.bf16.msra.mxu0 %v6378
    %7224 = vmatpush.bf16.msra.mxu0 %v6370
    %7225 = vmatpush.bf16.msra.mxu0 %v6362
    %7226 = vmatpush.bf16.msra.mxu0 %v6354
    %7227 = vmatpush.bf16.msra.mxu0 %v6346
    %7228 = vmatmul.bf16.gmra.mxu0 %v181
    %v7229 = vpop.f32.mrf.mxu0
    %v7230 = vadd.f32 %v7216, %v7229
    %v7231 = vpop.f32.mrf.mxu0
    %v7232 = vadd.f32 %v7218, %v7231
    %7233 = vdwg.mxu0
    %7234 = vmatpush.bf16.msra.mxu0 %v6466
    %7235 = vmatpush.bf16.msra.mxu0 %v6458
    %7236 = vmatpush.bf16.msra.mxu0 %v6450
    %7237 = vmatpush.bf16.msra.mxu0 %v6442
    %7238 = vmatpush.bf16.msra.mxu0 %v6434
    %7239 = vmatpush.bf16.msra.mxu0 %v6426
    %7240 = vmatpush.bf16.msra.mxu0 %v6418
    %7241 = vmatpush.bf16.msra.mxu0 %v6410
    %7242 = vmatmul.bf16.gmra.mxu0 %v182
    %v7243 = vpop.f32.mrf.mxu0
    %v7244 = vadd.f32 %v7230, %v7243
    %v7245 = vpop.f32.mrf.mxu0
    %v7246 = vadd.f32 %v7232, %v7245
    %7247 = vdwg.mxu0
    %7248 = vmatpush.bf16.msra.mxu0 %v6530
    %7249 = vmatpush.bf16.msra.mxu0 %v6522
    %7250 = vmatpush.bf16.msra.mxu0 %v6514
    %7251 = vmatpush.bf16.msra.mxu0 %v6506
    %7252 = vmatpush.bf16.msra.mxu0 %v6498
    %7253 = vmatpush.bf16.msra.mxu0 %v6490
    %7254 = vmatpush.bf16.msra.mxu0 %v6482
    %7255 = vmatpush.bf16.msra.mxu0 %v6474
    %7256 = vmatmul.bf16.gmra.mxu0 %v183
    %v7257 = vpop.f32.mrf.mxu0
    %v7258 = vadd.f32 %v7244, %v7257
    %v7259 = vpop.f32.mrf.mxu0
    %v7260 = vadd.f32 %v7246, %v7259
    %7261 = vdwg.mxu0
    %7262 = vmatpush.bf16.msra.mxu0 %v6594
    %7263 = vmatpush.bf16.msra.mxu0 %v6586
    %7264 = vmatpush.bf16.msra.mxu0 %v6578
    %7265 = vmatpush.bf16.msra.mxu0 %v6570
    %7266 = vmatpush.bf16.msra.mxu0 %v6562
    %7267 = vmatpush.bf16.msra.mxu0 %v6554
    %7268 = vmatpush.bf16.msra.mxu0 %v6546
    %7269 = vmatpush.bf16.msra.mxu0 %v6538
    %7270 = vmatmul.bf16.gmra.mxu0 %v184
    %v7271 = vpop.f32.mrf.mxu0
    %v7272 = vadd.f32 %v7258, %v7271
    %v7273 = vpop.f32.mrf.mxu0
    %v7274 = vadd.f32 %v7260, %v7273
    %7275 = vdwg.mxu0
    %7276 = vmatpush.bf16.msra.mxu0 %v6658
    %7277 = vmatpush.bf16.msra.mxu0 %v6650
    %7278 = vmatpush.bf16.msra.mxu0 %v6642
    %7279 = vmatpush.bf16.msra.mxu0 %v6634
    %7280 = vmatpush.bf16.msra.mxu0 %v6626
    %7281 = vmatpush.bf16.msra.mxu0 %v6618
    %7282 = vmatpush.bf16.msra.mxu0 %v6610
    %7283 = vmatpush.bf16.msra.mxu0 %v6602
    %7284 = vmatmul.bf16.gmra.mxu0 %v185
    %v7285 = vpop.f32.mrf.mxu0
    %v7286 = vadd.f32 %v7272, %v7285
    %v7287 = vpop.f32.mrf.mxu0
    %v7288 = vadd.f32 %v7274, %v7287
    %7289 = vdwg.mxu0
    %7290 = vmatpush.bf16.msra.mxu0 %v6211
    %7291 = vmatpush.bf16.msra.mxu0 %v6203
    %7292 = vmatpush.bf16.msra.mxu0 %v6195
    %7293 = vmatpush.bf16.msra.mxu0 %v6187
    %7294 = vmatpush.bf16.msra.mxu0 %v6179
    %7295 = vmatpush.bf16.msra.mxu0 %v6171
    %7296 = vmatpush.bf16.msra.mxu0 %v6163
    %7297 = vmatpush.bf16.msra.mxu0 %v6155
    %7298 = vmatmul.bf16.gmra.mxu0 %v178
    %v7299 = vpop.f32.mrf.mxu0
    %v7300 = vadd.f32 0.0, %v7299
    %v7301 = vpop.f32.mrf.mxu0
    %v7302 = vadd.f32 0.0, %v7301
    %7303 = vdwg.mxu0
    %7304 = vmatpush.bf16.msra.mxu0 %v6275
    %7305 = vmatpush.bf16.msra.mxu0 %v6267
    %7306 = vmatpush.bf16.msra.mxu0 %v6259
    %7307 = vmatpush.bf16.msra.mxu0 %v6251
    %7308 = vmatpush.bf16.msra.mxu0 %v6243
    %7309 = vmatpush.bf16.msra.mxu0 %v6235
    %7310 = vmatpush.bf16.msra.mxu0 %v6227
    %7311 = vmatpush.bf16.msra.mxu0 %v6219
    %7312 = vmatmul.bf16.gmra.mxu0 %v179
    %v7313 = vpop.f32.mrf.mxu0
    %v7314 = vadd.f32 %v7300, %v7313
    %v7315 = vpop.f32.mrf.mxu0
    %v7316 = vadd.f32 %v7302, %v7315
    %7317 = vdwg.mxu0
    %7318 = vmatpush.bf16.msra.mxu0 %v6339
    %7319 = vmatpush.bf16.msra.mxu0 %v6331
    %7320 = vmatpush.bf16.msra.mxu0 %v6323
    %7321 = vmatpush.bf16.msra.mxu0 %v6315
    %7322 = vmatpush.bf16.msra.mxu0 %v6307
    %7323 = vmatpush.bf16.msra.mxu0 %v6299
    %7324 = vmatpush.bf16.msra.mxu0 %v6291
    %7325 = vmatpush.bf16.msra.mxu0 %v6283
    %7326 = vmatmul.bf16.gmra.mxu0 %v180
    %v7327 = vpop.f32.mrf.mxu0
    %v7328 = vadd.f32 %v7314, %v7327
    %v7329 = vpop.f32.mrf.mxu0
    %v7330 = vadd.f32 %v7316, %v7329
    %7331 = vdwg.mxu0
    %7332 = vmatpush.bf16.msra.mxu0 %v6403
    %7333 = vmatpush.bf16.msra.mxu0 %v6395
    %7334 = vmatpush.bf16.msra.mxu0 %v6387
    %7335 = vmatpush.bf16.msra.mxu0 %v6379
    %7336 = vmatpush.bf16.msra.mxu0 %v6371
    %7337 = vmatpush.bf16.msra.mxu0 %v6363
    %7338 = vmatpush.bf16.msra.mxu0 %v6355
    %7339 = vmatpush.bf16.msra.mxu0 %v6347
    %7340 = vmatmul.bf16.gmra.mxu0 %v181
    %v7341 = vpop.f32.mrf.mxu0
    %v7342 = vadd.f32 %v7328, %v7341
    %v7343 = vpop.f32.mrf.mxu0
    %v7344 = vadd.f32 %v7330, %v7343
    %7345 = vdwg.mxu0
    %7346 = vmatpush.bf16.msra.mxu0 %v6467
    %7347 = vmatpush.bf16.msra.mxu0 %v6459
    %7348 = vmatpush.bf16.msra.mxu0 %v6451
    %7349 = vmatpush.bf16.msra.mxu0 %v6443
    %7350 = vmatpush.bf16.msra.mxu0 %v6435
    %7351 = vmatpush.bf16.msra.mxu0 %v6427
    %7352 = vmatpush.bf16.msra.mxu0 %v6419
    %7353 = vmatpush.bf16.msra.mxu0 %v6411
    %7354 = vmatmul.bf16.gmra.mxu0 %v182
    %v7355 = vpop.f32.mrf.mxu0
    %v7356 = vadd.f32 %v7342, %v7355
    %v7357 = vpop.f32.mrf.mxu0
    %v7358 = vadd.f32 %v7344, %v7357
    %7359 = vdwg.mxu0
    %7360 = vmatpush.bf16.msra.mxu0 %v6531
    %7361 = vmatpush.bf16.msra.mxu0 %v6523
    %7362 = vmatpush.bf16.msra.mxu0 %v6515
    %7363 = vmatpush.bf16.msra.mxu0 %v6507
    %7364 = vmatpush.bf16.msra.mxu0 %v6499
    %7365 = vmatpush.bf16.msra.mxu0 %v6491
    %7366 = vmatpush.bf16.msra.mxu0 %v6483
    %7367 = vmatpush.bf16.msra.mxu0 %v6475
    %7368 = vmatmul.bf16.gmra.mxu0 %v183
    %v7369 = vpop.f32.mrf.mxu0
    %v7370 = vadd.f32 %v7356, %v7369
    %v7371 = vpop.f32.mrf.mxu0
    %v7372 = vadd.f32 %v7358, %v7371
    %7373 = vdwg.mxu0
    %7374 = vmatpush.bf16.msra.mxu0 %v6595
    %7375 = vmatpush.bf16.msra.mxu0 %v6587
    %7376 = vmatpush.bf16.msra.mxu0 %v6579
    %7377 = vmatpush.bf16.msra.mxu0 %v6571
    %7378 = vmatpush.bf16.msra.mxu0 %v6563
    %7379 = vmatpush.bf16.msra.mxu0 %v6555
    %7380 = vmatpush.bf16.msra.mxu0 %v6547
    %7381 = vmatpush.bf16.msra.mxu0 %v6539
    %7382 = vmatmul.bf16.gmra.mxu0 %v184
    %v7383 = vpop.f32.mrf.mxu0
    %v7384 = vadd.f32 %v7370, %v7383
    %v7385 = vpop.f32.mrf.mxu0
    %v7386 = vadd.f32 %v7372, %v7385
    %7387 = vdwg.mxu0
    %7388 = vmatpush.bf16.msra.mxu0 %v6659
    %7389 = vmatpush.bf16.msra.mxu0 %v6651
    %7390 = vmatpush.bf16.msra.mxu0 %v6643
    %7391 = vmatpush.bf16.msra.mxu0 %v6635
    %7392 = vmatpush.bf16.msra.mxu0 %v6627
    %7393 = vmatpush.bf16.msra.mxu0 %v6619
    %7394 = vmatpush.bf16.msra.mxu0 %v6611
    %7395 = vmatpush.bf16.msra.mxu0 %v6603
    %7396 = vmatmul.bf16.gmra.mxu0 %v185
    %v7397 = vpop.f32.mrf.mxu0
    %v7398 = vadd.f32 %v7384, %v7397
    %v7399 = vpop.f32.mrf.mxu0
    %v7400 = vadd.f32 %v7386, %v7399
    %7401 = vdwg.mxu0
    %7402 = vmatpush.bf16.msra.mxu0 %v6212
    %7403 = vmatpush.bf16.msra.mxu0 %v6204
    %7404 = vmatpush.bf16.msra.mxu0 %v6196
    %7405 = vmatpush.bf16.msra.mxu0 %v6188
    %7406 = vmatpush.bf16.msra.mxu0 %v6180
    %7407 = vmatpush.bf16.msra.mxu0 %v6172
    %7408 = vmatpush.bf16.msra.mxu0 %v6164
    %7409 = vmatpush.bf16.msra.mxu0 %v6156
    %7410 = vmatmul.bf16.gmra.mxu0 %v178
    %v7411 = vpop.f32.mrf.mxu0
    %v7412 = vadd.f32 0.0, %v7411
    %v7413 = vpop.f32.mrf.mxu0
    %v7414 = vadd.f32 0.0, %v7413
    %7415 = vdwg.mxu0
    %7416 = vmatpush.bf16.msra.mxu0 %v6276
    %7417 = vmatpush.bf16.msra.mxu0 %v6268
    %7418 = vmatpush.bf16.msra.mxu0 %v6260
    %7419 = vmatpush.bf16.msra.mxu0 %v6252
    %7420 = vmatpush.bf16.msra.mxu0 %v6244
    %7421 = vmatpush.bf16.msra.mxu0 %v6236
    %7422 = vmatpush.bf16.msra.mxu0 %v6228
    %7423 = vmatpush.bf16.msra.mxu0 %v6220
    %7424 = vmatmul.bf16.gmra.mxu0 %v179
    %v7425 = vpop.f32.mrf.mxu0
    %v7426 = vadd.f32 %v7412, %v7425
    %v7427 = vpop.f32.mrf.mxu0
    %v7428 = vadd.f32 %v7414, %v7427
    %7429 = vdwg.mxu0
    %7430 = vmatpush.bf16.msra.mxu0 %v6340
    %7431 = vmatpush.bf16.msra.mxu0 %v6332
    %7432 = vmatpush.bf16.msra.mxu0 %v6324
    %7433 = vmatpush.bf16.msra.mxu0 %v6316
    %7434 = vmatpush.bf16.msra.mxu0 %v6308
    %7435 = vmatpush.bf16.msra.mxu0 %v6300
    %7436 = vmatpush.bf16.msra.mxu0 %v6292
    %7437 = vmatpush.bf16.msra.mxu0 %v6284
    %7438 = vmatmul.bf16.gmra.mxu0 %v180
    %v7439 = vpop.f32.mrf.mxu0
    %v7440 = vadd.f32 %v7426, %v7439
    %v7441 = vpop.f32.mrf.mxu0
    %v7442 = vadd.f32 %v7428, %v7441
    %7443 = vdwg.mxu0
    %7444 = vmatpush.bf16.msra.mxu0 %v6404
    %7445 = vmatpush.bf16.msra.mxu0 %v6396
    %7446 = vmatpush.bf16.msra.mxu0 %v6388
    %7447 = vmatpush.bf16.msra.mxu0 %v6380
    %7448 = vmatpush.bf16.msra.mxu0 %v6372
    %7449 = vmatpush.bf16.msra.mxu0 %v6364
    %7450 = vmatpush.bf16.msra.mxu0 %v6356
    %7451 = vmatpush.bf16.msra.mxu0 %v6348
    %7452 = vmatmul.bf16.gmra.mxu0 %v181
    %v7453 = vpop.f32.mrf.mxu0
    %v7454 = vadd.f32 %v7440, %v7453
    %v7455 = vpop.f32.mrf.mxu0
    %v7456 = vadd.f32 %v7442, %v7455
    %7457 = vdwg.mxu0
    %7458 = vmatpush.bf16.msra.mxu0 %v6468
    %7459 = vmatpush.bf16.msra.mxu0 %v6460
    %7460 = vmatpush.bf16.msra.mxu0 %v6452
    %7461 = vmatpush.bf16.msra.mxu0 %v6444
    %7462 = vmatpush.bf16.msra.mxu0 %v6436
    %7463 = vmatpush.bf16.msra.mxu0 %v6428
    %7464 = vmatpush.bf16.msra.mxu0 %v6420
    %7465 = vmatpush.bf16.msra.mxu0 %v6412
    %7466 = vmatmul.bf16.gmra.mxu0 %v182
    %v7467 = vpop.f32.mrf.mxu0
    %v7468 = vadd.f32 %v7454, %v7467
    %v7469 = vpop.f32.mrf.mxu0
    %v7470 = vadd.f32 %v7456, %v7469
    %7471 = vdwg.mxu0
    %7472 = vmatpush.bf16.msra.mxu0 %v6532
    %7473 = vmatpush.bf16.msra.mxu0 %v6524
    %7474 = vmatpush.bf16.msra.mxu0 %v6516
    %7475 = vmatpush.bf16.msra.mxu0 %v6508
    %7476 = vmatpush.bf16.msra.mxu0 %v6500
    %7477 = vmatpush.bf16.msra.mxu0 %v6492
    %7478 = vmatpush.bf16.msra.mxu0 %v6484
    %7479 = vmatpush.bf16.msra.mxu0 %v6476
    %7480 = vmatmul.bf16.gmra.mxu0 %v183
    %v7481 = vpop.f32.mrf.mxu0
    %v7482 = vadd.f32 %v7468, %v7481
    %v7483 = vpop.f32.mrf.mxu0
    %v7484 = vadd.f32 %v7470, %v7483
    %7485 = vdwg.mxu0
    %7486 = vmatpush.bf16.msra.mxu0 %v6596
    %7487 = vmatpush.bf16.msra.mxu0 %v6588
    %7488 = vmatpush.bf16.msra.mxu0 %v6580
    %7489 = vmatpush.bf16.msra.mxu0 %v6572
    %7490 = vmatpush.bf16.msra.mxu0 %v6564
    %7491 = vmatpush.bf16.msra.mxu0 %v6556
    %7492 = vmatpush.bf16.msra.mxu0 %v6548
    %7493 = vmatpush.bf16.msra.mxu0 %v6540
    %7494 = vmatmul.bf16.gmra.mxu0 %v184
    %v7495 = vpop.f32.mrf.mxu0
    %v7496 = vadd.f32 %v7482, %v7495
    %v7497 = vpop.f32.mrf.mxu0
    %v7498 = vadd.f32 %v7484, %v7497
    %7499 = vdwg.mxu0
    %7500 = vmatpush.bf16.msra.mxu0 %v6660
    %7501 = vmatpush.bf16.msra.mxu0 %v6652
    %7502 = vmatpush.bf16.msra.mxu0 %v6644
    %7503 = vmatpush.bf16.msra.mxu0 %v6636
    %7504 = vmatpush.bf16.msra.mxu0 %v6628
    %7505 = vmatpush.bf16.msra.mxu0 %v6620
    %7506 = vmatpush.bf16.msra.mxu0 %v6612
    %7507 = vmatpush.bf16.msra.mxu0 %v6604
    %7508 = vmatmul.bf16.gmra.mxu0 %v185
    %v7509 = vpop.f32.mrf.mxu0
    %v7510 = vadd.f32 %v7496, %v7509
    %v7511 = vpop.f32.mrf.mxu0
    %v7512 = vadd.f32 %v7498, %v7511
    %7513 = vdwg.mxu0
    %7514 = vmatpush.bf16.msra.mxu0 %v6213
    %7515 = vmatpush.bf16.msra.mxu0 %v6205
    %7516 = vmatpush.bf16.msra.mxu0 %v6197
    %7517 = vmatpush.bf16.msra.mxu0 %v6189
    %7518 = vmatpush.bf16.msra.mxu0 %v6181
    %7519 = vmatpush.bf16.msra.mxu0 %v6173
    %7520 = vmatpush.bf16.msra.mxu0 %v6165
    %7521 = vmatpush.bf16.msra.mxu0 %v6157
    %7522 = vmatmul.bf16.gmra.mxu0 %v178
    %v7523 = vpop.f32.mrf.mxu0
    %v7524 = vadd.f32 0.0, %v7523
    %v7525 = vpop.f32.mrf.mxu0
    %v7526 = vadd.f32 0.0, %v7525
    %7527 = vdwg.mxu0
    %7528 = vmatpush.bf16.msra.mxu0 %v6277
    %7529 = vmatpush.bf16.msra.mxu0 %v6269
    %7530 = vmatpush.bf16.msra.mxu0 %v6261
    %7531 = vmatpush.bf16.msra.mxu0 %v6253
    %7532 = vmatpush.bf16.msra.mxu0 %v6245
    %7533 = vmatpush.bf16.msra.mxu0 %v6237
    %7534 = vmatpush.bf16.msra.mxu0 %v6229
    %7535 = vmatpush.bf16.msra.mxu0 %v6221
    %7536 = vmatmul.bf16.gmra.mxu0 %v179
    %v7537 = vpop.f32.mrf.mxu0
    %v7538 = vadd.f32 %v7524, %v7537
    %v7539 = vpop.f32.mrf.mxu0
    %v7540 = vadd.f32 %v7526, %v7539
    %7541 = vdwg.mxu0
    %7542 = vmatpush.bf16.msra.mxu0 %v6341
    %7543 = vmatpush.bf16.msra.mxu0 %v6333
    %7544 = vmatpush.bf16.msra.mxu0 %v6325
    %7545 = vmatpush.bf16.msra.mxu0 %v6317
    %7546 = vmatpush.bf16.msra.mxu0 %v6309
    %7547 = vmatpush.bf16.msra.mxu0 %v6301
    %7548 = vmatpush.bf16.msra.mxu0 %v6293
    %7549 = vmatpush.bf16.msra.mxu0 %v6285
    %7550 = vmatmul.bf16.gmra.mxu0 %v180
    %v7551 = vpop.f32.mrf.mxu0
    %v7552 = vadd.f32 %v7538, %v7551
    %v7553 = vpop.f32.mrf.mxu0
    %v7554 = vadd.f32 %v7540, %v7553
    %7555 = vdwg.mxu0
    %7556 = vmatpush.bf16.msra.mxu0 %v6405
    %7557 = vmatpush.bf16.msra.mxu0 %v6397
    %7558 = vmatpush.bf16.msra.mxu0 %v6389
    %7559 = vmatpush.bf16.msra.mxu0 %v6381
    %7560 = vmatpush.bf16.msra.mxu0 %v6373
    %7561 = vmatpush.bf16.msra.mxu0 %v6365
    %7562 = vmatpush.bf16.msra.mxu0 %v6357
    %7563 = vmatpush.bf16.msra.mxu0 %v6349
    %7564 = vmatmul.bf16.gmra.mxu0 %v181
    %v7565 = vpop.f32.mrf.mxu0
    %v7566 = vadd.f32 %v7552, %v7565
    %v7567 = vpop.f32.mrf.mxu0
    %v7568 = vadd.f32 %v7554, %v7567
    %7569 = vdwg.mxu0
    %7570 = vmatpush.bf16.msra.mxu0 %v6469
    %7571 = vmatpush.bf16.msra.mxu0 %v6461
    %7572 = vmatpush.bf16.msra.mxu0 %v6453
    %7573 = vmatpush.bf16.msra.mxu0 %v6445
    %7574 = vmatpush.bf16.msra.mxu0 %v6437
    %7575 = vmatpush.bf16.msra.mxu0 %v6429
    %7576 = vmatpush.bf16.msra.mxu0 %v6421
    %7577 = vmatpush.bf16.msra.mxu0 %v6413
    %7578 = vmatmul.bf16.gmra.mxu0 %v182
    %v7579 = vpop.f32.mrf.mxu0
    %v7580 = vadd.f32 %v7566, %v7579
    %v7581 = vpop.f32.mrf.mxu0
    %v7582 = vadd.f32 %v7568, %v7581
    %7583 = vdwg.mxu0
    %7584 = vmatpush.bf16.msra.mxu0 %v6533
    %7585 = vmatpush.bf16.msra.mxu0 %v6525
    %7586 = vmatpush.bf16.msra.mxu0 %v6517
    %7587 = vmatpush.bf16.msra.mxu0 %v6509
    %7588 = vmatpush.bf16.msra.mxu0 %v6501
    %7589 = vmatpush.bf16.msra.mxu0 %v6493
    %7590 = vmatpush.bf16.msra.mxu0 %v6485
    %7591 = vmatpush.bf16.msra.mxu0 %v6477
    %7592 = vmatmul.bf16.gmra.mxu0 %v183
    %v7593 = vpop.f32.mrf.mxu0
    %v7594 = vadd.f32 %v7580, %v7593
    %v7595 = vpop.f32.mrf.mxu0
    %v7596 = vadd.f32 %v7582, %v7595
    %7597 = vdwg.mxu0
    %7598 = vmatpush.bf16.msra.mxu0 %v6597
    %7599 = vmatpush.bf16.msra.mxu0 %v6589
    %7600 = vmatpush.bf16.msra.mxu0 %v6581
    %7601 = vmatpush.bf16.msra.mxu0 %v6573
    %7602 = vmatpush.bf16.msra.mxu0 %v6565
    %7603 = vmatpush.bf16.msra.mxu0 %v6557
    %7604 = vmatpush.bf16.msra.mxu0 %v6549
    %7605 = vmatpush.bf16.msra.mxu0 %v6541
    %7606 = vmatmul.bf16.gmra.mxu0 %v184
    %v7607 = vpop.f32.mrf.mxu0
    %v7608 = vadd.f32 %v7594, %v7607
    %v7609 = vpop.f32.mrf.mxu0
    %v7610 = vadd.f32 %v7596, %v7609
    %7611 = vdwg.mxu0
    %7612 = vmatpush.bf16.msra.mxu0 %v6661
    %7613 = vmatpush.bf16.msra.mxu0 %v6653
    %7614 = vmatpush.bf16.msra.mxu0 %v6645
    %7615 = vmatpush.bf16.msra.mxu0 %v6637
    %7616 = vmatpush.bf16.msra.mxu0 %v6629
    %7617 = vmatpush.bf16.msra.mxu0 %v6621
    %7618 = vmatpush.bf16.msra.mxu0 %v6613
    %7619 = vmatpush.bf16.msra.mxu0 %v6605
    %7620 = vmatmul.bf16.gmra.mxu0 %v185
    %v7621 = vpop.f32.mrf.mxu0
    %v7622 = vadd.f32 %v7608, %v7621
    %v7623 = vpop.f32.mrf.mxu0
    %v7624 = vadd.f32 %v7610, %v7623
    %7625 = vdwg.mxu0
    %7626 = vmatpush.bf16.msra.mxu0 %v6214
    %7627 = vmatpush.bf16.msra.mxu0 %v6206
    %7628 = vmatpush.bf16.msra.mxu0 %v6198
    %7629 = vmatpush.bf16.msra.mxu0 %v6190
    %7630 = vmatpush.bf16.msra.mxu0 %v6182
    %7631 = vmatpush.bf16.msra.mxu0 %v6174
    %7632 = vmatpush.bf16.msra.mxu0 %v6166
    %7633 = vmatpush.bf16.msra.mxu0 %v6158
    %7634 = vmatmul.bf16.gmra.mxu0 %v178
    %v7635 = vpop.f32.mrf.mxu0
    %v7636 = vadd.f32 0.0, %v7635
    %v7637 = vpop.f32.mrf.mxu0
    %v7638 = vadd.f32 0.0, %v7637
    %7639 = vdwg.mxu0
    %7640 = vmatpush.bf16.msra.mxu0 %v6278
    %7641 = vmatpush.bf16.msra.mxu0 %v6270
    %7642 = vmatpush.bf16.msra.mxu0 %v6262
    %7643 = vmatpush.bf16.msra.mxu0 %v6254
    %7644 = vmatpush.bf16.msra.mxu0 %v6246
    %7645 = vmatpush.bf16.msra.mxu0 %v6238
    %7646 = vmatpush.bf16.msra.mxu0 %v6230
    %7647 = vmatpush.bf16.msra.mxu0 %v6222
    %7648 = vmatmul.bf16.gmra.mxu0 %v179
    %v7649 = vpop.f32.mrf.mxu0
    %v7650 = vadd.f32 %v7636, %v7649
    %v7651 = vpop.f32.mrf.mxu0
    %v7652 = vadd.f32 %v7638, %v7651
    %7653 = vdwg.mxu0
    %7654 = vmatpush.bf16.msra.mxu0 %v6342
    %7655 = vmatpush.bf16.msra.mxu0 %v6334
    %7656 = vmatpush.bf16.msra.mxu0 %v6326
    %7657 = vmatpush.bf16.msra.mxu0 %v6318
    %7658 = vmatpush.bf16.msra.mxu0 %v6310
    %7659 = vmatpush.bf16.msra.mxu0 %v6302
    %7660 = vmatpush.bf16.msra.mxu0 %v6294
    %7661 = vmatpush.bf16.msra.mxu0 %v6286
    %7662 = vmatmul.bf16.gmra.mxu0 %v180
    %v7663 = vpop.f32.mrf.mxu0
    %v7664 = vadd.f32 %v7650, %v7663
    %v7665 = vpop.f32.mrf.mxu0
    %v7666 = vadd.f32 %v7652, %v7665
    %7667 = vdwg.mxu0
    %7668 = vmatpush.bf16.msra.mxu0 %v6406
    %7669 = vmatpush.bf16.msra.mxu0 %v6398
    %7670 = vmatpush.bf16.msra.mxu0 %v6390
    %7671 = vmatpush.bf16.msra.mxu0 %v6382
    %7672 = vmatpush.bf16.msra.mxu0 %v6374
    %7673 = vmatpush.bf16.msra.mxu0 %v6366
    %7674 = vmatpush.bf16.msra.mxu0 %v6358
    %7675 = vmatpush.bf16.msra.mxu0 %v6350
    %7676 = vmatmul.bf16.gmra.mxu0 %v181
    %v7677 = vpop.f32.mrf.mxu0
    %v7678 = vadd.f32 %v7664, %v7677
    %v7679 = vpop.f32.mrf.mxu0
    %v7680 = vadd.f32 %v7666, %v7679
    %7681 = vdwg.mxu0
    %7682 = vmatpush.bf16.msra.mxu0 %v6470
    %7683 = vmatpush.bf16.msra.mxu0 %v6462
    %7684 = vmatpush.bf16.msra.mxu0 %v6454
    %7685 = vmatpush.bf16.msra.mxu0 %v6446
    %7686 = vmatpush.bf16.msra.mxu0 %v6438
    %7687 = vmatpush.bf16.msra.mxu0 %v6430
    %7688 = vmatpush.bf16.msra.mxu0 %v6422
    %7689 = vmatpush.bf16.msra.mxu0 %v6414
    %7690 = vmatmul.bf16.gmra.mxu0 %v182
    %v7691 = vpop.f32.mrf.mxu0
    %v7692 = vadd.f32 %v7678, %v7691
    %v7693 = vpop.f32.mrf.mxu0
    %v7694 = vadd.f32 %v7680, %v7693
    %7695 = vdwg.mxu0
    %7696 = vmatpush.bf16.msra.mxu0 %v6534
    %7697 = vmatpush.bf16.msra.mxu0 %v6526
    %7698 = vmatpush.bf16.msra.mxu0 %v6518
    %7699 = vmatpush.bf16.msra.mxu0 %v6510
    %7700 = vmatpush.bf16.msra.mxu0 %v6502
    %7701 = vmatpush.bf16.msra.mxu0 %v6494
    %7702 = vmatpush.bf16.msra.mxu0 %v6486
    %7703 = vmatpush.bf16.msra.mxu0 %v6478
    %7704 = vmatmul.bf16.gmra.mxu0 %v183
    %v7705 = vpop.f32.mrf.mxu0
    %v7706 = vadd.f32 %v7692, %v7705
    %v7707 = vpop.f32.mrf.mxu0
    %v7708 = vadd.f32 %v7694, %v7707
    %7709 = vdwg.mxu0
    %7710 = vmatpush.bf16.msra.mxu0 %v6598
    %7711 = vmatpush.bf16.msra.mxu0 %v6590
    %7712 = vmatpush.bf16.msra.mxu0 %v6582
    %7713 = vmatpush.bf16.msra.mxu0 %v6574
    %7714 = vmatpush.bf16.msra.mxu0 %v6566
    %7715 = vmatpush.bf16.msra.mxu0 %v6558
    %7716 = vmatpush.bf16.msra.mxu0 %v6550
    %7717 = vmatpush.bf16.msra.mxu0 %v6542
    %7718 = vmatmul.bf16.gmra.mxu0 %v184
    %v7719 = vpop.f32.mrf.mxu0
    %v7720 = vadd.f32 %v7706, %v7719
    %v7721 = vpop.f32.mrf.mxu0
    %v7722 = vadd.f32 %v7708, %v7721
    %7723 = vdwg.mxu0
    %7724 = vmatpush.bf16.msra.mxu0 %v6662
    %7725 = vmatpush.bf16.msra.mxu0 %v6654
    %7726 = vmatpush.bf16.msra.mxu0 %v6646
    %7727 = vmatpush.bf16.msra.mxu0 %v6638
    %7728 = vmatpush.bf16.msra.mxu0 %v6630
    %7729 = vmatpush.bf16.msra.mxu0 %v6622
    %7730 = vmatpush.bf16.msra.mxu0 %v6614
    %7731 = vmatpush.bf16.msra.mxu0 %v6606
    %7732 = vmatmul.bf16.gmra.mxu0 %v185
    %v7733 = vpop.f32.mrf.mxu0
    %v7734 = vadd.f32 %v7720, %v7733
    %v7735 = vpop.f32.mrf.mxu0
    %v7736 = vadd.f32 %v7722, %v7735
    %7737 = vdwg.mxu0
    %7738 = vmatpush.bf16.msra.mxu0 %v6215
    %7739 = vmatpush.bf16.msra.mxu0 %v6207
    %7740 = vmatpush.bf16.msra.mxu0 %v6199
    %7741 = vmatpush.bf16.msra.mxu0 %v6191
    %7742 = vmatpush.bf16.msra.mxu0 %v6183
    %7743 = vmatpush.bf16.msra.mxu0 %v6175
    %7744 = vmatpush.bf16.msra.mxu0 %v6167
    %7745 = vmatpush.bf16.msra.mxu0 %v6159
    %7746 = vmatmul.bf16.gmra.mxu0 %v178
    %v7747 = vpop.f32.mrf.mxu0
    %v7748 = vadd.f32 0.0, %v7747
    %v7749 = vpop.f32.mrf.mxu0
    %v7750 = vadd.f32 0.0, %v7749
    %7751 = vdwg.mxu0
    %7752 = vmatpush.bf16.msra.mxu0 %v6279
    %7753 = vmatpush.bf16.msra.mxu0 %v6271
    %7754 = vmatpush.bf16.msra.mxu0 %v6263
    %7755 = vmatpush.bf16.msra.mxu0 %v6255
    %7756 = vmatpush.bf16.msra.mxu0 %v6247
    %7757 = vmatpush.bf16.msra.mxu0 %v6239
    %7758 = vmatpush.bf16.msra.mxu0 %v6231
    %7759 = vmatpush.bf16.msra.mxu0 %v6223
    %7760 = vmatmul.bf16.gmra.mxu0 %v179
    %v7761 = vpop.f32.mrf.mxu0
    %v7762 = vadd.f32 %v7748, %v7761
    %v7763 = vpop.f32.mrf.mxu0
    %v7764 = vadd.f32 %v7750, %v7763
    %7765 = vdwg.mxu0
    %7766 = vmatpush.bf16.msra.mxu0 %v6343
    %7767 = vmatpush.bf16.msra.mxu0 %v6335
    %7768 = vmatpush.bf16.msra.mxu0 %v6327
    %7769 = vmatpush.bf16.msra.mxu0 %v6319
    %7770 = vmatpush.bf16.msra.mxu0 %v6311
    %7771 = vmatpush.bf16.msra.mxu0 %v6303
    %7772 = vmatpush.bf16.msra.mxu0 %v6295
    %7773 = vmatpush.bf16.msra.mxu0 %v6287
    %7774 = vmatmul.bf16.gmra.mxu0 %v180
    %v7775 = vpop.f32.mrf.mxu0
    %v7776 = vadd.f32 %v7762, %v7775
    %v7777 = vpop.f32.mrf.mxu0
    %v7778 = vadd.f32 %v7764, %v7777
    %7779 = vdwg.mxu0
    %7780 = vmatpush.bf16.msra.mxu0 %v6407
    %7781 = vmatpush.bf16.msra.mxu0 %v6399
    %7782 = vmatpush.bf16.msra.mxu0 %v6391
    %7783 = vmatpush.bf16.msra.mxu0 %v6383
    %7784 = vmatpush.bf16.msra.mxu0 %v6375
    %7785 = vmatpush.bf16.msra.mxu0 %v6367
    %7786 = vmatpush.bf16.msra.mxu0 %v6359
    %7787 = vmatpush.bf16.msra.mxu0 %v6351
    %7788 = vmatmul.bf16.gmra.mxu0 %v181
    %v7789 = vpop.f32.mrf.mxu0
    %v7790 = vadd.f32 %v7776, %v7789
    %v7791 = vpop.f32.mrf.mxu0
    %v7792 = vadd.f32 %v7778, %v7791
    %7793 = vdwg.mxu0
    %7794 = vmatpush.bf16.msra.mxu0 %v6471
    %7795 = vmatpush.bf16.msra.mxu0 %v6463
    %7796 = vmatpush.bf16.msra.mxu0 %v6455
    %7797 = vmatpush.bf16.msra.mxu0 %v6447
    %7798 = vmatpush.bf16.msra.mxu0 %v6439
    %7799 = vmatpush.bf16.msra.mxu0 %v6431
    %7800 = vmatpush.bf16.msra.mxu0 %v6423
    %7801 = vmatpush.bf16.msra.mxu0 %v6415
    %7802 = vmatmul.bf16.gmra.mxu0 %v182
    %v7803 = vpop.f32.mrf.mxu0
    %v7804 = vadd.f32 %v7790, %v7803
    %v7805 = vpop.f32.mrf.mxu0
    %v7806 = vadd.f32 %v7792, %v7805
    %7807 = vdwg.mxu0
    %7808 = vmatpush.bf16.msra.mxu0 %v6535
    %7809 = vmatpush.bf16.msra.mxu0 %v6527
    %7810 = vmatpush.bf16.msra.mxu0 %v6519
    %7811 = vmatpush.bf16.msra.mxu0 %v6511
    %7812 = vmatpush.bf16.msra.mxu0 %v6503
    %7813 = vmatpush.bf16.msra.mxu0 %v6495
    %7814 = vmatpush.bf16.msra.mxu0 %v6487
    %7815 = vmatpush.bf16.msra.mxu0 %v6479
    %7816 = vmatmul.bf16.gmra.mxu0 %v183
    %v7817 = vpop.f32.mrf.mxu0
    %v7818 = vadd.f32 %v7804, %v7817
    %v7819 = vpop.f32.mrf.mxu0
    %v7820 = vadd.f32 %v7806, %v7819
    %7821 = vdwg.mxu0
    %7822 = vmatpush.bf16.msra.mxu0 %v6599
    %7823 = vmatpush.bf16.msra.mxu0 %v6591
    %7824 = vmatpush.bf16.msra.mxu0 %v6583
    %7825 = vmatpush.bf16.msra.mxu0 %v6575
    %7826 = vmatpush.bf16.msra.mxu0 %v6567
    %7827 = vmatpush.bf16.msra.mxu0 %v6559
    %7828 = vmatpush.bf16.msra.mxu0 %v6551
    %7829 = vmatpush.bf16.msra.mxu0 %v6543
    %7830 = vmatmul.bf16.gmra.mxu0 %v184
    %v7831 = vpop.f32.mrf.mxu0
    %v7832 = vadd.f32 %v7818, %v7831
    %v7833 = vpop.f32.mrf.mxu0
    %v7834 = vadd.f32 %v7820, %v7833
    %7835 = vdwg.mxu0
    %7836 = vmatpush.bf16.msra.mxu0 %v6663
    %7837 = vmatpush.bf16.msra.mxu0 %v6655
    %7838 = vmatpush.bf16.msra.mxu0 %v6647
    %7839 = vmatpush.bf16.msra.mxu0 %v6639
    %7840 = vmatpush.bf16.msra.mxu0 %v6631
    %7841 = vmatpush.bf16.msra.mxu0 %v6623
    %7842 = vmatpush.bf16.msra.mxu0 %v6615
    %7843 = vmatpush.bf16.msra.mxu0 %v6607
    %7844 = vmatmul.bf16.gmra.mxu0 %v185
    %v7845 = vpop.f32.mrf.mxu0
    %v7846 = vadd.f32 %v7832, %v7845
    %v7847 = vpop.f32.mrf.mxu0
    %v7848 = vadd.f32 %v7834, %v7847
    %7849 = vdwg.mxu0
    %7850 = vmatpush.bf16.msra.mxu0 %v6216
    %7851 = vmatpush.bf16.msra.mxu0 %v6208
    %7852 = vmatpush.bf16.msra.mxu0 %v6200
    %7853 = vmatpush.bf16.msra.mxu0 %v6192
    %7854 = vmatpush.bf16.msra.mxu0 %v6184
    %7855 = vmatpush.bf16.msra.mxu0 %v6176
    %7856 = vmatpush.bf16.msra.mxu0 %v6168
    %7857 = vmatpush.bf16.msra.mxu0 %v6160
    %7858 = vmatmul.bf16.gmra.mxu0 %v178
    %v7859 = vpop.f32.mrf.mxu0
    %v7860 = vadd.f32 0.0, %v7859
    %v7861 = vpop.f32.mrf.mxu0
    %v7862 = vadd.f32 0.0, %v7861
    %7863 = vdwg.mxu0
    %7864 = vmatpush.bf16.msra.mxu0 %v6280
    %7865 = vmatpush.bf16.msra.mxu0 %v6272
    %7866 = vmatpush.bf16.msra.mxu0 %v6264
    %7867 = vmatpush.bf16.msra.mxu0 %v6256
    %7868 = vmatpush.bf16.msra.mxu0 %v6248
    %7869 = vmatpush.bf16.msra.mxu0 %v6240
    %7870 = vmatpush.bf16.msra.mxu0 %v6232
    %7871 = vmatpush.bf16.msra.mxu0 %v6224
    %7872 = vmatmul.bf16.gmra.mxu0 %v179
    %v7873 = vpop.f32.mrf.mxu0
    %v7874 = vadd.f32 %v7860, %v7873
    %v7875 = vpop.f32.mrf.mxu0
    %v7876 = vadd.f32 %v7862, %v7875
    %7877 = vdwg.mxu0
    %7878 = vmatpush.bf16.msra.mxu0 %v6344
    %7879 = vmatpush.bf16.msra.mxu0 %v6336
    %7880 = vmatpush.bf16.msra.mxu0 %v6328
    %7881 = vmatpush.bf16.msra.mxu0 %v6320
    %7882 = vmatpush.bf16.msra.mxu0 %v6312
    %7883 = vmatpush.bf16.msra.mxu0 %v6304
    %7884 = vmatpush.bf16.msra.mxu0 %v6296
    %7885 = vmatpush.bf16.msra.mxu0 %v6288
    %7886 = vmatmul.bf16.gmra.mxu0 %v180
    %v7887 = vpop.f32.mrf.mxu0
    %v7888 = vadd.f32 %v7874, %v7887
    %v7889 = vpop.f32.mrf.mxu0
    %v7890 = vadd.f32 %v7876, %v7889
    %7891 = vdwg.mxu0
    %7892 = vmatpush.bf16.msra.mxu0 %v6408
    %7893 = vmatpush.bf16.msra.mxu0 %v6400
    %7894 = vmatpush.bf16.msra.mxu0 %v6392
    %7895 = vmatpush.bf16.msra.mxu0 %v6384
    %7896 = vmatpush.bf16.msra.mxu0 %v6376
    %7897 = vmatpush.bf16.msra.mxu0 %v6368
    %7898 = vmatpush.bf16.msra.mxu0 %v6360
    %7899 = vmatpush.bf16.msra.mxu0 %v6352
    %7900 = vmatmul.bf16.gmra.mxu0 %v181
    %v7901 = vpop.f32.mrf.mxu0
    %v7902 = vadd.f32 %v7888, %v7901
    %v7903 = vpop.f32.mrf.mxu0
    %v7904 = vadd.f32 %v7890, %v7903
    %7905 = vdwg.mxu0
    %7906 = vmatpush.bf16.msra.mxu0 %v6472
    %7907 = vmatpush.bf16.msra.mxu0 %v6464
    %7908 = vmatpush.bf16.msra.mxu0 %v6456
    %7909 = vmatpush.bf16.msra.mxu0 %v6448
    %7910 = vmatpush.bf16.msra.mxu0 %v6440
    %7911 = vmatpush.bf16.msra.mxu0 %v6432
    %7912 = vmatpush.bf16.msra.mxu0 %v6424
    %7913 = vmatpush.bf16.msra.mxu0 %v6416
    %7914 = vmatmul.bf16.gmra.mxu0 %v182
    %v7915 = vpop.f32.mrf.mxu0
    %v7916 = vadd.f32 %v7902, %v7915
    %v7917 = vpop.f32.mrf.mxu0
    %v7918 = vadd.f32 %v7904, %v7917
    %7919 = vdwg.mxu0
    %7920 = vmatpush.bf16.msra.mxu0 %v6536
    %7921 = vmatpush.bf16.msra.mxu0 %v6528
    %7922 = vmatpush.bf16.msra.mxu0 %v6520
    %7923 = vmatpush.bf16.msra.mxu0 %v6512
    %7924 = vmatpush.bf16.msra.mxu0 %v6504
    %7925 = vmatpush.bf16.msra.mxu0 %v6496
    %7926 = vmatpush.bf16.msra.mxu0 %v6488
    %7927 = vmatpush.bf16.msra.mxu0 %v6480
    %7928 = vmatmul.bf16.gmra.mxu0 %v183
    %v7929 = vpop.f32.mrf.mxu0
    %v7930 = vadd.f32 %v7916, %v7929
    %v7931 = vpop.f32.mrf.mxu0
    %v7932 = vadd.f32 %v7918, %v7931
    %7933 = vdwg.mxu0
    %7934 = vmatpush.bf16.msra.mxu0 %v6600
    %7935 = vmatpush.bf16.msra.mxu0 %v6592
    %7936 = vmatpush.bf16.msra.mxu0 %v6584
    %7937 = vmatpush.bf16.msra.mxu0 %v6576
    %7938 = vmatpush.bf16.msra.mxu0 %v6568
    %7939 = vmatpush.bf16.msra.mxu0 %v6560
    %7940 = vmatpush.bf16.msra.mxu0 %v6552
    %7941 = vmatpush.bf16.msra.mxu0 %v6544
    %7942 = vmatmul.bf16.gmra.mxu0 %v184
    %v7943 = vpop.f32.mrf.mxu0
    %v7944 = vadd.f32 %v7930, %v7943
    %v7945 = vpop.f32.mrf.mxu0
    %v7946 = vadd.f32 %v7932, %v7945
    %7947 = vdwg.mxu0
    %7948 = vmatpush.bf16.msra.mxu0 %v6664
    %7949 = vmatpush.bf16.msra.mxu0 %v6656
    %7950 = vmatpush.bf16.msra.mxu0 %v6648
    %7951 = vmatpush.bf16.msra.mxu0 %v6640
    %7952 = vmatpush.bf16.msra.mxu0 %v6632
    %7953 = vmatpush.bf16.msra.mxu0 %v6624
    %7954 = vmatpush.bf16.msra.mxu0 %v6616
    %7955 = vmatpush.bf16.msra.mxu0 %v6608
    %7956 = vmatmul.bf16.gmra.mxu0 %v185
    %v7957 = vpop.f32.mrf.mxu0
    %v7958 = vadd.f32 %v7944, %v7957
    %v7959 = vpop.f32.mrf.mxu0
    %v7960 = vadd.f32 %v7946, %v7959
    %7961 = vdwg.mxu0
    %7962 = vmatpush.bf16.msra.mxu0 %v6217
    %7963 = vmatpush.bf16.msra.mxu0 %v6209
    %7964 = vmatpush.bf16.msra.mxu0 %v6201
    %7965 = vmatpush.bf16.msra.mxu0 %v6193
    %7966 = vmatpush.bf16.msra.mxu0 %v6185
    %7967 = vmatpush.bf16.msra.mxu0 %v6177
    %7968 = vmatpush.bf16.msra.mxu0 %v6169
    %7969 = vmatpush.bf16.msra.mxu0 %v6161
    %7970 = vmatmul.bf16.gmra.mxu0 %v178
    %v7971 = vpop.f32.mrf.mxu0
    %v7972 = vadd.f32 0.0, %v7971
    %v7973 = vpop.f32.mrf.mxu0
    %v7974 = vadd.f32 0.0, %v7973
    %7975 = vdwg.mxu0
    %7976 = vmatpush.bf16.msra.mxu0 %v6281
    %7977 = vmatpush.bf16.msra.mxu0 %v6273
    %7978 = vmatpush.bf16.msra.mxu0 %v6265
    %7979 = vmatpush.bf16.msra.mxu0 %v6257
    %7980 = vmatpush.bf16.msra.mxu0 %v6249
    %7981 = vmatpush.bf16.msra.mxu0 %v6241
    %7982 = vmatpush.bf16.msra.mxu0 %v6233
    %7983 = vmatpush.bf16.msra.mxu0 %v6225
    %7984 = vmatmul.bf16.gmra.mxu0 %v179
    %v7985 = vpop.f32.mrf.mxu0
    %v7986 = vadd.f32 %v7972, %v7985
    %v7987 = vpop.f32.mrf.mxu0
    %v7988 = vadd.f32 %v7974, %v7987
    %7989 = vdwg.mxu0
    %7990 = vmatpush.bf16.msra.mxu0 %v6345
    %7991 = vmatpush.bf16.msra.mxu0 %v6337
    %7992 = vmatpush.bf16.msra.mxu0 %v6329
    %7993 = vmatpush.bf16.msra.mxu0 %v6321
    %7994 = vmatpush.bf16.msra.mxu0 %v6313
    %7995 = vmatpush.bf16.msra.mxu0 %v6305
    %7996 = vmatpush.bf16.msra.mxu0 %v6297
    %7997 = vmatpush.bf16.msra.mxu0 %v6289
    %7998 = vmatmul.bf16.gmra.mxu0 %v180
    %v7999 = vpop.f32.mrf.mxu0
    %v8000 = vadd.f32 %v7986, %v7999
    %v8001 = vpop.f32.mrf.mxu0
    %v8002 = vadd.f32 %v7988, %v8001
    %8003 = vdwg.mxu0
    %8004 = vmatpush.bf16.msra.mxu0 %v6409
    %8005 = vmatpush.bf16.msra.mxu0 %v6401
    %8006 = vmatpush.bf16.msra.mxu0 %v6393
    %8007 = vmatpush.bf16.msra.mxu0 %v6385
    %8008 = vmatpush.bf16.msra.mxu0 %v6377
    %8009 = vmatpush.bf16.msra.mxu0 %v6369
    %8010 = vmatpush.bf16.msra.mxu0 %v6361
    %8011 = vmatpush.bf16.msra.mxu0 %v6353
    %8012 = vmatmul.bf16.gmra.mxu0 %v181
    %v8013 = vpop.f32.mrf.mxu0
    %v8014 = vadd.f32 %v8000, %v8013
    %v8015 = vpop.f32.mrf.mxu0
    %v8016 = vadd.f32 %v8002, %v8015
    %8017 = vdwg.mxu0
    %8018 = vmatpush.bf16.msra.mxu0 %v6473
    %8019 = vmatpush.bf16.msra.mxu0 %v6465
    %8020 = vmatpush.bf16.msra.mxu0 %v6457
    %8021 = vmatpush.bf16.msra.mxu0 %v6449
    %8022 = vmatpush.bf16.msra.mxu0 %v6441
    %8023 = vmatpush.bf16.msra.mxu0 %v6433
    %8024 = vmatpush.bf16.msra.mxu0 %v6425
    %8025 = vmatpush.bf16.msra.mxu0 %v6417
    %8026 = vmatmul.bf16.gmra.mxu0 %v182
    %v8027 = vpop.f32.mrf.mxu0
    %v8028 = vadd.f32 %v8014, %v8027
    %v8029 = vpop.f32.mrf.mxu0
    %v8030 = vadd.f32 %v8016, %v8029
    %8031 = vdwg.mxu0
    %8032 = vmatpush.bf16.msra.mxu0 %v6537
    %8033 = vmatpush.bf16.msra.mxu0 %v6529
    %8034 = vmatpush.bf16.msra.mxu0 %v6521
    %8035 = vmatpush.bf16.msra.mxu0 %v6513
    %8036 = vmatpush.bf16.msra.mxu0 %v6505
    %8037 = vmatpush.bf16.msra.mxu0 %v6497
    %8038 = vmatpush.bf16.msra.mxu0 %v6489
    %8039 = vmatpush.bf16.msra.mxu0 %v6481
    %8040 = vmatmul.bf16.gmra.mxu0 %v183
    %v8041 = vpop.f32.mrf.mxu0
    %v8042 = vadd.f32 %v8028, %v8041
    %v8043 = vpop.f32.mrf.mxu0
    %v8044 = vadd.f32 %v8030, %v8043
    %8045 = vdwg.mxu0
    %8046 = vmatpush.bf16.msra.mxu0 %v6601
    %8047 = vmatpush.bf16.msra.mxu0 %v6593
    %8048 = vmatpush.bf16.msra.mxu0 %v6585
    %8049 = vmatpush.bf16.msra.mxu0 %v6577
    %8050 = vmatpush.bf16.msra.mxu0 %v6569
    %8051 = vmatpush.bf16.msra.mxu0 %v6561
    %8052 = vmatpush.bf16.msra.mxu0 %v6553
    %8053 = vmatpush.bf16.msra.mxu0 %v6545
    %8054 = vmatmul.bf16.gmra.mxu0 %v184
    %v8055 = vpop.f32.mrf.mxu0
    %v8056 = vadd.f32 %v8042, %v8055
    %v8057 = vpop.f32.mrf.mxu0
    %v8058 = vadd.f32 %v8044, %v8057
    %8059 = vdwg.mxu0
    %8060 = vmatpush.bf16.msra.mxu0 %v6665
    %8061 = vmatpush.bf16.msra.mxu0 %v6657
    %8062 = vmatpush.bf16.msra.mxu0 %v6649
    %8063 = vmatpush.bf16.msra.mxu0 %v6641
    %8064 = vmatpush.bf16.msra.mxu0 %v6633
    %8065 = vmatpush.bf16.msra.mxu0 %v6625
    %8066 = vmatpush.bf16.msra.mxu0 %v6617
    %8067 = vmatpush.bf16.msra.mxu0 %v6609
    %8068 = vmatmul.bf16.gmra.mxu0 %v185
    %v8069 = vpop.f32.mrf.mxu0
    %v8070 = vadd.f32 %v8056, %v8069
    %v8071 = vpop.f32.mrf.mxu0
    %v8072 = vadd.f32 %v8058, %v8071
    %8073 = vdwg.mxu0
    %v8074 = vadd.f32 %v3375, %v7286
    %v8075 = vadd.f32 %v3479, %v7398
    %v8076 = vadd.f32 %v3583, %v7510
    %v8077 = vadd.f32 %v3687, %v7622
    %v8078 = vadd.f32 %v3791, %v7734
    %v8079 = vadd.f32 %v3895, %v7846
    %v8080 = vadd.f32 %v3999, %v7958
    %v8081 = vadd.f32 %v4103, %v8070
    %v8082 = vadd.f32 %v3375, %v7288
    %v8083 = vadd.f32 %v3479, %v7400
    %v8084 = vadd.f32 %v3583, %v7512
    %v8085 = vadd.f32 %v3687, %v7624
    %v8086 = vadd.f32 %v3791, %v7736
    %v8087 = vadd.f32 %v3895, %v7848
    %v8088 = vadd.f32 %v3999, %v7960
    %v8089 = vadd.f32 %v4103, %v8072
    %v8090 = vld [vmem:[#allocation14] sm:$0xff]
    %v8092 = vperm.slane %v8090, 0
    %v8093 = vperm.slane %v8090, 1
    %v8094 = vperm.slane %v8090, 2
    %v8095 = vperm.slane %v8090, 3
    %v8096 = vperm.slane %v8090, 4
    %v8097 = vperm.slane %v8090, 5
    %v8098 = vperm.slane %v8090, 6
    %v8099 = vperm.slane %v8090, 7
    %v8108 = vadd.f32 %v8074, %v8092
    %v8109 = vadd.f32 %v8075, %v8093
    %v8110 = vadd.f32 %v8076, %v8094
    %v8111 = vadd.f32 %v8077, %v8095
    %v8112 = vadd.f32 %v8078, %v8096
    %v8113 = vadd.f32 %v8079, %v8097
    %v8114 = vadd.f32 %v8080, %v8098
    %v8115 = vadd.f32 %v8081, %v8099
    %v8116 = vadd.f32 %v8082, %v8092
    %v8117 = vadd.f32 %v8083, %v8093
    %v8118 = vadd.f32 %v8084, %v8094
    %v8119 = vadd.f32 %v8085, %v8095
    %v8120 = vadd.f32 %v8086, %v8096
    %v8121 = vadd.f32 %v8087, %v8097
    %v8122 = vadd.f32 %v8088, %v8098
    %v8123 = vadd.f32 %v8089, %v8099
    %vm8124 = vcmp.gt.f32.partialorder %v8108, 0.0
    %vm8125 = vcmp.gt.f32.partialorder %v8109, 0.0
    %vm8126 = vcmp.gt.f32.partialorder %v8110, 0.0
    %vm8127 = vcmp.gt.f32.partialorder %v8111, 0.0
    %vm8128 = vcmp.gt.f32.partialorder %v8112, 0.0
    %vm8129 = vcmp.gt.f32.partialorder %v8113, 0.0
    %vm8130 = vcmp.gt.f32.partialorder %v8114, 0.0
    %vm8131 = vcmp.gt.f32.partialorder %v8115, 0.0
    %vm8132 = vcmp.gt.f32.partialorder %v8116, 0.0
    %vm8133 = vcmp.gt.f32.partialorder %v8117, 0.0
    %vm8134 = vcmp.gt.f32.partialorder %v8118, 0.0
    %vm8135 = vcmp.gt.f32.partialorder %v8119, 0.0
    %vm8136 = vcmp.gt.f32.partialorder %v8120, 0.0
    %vm8137 = vcmp.gt.f32.partialorder %v8121, 0.0
    %vm8138 = vcmp.gt.f32.partialorder %v8122, 0.0
    %vm8139 = vcmp.gt.f32.partialorder %v8123, 0.0
    %v8140 = vmin.f32 %v8108, 0.0
    %v8141 = vmin.f32 %v8109, 0.0
    %v8142 = vmin.f32 %v8110, 0.0
    %v8143 = vmin.f32 %v8111, 0.0
    %v8144 = vmin.f32 %v8112, 0.0
    %v8145 = vmin.f32 %v8113, 0.0
    %v8146 = vmin.f32 %v8114, 0.0
    %v8147 = vmin.f32 %v8115, 0.0
    %v8148 = vmin.f32 %v8116, 0.0
    %v8149 = vmin.f32 %v8117, 0.0
    %v8150 = vmin.f32 %v8118, 0.0
    %v8151 = vmin.f32 %v8119, 0.0
    %v8152 = vmin.f32 %v8120, 0.0
    %v8153 = vmin.f32 %v8121, 0.0
    %v8154 = vmin.f32 %v8122, 0.0
    %v8155 = vmin.f32 %v8123, 0.0
    %v8156 = vmul.f32 %v8140, 1.442695
    %v8157 = vpow.pop %v8156
    %v8158 = vmul.f32 %v8141, 1.442695
    %v8159 = vpow.pop %v8158
    %v8160 = vmul.f32 %v8142, 1.442695
    %v8161 = vpow.pop %v8160
    %v8162 = vmul.f32 %v8143, 1.442695
    %v8163 = vpow.pop %v8162
    %v8164 = vmul.f32 %v8144, 1.442695
    %v8165 = vpow.pop %v8164
    %v8166 = vmul.f32 %v8145, 1.442695
    %v8167 = vpow.pop %v8166
    %v8168 = vmul.f32 %v8146, 1.442695
    %v8169 = vpow.pop %v8168
    %v8170 = vmul.f32 %v8147, 1.442695
    %v8171 = vpow.pop %v8170
    %v8172 = vmul.f32 %v8148, 1.442695
    %v8173 = vpow.pop %v8172
    %v8174 = vmul.f32 %v8149, 1.442695
    %v8175 = vpow.pop %v8174
    %v8176 = vmul.f32 %v8150, 1.442695
    %v8177 = vpow.pop %v8176
    %v8178 = vmul.f32 %v8151, 1.442695
    %v8179 = vpow.pop %v8178
    %v8180 = vmul.f32 %v8152, 1.442695
    %v8181 = vpow.pop %v8180
    %v8182 = vmul.f32 %v8153, 1.442695
    %v8183 = vpow.pop %v8182
    %v8184 = vmul.f32 %v8154, 1.442695
    %v8185 = vpow.pop %v8184
    %v8186 = vmul.f32 %v8155, 1.442695
    %v8187 = vpow.pop %v8186
    %v8188 = vsub.f32 %v8157, 1.0
    %v8189 = vsub.f32 %v8159, 1.0
    %v8190 = vsub.f32 %v8161, 1.0
    %v8191 = vsub.f32 %v8163, 1.0
    %v8192 = vsub.f32 %v8165, 1.0
    %v8193 = vsub.f32 %v8167, 1.0
    %v8194 = vsub.f32 %v8169, 1.0
    %v8195 = vsub.f32 %v8171, 1.0
    %v8196 = vsub.f32 %v8173, 1.0
    %v8197 = vsub.f32 %v8175, 1.0
    %v8198 = vsub.f32 %v8177, 1.0
    %v8199 = vsub.f32 %v8179, 1.0
    %v8200 = vsub.f32 %v8181, 1.0
    %v8201 = vsub.f32 %v8183, 1.0
    %v8202 = vsub.f32 %v8185, 1.0
    %v8203 = vsub.f32 %v8187, 1.0
    %v8204 = vsel %vm8124, %v8108, %v8188
    %v8205 = vsel %vm8125, %v8109, %v8189
    %v8206 = vsel %vm8126, %v8110, %v8190
    %v8207 = vsel %vm8127, %v8111, %v8191
    %v8208 = vsel %vm8128, %v8112, %v8192
    %v8209 = vsel %vm8129, %v8113, %v8193
    %v8210 = vsel %vm8130, %v8114, %v8194
    %v8211 = vsel %vm8131, %v8115, %v8195
    %v8212 = vsel %vm8132, %v8116, %v8196
    %v8213 = vsel %vm8133, %v8117, %v8197
    %v8214 = vsel %vm8134, %v8118, %v8198
    %v8215 = vsel %vm8135, %v8119, %v8199
    %v8216 = vsel %vm8136, %v8120, %v8200
    %v8217 = vsel %vm8137, %v8121, %v8201
    %v8218 = vsel %vm8138, %v8122, %v8202
    %v8219 = vsel %vm8139, %v8123, %v8203
    %s8220 = smul.u32 4, 128
    %s8221 = smul.u32 %s8220, 8
    %s8222 = sshll.u32 %s8221, 4
    %8223 = dma.done [#allocation3], %s8222
    %v8224 = vpack.c.bf16 %v8212, %v8204
    %v8225 = vpack.c.bf16 %v8213, %v8205
    %v8226 = vpack.c.bf16 %v8214, %v8206
    %v8227 = vpack.c.bf16 %v8215, %v8207
    %v8228 = vpack.c.bf16 %v8216, %v8208
    %v8229 = vpack.c.bf16 %v8217, %v8209
    %v8230 = vpack.c.bf16 %v8218, %v8210
    %v8231 = vpack.c.bf16 %v8219, %v8211
    %v8232 = vld [vmem:[#allocation2] sm:$0xff]
    %v8233 = vld [vmem:[#allocation2 + $0x8] sm:$0xff]
    %v8234 = vld [vmem:[#allocation2 + $0x10] sm:$0xff]
    %v8235 = vld [vmem:[#allocation2 + $0x18] sm:$0xff]
    %v8236 = vld [vmem:[#allocation2 + $0x20] sm:$0xff]
    %v8237 = vld [vmem:[#allocation2 + $0x28] sm:$0xff]
    %v8238 = vld [vmem:[#allocation2 + $0x30] sm:$0xff]
    %v8239 = vld [vmem:[#allocation2 + $0x38] sm:$0xff]
    %v8240 = vld [vmem:[#allocation2 + $0x40] sm:$0xff]
    %v8241 = vld [vmem:[#allocation2 + $0x48] sm:$0xff]
    %v8242 = vld [vmem:[#allocation2 + $0x50] sm:$0xff]
    %v8243 = vld [vmem:[#allocation2 + $0x58] sm:$0xff]
    %v8244 = vld [vmem:[#allocation2 + $0x60] sm:$0xff]
    %v8245 = vld [vmem:[#allocation2 + $0x68] sm:$0xff]
    %v8246 = vld [vmem:[#allocation2 + $0x70] sm:$0xff]
    %v8247 = vld [vmem:[#allocation2 + $0x78] sm:$0xff]
    %v8248 = vld [vmem:[#allocation2 + $0x80] sm:$0xff]
    %v8249 = vld [vmem:[#allocation2 + $0x88] sm:$0xff]
    %v8250 = vld [vmem:[#allocation2 + $0x90] sm:$0xff]
    %v8251 = vld [vmem:[#allocation2 + $0x98] sm:$0xff]
    %v8252 = vld [vmem:[#allocation2 + $0xa0] sm:$0xff]
    %v8253 = vld [vmem:[#allocation2 + $0xa8] sm:$0xff]
    %v8254 = vld [vmem:[#allocation2 + $0xb0] sm:$0xff]
    %v8255 = vld [vmem:[#allocation2 + $0xb8] sm:$0xff]
    %v8256 = vld [vmem:[#allocation2 + $0xc0] sm:$0xff]
    %v8257 = vld [vmem:[#allocation2 + $0xc8] sm:$0xff]
    %v8258 = vld [vmem:[#allocation2 + $0xd0] sm:$0xff]
    %v8259 = vld [vmem:[#allocation2 + $0xd8] sm:$0xff]
    %v8260 = vld [vmem:[#allocation2 + $0xe0] sm:$0xff]
    %v8261 = vld [vmem:[#allocation2 + $0xe8] sm:$0xff]
    %v8262 = vld [vmem:[#allocation2 + $0xf0] sm:$0xff]
    %v8263 = vld [vmem:[#allocation2 + $0xf8] sm:$0xff]
    %v8264 = vld [vmem:[#allocation2 + $0x100] sm:$0xff]
    %v8265 = vld [vmem:[#allocation2 + $0x108] sm:$0xff]
    %v8266 = vld [vmem:[#allocation2 + $0x110] sm:$0xff]
    %v8267 = vld [vmem:[#allocation2 + $0x118] sm:$0xff]
    %v8268 = vld [vmem:[#allocation2 + $0x120] sm:$0xff]
    %v8269 = vld [vmem:[#allocation2 + $0x128] sm:$0xff]
    %v8270 = vld [vmem:[#allocation2 + $0x130] sm:$0xff]
    %v8271 = vld [vmem:[#allocation2 + $0x138] sm:$0xff]
    %v8272 = vld [vmem:[#allocation2 + $0x140] sm:$0xff]
    %v8273 = vld [vmem:[#allocation2 + $0x148] sm:$0xff]
    %v8274 = vld [vmem:[#allocation2 + $0x150] sm:$0xff]
    %v8275 = vld [vmem:[#allocation2 + $0x158] sm:$0xff]
    %v8276 = vld [vmem:[#allocation2 + $0x160] sm:$0xff]
    %v8277 = vld [vmem:[#allocation2 + $0x168] sm:$0xff]
    %v8278 = vld [vmem:[#allocation2 + $0x170] sm:$0xff]
    %v8279 = vld [vmem:[#allocation2 + $0x178] sm:$0xff]
    %v8280 = vld [vmem:[#allocation2 + $0x180] sm:$0xff]
    %v8281 = vld [vmem:[#allocation2 + $0x188] sm:$0xff]
    %v8282 = vld [vmem:[#allocation2 + $0x190] sm:$0xff]
    %v8283 = vld [vmem:[#allocation2 + $0x198] sm:$0xff]
    %v8284 = vld [vmem:[#allocation2 + $0x1a0] sm:$0xff]
    %v8285 = vld [vmem:[#allocation2 + $0x1a8] sm:$0xff]
    %v8286 = vld [vmem:[#allocation2 + $0x1b0] sm:$0xff]
    %v8287 = vld [vmem:[#allocation2 + $0x1b8] sm:$0xff]
    %v8288 = vld [vmem:[#allocation2 + $0x1c0] sm:$0xff]
    %v8289 = vld [vmem:[#allocation2 + $0x1c8] sm:$0xff]
    %v8290 = vld [vmem:[#allocation2 + $0x1d0] sm:$0xff]
    %v8291 = vld [vmem:[#allocation2 + $0x1d8] sm:$0xff]
    %v8292 = vld [vmem:[#allocation2 + $0x1e0] sm:$0xff]
    %v8293 = vld [vmem:[#allocation2 + $0x1e8] sm:$0xff]
    %v8294 = vld [vmem:[#allocation2 + $0x1f0] sm:$0xff]
    %v8295 = vld [vmem:[#allocation2 + $0x1f8] sm:$0xff]
    %v8296 = vld [vmem:[#allocation2 + $0x200] sm:$0xff]
    %v8297 = vld [vmem:[#allocation2 + $0x208] sm:$0xff]
    %v8298 = vld [vmem:[#allocation2 + $0x210] sm:$0xff]
    %v8299 = vld [vmem:[#allocation2 + $0x218] sm:$0xff]
    %v8300 = vld [vmem:[#allocation2 + $0x220] sm:$0xff]
    %v8301 = vld [vmem:[#allocation2 + $0x228] sm:$0xff]
    %v8302 = vld [vmem:[#allocation2 + $0x230] sm:$0xff]
    %v8303 = vld [vmem:[#allocation2 + $0x238] sm:$0xff]
    %v8304 = vld [vmem:[#allocation2 + $0x240] sm:$0xff]
    %v8305 = vld [vmem:[#allocation2 + $0x248] sm:$0xff]
    %v8306 = vld [vmem:[#allocation2 + $0x250] sm:$0xff]
    %v8307 = vld [vmem:[#allocation2 + $0x258] sm:$0xff]
    %v8308 = vld [vmem:[#allocation2 + $0x260] sm:$0xff]
    %v8309 = vld [vmem:[#allocation2 + $0x268] sm:$0xff]
    %v8310 = vld [vmem:[#allocation2 + $0x270] sm:$0xff]
    %v8311 = vld [vmem:[#allocation2 + $0x278] sm:$0xff]
    %v8312 = vld [vmem:[#allocation2 + $0x280] sm:$0xff]
    %v8313 = vld [vmem:[#allocation2 + $0x288] sm:$0xff]
    %v8314 = vld [vmem:[#allocation2 + $0x290] sm:$0xff]
    %v8315 = vld [vmem:[#allocation2 + $0x298] sm:$0xff]
    %v8316 = vld [vmem:[#allocation2 + $0x2a0] sm:$0xff]
    %v8317 = vld [vmem:[#allocation2 + $0x2a8] sm:$0xff]
    %v8318 = vld [vmem:[#allocation2 + $0x2b0] sm:$0xff]
    %v8319 = vld [vmem:[#allocation2 + $0x2b8] sm:$0xff]
    %v8320 = vld [vmem:[#allocation2 + $0x2c0] sm:$0xff]
    %v8321 = vld [vmem:[#allocation2 + $0x2c8] sm:$0xff]
    %v8322 = vld [vmem:[#allocation2 + $0x2d0] sm:$0xff]
    %v8323 = vld [vmem:[#allocation2 + $0x2d8] sm:$0xff]
    %v8324 = vld [vmem:[#allocation2 + $0x2e0] sm:$0xff]
    %v8325 = vld [vmem:[#allocation2 + $0x2e8] sm:$0xff]
    %v8326 = vld [vmem:[#allocation2 + $0x2f0] sm:$0xff]
    %v8327 = vld [vmem:[#allocation2 + $0x2f8] sm:$0xff]
    %v8328 = vld [vmem:[#allocation2 + $0x300] sm:$0xff]
    %v8329 = vld [vmem:[#allocation2 + $0x308] sm:$0xff]
    %v8330 = vld [vmem:[#allocation2 + $0x310] sm:$0xff]
    %v8331 = vld [vmem:[#allocation2 + $0x318] sm:$0xff]
    %v8332 = vld [vmem:[#allocation2 + $0x320] sm:$0xff]
    %v8333 = vld [vmem:[#allocation2 + $0x328] sm:$0xff]
    %v8334 = vld [vmem:[#allocation2 + $0x330] sm:$0xff]
    %v8335 = vld [vmem:[#allocation2 + $0x338] sm:$0xff]
    %v8336 = vld [vmem:[#allocation2 + $0x340] sm:$0xff]
    %v8337 = vld [vmem:[#allocation2 + $0x348] sm:$0xff]
    %v8338 = vld [vmem:[#allocation2 + $0x350] sm:$0xff]
    %v8339 = vld [vmem:[#allocation2 + $0x358] sm:$0xff]
    %v8340 = vld [vmem:[#allocation2 + $0x360] sm:$0xff]
    %v8341 = vld [vmem:[#allocation2 + $0x368] sm:$0xff]
    %v8342 = vld [vmem:[#allocation2 + $0x370] sm:$0xff]
    %v8343 = vld [vmem:[#allocation2 + $0x378] sm:$0xff]
    %v8344 = vld [vmem:[#allocation2 + $0x380] sm:$0xff]
    %v8345 = vld [vmem:[#allocation2 + $0x388] sm:$0xff]
    %v8346 = vld [vmem:[#allocation2 + $0x390] sm:$0xff]
    %v8347 = vld [vmem:[#allocation2 + $0x398] sm:$0xff]
    %v8348 = vld [vmem:[#allocation2 + $0x3a0] sm:$0xff]
    %v8349 = vld [vmem:[#allocation2 + $0x3a8] sm:$0xff]
    %v8350 = vld [vmem:[#allocation2 + $0x3b0] sm:$0xff]
    %v8351 = vld [vmem:[#allocation2 + $0x3b8] sm:$0xff]
    %v8352 = vld [vmem:[#allocation2 + $0x3c0] sm:$0xff]
    %v8353 = vld [vmem:[#allocation2 + $0x3c8] sm:$0xff]
    %v8354 = vld [vmem:[#allocation2 + $0x3d0] sm:$0xff]
    %v8355 = vld [vmem:[#allocation2 + $0x3d8] sm:$0xff]
    %v8356 = vld [vmem:[#allocation2 + $0x3e0] sm:$0xff]
    %v8357 = vld [vmem:[#allocation2 + $0x3e8] sm:$0xff]
    %v8358 = vld [vmem:[#allocation2 + $0x3f0] sm:$0xff]
    %v8359 = vld [vmem:[#allocation2 + $0x3f8] sm:$0xff]
    %v8360 = vld [vmem:[#allocation2 + $0x400] sm:$0xff]
    %v8361 = vld [vmem:[#allocation2 + $0x408] sm:$0xff]
    %v8362 = vld [vmem:[#allocation2 + $0x410] sm:$0xff]
    %v8363 = vld [vmem:[#allocation2 + $0x418] sm:$0xff]
    %v8364 = vld [vmem:[#allocation2 + $0x420] sm:$0xff]
    %v8365 = vld [vmem:[#allocation2 + $0x428] sm:$0xff]
    %v8366 = vld [vmem:[#allocation2 + $0x430] sm:$0xff]
    %v8367 = vld [vmem:[#allocation2 + $0x438] sm:$0xff]
    %v8368 = vld [vmem:[#allocation2 + $0x440] sm:$0xff]
    %v8369 = vld [vmem:[#allocation2 + $0x448] sm:$0xff]
    %v8370 = vld [vmem:[#allocation2 + $0x450] sm:$0xff]
    %v8371 = vld [vmem:[#allocation2 + $0x458] sm:$0xff]
    %v8372 = vld [vmem:[#allocation2 + $0x460] sm:$0xff]
    %v8373 = vld [vmem:[#allocation2 + $0x468] sm:$0xff]
    %v8374 = vld [vmem:[#allocation2 + $0x470] sm:$0xff]
    %v8375 = vld [vmem:[#allocation2 + $0x478] sm:$0xff]
    %v8376 = vld [vmem:[#allocation2 + $0x480] sm:$0xff]
    %v8377 = vld [vmem:[#allocation2 + $0x488] sm:$0xff]
    %v8378 = vld [vmem:[#allocation2 + $0x490] sm:$0xff]
    %v8379 = vld [vmem:[#allocation2 + $0x498] sm:$0xff]
    %v8380 = vld [vmem:[#allocation2 + $0x4a0] sm:$0xff]
    %v8381 = vld [vmem:[#allocation2 + $0x4a8] sm:$0xff]
    %v8382 = vld [vmem:[#allocation2 + $0x4b0] sm:$0xff]
    %v8383 = vld [vmem:[#allocation2 + $0x4b8] sm:$0xff]
    %v8384 = vld [vmem:[#allocation2 + $0x4c0] sm:$0xff]
    %v8385 = vld [vmem:[#allocation2 + $0x4c8] sm:$0xff]
    %v8386 = vld [vmem:[#allocation2 + $0x4d0] sm:$0xff]
    %v8387 = vld [vmem:[#allocation2 + $0x4d8] sm:$0xff]
    %v8388 = vld [vmem:[#allocation2 + $0x4e0] sm:$0xff]
    %v8389 = vld [vmem:[#allocation2 + $0x4e8] sm:$0xff]
    %v8390 = vld [vmem:[#allocation2 + $0x4f0] sm:$0xff]
    %v8391 = vld [vmem:[#allocation2 + $0x4f8] sm:$0xff]
    %v8392 = vld [vmem:[#allocation2 + $0x500] sm:$0xff]
    %v8393 = vld [vmem:[#allocation2 + $0x508] sm:$0xff]
    %v8394 = vld [vmem:[#allocation2 + $0x510] sm:$0xff]
    %v8395 = vld [vmem:[#allocation2 + $0x518] sm:$0xff]
    %v8396 = vld [vmem:[#allocation2 + $0x520] sm:$0xff]
    %v8397 = vld [vmem:[#allocation2 + $0x528] sm:$0xff]
    %v8398 = vld [vmem:[#allocation2 + $0x530] sm:$0xff]
    %v8399 = vld [vmem:[#allocation2 + $0x538] sm:$0xff]
    %v8400 = vld [vmem:[#allocation2 + $0x540] sm:$0xff]
    %v8401 = vld [vmem:[#allocation2 + $0x548] sm:$0xff]
    %v8402 = vld [vmem:[#allocation2 + $0x550] sm:$0xff]
    %v8403 = vld [vmem:[#allocation2 + $0x558] sm:$0xff]
    %v8404 = vld [vmem:[#allocation2 + $0x560] sm:$0xff]
    %v8405 = vld [vmem:[#allocation2 + $0x568] sm:$0xff]
    %v8406 = vld [vmem:[#allocation2 + $0x570] sm:$0xff]
    %v8407 = vld [vmem:[#allocation2 + $0x578] sm:$0xff]
    %v8408 = vld [vmem:[#allocation2 + $0x580] sm:$0xff]
    %v8409 = vld [vmem:[#allocation2 + $0x588] sm:$0xff]
    %v8410 = vld [vmem:[#allocation2 + $0x590] sm:$0xff]
    %v8411 = vld [vmem:[#allocation2 + $0x598] sm:$0xff]
    %v8412 = vld [vmem:[#allocation2 + $0x5a0] sm:$0xff]
    %v8413 = vld [vmem:[#allocation2 + $0x5a8] sm:$0xff]
    %v8414 = vld [vmem:[#allocation2 + $0x5b0] sm:$0xff]
    %v8415 = vld [vmem:[#allocation2 + $0x5b8] sm:$0xff]
    %v8416 = vld [vmem:[#allocation2 + $0x5c0] sm:$0xff]
    %v8417 = vld [vmem:[#allocation2 + $0x5c8] sm:$0xff]
    %v8418 = vld [vmem:[#allocation2 + $0x5d0] sm:$0xff]
    %v8419 = vld [vmem:[#allocation2 + $0x5d8] sm:$0xff]
    %v8420 = vld [vmem:[#allocation2 + $0x5e0] sm:$0xff]
    %v8421 = vld [vmem:[#allocation2 + $0x5e8] sm:$0xff]
    %v8422 = vld [vmem:[#allocation2 + $0x5f0] sm:$0xff]
    %v8423 = vld [vmem:[#allocation2 + $0x5f8] sm:$0xff]
    %v8424 = vld [vmem:[#allocation2 + $0x600] sm:$0xff]
    %v8425 = vld [vmem:[#allocation2 + $0x608] sm:$0xff]
    %v8426 = vld [vmem:[#allocation2 + $0x610] sm:$0xff]
    %v8427 = vld [vmem:[#allocation2 + $0x618] sm:$0xff]
    %v8428 = vld [vmem:[#allocation2 + $0x620] sm:$0xff]
    %v8429 = vld [vmem:[#allocation2 + $0x628] sm:$0xff]
    %v8430 = vld [vmem:[#allocation2 + $0x630] sm:$0xff]
    %v8431 = vld [vmem:[#allocation2 + $0x638] sm:$0xff]
    %v8432 = vld [vmem:[#allocation2 + $0x640] sm:$0xff]
    %v8433 = vld [vmem:[#allocation2 + $0x648] sm:$0xff]
    %v8434 = vld [vmem:[#allocation2 + $0x650] sm:$0xff]
    %v8435 = vld [vmem:[#allocation2 + $0x658] sm:$0xff]
    %v8436 = vld [vmem:[#allocation2 + $0x660] sm:$0xff]
    %v8437 = vld [vmem:[#allocation2 + $0x668] sm:$0xff]
    %v8438 = vld [vmem:[#allocation2 + $0x670] sm:$0xff]
    %v8439 = vld [vmem:[#allocation2 + $0x678] sm:$0xff]
    %v8440 = vld [vmem:[#allocation2 + $0x680] sm:$0xff]
    %v8441 = vld [vmem:[#allocation2 + $0x688] sm:$0xff]
    %v8442 = vld [vmem:[#allocation2 + $0x690] sm:$0xff]
    %v8443 = vld [vmem:[#allocation2 + $0x698] sm:$0xff]
    %v8444 = vld [vmem:[#allocation2 + $0x6a0] sm:$0xff]
    %v8445 = vld [vmem:[#allocation2 + $0x6a8] sm:$0xff]
    %v8446 = vld [vmem:[#allocation2 + $0x6b0] sm:$0xff]
    %v8447 = vld [vmem:[#allocation2 + $0x6b8] sm:$0xff]
    %v8448 = vld [vmem:[#allocation2 + $0x6c0] sm:$0xff]
    %v8449 = vld [vmem:[#allocation2 + $0x6c8] sm:$0xff]
    %v8450 = vld [vmem:[#allocation2 + $0x6d0] sm:$0xff]
    %v8451 = vld [vmem:[#allocation2 + $0x6d8] sm:$0xff]
    %v8452 = vld [vmem:[#allocation2 + $0x6e0] sm:$0xff]
    %v8453 = vld [vmem:[#allocation2 + $0x6e8] sm:$0xff]
    %v8454 = vld [vmem:[#allocation2 + $0x6f0] sm:$0xff]
    %v8455 = vld [vmem:[#allocation2 + $0x6f8] sm:$0xff]
    %v8456 = vld [vmem:[#allocation2 + $0x700] sm:$0xff]
    %v8457 = vld [vmem:[#allocation2 + $0x708] sm:$0xff]
    %v8458 = vld [vmem:[#allocation2 + $0x710] sm:$0xff]
    %v8459 = vld [vmem:[#allocation2 + $0x718] sm:$0xff]
    %v8460 = vld [vmem:[#allocation2 + $0x720] sm:$0xff]
    %v8461 = vld [vmem:[#allocation2 + $0x728] sm:$0xff]
    %v8462 = vld [vmem:[#allocation2 + $0x730] sm:$0xff]
    %v8463 = vld [vmem:[#allocation2 + $0x738] sm:$0xff]
    %v8464 = vld [vmem:[#allocation2 + $0x740] sm:$0xff]
    %v8465 = vld [vmem:[#allocation2 + $0x748] sm:$0xff]
    %v8466 = vld [vmem:[#allocation2 + $0x750] sm:$0xff]
    %v8467 = vld [vmem:[#allocation2 + $0x758] sm:$0xff]
    %v8468 = vld [vmem:[#allocation2 + $0x760] sm:$0xff]
    %v8469 = vld [vmem:[#allocation2 + $0x768] sm:$0xff]
    %v8470 = vld [vmem:[#allocation2 + $0x770] sm:$0xff]
    %v8471 = vld [vmem:[#allocation2 + $0x778] sm:$0xff]
    %v8472 = vld [vmem:[#allocation2 + $0x780] sm:$0xff]
    %v8473 = vld [vmem:[#allocation2 + $0x788] sm:$0xff]
    %v8474 = vld [vmem:[#allocation2 + $0x790] sm:$0xff]
    %v8475 = vld [vmem:[#allocation2 + $0x798] sm:$0xff]
    %v8476 = vld [vmem:[#allocation2 + $0x7a0] sm:$0xff]
    %v8477 = vld [vmem:[#allocation2 + $0x7a8] sm:$0xff]
    %v8478 = vld [vmem:[#allocation2 + $0x7b0] sm:$0xff]
    %v8479 = vld [vmem:[#allocation2 + $0x7b8] sm:$0xff]
    %v8480 = vld [vmem:[#allocation2 + $0x7c0] sm:$0xff]
    %v8481 = vld [vmem:[#allocation2 + $0x7c8] sm:$0xff]
    %v8482 = vld [vmem:[#allocation2 + $0x7d0] sm:$0xff]
    %v8483 = vld [vmem:[#allocation2 + $0x7d8] sm:$0xff]
    %v8484 = vld [vmem:[#allocation2 + $0x7e0] sm:$0xff]
    %v8485 = vld [vmem:[#allocation2 + $0x7e8] sm:$0xff]
    %v8486 = vld [vmem:[#allocation2 + $0x7f0] sm:$0xff]
    %v8487 = vld [vmem:[#allocation2 + $0x7f8] sm:$0xff]
    %v8488 = vld [vmem:[#allocation2 + $0x800] sm:$0xff]
    %v8489 = vld [vmem:[#allocation2 + $0x808] sm:$0xff]
    %v8490 = vld [vmem:[#allocation2 + $0x810] sm:$0xff]
    %v8491 = vld [vmem:[#allocation2 + $0x818] sm:$0xff]
    %v8492 = vld [vmem:[#allocation2 + $0x820] sm:$0xff]
    %v8493 = vld [vmem:[#allocation2 + $0x828] sm:$0xff]
    %v8494 = vld [vmem:[#allocation2 + $0x830] sm:$0xff]
    %v8495 = vld [vmem:[#allocation2 + $0x838] sm:$0xff]
    %v8496 = vld [vmem:[#allocation2 + $0x840] sm:$0xff]
    %v8497 = vld [vmem:[#allocation2 + $0x848] sm:$0xff]
    %v8498 = vld [vmem:[#allocation2 + $0x850] sm:$0xff]
    %v8499 = vld [vmem:[#allocation2 + $0x858] sm:$0xff]
    %v8500 = vld [vmem:[#allocation2 + $0x860] sm:$0xff]
    %v8501 = vld [vmem:[#allocation2 + $0x868] sm:$0xff]
    %v8502 = vld [vmem:[#allocation2 + $0x870] sm:$0xff]
    %v8503 = vld [vmem:[#allocation2 + $0x878] sm:$0xff]
    %v8504 = vld [vmem:[#allocation2 + $0x880] sm:$0xff]
    %v8505 = vld [vmem:[#allocation2 + $0x888] sm:$0xff]
    %v8506 = vld [vmem:[#allocation2 + $0x890] sm:$0xff]
    %v8507 = vld [vmem:[#allocation2 + $0x898] sm:$0xff]
    %v8508 = vld [vmem:[#allocation2 + $0x8a0] sm:$0xff]
    %v8509 = vld [vmem:[#allocation2 + $0x8a8] sm:$0xff]
    %v8510 = vld [vmem:[#allocation2 + $0x8b0] sm:$0xff]
    %v8511 = vld [vmem:[#allocation2 + $0x8b8] sm:$0xff]
    %v8512 = vld [vmem:[#allocation2 + $0x8c0] sm:$0xff]
    %v8513 = vld [vmem:[#allocation2 + $0x8c8] sm:$0xff]
    %v8514 = vld [vmem:[#allocation2 + $0x8d0] sm:$0xff]
    %v8515 = vld [vmem:[#allocation2 + $0x8d8] sm:$0xff]
    %v8516 = vld [vmem:[#allocation2 + $0x8e0] sm:$0xff]
    %v8517 = vld [vmem:[#allocation2 + $0x8e8] sm:$0xff]
    %v8518 = vld [vmem:[#allocation2 + $0x8f0] sm:$0xff]
    %v8519 = vld [vmem:[#allocation2 + $0x8f8] sm:$0xff]
    %v8520 = vld [vmem:[#allocation2 + $0x900] sm:$0xff]
    %v8521 = vld [vmem:[#allocation2 + $0x908] sm:$0xff]
    %v8522 = vld [vmem:[#allocation2 + $0x910] sm:$0xff]
    %v8523 = vld [vmem:[#allocation2 + $0x918] sm:$0xff]
    %v8524 = vld [vmem:[#allocation2 + $0x920] sm:$0xff]
    %v8525 = vld [vmem:[#allocation2 + $0x928] sm:$0xff]
    %v8526 = vld [vmem:[#allocation2 + $0x930] sm:$0xff]
    %v8527 = vld [vmem:[#allocation2 + $0x938] sm:$0xff]
    %v8528 = vld [vmem:[#allocation2 + $0x940] sm:$0xff]
    %v8529 = vld [vmem:[#allocation2 + $0x948] sm:$0xff]
    %v8530 = vld [vmem:[#allocation2 + $0x950] sm:$0xff]
    %v8531 = vld [vmem:[#allocation2 + $0x958] sm:$0xff]
    %v8532 = vld [vmem:[#allocation2 + $0x960] sm:$0xff]
    %v8533 = vld [vmem:[#allocation2 + $0x968] sm:$0xff]
    %v8534 = vld [vmem:[#allocation2 + $0x970] sm:$0xff]
    %v8535 = vld [vmem:[#allocation2 + $0x978] sm:$0xff]
    %v8536 = vld [vmem:[#allocation2 + $0x980] sm:$0xff]
    %v8537 = vld [vmem:[#allocation2 + $0x988] sm:$0xff]
    %v8538 = vld [vmem:[#allocation2 + $0x990] sm:$0xff]
    %v8539 = vld [vmem:[#allocation2 + $0x998] sm:$0xff]
    %v8540 = vld [vmem:[#allocation2 + $0x9a0] sm:$0xff]
    %v8541 = vld [vmem:[#allocation2 + $0x9a8] sm:$0xff]
    %v8542 = vld [vmem:[#allocation2 + $0x9b0] sm:$0xff]
    %v8543 = vld [vmem:[#allocation2 + $0x9b8] sm:$0xff]
    %v8544 = vld [vmem:[#allocation2 + $0x9c0] sm:$0xff]
    %v8545 = vld [vmem:[#allocation2 + $0x9c8] sm:$0xff]
    %v8546 = vld [vmem:[#allocation2 + $0x9d0] sm:$0xff]
    %v8547 = vld [vmem:[#allocation2 + $0x9d8] sm:$0xff]
    %v8548 = vld [vmem:[#allocation2 + $0x9e0] sm:$0xff]
    %v8549 = vld [vmem:[#allocation2 + $0x9e8] sm:$0xff]
    %v8550 = vld [vmem:[#allocation2 + $0x9f0] sm:$0xff]
    %v8551 = vld [vmem:[#allocation2 + $0x9f8] sm:$0xff]
    %v8552 = vld [vmem:[#allocation2 + $0xa00] sm:$0xff]
    %v8553 = vld [vmem:[#allocation2 + $0xa08] sm:$0xff]
    %v8554 = vld [vmem:[#allocation2 + $0xa10] sm:$0xff]
    %v8555 = vld [vmem:[#allocation2 + $0xa18] sm:$0xff]
    %v8556 = vld [vmem:[#allocation2 + $0xa20] sm:$0xff]
    %v8557 = vld [vmem:[#allocation2 + $0xa28] sm:$0xff]
    %v8558 = vld [vmem:[#allocation2 + $0xa30] sm:$0xff]
    %v8559 = vld [vmem:[#allocation2 + $0xa38] sm:$0xff]
    %v8560 = vld [vmem:[#allocation2 + $0xa40] sm:$0xff]
    %v8561 = vld [vmem:[#allocation2 + $0xa48] sm:$0xff]
    %v8562 = vld [vmem:[#allocation2 + $0xa50] sm:$0xff]
    %v8563 = vld [vmem:[#allocation2 + $0xa58] sm:$0xff]
    %v8564 = vld [vmem:[#allocation2 + $0xa60] sm:$0xff]
    %v8565 = vld [vmem:[#allocation2 + $0xa68] sm:$0xff]
    %v8566 = vld [vmem:[#allocation2 + $0xa70] sm:$0xff]
    %v8567 = vld [vmem:[#allocation2 + $0xa78] sm:$0xff]
    %v8568 = vld [vmem:[#allocation2 + $0xa80] sm:$0xff]
    %v8569 = vld [vmem:[#allocation2 + $0xa88] sm:$0xff]
    %v8570 = vld [vmem:[#allocation2 + $0xa90] sm:$0xff]
    %v8571 = vld [vmem:[#allocation2 + $0xa98] sm:$0xff]
    %v8572 = vld [vmem:[#allocation2 + $0xaa0] sm:$0xff]
    %v8573 = vld [vmem:[#allocation2 + $0xaa8] sm:$0xff]
    %v8574 = vld [vmem:[#allocation2 + $0xab0] sm:$0xff]
    %v8575 = vld [vmem:[#allocation2 + $0xab8] sm:$0xff]
    %v8576 = vld [vmem:[#allocation2 + $0xac0] sm:$0xff]
    %v8577 = vld [vmem:[#allocation2 + $0xac8] sm:$0xff]
    %v8578 = vld [vmem:[#allocation2 + $0xad0] sm:$0xff]
    %v8579 = vld [vmem:[#allocation2 + $0xad8] sm:$0xff]
    %v8580 = vld [vmem:[#allocation2 + $0xae0] sm:$0xff]
    %v8581 = vld [vmem:[#allocation2 + $0xae8] sm:$0xff]
    %v8582 = vld [vmem:[#allocation2 + $0xaf0] sm:$0xff]
    %v8583 = vld [vmem:[#allocation2 + $0xaf8] sm:$0xff]
    %v8584 = vld [vmem:[#allocation2 + $0xb00] sm:$0xff]
    %v8585 = vld [vmem:[#allocation2 + $0xb08] sm:$0xff]
    %v8586 = vld [vmem:[#allocation2 + $0xb10] sm:$0xff]
    %v8587 = vld [vmem:[#allocation2 + $0xb18] sm:$0xff]
    %v8588 = vld [vmem:[#allocation2 + $0xb20] sm:$0xff]
    %v8589 = vld [vmem:[#allocation2 + $0xb28] sm:$0xff]
    %v8590 = vld [vmem:[#allocation2 + $0xb30] sm:$0xff]
    %v8591 = vld [vmem:[#allocation2 + $0xb38] sm:$0xff]
    %v8592 = vld [vmem:[#allocation2 + $0xb40] sm:$0xff]
    %v8593 = vld [vmem:[#allocation2 + $0xb48] sm:$0xff]
    %v8594 = vld [vmem:[#allocation2 + $0xb50] sm:$0xff]
    %v8595 = vld [vmem:[#allocation2 + $0xb58] sm:$0xff]
    %v8596 = vld [vmem:[#allocation2 + $0xb60] sm:$0xff]
    %v8597 = vld [vmem:[#allocation2 + $0xb68] sm:$0xff]
    %v8598 = vld [vmem:[#allocation2 + $0xb70] sm:$0xff]
    %v8599 = vld [vmem:[#allocation2 + $0xb78] sm:$0xff]
    %v8600 = vld [vmem:[#allocation2 + $0xb80] sm:$0xff]
    %v8601 = vld [vmem:[#allocation2 + $0xb88] sm:$0xff]
    %v8602 = vld [vmem:[#allocation2 + $0xb90] sm:$0xff]
    %v8603 = vld [vmem:[#allocation2 + $0xb98] sm:$0xff]
    %v8604 = vld [vmem:[#allocation2 + $0xba0] sm:$0xff]
    %v8605 = vld [vmem:[#allocation2 + $0xba8] sm:$0xff]
    %v8606 = vld [vmem:[#allocation2 + $0xbb0] sm:$0xff]
    %v8607 = vld [vmem:[#allocation2 + $0xbb8] sm:$0xff]
    %v8608 = vld [vmem:[#allocation2 + $0xbc0] sm:$0xff]
    %v8609 = vld [vmem:[#allocation2 + $0xbc8] sm:$0xff]
    %v8610 = vld [vmem:[#allocation2 + $0xbd0] sm:$0xff]
    %v8611 = vld [vmem:[#allocation2 + $0xbd8] sm:$0xff]
    %v8612 = vld [vmem:[#allocation2 + $0xbe0] sm:$0xff]
    %v8613 = vld [vmem:[#allocation2 + $0xbe8] sm:$0xff]
    %v8614 = vld [vmem:[#allocation2 + $0xbf0] sm:$0xff]
    %v8615 = vld [vmem:[#allocation2 + $0xbf8] sm:$0xff]
    %v8616 = vld [vmem:[#allocation2 + $0xc00] sm:$0xff]
    %v8617 = vld [vmem:[#allocation2 + $0xc08] sm:$0xff]
    %v8618 = vld [vmem:[#allocation2 + $0xc10] sm:$0xff]
    %v8619 = vld [vmem:[#allocation2 + $0xc18] sm:$0xff]
    %v8620 = vld [vmem:[#allocation2 + $0xc20] sm:$0xff]
    %v8621 = vld [vmem:[#allocation2 + $0xc28] sm:$0xff]
    %v8622 = vld [vmem:[#allocation2 + $0xc30] sm:$0xff]
    %v8623 = vld [vmem:[#allocation2 + $0xc38] sm:$0xff]
    %v8624 = vld [vmem:[#allocation2 + $0xc40] sm:$0xff]
    %v8625 = vld [vmem:[#allocation2 + $0xc48] sm:$0xff]
    %v8626 = vld [vmem:[#allocation2 + $0xc50] sm:$0xff]
    %v8627 = vld [vmem:[#allocation2 + $0xc58] sm:$0xff]
    %v8628 = vld [vmem:[#allocation2 + $0xc60] sm:$0xff]
    %v8629 = vld [vmem:[#allocation2 + $0xc68] sm:$0xff]
    %v8630 = vld [vmem:[#allocation2 + $0xc70] sm:$0xff]
    %v8631 = vld [vmem:[#allocation2 + $0xc78] sm:$0xff]
    %v8632 = vld [vmem:[#allocation2 + $0xc80] sm:$0xff]
    %v8633 = vld [vmem:[#allocation2 + $0xc88] sm:$0xff]
    %v8634 = vld [vmem:[#allocation2 + $0xc90] sm:$0xff]
    %v8635 = vld [vmem:[#allocation2 + $0xc98] sm:$0xff]
    %v8636 = vld [vmem:[#allocation2 + $0xca0] sm:$0xff]
    %v8637 = vld [vmem:[#allocation2 + $0xca8] sm:$0xff]
    %v8638 = vld [vmem:[#allocation2 + $0xcb0] sm:$0xff]
    %v8639 = vld [vmem:[#allocation2 + $0xcb8] sm:$0xff]
    %v8640 = vld [vmem:[#allocation2 + $0xcc0] sm:$0xff]
    %v8641 = vld [vmem:[#allocation2 + $0xcc8] sm:$0xff]
    %v8642 = vld [vmem:[#allocation2 + $0xcd0] sm:$0xff]
    %v8643 = vld [vmem:[#allocation2 + $0xcd8] sm:$0xff]
    %v8644 = vld [vmem:[#allocation2 + $0xce0] sm:$0xff]
    %v8645 = vld [vmem:[#allocation2 + $0xce8] sm:$0xff]
    %v8646 = vld [vmem:[#allocation2 + $0xcf0] sm:$0xff]
    %v8647 = vld [vmem:[#allocation2 + $0xcf8] sm:$0xff]
    %v8648 = vld [vmem:[#allocation2 + $0xd00] sm:$0xff]
    %v8649 = vld [vmem:[#allocation2 + $0xd08] sm:$0xff]
    %v8650 = vld [vmem:[#allocation2 + $0xd10] sm:$0xff]
    %v8651 = vld [vmem:[#allocation2 + $0xd18] sm:$0xff]
    %v8652 = vld [vmem:[#allocation2 + $0xd20] sm:$0xff]
    %v8653 = vld [vmem:[#allocation2 + $0xd28] sm:$0xff]
    %v8654 = vld [vmem:[#allocation2 + $0xd30] sm:$0xff]
    %v8655 = vld [vmem:[#allocation2 + $0xd38] sm:$0xff]
    %v8656 = vld [vmem:[#allocation2 + $0xd40] sm:$0xff]
    %v8657 = vld [vmem:[#allocation2 + $0xd48] sm:$0xff]
    %v8658 = vld [vmem:[#allocation2 + $0xd50] sm:$0xff]
    %v8659 = vld [vmem:[#allocation2 + $0xd58] sm:$0xff]
    %v8660 = vld [vmem:[#allocation2 + $0xd60] sm:$0xff]
    %v8661 = vld [vmem:[#allocation2 + $0xd68] sm:$0xff]
    %v8662 = vld [vmem:[#allocation2 + $0xd70] sm:$0xff]
    %v8663 = vld [vmem:[#allocation2 + $0xd78] sm:$0xff]
    %v8664 = vld [vmem:[#allocation2 + $0xd80] sm:$0xff]
    %v8665 = vld [vmem:[#allocation2 + $0xd88] sm:$0xff]
    %v8666 = vld [vmem:[#allocation2 + $0xd90] sm:$0xff]
    %v8667 = vld [vmem:[#allocation2 + $0xd98] sm:$0xff]
    %v8668 = vld [vmem:[#allocation2 + $0xda0] sm:$0xff]
    %v8669 = vld [vmem:[#allocation2 + $0xda8] sm:$0xff]
    %v8670 = vld [vmem:[#allocation2 + $0xdb0] sm:$0xff]
    %v8671 = vld [vmem:[#allocation2 + $0xdb8] sm:$0xff]
    %v8672 = vld [vmem:[#allocation2 + $0xdc0] sm:$0xff]
    %v8673 = vld [vmem:[#allocation2 + $0xdc8] sm:$0xff]
    %v8674 = vld [vmem:[#allocation2 + $0xdd0] sm:$0xff]
    %v8675 = vld [vmem:[#allocation2 + $0xdd8] sm:$0xff]
    %v8676 = vld [vmem:[#allocation2 + $0xde0] sm:$0xff]
    %v8677 = vld [vmem:[#allocation2 + $0xde8] sm:$0xff]
    %v8678 = vld [vmem:[#allocation2 + $0xdf0] sm:$0xff]
    %v8679 = vld [vmem:[#allocation2 + $0xdf8] sm:$0xff]
    %v8680 = vld [vmem:[#allocation2 + $0xe00] sm:$0xff]
    %v8681 = vld [vmem:[#allocation2 + $0xe08] sm:$0xff]
    %v8682 = vld [vmem:[#allocation2 + $0xe10] sm:$0xff]
    %v8683 = vld [vmem:[#allocation2 + $0xe18] sm:$0xff]
    %v8684 = vld [vmem:[#allocation2 + $0xe20] sm:$0xff]
    %v8685 = vld [vmem:[#allocation2 + $0xe28] sm:$0xff]
    %v8686 = vld [vmem:[#allocation2 + $0xe30] sm:$0xff]
    %v8687 = vld [vmem:[#allocation2 + $0xe38] sm:$0xff]
    %v8688 = vld [vmem:[#allocation2 + $0xe40] sm:$0xff]
    %v8689 = vld [vmem:[#allocation2 + $0xe48] sm:$0xff]
    %v8690 = vld [vmem:[#allocation2 + $0xe50] sm:$0xff]
    %v8691 = vld [vmem:[#allocation2 + $0xe58] sm:$0xff]
    %v8692 = vld [vmem:[#allocation2 + $0xe60] sm:$0xff]
    %v8693 = vld [vmem:[#allocation2 + $0xe68] sm:$0xff]
    %v8694 = vld [vmem:[#allocation2 + $0xe70] sm:$0xff]
    %v8695 = vld [vmem:[#allocation2 + $0xe78] sm:$0xff]
    %v8696 = vld [vmem:[#allocation2 + $0xe80] sm:$0xff]
    %v8697 = vld [vmem:[#allocation2 + $0xe88] sm:$0xff]
    %v8698 = vld [vmem:[#allocation2 + $0xe90] sm:$0xff]
    %v8699 = vld [vmem:[#allocation2 + $0xe98] sm:$0xff]
    %v8700 = vld [vmem:[#allocation2 + $0xea0] sm:$0xff]
    %v8701 = vld [vmem:[#allocation2 + $0xea8] sm:$0xff]
    %v8702 = vld [vmem:[#allocation2 + $0xeb0] sm:$0xff]
    %v8703 = vld [vmem:[#allocation2 + $0xeb8] sm:$0xff]
    %v8704 = vld [vmem:[#allocation2 + $0xec0] sm:$0xff]
    %v8705 = vld [vmem:[#allocation2 + $0xec8] sm:$0xff]
    %v8706 = vld [vmem:[#allocation2 + $0xed0] sm:$0xff]
    %v8707 = vld [vmem:[#allocation2 + $0xed8] sm:$0xff]
    %v8708 = vld [vmem:[#allocation2 + $0xee0] sm:$0xff]
    %v8709 = vld [vmem:[#allocation2 + $0xee8] sm:$0xff]
    %v8710 = vld [vmem:[#allocation2 + $0xef0] sm:$0xff]
    %v8711 = vld [vmem:[#allocation2 + $0xef8] sm:$0xff]
    %v8712 = vld [vmem:[#allocation2 + $0xf00] sm:$0xff]
    %v8713 = vld [vmem:[#allocation2 + $0xf08] sm:$0xff]
    %v8714 = vld [vmem:[#allocation2 + $0xf10] sm:$0xff]
    %v8715 = vld [vmem:[#allocation2 + $0xf18] sm:$0xff]
    %v8716 = vld [vmem:[#allocation2 + $0xf20] sm:$0xff]
    %v8717 = vld [vmem:[#allocation2 + $0xf28] sm:$0xff]
    %v8718 = vld [vmem:[#allocation2 + $0xf30] sm:$0xff]
    %v8719 = vld [vmem:[#allocation2 + $0xf38] sm:$0xff]
    %v8720 = vld [vmem:[#allocation2 + $0xf40] sm:$0xff]
    %v8721 = vld [vmem:[#allocation2 + $0xf48] sm:$0xff]
    %v8722 = vld [vmem:[#allocation2 + $0xf50] sm:$0xff]
    %v8723 = vld [vmem:[#allocation2 + $0xf58] sm:$0xff]
    %v8724 = vld [vmem:[#allocation2 + $0xf60] sm:$0xff]
    %v8725 = vld [vmem:[#allocation2 + $0xf68] sm:$0xff]
    %v8726 = vld [vmem:[#allocation2 + $0xf70] sm:$0xff]
    %v8727 = vld [vmem:[#allocation2 + $0xf78] sm:$0xff]
    %v8728 = vld [vmem:[#allocation2 + $0xf80] sm:$0xff]
    %v8729 = vld [vmem:[#allocation2 + $0xf88] sm:$0xff]
    %v8730 = vld [vmem:[#allocation2 + $0xf90] sm:$0xff]
    %v8731 = vld [vmem:[#allocation2 + $0xf98] sm:$0xff]
    %v8732 = vld [vmem:[#allocation2 + $0xfa0] sm:$0xff]
    %v8733 = vld [vmem:[#allocation2 + $0xfa8] sm:$0xff]
    %v8734 = vld [vmem:[#allocation2 + $0xfb0] sm:$0xff]
    %v8735 = vld [vmem:[#allocation2 + $0xfb8] sm:$0xff]
    %v8736 = vld [vmem:[#allocation2 + $0xfc0] sm:$0xff]
    %v8737 = vld [vmem:[#allocation2 + $0xfc8] sm:$0xff]
    %v8738 = vld [vmem:[#allocation2 + $0xfd0] sm:$0xff]
    %v8739 = vld [vmem:[#allocation2 + $0xfd8] sm:$0xff]
    %v8740 = vld [vmem:[#allocation2 + $0xfe0] sm:$0xff]
    %v8741 = vld [vmem:[#allocation2 + $0xfe8] sm:$0xff]
    %v8742 = vld [vmem:[#allocation2 + $0xff0] sm:$0xff]
    %v8743 = vld [vmem:[#allocation2 + $0xff8] sm:$0xff]
    %v8744 = vld [vmem:[#allocation16] sm:$0xff]
    %v8746 = vperm.slane %v8744, 0
    %v8747 = vperm.slane %v8744, 1
    %v8748 = vperm.slane %v8744, 2
    %v8749 = vperm.slane %v8744, 3
    %v8750 = vperm.slane %v8744, 4
    %v8751 = vperm.slane %v8744, 5
    %v8752 = vperm.slane %v8744, 6
    %v8753 = vperm.slane %v8744, 7
    %v9274 = vunpack.c.l.b16 %v8232
    %v9275 = vunpack.c.h.b16 %v8232
    %v9276 = vunpack.c.l.b16 %v8233
    %v9277 = vunpack.c.h.b16 %v8233
    %v9278 = vunpack.c.l.b16 %v8234
    %v9279 = vunpack.c.h.b16 %v8234
    %v9280 = vunpack.c.l.b16 %v8235
    %v9281 = vunpack.c.h.b16 %v8235
    %v9282 = vunpack.c.l.b16 %v8236
    %v9283 = vunpack.c.h.b16 %v8236
    %v9284 = vunpack.c.l.b16 %v8237
    %v9285 = vunpack.c.h.b16 %v8237
    %v9286 = vunpack.c.l.b16 %v8238
    %v9287 = vunpack.c.h.b16 %v8238
    %v9288 = vunpack.c.l.b16 %v8239
    %v9289 = vunpack.c.h.b16 %v8239
    %v9290 = vunpack.c.l.b16 %v8240
    %v9291 = vunpack.c.h.b16 %v8240
    %v9292 = vunpack.c.l.b16 %v8241
    %v9293 = vunpack.c.h.b16 %v8241
    %v9294 = vunpack.c.l.b16 %v8242
    %v9295 = vunpack.c.h.b16 %v8242
    %v9296 = vunpack.c.l.b16 %v8243
    %v9297 = vunpack.c.h.b16 %v8243
    %v9298 = vunpack.c.l.b16 %v8244
    %v9299 = vunpack.c.h.b16 %v8244
    %v9300 = vunpack.c.l.b16 %v8245
    %v9301 = vunpack.c.h.b16 %v8245
    %v9302 = vunpack.c.l.b16 %v8246
    %v9303 = vunpack.c.h.b16 %v8246
    %v9304 = vunpack.c.l.b16 %v8247
    %v9305 = vunpack.c.h.b16 %v8247
    %v9306 = vunpack.c.l.b16 %v8248
    %v9307 = vunpack.c.h.b16 %v8248
    %v9308 = vunpack.c.l.b16 %v8249
    %v9309 = vunpack.c.h.b16 %v8249
    %v9310 = vunpack.c.l.b16 %v8250
    %v9311 = vunpack.c.h.b16 %v8250
    %v9312 = vunpack.c.l.b16 %v8251
    %v9313 = vunpack.c.h.b16 %v8251
    %v9314 = vunpack.c.l.b16 %v8252
    %v9315 = vunpack.c.h.b16 %v8252
    %v9316 = vunpack.c.l.b16 %v8253
    %v9317 = vunpack.c.h.b16 %v8253
    %v9318 = vunpack.c.l.b16 %v8254
    %v9319 = vunpack.c.h.b16 %v8254
    %v9320 = vunpack.c.l.b16 %v8255
    %v9321 = vunpack.c.h.b16 %v8255
    %v9322 = vunpack.c.l.b16 %v8256
    %v9323 = vunpack.c.h.b16 %v8256
    %v9324 = vunpack.c.l.b16 %v8257
    %v9325 = vunpack.c.h.b16 %v8257
    %v9326 = vunpack.c.l.b16 %v8258
    %v9327 = vunpack.c.h.b16 %v8258
    %v9328 = vunpack.c.l.b16 %v8259
    %v9329 = vunpack.c.h.b16 %v8259
    %v9330 = vunpack.c.l.b16 %v8260
    %v9331 = vunpack.c.h.b16 %v8260
    %v9332 = vunpack.c.l.b16 %v8261
    %v9333 = vunpack.c.h.b16 %v8261
    %v9334 = vunpack.c.l.b16 %v8262
    %v9335 = vunpack.c.h.b16 %v8262
    %v9336 = vunpack.c.l.b16 %v8263
    %v9337 = vunpack.c.h.b16 %v8263
    %v9338 = vunpack.c.l.b16 %v8264
    %v9339 = vunpack.c.h.b16 %v8264
    %v9340 = vunpack.c.l.b16 %v8265
    %v9341 = vunpack.c.h.b16 %v8265
    %v9342 = vunpack.c.l.b16 %v8266
    %v9343 = vunpack.c.h.b16 %v8266
    %v9344 = vunpack.c.l.b16 %v8267
    %v9345 = vunpack.c.h.b16 %v8267
    %v9346 = vunpack.c.l.b16 %v8268
    %v9347 = vunpack.c.h.b16 %v8268
    %v9348 = vunpack.c.l.b16 %v8269
    %v9349 = vunpack.c.h.b16 %v8269
    %v9350 = vunpack.c.l.b16 %v8270
    %v9351 = vunpack.c.h.b16 %v8270
    %v9352 = vunpack.c.l.b16 %v8271
    %v9353 = vunpack.c.h.b16 %v8271
    %v9354 = vunpack.c.l.b16 %v8272
    %v9355 = vunpack.c.h.b16 %v8272
    %v9356 = vunpack.c.l.b16 %v8273
    %v9357 = vunpack.c.h.b16 %v8273
    %v9358 = vunpack.c.l.b16 %v8274
    %v9359 = vunpack.c.h.b16 %v8274
    %v9360 = vunpack.c.l.b16 %v8275
    %v9361 = vunpack.c.h.b16 %v8275
    %v9362 = vunpack.c.l.b16 %v8276
    %v9363 = vunpack.c.h.b16 %v8276
    %v9364 = vunpack.c.l.b16 %v8277
    %v9365 = vunpack.c.h.b16 %v8277
    %v9366 = vunpack.c.l.b16 %v8278
    %v9367 = vunpack.c.h.b16 %v8278
    %v9368 = vunpack.c.l.b16 %v8279
    %v9369 = vunpack.c.h.b16 %v8279
    %v9370 = vunpack.c.l.b16 %v8280
    %v9371 = vunpack.c.h.b16 %v8280
    %v9372 = vunpack.c.l.b16 %v8281
    %v9373 = vunpack.c.h.b16 %v8281
    %v9374 = vunpack.c.l.b16 %v8282
    %v9375 = vunpack.c.h.b16 %v8282
    %v9376 = vunpack.c.l.b16 %v8283
    %v9377 = vunpack.c.h.b16 %v8283
    %v9378 = vunpack.c.l.b16 %v8284
    %v9379 = vunpack.c.h.b16 %v8284
    %v9380 = vunpack.c.l.b16 %v8285
    %v9381 = vunpack.c.h.b16 %v8285
    %v9382 = vunpack.c.l.b16 %v8286
    %v9383 = vunpack.c.h.b16 %v8286
    %v9384 = vunpack.c.l.b16 %v8287
    %v9385 = vunpack.c.h.b16 %v8287
    %v9386 = vunpack.c.l.b16 %v8288
    %v9387 = vunpack.c.h.b16 %v8288
    %v9388 = vunpack.c.l.b16 %v8289
    %v9389 = vunpack.c.h.b16 %v8289
    %v9390 = vunpack.c.l.b16 %v8290
    %v9391 = vunpack.c.h.b16 %v8290
    %v9392 = vunpack.c.l.b16 %v8291
    %v9393 = vunpack.c.h.b16 %v8291
    %v9394 = vunpack.c.l.b16 %v8292
    %v9395 = vunpack.c.h.b16 %v8292
    %v9396 = vunpack.c.l.b16 %v8293
    %v9397 = vunpack.c.h.b16 %v8293
    %v9398 = vunpack.c.l.b16 %v8294
    %v9399 = vunpack.c.h.b16 %v8294
    %v9400 = vunpack.c.l.b16 %v8295
    %v9401 = vunpack.c.h.b16 %v8295
    %v9402 = vunpack.c.l.b16 %v8296
    %v9403 = vunpack.c.h.b16 %v8296
    %v9404 = vunpack.c.l.b16 %v8297
    %v9405 = vunpack.c.h.b16 %v8297
    %v9406 = vunpack.c.l.b16 %v8298
    %v9407 = vunpack.c.h.b16 %v8298
    %v9408 = vunpack.c.l.b16 %v8299
    %v9409 = vunpack.c.h.b16 %v8299
    %v9410 = vunpack.c.l.b16 %v8300
    %v9411 = vunpack.c.h.b16 %v8300
    %v9412 = vunpack.c.l.b16 %v8301
    %v9413 = vunpack.c.h.b16 %v8301
    %v9414 = vunpack.c.l.b16 %v8302
    %v9415 = vunpack.c.h.b16 %v8302
    %v9416 = vunpack.c.l.b16 %v8303
    %v9417 = vunpack.c.h.b16 %v8303
    %v9418 = vunpack.c.l.b16 %v8304
    %v9419 = vunpack.c.h.b16 %v8304
    %v9420 = vunpack.c.l.b16 %v8305
    %v9421 = vunpack.c.h.b16 %v8305
    %v9422 = vunpack.c.l.b16 %v8306
    %v9423 = vunpack.c.h.b16 %v8306
    %v9424 = vunpack.c.l.b16 %v8307
    %v9425 = vunpack.c.h.b16 %v8307
    %v9426 = vunpack.c.l.b16 %v8308
    %v9427 = vunpack.c.h.b16 %v8308
    %v9428 = vunpack.c.l.b16 %v8309
    %v9429 = vunpack.c.h.b16 %v8309
    %v9430 = vunpack.c.l.b16 %v8310
    %v9431 = vunpack.c.h.b16 %v8310
    %v9432 = vunpack.c.l.b16 %v8311
    %v9433 = vunpack.c.h.b16 %v8311
    %v9434 = vunpack.c.l.b16 %v8312
    %v9435 = vunpack.c.h.b16 %v8312
    %v9436 = vunpack.c.l.b16 %v8313
    %v9437 = vunpack.c.h.b16 %v8313
    %v9438 = vunpack.c.l.b16 %v8314
    %v9439 = vunpack.c.h.b16 %v8314
    %v9440 = vunpack.c.l.b16 %v8315
    %v9441 = vunpack.c.h.b16 %v8315
    %v9442 = vunpack.c.l.b16 %v8316
    %v9443 = vunpack.c.h.b16 %v8316
    %v9444 = vunpack.c.l.b16 %v8317
    %v9445 = vunpack.c.h.b16 %v8317
    %v9446 = vunpack.c.l.b16 %v8318
    %v9447 = vunpack.c.h.b16 %v8318
    %v9448 = vunpack.c.l.b16 %v8319
    %v9449 = vunpack.c.h.b16 %v8319
    %v9450 = vunpack.c.l.b16 %v8320
    %v9451 = vunpack.c.h.b16 %v8320
    %v9452 = vunpack.c.l.b16 %v8321
    %v9453 = vunpack.c.h.b16 %v8321
    %v9454 = vunpack.c.l.b16 %v8322
    %v9455 = vunpack.c.h.b16 %v8322
    %v9456 = vunpack.c.l.b16 %v8323
    %v9457 = vunpack.c.h.b16 %v8323
    %v9458 = vunpack.c.l.b16 %v8324
    %v9459 = vunpack.c.h.b16 %v8324
    %v9460 = vunpack.c.l.b16 %v8325
    %v9461 = vunpack.c.h.b16 %v8325
    %v9462 = vunpack.c.l.b16 %v8326
    %v9463 = vunpack.c.h.b16 %v8326
    %v9464 = vunpack.c.l.b16 %v8327
    %v9465 = vunpack.c.h.b16 %v8327
    %v9466 = vunpack.c.l.b16 %v8328
    %v9467 = vunpack.c.h.b16 %v8328
    %v9468 = vunpack.c.l.b16 %v8329
    %v9469 = vunpack.c.h.b16 %v8329
    %v9470 = vunpack.c.l.b16 %v8330
    %v9471 = vunpack.c.h.b16 %v8330
    %v9472 = vunpack.c.l.b16 %v8331
    %v9473 = vunpack.c.h.b16 %v8331
    %v9474 = vunpack.c.l.b16 %v8332
    %v9475 = vunpack.c.h.b16 %v8332
    %v9476 = vunpack.c.l.b16 %v8333
    %v9477 = vunpack.c.h.b16 %v8333
    %v9478 = vunpack.c.l.b16 %v8334
    %v9479 = vunpack.c.h.b16 %v8334
    %v9480 = vunpack.c.l.b16 %v8335
    %v9481 = vunpack.c.h.b16 %v8335
    %v9482 = vunpack.c.l.b16 %v8336
    %v9483 = vunpack.c.h.b16 %v8336
    %v9484 = vunpack.c.l.b16 %v8337
    %v9485 = vunpack.c.h.b16 %v8337
    %v9486 = vunpack.c.l.b16 %v8338
    %v9487 = vunpack.c.h.b16 %v8338
    %v9488 = vunpack.c.l.b16 %v8339
    %v9489 = vunpack.c.h.b16 %v8339
    %v9490 = vunpack.c.l.b16 %v8340
    %v9491 = vunpack.c.h.b16 %v8340
    %v9492 = vunpack.c.l.b16 %v8341
    %v9493 = vunpack.c.h.b16 %v8341
    %v9494 = vunpack.c.l.b16 %v8342
    %v9495 = vunpack.c.h.b16 %v8342
    %v9496 = vunpack.c.l.b16 %v8343
    %v9497 = vunpack.c.h.b16 %v8343
    %v9498 = vunpack.c.l.b16 %v8344
    %v9499 = vunpack.c.h.b16 %v8344
    %v9500 = vunpack.c.l.b16 %v8345
    %v9501 = vunpack.c.h.b16 %v8345
    %v9502 = vunpack.c.l.b16 %v8346
    %v9503 = vunpack.c.h.b16 %v8346
    %v9504 = vunpack.c.l.b16 %v8347
    %v9505 = vunpack.c.h.b16 %v8347
    %v9506 = vunpack.c.l.b16 %v8348
    %v9507 = vunpack.c.h.b16 %v8348
    %v9508 = vunpack.c.l.b16 %v8349
    %v9509 = vunpack.c.h.b16 %v8349
    %v9510 = vunpack.c.l.b16 %v8350
    %v9511 = vunpack.c.h.b16 %v8350
    %v9512 = vunpack.c.l.b16 %v8351
    %v9513 = vunpack.c.h.b16 %v8351
    %v9514 = vunpack.c.l.b16 %v8352
    %v9515 = vunpack.c.h.b16 %v8352
    %v9516 = vunpack.c.l.b16 %v8353
    %v9517 = vunpack.c.h.b16 %v8353
    %v9518 = vunpack.c.l.b16 %v8354
    %v9519 = vunpack.c.h.b16 %v8354
    %v9520 = vunpack.c.l.b16 %v8355
    %v9521 = vunpack.c.h.b16 %v8355
    %v9522 = vunpack.c.l.b16 %v8356
    %v9523 = vunpack.c.h.b16 %v8356
    %v9524 = vunpack.c.l.b16 %v8357
    %v9525 = vunpack.c.h.b16 %v8357
    %v9526 = vunpack.c.l.b16 %v8358
    %v9527 = vunpack.c.h.b16 %v8358
    %v9528 = vunpack.c.l.b16 %v8359
    %v9529 = vunpack.c.h.b16 %v8359
    %v9530 = vunpack.c.l.b16 %v8360
    %v9531 = vunpack.c.h.b16 %v8360
    %v9532 = vunpack.c.l.b16 %v8361
    %v9533 = vunpack.c.h.b16 %v8361
    %v9534 = vunpack.c.l.b16 %v8362
    %v9535 = vunpack.c.h.b16 %v8362
    %v9536 = vunpack.c.l.b16 %v8363
    %v9537 = vunpack.c.h.b16 %v8363
    %v9538 = vunpack.c.l.b16 %v8364
    %v9539 = vunpack.c.h.b16 %v8364
    %v9540 = vunpack.c.l.b16 %v8365
    %v9541 = vunpack.c.h.b16 %v8365
    %v9542 = vunpack.c.l.b16 %v8366
    %v9543 = vunpack.c.h.b16 %v8366
    %v9544 = vunpack.c.l.b16 %v8367
    %v9545 = vunpack.c.h.b16 %v8367
    %v9546 = vunpack.c.l.b16 %v8368
    %v9547 = vunpack.c.h.b16 %v8368
    %v9548 = vunpack.c.l.b16 %v8369
    %v9549 = vunpack.c.h.b16 %v8369
    %v9550 = vunpack.c.l.b16 %v8370
    %v9551 = vunpack.c.h.b16 %v8370
    %v9552 = vunpack.c.l.b16 %v8371
    %v9553 = vunpack.c.h.b16 %v8371
    %v9554 = vunpack.c.l.b16 %v8372
    %v9555 = vunpack.c.h.b16 %v8372
    %v9556 = vunpack.c.l.b16 %v8373
    %v9557 = vunpack.c.h.b16 %v8373
    %v9558 = vunpack.c.l.b16 %v8374
    %v9559 = vunpack.c.h.b16 %v8374
    %v9560 = vunpack.c.l.b16 %v8375
    %v9561 = vunpack.c.h.b16 %v8375
    %v9562 = vunpack.c.l.b16 %v8376
    %v9563 = vunpack.c.h.b16 %v8376
    %v9564 = vunpack.c.l.b16 %v8377
    %v9565 = vunpack.c.h.b16 %v8377
    %v9566 = vunpack.c.l.b16 %v8378
    %v9567 = vunpack.c.h.b16 %v8378
    %v9568 = vunpack.c.l.b16 %v8379
    %v9569 = vunpack.c.h.b16 %v8379
    %v9570 = vunpack.c.l.b16 %v8380
    %v9571 = vunpack.c.h.b16 %v8380
    %v9572 = vunpack.c.l.b16 %v8381
    %v9573 = vunpack.c.h.b16 %v8381
    %v9574 = vunpack.c.l.b16 %v8382
    %v9575 = vunpack.c.h.b16 %v8382
    %v9576 = vunpack.c.l.b16 %v8383
    %v9577 = vunpack.c.h.b16 %v8383
    %v9578 = vunpack.c.l.b16 %v8384
    %v9579 = vunpack.c.h.b16 %v8384
    %v9580 = vunpack.c.l.b16 %v8385
    %v9581 = vunpack.c.h.b16 %v8385
    %v9582 = vunpack.c.l.b16 %v8386
    %v9583 = vunpack.c.h.b16 %v8386
    %v9584 = vunpack.c.l.b16 %v8387
    %v9585 = vunpack.c.h.b16 %v8387
    %v9586 = vunpack.c.l.b16 %v8388
    %v9587 = vunpack.c.h.b16 %v8388
    %v9588 = vunpack.c.l.b16 %v8389
    %v9589 = vunpack.c.h.b16 %v8389
    %v9590 = vunpack.c.l.b16 %v8390
    %v9591 = vunpack.c.h.b16 %v8390
    %v9592 = vunpack.c.l.b16 %v8391
    %v9593 = vunpack.c.h.b16 %v8391
    %v9594 = vunpack.c.l.b16 %v8392
    %v9595 = vunpack.c.h.b16 %v8392
    %v9596 = vunpack.c.l.b16 %v8393
    %v9597 = vunpack.c.h.b16 %v8393
    %v9598 = vunpack.c.l.b16 %v8394
    %v9599 = vunpack.c.h.b16 %v8394
    %v9600 = vunpack.c.l.b16 %v8395
    %v9601 = vunpack.c.h.b16 %v8395
    %v9602 = vunpack.c.l.b16 %v8396
    %v9603 = vunpack.c.h.b16 %v8396
    %v9604 = vunpack.c.l.b16 %v8397
    %v9605 = vunpack.c.h.b16 %v8397
    %v9606 = vunpack.c.l.b16 %v8398
    %v9607 = vunpack.c.h.b16 %v8398
    %v9608 = vunpack.c.l.b16 %v8399
    %v9609 = vunpack.c.h.b16 %v8399
    %v9610 = vunpack.c.l.b16 %v8400
    %v9611 = vunpack.c.h.b16 %v8400
    %v9612 = vunpack.c.l.b16 %v8401
    %v9613 = vunpack.c.h.b16 %v8401
    %v9614 = vunpack.c.l.b16 %v8402
    %v9615 = vunpack.c.h.b16 %v8402
    %v9616 = vunpack.c.l.b16 %v8403
    %v9617 = vunpack.c.h.b16 %v8403
    %v9618 = vunpack.c.l.b16 %v8404
    %v9619 = vunpack.c.h.b16 %v8404
    %v9620 = vunpack.c.l.b16 %v8405
    %v9621 = vunpack.c.h.b16 %v8405
    %v9622 = vunpack.c.l.b16 %v8406
    %v9623 = vunpack.c.h.b16 %v8406
    %v9624 = vunpack.c.l.b16 %v8407
    %v9625 = vunpack.c.h.b16 %v8407
    %v9626 = vunpack.c.l.b16 %v8408
    %v9627 = vunpack.c.h.b16 %v8408
    %v9628 = vunpack.c.l.b16 %v8409
    %v9629 = vunpack.c.h.b16 %v8409
    %v9630 = vunpack.c.l.b16 %v8410
    %v9631 = vunpack.c.h.b16 %v8410
    %v9632 = vunpack.c.l.b16 %v8411
    %v9633 = vunpack.c.h.b16 %v8411
    %v9634 = vunpack.c.l.b16 %v8412
    %v9635 = vunpack.c.h.b16 %v8412
    %v9636 = vunpack.c.l.b16 %v8413
    %v9637 = vunpack.c.h.b16 %v8413
    %v9638 = vunpack.c.l.b16 %v8414
    %v9639 = vunpack.c.h.b16 %v8414
    %v9640 = vunpack.c.l.b16 %v8415
    %v9641 = vunpack.c.h.b16 %v8415
    %v9642 = vunpack.c.l.b16 %v8416
    %v9643 = vunpack.c.h.b16 %v8416
    %v9644 = vunpack.c.l.b16 %v8417
    %v9645 = vunpack.c.h.b16 %v8417
    %v9646 = vunpack.c.l.b16 %v8418
    %v9647 = vunpack.c.h.b16 %v8418
    %v9648 = vunpack.c.l.b16 %v8419
    %v9649 = vunpack.c.h.b16 %v8419
    %v9650 = vunpack.c.l.b16 %v8420
    %v9651 = vunpack.c.h.b16 %v8420
    %v9652 = vunpack.c.l.b16 %v8421
    %v9653 = vunpack.c.h.b16 %v8421
    %v9654 = vunpack.c.l.b16 %v8422
    %v9655 = vunpack.c.h.b16 %v8422
    %v9656 = vunpack.c.l.b16 %v8423
    %v9657 = vunpack.c.h.b16 %v8423
    %v9658 = vunpack.c.l.b16 %v8424
    %v9659 = vunpack.c.h.b16 %v8424
    %v9660 = vunpack.c.l.b16 %v8425
    %v9661 = vunpack.c.h.b16 %v8425
    %v9662 = vunpack.c.l.b16 %v8426
    %v9663 = vunpack.c.h.b16 %v8426
    %v9664 = vunpack.c.l.b16 %v8427
    %v9665 = vunpack.c.h.b16 %v8427
    %v9666 = vunpack.c.l.b16 %v8428
    %v9667 = vunpack.c.h.b16 %v8428
    %v9668 = vunpack.c.l.b16 %v8429
    %v9669 = vunpack.c.h.b16 %v8429
    %v9670 = vunpack.c.l.b16 %v8430
    %v9671 = vunpack.c.h.b16 %v8430
    %v9672 = vunpack.c.l.b16 %v8431
    %v9673 = vunpack.c.h.b16 %v8431
    %v9674 = vunpack.c.l.b16 %v8432
    %v9675 = vunpack.c.h.b16 %v8432
    %v9676 = vunpack.c.l.b16 %v8433
    %v9677 = vunpack.c.h.b16 %v8433
    %v9678 = vunpack.c.l.b16 %v8434
    %v9679 = vunpack.c.h.b16 %v8434
    %v9680 = vunpack.c.l.b16 %v8435
    %v9681 = vunpack.c.h.b16 %v8435
    %v9682 = vunpack.c.l.b16 %v8436
    %v9683 = vunpack.c.h.b16 %v8436
    %v9684 = vunpack.c.l.b16 %v8437
    %v9685 = vunpack.c.h.b16 %v8437
    %v9686 = vunpack.c.l.b16 %v8438
    %v9687 = vunpack.c.h.b16 %v8438
    %v9688 = vunpack.c.l.b16 %v8439
    %v9689 = vunpack.c.h.b16 %v8439
    %v9690 = vunpack.c.l.b16 %v8440
    %v9691 = vunpack.c.h.b16 %v8440
    %v9692 = vunpack.c.l.b16 %v8441
    %v9693 = vunpack.c.h.b16 %v8441
    %v9694 = vunpack.c.l.b16 %v8442
    %v9695 = vunpack.c.h.b16 %v8442
    %v9696 = vunpack.c.l.b16 %v8443
    %v9697 = vunpack.c.h.b16 %v8443
    %v9698 = vunpack.c.l.b16 %v8444
    %v9699 = vunpack.c.h.b16 %v8444
    %v9700 = vunpack.c.l.b16 %v8445
    %v9701 = vunpack.c.h.b16 %v8445
    %v9702 = vunpack.c.l.b16 %v8446
    %v9703 = vunpack.c.h.b16 %v8446
    %v9704 = vunpack.c.l.b16 %v8447
    %v9705 = vunpack.c.h.b16 %v8447
    %v9706 = vunpack.c.l.b16 %v8448
    %v9707 = vunpack.c.h.b16 %v8448
    %v9708 = vunpack.c.l.b16 %v8449
    %v9709 = vunpack.c.h.b16 %v8449
    %v9710 = vunpack.c.l.b16 %v8450
    %v9711 = vunpack.c.h.b16 %v8450
    %v9712 = vunpack.c.l.b16 %v8451
    %v9713 = vunpack.c.h.b16 %v8451
    %v9714 = vunpack.c.l.b16 %v8452
    %v9715 = vunpack.c.h.b16 %v8452
    %v9716 = vunpack.c.l.b16 %v8453
    %v9717 = vunpack.c.h.b16 %v8453
    %v9718 = vunpack.c.l.b16 %v8454
    %v9719 = vunpack.c.h.b16 %v8454
    %v9720 = vunpack.c.l.b16 %v8455
    %v9721 = vunpack.c.h.b16 %v8455
    %v9722 = vunpack.c.l.b16 %v8456
    %v9723 = vunpack.c.h.b16 %v8456
    %v9724 = vunpack.c.l.b16 %v8457
    %v9725 = vunpack.c.h.b16 %v8457
    %v9726 = vunpack.c.l.b16 %v8458
    %v9727 = vunpack.c.h.b16 %v8458
    %v9728 = vunpack.c.l.b16 %v8459
    %v9729 = vunpack.c.h.b16 %v8459
    %v9730 = vunpack.c.l.b16 %v8460
    %v9731 = vunpack.c.h.b16 %v8460
    %v9732 = vunpack.c.l.b16 %v8461
    %v9733 = vunpack.c.h.b16 %v8461
    %v9734 = vunpack.c.l.b16 %v8462
    %v9735 = vunpack.c.h.b16 %v8462
    %v9736 = vunpack.c.l.b16 %v8463
    %v9737 = vunpack.c.h.b16 %v8463
    %v9738 = vunpack.c.l.b16 %v8464
    %v9739 = vunpack.c.h.b16 %v8464
    %v9740 = vunpack.c.l.b16 %v8465
    %v9741 = vunpack.c.h.b16 %v8465
    %v9742 = vunpack.c.l.b16 %v8466
    %v9743 = vunpack.c.h.b16 %v8466
    %v9744 = vunpack.c.l.b16 %v8467
    %v9745 = vunpack.c.h.b16 %v8467
    %v9746 = vunpack.c.l.b16 %v8468
    %v9747 = vunpack.c.h.b16 %v8468
    %v9748 = vunpack.c.l.b16 %v8469
    %v9749 = vunpack.c.h.b16 %v8469
    %v9750 = vunpack.c.l.b16 %v8470
    %v9751 = vunpack.c.h.b16 %v8470
    %v9752 = vunpack.c.l.b16 %v8471
    %v9753 = vunpack.c.h.b16 %v8471
    %v9754 = vunpack.c.l.b16 %v8472
    %v9755 = vunpack.c.h.b16 %v8472
    %v9756 = vunpack.c.l.b16 %v8473
    %v9757 = vunpack.c.h.b16 %v8473
    %v9758 = vunpack.c.l.b16 %v8474
    %v9759 = vunpack.c.h.b16 %v8474
    %v9760 = vunpack.c.l.b16 %v8475
    %v9761 = vunpack.c.h.b16 %v8475
    %v9762 = vunpack.c.l.b16 %v8476
    %v9763 = vunpack.c.h.b16 %v8476
    %v9764 = vunpack.c.l.b16 %v8477
    %v9765 = vunpack.c.h.b16 %v8477
    %v9766 = vunpack.c.l.b16 %v8478
    %v9767 = vunpack.c.h.b16 %v8478
    %v9768 = vunpack.c.l.b16 %v8479
    %v9769 = vunpack.c.h.b16 %v8479
    %v9770 = vunpack.c.l.b16 %v8480
    %v9771 = vunpack.c.h.b16 %v8480
    %v9772 = vunpack.c.l.b16 %v8481
    %v9773 = vunpack.c.h.b16 %v8481
    %v9774 = vunpack.c.l.b16 %v8482
    %v9775 = vunpack.c.h.b16 %v8482
    %v9776 = vunpack.c.l.b16 %v8483
    %v9777 = vunpack.c.h.b16 %v8483
    %v9778 = vunpack.c.l.b16 %v8484
    %v9779 = vunpack.c.h.b16 %v8484
    %v9780 = vunpack.c.l.b16 %v8485
    %v9781 = vunpack.c.h.b16 %v8485
    %v9782 = vunpack.c.l.b16 %v8486
    %v9783 = vunpack.c.h.b16 %v8486
    %v9784 = vunpack.c.l.b16 %v8487
    %v9785 = vunpack.c.h.b16 %v8487
    %v9786 = vunpack.c.l.b16 %v8488
    %v9787 = vunpack.c.h.b16 %v8488
    %v9788 = vunpack.c.l.b16 %v8489
    %v9789 = vunpack.c.h.b16 %v8489
    %v9790 = vunpack.c.l.b16 %v8490
    %v9791 = vunpack.c.h.b16 %v8490
    %v9792 = vunpack.c.l.b16 %v8491
    %v9793 = vunpack.c.h.b16 %v8491
    %v9794 = vunpack.c.l.b16 %v8492
    %v9795 = vunpack.c.h.b16 %v8492
    %v9796 = vunpack.c.l.b16 %v8493
    %v9797 = vunpack.c.h.b16 %v8493
    %v9798 = vunpack.c.l.b16 %v8494
    %v9799 = vunpack.c.h.b16 %v8494
    %v9800 = vunpack.c.l.b16 %v8495
    %v9801 = vunpack.c.h.b16 %v8495
    %v9802 = vunpack.c.l.b16 %v8496
    %v9803 = vunpack.c.h.b16 %v8496
    %v9804 = vunpack.c.l.b16 %v8497
    %v9805 = vunpack.c.h.b16 %v8497
    %v9806 = vunpack.c.l.b16 %v8498
    %v9807 = vunpack.c.h.b16 %v8498
    %v9808 = vunpack.c.l.b16 %v8499
    %v9809 = vunpack.c.h.b16 %v8499
    %v9810 = vunpack.c.l.b16 %v8500
    %v9811 = vunpack.c.h.b16 %v8500
    %v9812 = vunpack.c.l.b16 %v8501
    %v9813 = vunpack.c.h.b16 %v8501
    %v9814 = vunpack.c.l.b16 %v8502
    %v9815 = vunpack.c.h.b16 %v8502
    %v9816 = vunpack.c.l.b16 %v8503
    %v9817 = vunpack.c.h.b16 %v8503
    %v9818 = vunpack.c.l.b16 %v8504
    %v9819 = vunpack.c.h.b16 %v8504
    %v9820 = vunpack.c.l.b16 %v8505
    %v9821 = vunpack.c.h.b16 %v8505
    %v9822 = vunpack.c.l.b16 %v8506
    %v9823 = vunpack.c.h.b16 %v8506
    %v9824 = vunpack.c.l.b16 %v8507
    %v9825 = vunpack.c.h.b16 %v8507
    %v9826 = vunpack.c.l.b16 %v8508
    %v9827 = vunpack.c.h.b16 %v8508
    %v9828 = vunpack.c.l.b16 %v8509
    %v9829 = vunpack.c.h.b16 %v8509
    %v9830 = vunpack.c.l.b16 %v8510
    %v9831 = vunpack.c.h.b16 %v8510
    %v9832 = vunpack.c.l.b16 %v8511
    %v9833 = vunpack.c.h.b16 %v8511
    %v9834 = vunpack.c.l.b16 %v8512
    %v9835 = vunpack.c.h.b16 %v8512
    %v9836 = vunpack.c.l.b16 %v8513
    %v9837 = vunpack.c.h.b16 %v8513
    %v9838 = vunpack.c.l.b16 %v8514
    %v9839 = vunpack.c.h.b16 %v8514
    %v9840 = vunpack.c.l.b16 %v8515
    %v9841 = vunpack.c.h.b16 %v8515
    %v9842 = vunpack.c.l.b16 %v8516
    %v9843 = vunpack.c.h.b16 %v8516
    %v9844 = vunpack.c.l.b16 %v8517
    %v9845 = vunpack.c.h.b16 %v8517
    %v9846 = vunpack.c.l.b16 %v8518
    %v9847 = vunpack.c.h.b16 %v8518
    %v9848 = vunpack.c.l.b16 %v8519
    %v9849 = vunpack.c.h.b16 %v8519
    %v9850 = vunpack.c.l.b16 %v8520
    %v9851 = vunpack.c.h.b16 %v8520
    %v9852 = vunpack.c.l.b16 %v8521
    %v9853 = vunpack.c.h.b16 %v8521
    %v9854 = vunpack.c.l.b16 %v8522
    %v9855 = vunpack.c.h.b16 %v8522
    %v9856 = vunpack.c.l.b16 %v8523
    %v9857 = vunpack.c.h.b16 %v8523
    %v9858 = vunpack.c.l.b16 %v8524
    %v9859 = vunpack.c.h.b16 %v8524
    %v9860 = vunpack.c.l.b16 %v8525
    %v9861 = vunpack.c.h.b16 %v8525
    %v9862 = vunpack.c.l.b16 %v8526
    %v9863 = vunpack.c.h.b16 %v8526
    %v9864 = vunpack.c.l.b16 %v8527
    %v9865 = vunpack.c.h.b16 %v8527
    %v9866 = vunpack.c.l.b16 %v8528
    %v9867 = vunpack.c.h.b16 %v8528
    %v9868 = vunpack.c.l.b16 %v8529
    %v9869 = vunpack.c.h.b16 %v8529
    %v9870 = vunpack.c.l.b16 %v8530
    %v9871 = vunpack.c.h.b16 %v8530
    %v9872 = vunpack.c.l.b16 %v8531
    %v9873 = vunpack.c.h.b16 %v8531
    %v9874 = vunpack.c.l.b16 %v8532
    %v9875 = vunpack.c.h.b16 %v8532
    %v9876 = vunpack.c.l.b16 %v8533
    %v9877 = vunpack.c.h.b16 %v8533
    %v9878 = vunpack.c.l.b16 %v8534
    %v9879 = vunpack.c.h.b16 %v8534
    %v9880 = vunpack.c.l.b16 %v8535
    %v9881 = vunpack.c.h.b16 %v8535
    %v9882 = vunpack.c.l.b16 %v8536
    %v9883 = vunpack.c.h.b16 %v8536
    %v9884 = vunpack.c.l.b16 %v8537
    %v9885 = vunpack.c.h.b16 %v8537
    %v9886 = vunpack.c.l.b16 %v8538
    %v9887 = vunpack.c.h.b16 %v8538
    %v9888 = vunpack.c.l.b16 %v8539
    %v9889 = vunpack.c.h.b16 %v8539
    %v9890 = vunpack.c.l.b16 %v8540
    %v9891 = vunpack.c.h.b16 %v8540
    %v9892 = vunpack.c.l.b16 %v8541
    %v9893 = vunpack.c.h.b16 %v8541
    %v9894 = vunpack.c.l.b16 %v8542
    %v9895 = vunpack.c.h.b16 %v8542
    %v9896 = vunpack.c.l.b16 %v8543
    %v9897 = vunpack.c.h.b16 %v8543
    %v9898 = vunpack.c.l.b16 %v8544
    %v9899 = vunpack.c.h.b16 %v8544
    %v9900 = vunpack.c.l.b16 %v8545
    %v9901 = vunpack.c.h.b16 %v8545
    %v9902 = vunpack.c.l.b16 %v8546
    %v9903 = vunpack.c.h.b16 %v8546
    %v9904 = vunpack.c.l.b16 %v8547
    %v9905 = vunpack.c.h.b16 %v8547
    %v9906 = vunpack.c.l.b16 %v8548
    %v9907 = vunpack.c.h.b16 %v8548
    %v9908 = vunpack.c.l.b16 %v8549
    %v9909 = vunpack.c.h.b16 %v8549
    %v9910 = vunpack.c.l.b16 %v8550
    %v9911 = vunpack.c.h.b16 %v8550
    %v9912 = vunpack.c.l.b16 %v8551
    %v9913 = vunpack.c.h.b16 %v8551
    %v9914 = vunpack.c.l.b16 %v8552
    %v9915 = vunpack.c.h.b16 %v8552
    %v9916 = vunpack.c.l.b16 %v8553
    %v9917 = vunpack.c.h.b16 %v8553
    %v9918 = vunpack.c.l.b16 %v8554
    %v9919 = vunpack.c.h.b16 %v8554
    %v9920 = vunpack.c.l.b16 %v8555
    %v9921 = vunpack.c.h.b16 %v8555
    %v9922 = vunpack.c.l.b16 %v8556
    %v9923 = vunpack.c.h.b16 %v8556
    %v9924 = vunpack.c.l.b16 %v8557
    %v9925 = vunpack.c.h.b16 %v8557
    %v9926 = vunpack.c.l.b16 %v8558
    %v9927 = vunpack.c.h.b16 %v8558
    %v9928 = vunpack.c.l.b16 %v8559
    %v9929 = vunpack.c.h.b16 %v8559
    %v9930 = vunpack.c.l.b16 %v8560
    %v9931 = vunpack.c.h.b16 %v8560
    %v9932 = vunpack.c.l.b16 %v8561
    %v9933 = vunpack.c.h.b16 %v8561
    %v9934 = vunpack.c.l.b16 %v8562
    %v9935 = vunpack.c.h.b16 %v8562
    %v9936 = vunpack.c.l.b16 %v8563
    %v9937 = vunpack.c.h.b16 %v8563
    %v9938 = vunpack.c.l.b16 %v8564
    %v9939 = vunpack.c.h.b16 %v8564
    %v9940 = vunpack.c.l.b16 %v8565
    %v9941 = vunpack.c.h.b16 %v8565
    %v9942 = vunpack.c.l.b16 %v8566
    %v9943 = vunpack.c.h.b16 %v8566
    %v9944 = vunpack.c.l.b16 %v8567
    %v9945 = vunpack.c.h.b16 %v8567
    %v9946 = vunpack.c.l.b16 %v8568
    %v9947 = vunpack.c.h.b16 %v8568
    %v9948 = vunpack.c.l.b16 %v8569
    %v9949 = vunpack.c.h.b16 %v8569
    %v9950 = vunpack.c.l.b16 %v8570
    %v9951 = vunpack.c.h.b16 %v8570
    %v9952 = vunpack.c.l.b16 %v8571
    %v9953 = vunpack.c.h.b16 %v8571
    %v9954 = vunpack.c.l.b16 %v8572
    %v9955 = vunpack.c.h.b16 %v8572
    %v9956 = vunpack.c.l.b16 %v8573
    %v9957 = vunpack.c.h.b16 %v8573
    %v9958 = vunpack.c.l.b16 %v8574
    %v9959 = vunpack.c.h.b16 %v8574
    %v9960 = vunpack.c.l.b16 %v8575
    %v9961 = vunpack.c.h.b16 %v8575
    %v9962 = vunpack.c.l.b16 %v8576
    %v9963 = vunpack.c.h.b16 %v8576
    %v9964 = vunpack.c.l.b16 %v8577
    %v9965 = vunpack.c.h.b16 %v8577
    %v9966 = vunpack.c.l.b16 %v8578
    %v9967 = vunpack.c.h.b16 %v8578
    %v9968 = vunpack.c.l.b16 %v8579
    %v9969 = vunpack.c.h.b16 %v8579
    %v9970 = vunpack.c.l.b16 %v8580
    %v9971 = vunpack.c.h.b16 %v8580
    %v9972 = vunpack.c.l.b16 %v8581
    %v9973 = vunpack.c.h.b16 %v8581
    %v9974 = vunpack.c.l.b16 %v8582
    %v9975 = vunpack.c.h.b16 %v8582
    %v9976 = vunpack.c.l.b16 %v8583
    %v9977 = vunpack.c.h.b16 %v8583
    %v9978 = vunpack.c.l.b16 %v8584
    %v9979 = vunpack.c.h.b16 %v8584
    %v9980 = vunpack.c.l.b16 %v8585
    %v9981 = vunpack.c.h.b16 %v8585
    %v9982 = vunpack.c.l.b16 %v8586
    %v9983 = vunpack.c.h.b16 %v8586
    %v9984 = vunpack.c.l.b16 %v8587
    %v9985 = vunpack.c.h.b16 %v8587
    %v9986 = vunpack.c.l.b16 %v8588
    %v9987 = vunpack.c.h.b16 %v8588
    %v9988 = vunpack.c.l.b16 %v8589
    %v9989 = vunpack.c.h.b16 %v8589
    %v9990 = vunpack.c.l.b16 %v8590
    %v9991 = vunpack.c.h.b16 %v8590
    %v9992 = vunpack.c.l.b16 %v8591
    %v9993 = vunpack.c.h.b16 %v8591
    %v9994 = vunpack.c.l.b16 %v8592
    %v9995 = vunpack.c.h.b16 %v8592
    %v9996 = vunpack.c.l.b16 %v8593
    %v9997 = vunpack.c.h.b16 %v8593
    %v9998 = vunpack.c.l.b16 %v8594
    %v9999 = vunpack.c.h.b16 %v8594
    %v10000 = vunpack.c.l.b16 %v8595
    %v10001 = vunpack.c.h.b16 %v8595
    %v10002 = vunpack.c.l.b16 %v8596
    %v10003 = vunpack.c.h.b16 %v8596
    %v10004 = vunpack.c.l.b16 %v8597
    %v10005 = vunpack.c.h.b16 %v8597
    %v10006 = vunpack.c.l.b16 %v8598
    %v10007 = vunpack.c.h.b16 %v8598
    %v10008 = vunpack.c.l.b16 %v8599
    %v10009 = vunpack.c.h.b16 %v8599
    %v10010 = vunpack.c.l.b16 %v8600
    %v10011 = vunpack.c.h.b16 %v8600
    %v10012 = vunpack.c.l.b16 %v8601
    %v10013 = vunpack.c.h.b16 %v8601
    %v10014 = vunpack.c.l.b16 %v8602
    %v10015 = vunpack.c.h.b16 %v8602
    %v10016 = vunpack.c.l.b16 %v8603
    %v10017 = vunpack.c.h.b16 %v8603
    %v10018 = vunpack.c.l.b16 %v8604
    %v10019 = vunpack.c.h.b16 %v8604
    %v10020 = vunpack.c.l.b16 %v8605
    %v10021 = vunpack.c.h.b16 %v8605
    %v10022 = vunpack.c.l.b16 %v8606
    %v10023 = vunpack.c.h.b16 %v8606
    %v10024 = vunpack.c.l.b16 %v8607
    %v10025 = vunpack.c.h.b16 %v8607
    %v10026 = vunpack.c.l.b16 %v8608
    %v10027 = vunpack.c.h.b16 %v8608
    %v10028 = vunpack.c.l.b16 %v8609
    %v10029 = vunpack.c.h.b16 %v8609
    %v10030 = vunpack.c.l.b16 %v8610
    %v10031 = vunpack.c.h.b16 %v8610
    %v10032 = vunpack.c.l.b16 %v8611
    %v10033 = vunpack.c.h.b16 %v8611
    %v10034 = vunpack.c.l.b16 %v8612
    %v10035 = vunpack.c.h.b16 %v8612
    %v10036 = vunpack.c.l.b16 %v8613
    %v10037 = vunpack.c.h.b16 %v8613
    %v10038 = vunpack.c.l.b16 %v8614
    %v10039 = vunpack.c.h.b16 %v8614
    %v10040 = vunpack.c.l.b16 %v8615
    %v10041 = vunpack.c.h.b16 %v8615
    %v10042 = vunpack.c.l.b16 %v8616
    %v10043 = vunpack.c.h.b16 %v8616
    %v10044 = vunpack.c.l.b16 %v8617
    %v10045 = vunpack.c.h.b16 %v8617
    %v10046 = vunpack.c.l.b16 %v8618
    %v10047 = vunpack.c.h.b16 %v8618
    %v10048 = vunpack.c.l.b16 %v8619
    %v10049 = vunpack.c.h.b16 %v8619
    %v10050 = vunpack.c.l.b16 %v8620
    %v10051 = vunpack.c.h.b16 %v8620
    %v10052 = vunpack.c.l.b16 %v8621
    %v10053 = vunpack.c.h.b16 %v8621
    %v10054 = vunpack.c.l.b16 %v8622
    %v10055 = vunpack.c.h.b16 %v8622
    %v10056 = vunpack.c.l.b16 %v8623
    %v10057 = vunpack.c.h.b16 %v8623
    %v10058 = vunpack.c.l.b16 %v8624
    %v10059 = vunpack.c.h.b16 %v8624
    %v10060 = vunpack.c.l.b16 %v8625
    %v10061 = vunpack.c.h.b16 %v8625
    %v10062 = vunpack.c.l.b16 %v8626
    %v10063 = vunpack.c.h.b16 %v8626
    %v10064 = vunpack.c.l.b16 %v8627
    %v10065 = vunpack.c.h.b16 %v8627
    %v10066 = vunpack.c.l.b16 %v8628
    %v10067 = vunpack.c.h.b16 %v8628
    %v10068 = vunpack.c.l.b16 %v8629
    %v10069 = vunpack.c.h.b16 %v8629
    %v10070 = vunpack.c.l.b16 %v8630
    %v10071 = vunpack.c.h.b16 %v8630
    %v10072 = vunpack.c.l.b16 %v8631
    %v10073 = vunpack.c.h.b16 %v8631
    %v10074 = vunpack.c.l.b16 %v8632
    %v10075 = vunpack.c.h.b16 %v8632
    %v10076 = vunpack.c.l.b16 %v8633
    %v10077 = vunpack.c.h.b16 %v8633
    %v10078 = vunpack.c.l.b16 %v8634
    %v10079 = vunpack.c.h.b16 %v8634
    %v10080 = vunpack.c.l.b16 %v8635
    %v10081 = vunpack.c.h.b16 %v8635
    %v10082 = vunpack.c.l.b16 %v8636
    %v10083 = vunpack.c.h.b16 %v8636
    %v10084 = vunpack.c.l.b16 %v8637
    %v10085 = vunpack.c.h.b16 %v8637
    %v10086 = vunpack.c.l.b16 %v8638
    %v10087 = vunpack.c.h.b16 %v8638
    %v10088 = vunpack.c.l.b16 %v8639
    %v10089 = vunpack.c.h.b16 %v8639
    %v10090 = vunpack.c.l.b16 %v8640
    %v10091 = vunpack.c.h.b16 %v8640
    %v10092 = vunpack.c.l.b16 %v8641
    %v10093 = vunpack.c.h.b16 %v8641
    %v10094 = vunpack.c.l.b16 %v8642
    %v10095 = vunpack.c.h.b16 %v8642
    %v10096 = vunpack.c.l.b16 %v8643
    %v10097 = vunpack.c.h.b16 %v8643
    %v10098 = vunpack.c.l.b16 %v8644
    %v10099 = vunpack.c.h.b16 %v8644
    %v10100 = vunpack.c.l.b16 %v8645
    %v10101 = vunpack.c.h.b16 %v8645
    %v10102 = vunpack.c.l.b16 %v8646
    %v10103 = vunpack.c.h.b16 %v8646
    %v10104 = vunpack.c.l.b16 %v8647
    %v10105 = vunpack.c.h.b16 %v8647
    %v10106 = vunpack.c.l.b16 %v8648
    %v10107 = vunpack.c.h.b16 %v8648
    %v10108 = vunpack.c.l.b16 %v8649
    %v10109 = vunpack.c.h.b16 %v8649
    %v10110 = vunpack.c.l.b16 %v8650
    %v10111 = vunpack.c.h.b16 %v8650
    %v10112 = vunpack.c.l.b16 %v8651
    %v10113 = vunpack.c.h.b16 %v8651
    %v10114 = vunpack.c.l.b16 %v8652
    %v10115 = vunpack.c.h.b16 %v8652
    %v10116 = vunpack.c.l.b16 %v8653
    %v10117 = vunpack.c.h.b16 %v8653
    %v10118 = vunpack.c.l.b16 %v8654
    %v10119 = vunpack.c.h.b16 %v8654
    %v10120 = vunpack.c.l.b16 %v8655
    %v10121 = vunpack.c.h.b16 %v8655
    %v10122 = vunpack.c.l.b16 %v8656
    %v10123 = vunpack.c.h.b16 %v8656
    %v10124 = vunpack.c.l.b16 %v8657
    %v10125 = vunpack.c.h.b16 %v8657
    %v10126 = vunpack.c.l.b16 %v8658
    %v10127 = vunpack.c.h.b16 %v8658
    %v10128 = vunpack.c.l.b16 %v8659
    %v10129 = vunpack.c.h.b16 %v8659
    %v10130 = vunpack.c.l.b16 %v8660
    %v10131 = vunpack.c.h.b16 %v8660
    %v10132 = vunpack.c.l.b16 %v8661
    %v10133 = vunpack.c.h.b16 %v8661
    %v10134 = vunpack.c.l.b16 %v8662
    %v10135 = vunpack.c.h.b16 %v8662
    %v10136 = vunpack.c.l.b16 %v8663
    %v10137 = vunpack.c.h.b16 %v8663
    %v10138 = vunpack.c.l.b16 %v8664
    %v10139 = vunpack.c.h.b16 %v8664
    %v10140 = vunpack.c.l.b16 %v8665
    %v10141 = vunpack.c.h.b16 %v8665
    %v10142 = vunpack.c.l.b16 %v8666
    %v10143 = vunpack.c.h.b16 %v8666
    %v10144 = vunpack.c.l.b16 %v8667
    %v10145 = vunpack.c.h.b16 %v8667
    %v10146 = vunpack.c.l.b16 %v8668
    %v10147 = vunpack.c.h.b16 %v8668
    %v10148 = vunpack.c.l.b16 %v8669
    %v10149 = vunpack.c.h.b16 %v8669
    %v10150 = vunpack.c.l.b16 %v8670
    %v10151 = vunpack.c.h.b16 %v8670
    %v10152 = vunpack.c.l.b16 %v8671
    %v10153 = vunpack.c.h.b16 %v8671
    %v10154 = vunpack.c.l.b16 %v8672
    %v10155 = vunpack.c.h.b16 %v8672
    %v10156 = vunpack.c.l.b16 %v8673
    %v10157 = vunpack.c.h.b16 %v8673
    %v10158 = vunpack.c.l.b16 %v8674
    %v10159 = vunpack.c.h.b16 %v8674
    %v10160 = vunpack.c.l.b16 %v8675
    %v10161 = vunpack.c.h.b16 %v8675
    %v10162 = vunpack.c.l.b16 %v8676
    %v10163 = vunpack.c.h.b16 %v8676
    %v10164 = vunpack.c.l.b16 %v8677
    %v10165 = vunpack.c.h.b16 %v8677
    %v10166 = vunpack.c.l.b16 %v8678
    %v10167 = vunpack.c.h.b16 %v8678
    %v10168 = vunpack.c.l.b16 %v8679
    %v10169 = vunpack.c.h.b16 %v8679
    %v10170 = vunpack.c.l.b16 %v8680
    %v10171 = vunpack.c.h.b16 %v8680
    %v10172 = vunpack.c.l.b16 %v8681
    %v10173 = vunpack.c.h.b16 %v8681
    %v10174 = vunpack.c.l.b16 %v8682
    %v10175 = vunpack.c.h.b16 %v8682
    %v10176 = vunpack.c.l.b16 %v8683
    %v10177 = vunpack.c.h.b16 %v8683
    %v10178 = vunpack.c.l.b16 %v8684
    %v10179 = vunpack.c.h.b16 %v8684
    %v10180 = vunpack.c.l.b16 %v8685
    %v10181 = vunpack.c.h.b16 %v8685
    %v10182 = vunpack.c.l.b16 %v8686
    %v10183 = vunpack.c.h.b16 %v8686
    %v10184 = vunpack.c.l.b16 %v8687
    %v10185 = vunpack.c.h.b16 %v8687
    %v10186 = vunpack.c.l.b16 %v8688
    %v10187 = vunpack.c.h.b16 %v8688
    %v10188 = vunpack.c.l.b16 %v8689
    %v10189 = vunpack.c.h.b16 %v8689
    %v10190 = vunpack.c.l.b16 %v8690
    %v10191 = vunpack.c.h.b16 %v8690
    %v10192 = vunpack.c.l.b16 %v8691
    %v10193 = vunpack.c.h.b16 %v8691
    %v10194 = vunpack.c.l.b16 %v8692
    %v10195 = vunpack.c.h.b16 %v8692
    %v10196 = vunpack.c.l.b16 %v8693
    %v10197 = vunpack.c.h.b16 %v8693
    %v10198 = vunpack.c.l.b16 %v8694
    %v10199 = vunpack.c.h.b16 %v8694
    %v10200 = vunpack.c.l.b16 %v8695
    %v10201 = vunpack.c.h.b16 %v8695
    %v10202 = vunpack.c.l.b16 %v8696
    %v10203 = vunpack.c.h.b16 %v8696
    %v10204 = vunpack.c.l.b16 %v8697
    %v10205 = vunpack.c.h.b16 %v8697
    %v10206 = vunpack.c.l.b16 %v8698
    %v10207 = vunpack.c.h.b16 %v8698
    %v10208 = vunpack.c.l.b16 %v8699
    %v10209 = vunpack.c.h.b16 %v8699
    %v10210 = vunpack.c.l.b16 %v8700
    %v10211 = vunpack.c.h.b16 %v8700
    %v10212 = vunpack.c.l.b16 %v8701
    %v10213 = vunpack.c.h.b16 %v8701
    %v10214 = vunpack.c.l.b16 %v8702
    %v10215 = vunpack.c.h.b16 %v8702
    %v10216 = vunpack.c.l.b16 %v8703
    %v10217 = vunpack.c.h.b16 %v8703
    %v10218 = vunpack.c.l.b16 %v8704
    %v10219 = vunpack.c.h.b16 %v8704
    %v10220 = vunpack.c.l.b16 %v8705
    %v10221 = vunpack.c.h.b16 %v8705
    %v10222 = vunpack.c.l.b16 %v8706
    %v10223 = vunpack.c.h.b16 %v8706
    %v10224 = vunpack.c.l.b16 %v8707
    %v10225 = vunpack.c.h.b16 %v8707
    %v10226 = vunpack.c.l.b16 %v8708
    %v10227 = vunpack.c.h.b16 %v8708
    %v10228 = vunpack.c.l.b16 %v8709
    %v10229 = vunpack.c.h.b16 %v8709
    %v10230 = vunpack.c.l.b16 %v8710
    %v10231 = vunpack.c.h.b16 %v8710
    %v10232 = vunpack.c.l.b16 %v8711
    %v10233 = vunpack.c.h.b16 %v8711
    %v10234 = vunpack.c.l.b16 %v8712
    %v10235 = vunpack.c.h.b16 %v8712
    %v10236 = vunpack.c.l.b16 %v8713
    %v10237 = vunpack.c.h.b16 %v8713
    %v10238 = vunpack.c.l.b16 %v8714
    %v10239 = vunpack.c.h.b16 %v8714
    %v10240 = vunpack.c.l.b16 %v8715
    %v10241 = vunpack.c.h.b16 %v8715
    %v10242 = vunpack.c.l.b16 %v8716
    %v10243 = vunpack.c.h.b16 %v8716
    %v10244 = vunpack.c.l.b16 %v8717
    %v10245 = vunpack.c.h.b16 %v8717
    %v10246 = vunpack.c.l.b16 %v8718
    %v10247 = vunpack.c.h.b16 %v8718
    %v10248 = vunpack.c.l.b16 %v8719
    %v10249 = vunpack.c.h.b16 %v8719
    %v10250 = vunpack.c.l.b16 %v8720
    %v10251 = vunpack.c.h.b16 %v8720
    %v10252 = vunpack.c.l.b16 %v8721
    %v10253 = vunpack.c.h.b16 %v8721
    %v10254 = vunpack.c.l.b16 %v8722
    %v10255 = vunpack.c.h.b16 %v8722
    %v10256 = vunpack.c.l.b16 %v8723
    %v10257 = vunpack.c.h.b16 %v8723
    %v10258 = vunpack.c.l.b16 %v8724
    %v10259 = vunpack.c.h.b16 %v8724
    %v10260 = vunpack.c.l.b16 %v8725
    %v10261 = vunpack.c.h.b16 %v8725
    %v10262 = vunpack.c.l.b16 %v8726
    %v10263 = vunpack.c.h.b16 %v8726
    %v10264 = vunpack.c.l.b16 %v8727
    %v10265 = vunpack.c.h.b16 %v8727
    %v10266 = vunpack.c.l.b16 %v8728
    %v10267 = vunpack.c.h.b16 %v8728
    %v10268 = vunpack.c.l.b16 %v8729
    %v10269 = vunpack.c.h.b16 %v8729
    %v10270 = vunpack.c.l.b16 %v8730
    %v10271 = vunpack.c.h.b16 %v8730
    %v10272 = vunpack.c.l.b16 %v8731
    %v10273 = vunpack.c.h.b16 %v8731
    %v10274 = vunpack.c.l.b16 %v8732
    %v10275 = vunpack.c.h.b16 %v8732
    %v10276 = vunpack.c.l.b16 %v8733
    %v10277 = vunpack.c.h.b16 %v8733
    %v10278 = vunpack.c.l.b16 %v8734
    %v10279 = vunpack.c.h.b16 %v8734
    %v10280 = vunpack.c.l.b16 %v8735
    %v10281 = vunpack.c.h.b16 %v8735
    %v10282 = vunpack.c.l.b16 %v8736
    %v10283 = vunpack.c.h.b16 %v8736
    %v10284 = vunpack.c.l.b16 %v8737
    %v10285 = vunpack.c.h.b16 %v8737
    %v10286 = vunpack.c.l.b16 %v8738
    %v10287 = vunpack.c.h.b16 %v8738
    %v10288 = vunpack.c.l.b16 %v8739
    %v10289 = vunpack.c.h.b16 %v8739
    %v10290 = vunpack.c.l.b16 %v8740
    %v10291 = vunpack.c.h.b16 %v8740
    %v10292 = vunpack.c.l.b16 %v8741
    %v10293 = vunpack.c.h.b16 %v8741
    %v10294 = vunpack.c.l.b16 %v8742
    %v10295 = vunpack.c.h.b16 %v8742
    %v10296 = vunpack.c.l.b16 %v8743
    %v10297 = vunpack.c.h.b16 %v8743
    %v10298 = vpack.c.b16 %v9282, %v9274
    %v10299 = vpack.c.b16 %v9283, %v9275
    %v10300 = vpack.c.b16 %v9284, %v9276
    %v10301 = vpack.c.b16 %v9285, %v9277
    %v10302 = vpack.c.b16 %v9286, %v9278
    %v10303 = vpack.c.b16 %v9287, %v9279
    %v10304 = vpack.c.b16 %v9288, %v9280
    %v10305 = vpack.c.b16 %v9289, %v9281
    %v10306 = vpack.c.b16 %v9298, %v9290
    %v10307 = vpack.c.b16 %v9299, %v9291
    %v10308 = vpack.c.b16 %v9300, %v9292
    %v10309 = vpack.c.b16 %v9301, %v9293
    %v10310 = vpack.c.b16 %v9302, %v9294
    %v10311 = vpack.c.b16 %v9303, %v9295
    %v10312 = vpack.c.b16 %v9304, %v9296
    %v10313 = vpack.c.b16 %v9305, %v9297
    %v10314 = vpack.c.b16 %v9314, %v9306
    %v10315 = vpack.c.b16 %v9315, %v9307
    %v10316 = vpack.c.b16 %v9316, %v9308
    %v10317 = vpack.c.b16 %v9317, %v9309
    %v10318 = vpack.c.b16 %v9318, %v9310
    %v10319 = vpack.c.b16 %v9319, %v9311
    %v10320 = vpack.c.b16 %v9320, %v9312
    %v10321 = vpack.c.b16 %v9321, %v9313
    %v10322 = vpack.c.b16 %v9330, %v9322
    %v10323 = vpack.c.b16 %v9331, %v9323
    %v10324 = vpack.c.b16 %v9332, %v9324
    %v10325 = vpack.c.b16 %v9333, %v9325
    %v10326 = vpack.c.b16 %v9334, %v9326
    %v10327 = vpack.c.b16 %v9335, %v9327
    %v10328 = vpack.c.b16 %v9336, %v9328
    %v10329 = vpack.c.b16 %v9337, %v9329
    %v10330 = vpack.c.b16 %v9346, %v9338
    %v10331 = vpack.c.b16 %v9347, %v9339
    %v10332 = vpack.c.b16 %v9348, %v9340
    %v10333 = vpack.c.b16 %v9349, %v9341
    %v10334 = vpack.c.b16 %v9350, %v9342
    %v10335 = vpack.c.b16 %v9351, %v9343
    %v10336 = vpack.c.b16 %v9352, %v9344
    %v10337 = vpack.c.b16 %v9353, %v9345
    %v10338 = vpack.c.b16 %v9362, %v9354
    %v10339 = vpack.c.b16 %v9363, %v9355
    %v10340 = vpack.c.b16 %v9364, %v9356
    %v10341 = vpack.c.b16 %v9365, %v9357
    %v10342 = vpack.c.b16 %v9366, %v9358
    %v10343 = vpack.c.b16 %v9367, %v9359
    %v10344 = vpack.c.b16 %v9368, %v9360
    %v10345 = vpack.c.b16 %v9369, %v9361
    %v10346 = vpack.c.b16 %v9378, %v9370
    %v10347 = vpack.c.b16 %v9379, %v9371
    %v10348 = vpack.c.b16 %v9380, %v9372
    %v10349 = vpack.c.b16 %v9381, %v9373
    %v10350 = vpack.c.b16 %v9382, %v9374
    %v10351 = vpack.c.b16 %v9383, %v9375
    %v10352 = vpack.c.b16 %v9384, %v9376
    %v10353 = vpack.c.b16 %v9385, %v9377
    %v10354 = vpack.c.b16 %v9394, %v9386
    %v10355 = vpack.c.b16 %v9395, %v9387
    %v10356 = vpack.c.b16 %v9396, %v9388
    %v10357 = vpack.c.b16 %v9397, %v9389
    %v10358 = vpack.c.b16 %v9398, %v9390
    %v10359 = vpack.c.b16 %v9399, %v9391
    %v10360 = vpack.c.b16 %v9400, %v9392
    %v10361 = vpack.c.b16 %v9401, %v9393
    %v10362 = vpack.c.b16 %v9410, %v9402
    %v10363 = vpack.c.b16 %v9411, %v9403
    %v10364 = vpack.c.b16 %v9412, %v9404
    %v10365 = vpack.c.b16 %v9413, %v9405
    %v10366 = vpack.c.b16 %v9414, %v9406
    %v10367 = vpack.c.b16 %v9415, %v9407
    %v10368 = vpack.c.b16 %v9416, %v9408
    %v10369 = vpack.c.b16 %v9417, %v9409
    %v10370 = vpack.c.b16 %v9426, %v9418
    %v10371 = vpack.c.b16 %v9427, %v9419
    %v10372 = vpack.c.b16 %v9428, %v9420
    %v10373 = vpack.c.b16 %v9429, %v9421
    %v10374 = vpack.c.b16 %v9430, %v9422
    %v10375 = vpack.c.b16 %v9431, %v9423
    %v10376 = vpack.c.b16 %v9432, %v9424
    %v10377 = vpack.c.b16 %v9433, %v9425
    %v10378 = vpack.c.b16 %v9442, %v9434
    %v10379 = vpack.c.b16 %v9443, %v9435
    %v10380 = vpack.c.b16 %v9444, %v9436
    %v10381 = vpack.c.b16 %v9445, %v9437
    %v10382 = vpack.c.b16 %v9446, %v9438
    %v10383 = vpack.c.b16 %v9447, %v9439
    %v10384 = vpack.c.b16 %v9448, %v9440
    %v10385 = vpack.c.b16 %v9449, %v9441
    %v10386 = vpack.c.b16 %v9458, %v9450
    %v10387 = vpack.c.b16 %v9459, %v9451
    %v10388 = vpack.c.b16 %v9460, %v9452
    %v10389 = vpack.c.b16 %v9461, %v9453
    %v10390 = vpack.c.b16 %v9462, %v9454
    %v10391 = vpack.c.b16 %v9463, %v9455
    %v10392 = vpack.c.b16 %v9464, %v9456
    %v10393 = vpack.c.b16 %v9465, %v9457
    %v10394 = vpack.c.b16 %v9474, %v9466
    %v10395 = vpack.c.b16 %v9475, %v9467
    %v10396 = vpack.c.b16 %v9476, %v9468
    %v10397 = vpack.c.b16 %v9477, %v9469
    %v10398 = vpack.c.b16 %v9478, %v9470
    %v10399 = vpack.c.b16 %v9479, %v9471
    %v10400 = vpack.c.b16 %v9480, %v9472
    %v10401 = vpack.c.b16 %v9481, %v9473
    %v10402 = vpack.c.b16 %v9490, %v9482
    %v10403 = vpack.c.b16 %v9491, %v9483
    %v10404 = vpack.c.b16 %v9492, %v9484
    %v10405 = vpack.c.b16 %v9493, %v9485
    %v10406 = vpack.c.b16 %v9494, %v9486
    %v10407 = vpack.c.b16 %v9495, %v9487
    %v10408 = vpack.c.b16 %v9496, %v9488
    %v10409 = vpack.c.b16 %v9497, %v9489
    %v10410 = vpack.c.b16 %v9506, %v9498
    %v10411 = vpack.c.b16 %v9507, %v9499
    %v10412 = vpack.c.b16 %v9508, %v9500
    %v10413 = vpack.c.b16 %v9509, %v9501
    %v10414 = vpack.c.b16 %v9510, %v9502
    %v10415 = vpack.c.b16 %v9511, %v9503
    %v10416 = vpack.c.b16 %v9512, %v9504
    %v10417 = vpack.c.b16 %v9513, %v9505
    %v10418 = vpack.c.b16 %v9522, %v9514
    %v10419 = vpack.c.b16 %v9523, %v9515
    %v10420 = vpack.c.b16 %v9524, %v9516
    %v10421 = vpack.c.b16 %v9525, %v9517
    %v10422 = vpack.c.b16 %v9526, %v9518
    %v10423 = vpack.c.b16 %v9527, %v9519
    %v10424 = vpack.c.b16 %v9528, %v9520
    %v10425 = vpack.c.b16 %v9529, %v9521
    %v10426 = vpack.c.b16 %v9538, %v9530
    %v10427 = vpack.c.b16 %v9539, %v9531
    %v10428 = vpack.c.b16 %v9540, %v9532
    %v10429 = vpack.c.b16 %v9541, %v9533
    %v10430 = vpack.c.b16 %v9542, %v9534
    %v10431 = vpack.c.b16 %v9543, %v9535
    %v10432 = vpack.c.b16 %v9544, %v9536
    %v10433 = vpack.c.b16 %v9545, %v9537
    %v10434 = vpack.c.b16 %v9554, %v9546
    %v10435 = vpack.c.b16 %v9555, %v9547
    %v10436 = vpack.c.b16 %v9556, %v9548
    %v10437 = vpack.c.b16 %v9557, %v9549
    %v10438 = vpack.c.b16 %v9558, %v9550
    %v10439 = vpack.c.b16 %v9559, %v9551
    %v10440 = vpack.c.b16 %v9560, %v9552
    %v10441 = vpack.c.b16 %v9561, %v9553
    %v10442 = vpack.c.b16 %v9570, %v9562
    %v10443 = vpack.c.b16 %v9571, %v9563
    %v10444 = vpack.c.b16 %v9572, %v9564
    %v10445 = vpack.c.b16 %v9573, %v9565
    %v10446 = vpack.c.b16 %v9574, %v9566
    %v10447 = vpack.c.b16 %v9575, %v9567
    %v10448 = vpack.c.b16 %v9576, %v9568
    %v10449 = vpack.c.b16 %v9577, %v9569
    %v10450 = vpack.c.b16 %v9586, %v9578
    %v10451 = vpack.c.b16 %v9587, %v9579
    %v10452 = vpack.c.b16 %v9588, %v9580
    %v10453 = vpack.c.b16 %v9589, %v9581
    %v10454 = vpack.c.b16 %v9590, %v9582
    %v10455 = vpack.c.b16 %v9591, %v9583
    %v10456 = vpack.c.b16 %v9592, %v9584
    %v10457 = vpack.c.b16 %v9593, %v9585
    %v10458 = vpack.c.b16 %v9602, %v9594
    %v10459 = vpack.c.b16 %v9603, %v9595
    %v10460 = vpack.c.b16 %v9604, %v9596
    %v10461 = vpack.c.b16 %v9605, %v9597
    %v10462 = vpack.c.b16 %v9606, %v9598
    %v10463 = vpack.c.b16 %v9607, %v9599
    %v10464 = vpack.c.b16 %v9608, %v9600
    %v10465 = vpack.c.b16 %v9609, %v9601
    %v10466 = vpack.c.b16 %v9618, %v9610
    %v10467 = vpack.c.b16 %v9619, %v9611
    %v10468 = vpack.c.b16 %v9620, %v9612
    %v10469 = vpack.c.b16 %v9621, %v9613
    %v10470 = vpack.c.b16 %v9622, %v9614
    %v10471 = vpack.c.b16 %v9623, %v9615
    %v10472 = vpack.c.b16 %v9624, %v9616
    %v10473 = vpack.c.b16 %v9625, %v9617
    %v10474 = vpack.c.b16 %v9634, %v9626
    %v10475 = vpack.c.b16 %v9635, %v9627
    %v10476 = vpack.c.b16 %v9636, %v9628
    %v10477 = vpack.c.b16 %v9637, %v9629
    %v10478 = vpack.c.b16 %v9638, %v9630
    %v10479 = vpack.c.b16 %v9639, %v9631
    %v10480 = vpack.c.b16 %v9640, %v9632
    %v10481 = vpack.c.b16 %v9641, %v9633
    %v10482 = vpack.c.b16 %v9650, %v9642
    %v10483 = vpack.c.b16 %v9651, %v9643
    %v10484 = vpack.c.b16 %v9652, %v9644
    %v10485 = vpack.c.b16 %v9653, %v9645
    %v10486 = vpack.c.b16 %v9654, %v9646
    %v10487 = vpack.c.b16 %v9655, %v9647
    %v10488 = vpack.c.b16 %v9656, %v9648
    %v10489 = vpack.c.b16 %v9657, %v9649
    %v10490 = vpack.c.b16 %v9666, %v9658
    %v10491 = vpack.c.b16 %v9667, %v9659
    %v10492 = vpack.c.b16 %v9668, %v9660
    %v10493 = vpack.c.b16 %v9669, %v9661
    %v10494 = vpack.c.b16 %v9670, %v9662
    %v10495 = vpack.c.b16 %v9671, %v9663
    %v10496 = vpack.c.b16 %v9672, %v9664
    %v10497 = vpack.c.b16 %v9673, %v9665
    %v10498 = vpack.c.b16 %v9682, %v9674
    %v10499 = vpack.c.b16 %v9683, %v9675
    %v10500 = vpack.c.b16 %v9684, %v9676
    %v10501 = vpack.c.b16 %v9685, %v9677
    %v10502 = vpack.c.b16 %v9686, %v9678
    %v10503 = vpack.c.b16 %v9687, %v9679
    %v10504 = vpack.c.b16 %v9688, %v9680
    %v10505 = vpack.c.b16 %v9689, %v9681
    %v10506 = vpack.c.b16 %v9698, %v9690
    %v10507 = vpack.c.b16 %v9699, %v9691
    %v10508 = vpack.c.b16 %v9700, %v9692
    %v10509 = vpack.c.b16 %v9701, %v9693
    %v10510 = vpack.c.b16 %v9702, %v9694
    %v10511 = vpack.c.b16 %v9703, %v9695
    %v10512 = vpack.c.b16 %v9704, %v9696
    %v10513 = vpack.c.b16 %v9705, %v9697
    %v10514 = vpack.c.b16 %v9714, %v9706
    %v10515 = vpack.c.b16 %v9715, %v9707
    %v10516 = vpack.c.b16 %v9716, %v9708
    %v10517 = vpack.c.b16 %v9717, %v9709
    %v10518 = vpack.c.b16 %v9718, %v9710
    %v10519 = vpack.c.b16 %v9719, %v9711
    %v10520 = vpack.c.b16 %v9720, %v9712
    %v10521 = vpack.c.b16 %v9721, %v9713
    %v10522 = vpack.c.b16 %v9730, %v9722
    %v10523 = vpack.c.b16 %v9731, %v9723
    %v10524 = vpack.c.b16 %v9732, %v9724
    %v10525 = vpack.c.b16 %v9733, %v9725
    %v10526 = vpack.c.b16 %v9734, %v9726
    %v10527 = vpack.c.b16 %v9735, %v9727
    %v10528 = vpack.c.b16 %v9736, %v9728
    %v10529 = vpack.c.b16 %v9737, %v9729
    %v10530 = vpack.c.b16 %v9746, %v9738
    %v10531 = vpack.c.b16 %v9747, %v9739
    %v10532 = vpack.c.b16 %v9748, %v9740
    %v10533 = vpack.c.b16 %v9749, %v9741
    %v10534 = vpack.c.b16 %v9750, %v9742
    %v10535 = vpack.c.b16 %v9751, %v9743
    %v10536 = vpack.c.b16 %v9752, %v9744
    %v10537 = vpack.c.b16 %v9753, %v9745
    %v10538 = vpack.c.b16 %v9762, %v9754
    %v10539 = vpack.c.b16 %v9763, %v9755
    %v10540 = vpack.c.b16 %v9764, %v9756
    %v10541 = vpack.c.b16 %v9765, %v9757
    %v10542 = vpack.c.b16 %v9766, %v9758
    %v10543 = vpack.c.b16 %v9767, %v9759
    %v10544 = vpack.c.b16 %v9768, %v9760
    %v10545 = vpack.c.b16 %v9769, %v9761
    %v10546 = vpack.c.b16 %v9778, %v9770
    %v10547 = vpack.c.b16 %v9779, %v9771
    %v10548 = vpack.c.b16 %v9780, %v9772
    %v10549 = vpack.c.b16 %v9781, %v9773
    %v10550 = vpack.c.b16 %v9782, %v9774
    %v10551 = vpack.c.b16 %v9783, %v9775
    %v10552 = vpack.c.b16 %v9784, %v9776
    %v10553 = vpack.c.b16 %v9785, %v9777
    %v10554 = vpack.c.b16 %v9794, %v9786
    %v10555 = vpack.c.b16 %v9795, %v9787
    %v10556 = vpack.c.b16 %v9796, %v9788
    %v10557 = vpack.c.b16 %v9797, %v9789
    %v10558 = vpack.c.b16 %v9798, %v9790
    %v10559 = vpack.c.b16 %v9799, %v9791
    %v10560 = vpack.c.b16 %v9800, %v9792
    %v10561 = vpack.c.b16 %v9801, %v9793
    %v10562 = vpack.c.b16 %v9810, %v9802
    %v10563 = vpack.c.b16 %v9811, %v9803
    %v10564 = vpack.c.b16 %v9812, %v9804
    %v10565 = vpack.c.b16 %v9813, %v9805
    %v10566 = vpack.c.b16 %v9814, %v9806
    %v10567 = vpack.c.b16 %v9815, %v9807
    %v10568 = vpack.c.b16 %v9816, %v9808
    %v10569 = vpack.c.b16 %v9817, %v9809
    %v10570 = vpack.c.b16 %v9826, %v9818
    %v10571 = vpack.c.b16 %v9827, %v9819
    %v10572 = vpack.c.b16 %v9828, %v9820
    %v10573 = vpack.c.b16 %v9829, %v9821
    %v10574 = vpack.c.b16 %v9830, %v9822
    %v10575 = vpack.c.b16 %v9831, %v9823
    %v10576 = vpack.c.b16 %v9832, %v9824
    %v10577 = vpack.c.b16 %v9833, %v9825
    %v10578 = vpack.c.b16 %v9842, %v9834
    %v10579 = vpack.c.b16 %v9843, %v9835
    %v10580 = vpack.c.b16 %v9844, %v9836
    %v10581 = vpack.c.b16 %v9845, %v9837
    %v10582 = vpack.c.b16 %v9846, %v9838
    %v10583 = vpack.c.b16 %v9847, %v9839
    %v10584 = vpack.c.b16 %v9848, %v9840
    %v10585 = vpack.c.b16 %v9849, %v9841
    %v10586 = vpack.c.b16 %v9858, %v9850
    %v10587 = vpack.c.b16 %v9859, %v9851
    %v10588 = vpack.c.b16 %v9860, %v9852
    %v10589 = vpack.c.b16 %v9861, %v9853
    %v10590 = vpack.c.b16 %v9862, %v9854
    %v10591 = vpack.c.b16 %v9863, %v9855
    %v10592 = vpack.c.b16 %v9864, %v9856
    %v10593 = vpack.c.b16 %v9865, %v9857
    %v10594 = vpack.c.b16 %v9874, %v9866
    %v10595 = vpack.c.b16 %v9875, %v9867
    %v10596 = vpack.c.b16 %v9876, %v9868
    %v10597 = vpack.c.b16 %v9877, %v9869
    %v10598 = vpack.c.b16 %v9878, %v9870
    %v10599 = vpack.c.b16 %v9879, %v9871
    %v10600 = vpack.c.b16 %v9880, %v9872
    %v10601 = vpack.c.b16 %v9881, %v9873
    %v10602 = vpack.c.b16 %v9890, %v9882
    %v10603 = vpack.c.b16 %v9891, %v9883
    %v10604 = vpack.c.b16 %v9892, %v9884
    %v10605 = vpack.c.b16 %v9893, %v9885
    %v10606 = vpack.c.b16 %v9894, %v9886
    %v10607 = vpack.c.b16 %v9895, %v9887
    %v10608 = vpack.c.b16 %v9896, %v9888
    %v10609 = vpack.c.b16 %v9897, %v9889
    %v10610 = vpack.c.b16 %v9906, %v9898
    %v10611 = vpack.c.b16 %v9907, %v9899
    %v10612 = vpack.c.b16 %v9908, %v9900
    %v10613 = vpack.c.b16 %v9909, %v9901
    %v10614 = vpack.c.b16 %v9910, %v9902
    %v10615 = vpack.c.b16 %v9911, %v9903
    %v10616 = vpack.c.b16 %v9912, %v9904
    %v10617 = vpack.c.b16 %v9913, %v9905
    %v10618 = vpack.c.b16 %v9922, %v9914
    %v10619 = vpack.c.b16 %v9923, %v9915
    %v10620 = vpack.c.b16 %v9924, %v9916
    %v10621 = vpack.c.b16 %v9925, %v9917
    %v10622 = vpack.c.b16 %v9926, %v9918
    %v10623 = vpack.c.b16 %v9927, %v9919
    %v10624 = vpack.c.b16 %v9928, %v9920
    %v10625 = vpack.c.b16 %v9929, %v9921
    %v10626 = vpack.c.b16 %v9938, %v9930
    %v10627 = vpack.c.b16 %v9939, %v9931
    %v10628 = vpack.c.b16 %v9940, %v9932
    %v10629 = vpack.c.b16 %v9941, %v9933
    %v10630 = vpack.c.b16 %v9942, %v9934
    %v10631 = vpack.c.b16 %v9943, %v9935
    %v10632 = vpack.c.b16 %v9944, %v9936
    %v10633 = vpack.c.b16 %v9945, %v9937
    %v10634 = vpack.c.b16 %v9954, %v9946
    %v10635 = vpack.c.b16 %v9955, %v9947
    %v10636 = vpack.c.b16 %v9956, %v9948
    %v10637 = vpack.c.b16 %v9957, %v9949
    %v10638 = vpack.c.b16 %v9958, %v9950
    %v10639 = vpack.c.b16 %v9959, %v9951
    %v10640 = vpack.c.b16 %v9960, %v9952
    %v10641 = vpack.c.b16 %v9961, %v9953
    %v10642 = vpack.c.b16 %v9970, %v9962
    %v10643 = vpack.c.b16 %v9971, %v9963
    %v10644 = vpack.c.b16 %v9972, %v9964
    %v10645 = vpack.c.b16 %v9973, %v9965
    %v10646 = vpack.c.b16 %v9974, %v9966
    %v10647 = vpack.c.b16 %v9975, %v9967
    %v10648 = vpack.c.b16 %v9976, %v9968
    %v10649 = vpack.c.b16 %v9977, %v9969
    %v10650 = vpack.c.b16 %v9986, %v9978
    %v10651 = vpack.c.b16 %v9987, %v9979
    %v10652 = vpack.c.b16 %v9988, %v9980
    %v10653 = vpack.c.b16 %v9989, %v9981
    %v10654 = vpack.c.b16 %v9990, %v9982
    %v10655 = vpack.c.b16 %v9991, %v9983
    %v10656 = vpack.c.b16 %v9992, %v9984
    %v10657 = vpack.c.b16 %v9993, %v9985
    %v10658 = vpack.c.b16 %v10002, %v9994
    %v10659 = vpack.c.b16 %v10003, %v9995
    %v10660 = vpack.c.b16 %v10004, %v9996
    %v10661 = vpack.c.b16 %v10005, %v9997
    %v10662 = vpack.c.b16 %v10006, %v9998
    %v10663 = vpack.c.b16 %v10007, %v9999
    %v10664 = vpack.c.b16 %v10008, %v10000
    %v10665 = vpack.c.b16 %v10009, %v10001
    %v10666 = vpack.c.b16 %v10018, %v10010
    %v10667 = vpack.c.b16 %v10019, %v10011
    %v10668 = vpack.c.b16 %v10020, %v10012
    %v10669 = vpack.c.b16 %v10021, %v10013
    %v10670 = vpack.c.b16 %v10022, %v10014
    %v10671 = vpack.c.b16 %v10023, %v10015
    %v10672 = vpack.c.b16 %v10024, %v10016
    %v10673 = vpack.c.b16 %v10025, %v10017
    %v10674 = vpack.c.b16 %v10034, %v10026
    %v10675 = vpack.c.b16 %v10035, %v10027
    %v10676 = vpack.c.b16 %v10036, %v10028
    %v10677 = vpack.c.b16 %v10037, %v10029
    %v10678 = vpack.c.b16 %v10038, %v10030
    %v10679 = vpack.c.b16 %v10039, %v10031
    %v10680 = vpack.c.b16 %v10040, %v10032
    %v10681 = vpack.c.b16 %v10041, %v10033
    %v10682 = vpack.c.b16 %v10050, %v10042
    %v10683 = vpack.c.b16 %v10051, %v10043
    %v10684 = vpack.c.b16 %v10052, %v10044
    %v10685 = vpack.c.b16 %v10053, %v10045
    %v10686 = vpack.c.b16 %v10054, %v10046
    %v10687 = vpack.c.b16 %v10055, %v10047
    %v10688 = vpack.c.b16 %v10056, %v10048
    %v10689 = vpack.c.b16 %v10057, %v10049
    %v10690 = vpack.c.b16 %v10066, %v10058
    %v10691 = vpack.c.b16 %v10067, %v10059
    %v10692 = vpack.c.b16 %v10068, %v10060
    %v10693 = vpack.c.b16 %v10069, %v10061
    %v10694 = vpack.c.b16 %v10070, %v10062
    %v10695 = vpack.c.b16 %v10071, %v10063
    %v10696 = vpack.c.b16 %v10072, %v10064
    %v10697 = vpack.c.b16 %v10073, %v10065
    %v10698 = vpack.c.b16 %v10082, %v10074
    %v10699 = vpack.c.b16 %v10083, %v10075
    %v10700 = vpack.c.b16 %v10084, %v10076
    %v10701 = vpack.c.b16 %v10085, %v10077
    %v10702 = vpack.c.b16 %v10086, %v10078
    %v10703 = vpack.c.b16 %v10087, %v10079
    %v10704 = vpack.c.b16 %v10088, %v10080
    %v10705 = vpack.c.b16 %v10089, %v10081
    %v10706 = vpack.c.b16 %v10098, %v10090
    %v10707 = vpack.c.b16 %v10099, %v10091
    %v10708 = vpack.c.b16 %v10100, %v10092
    %v10709 = vpack.c.b16 %v10101, %v10093
    %v10710 = vpack.c.b16 %v10102, %v10094
    %v10711 = vpack.c.b16 %v10103, %v10095
    %v10712 = vpack.c.b16 %v10104, %v10096
    %v10713 = vpack.c.b16 %v10105, %v10097
    %v10714 = vpack.c.b16 %v10114, %v10106
    %v10715 = vpack.c.b16 %v10115, %v10107
    %v10716 = vpack.c.b16 %v10116, %v10108
    %v10717 = vpack.c.b16 %v10117, %v10109
    %v10718 = vpack.c.b16 %v10118, %v10110
    %v10719 = vpack.c.b16 %v10119, %v10111
    %v10720 = vpack.c.b16 %v10120, %v10112
    %v10721 = vpack.c.b16 %v10121, %v10113
    %v10722 = vpack.c.b16 %v10130, %v10122
    %v10723 = vpack.c.b16 %v10131, %v10123
    %v10724 = vpack.c.b16 %v10132, %v10124
    %v10725 = vpack.c.b16 %v10133, %v10125
    %v10726 = vpack.c.b16 %v10134, %v10126
    %v10727 = vpack.c.b16 %v10135, %v10127
    %v10728 = vpack.c.b16 %v10136, %v10128
    %v10729 = vpack.c.b16 %v10137, %v10129
    %v10730 = vpack.c.b16 %v10146, %v10138
    %v10731 = vpack.c.b16 %v10147, %v10139
    %v10732 = vpack.c.b16 %v10148, %v10140
    %v10733 = vpack.c.b16 %v10149, %v10141
    %v10734 = vpack.c.b16 %v10150, %v10142
    %v10735 = vpack.c.b16 %v10151, %v10143
    %v10736 = vpack.c.b16 %v10152, %v10144
    %v10737 = vpack.c.b16 %v10153, %v10145
    %v10738 = vpack.c.b16 %v10162, %v10154
    %v10739 = vpack.c.b16 %v10163, %v10155
    %v10740 = vpack.c.b16 %v10164, %v10156
    %v10741 = vpack.c.b16 %v10165, %v10157
    %v10742 = vpack.c.b16 %v10166, %v10158
    %v10743 = vpack.c.b16 %v10167, %v10159
    %v10744 = vpack.c.b16 %v10168, %v10160
    %v10745 = vpack.c.b16 %v10169, %v10161
    %v10746 = vpack.c.b16 %v10178, %v10170
    %v10747 = vpack.c.b16 %v10179, %v10171
    %v10748 = vpack.c.b16 %v10180, %v10172
    %v10749 = vpack.c.b16 %v10181, %v10173
    %v10750 = vpack.c.b16 %v10182, %v10174
    %v10751 = vpack.c.b16 %v10183, %v10175
    %v10752 = vpack.c.b16 %v10184, %v10176
    %v10753 = vpack.c.b16 %v10185, %v10177
    %v10754 = vpack.c.b16 %v10194, %v10186
    %v10755 = vpack.c.b16 %v10195, %v10187
    %v10756 = vpack.c.b16 %v10196, %v10188
    %v10757 = vpack.c.b16 %v10197, %v10189
    %v10758 = vpack.c.b16 %v10198, %v10190
    %v10759 = vpack.c.b16 %v10199, %v10191
    %v10760 = vpack.c.b16 %v10200, %v10192
    %v10761 = vpack.c.b16 %v10201, %v10193
    %v10762 = vpack.c.b16 %v10210, %v10202
    %v10763 = vpack.c.b16 %v10211, %v10203
    %v10764 = vpack.c.b16 %v10212, %v10204
    %v10765 = vpack.c.b16 %v10213, %v10205
    %v10766 = vpack.c.b16 %v10214, %v10206
    %v10767 = vpack.c.b16 %v10215, %v10207
    %v10768 = vpack.c.b16 %v10216, %v10208
    %v10769 = vpack.c.b16 %v10217, %v10209
    %v10770 = vpack.c.b16 %v10226, %v10218
    %v10771 = vpack.c.b16 %v10227, %v10219
    %v10772 = vpack.c.b16 %v10228, %v10220
    %v10773 = vpack.c.b16 %v10229, %v10221
    %v10774 = vpack.c.b16 %v10230, %v10222
    %v10775 = vpack.c.b16 %v10231, %v10223
    %v10776 = vpack.c.b16 %v10232, %v10224
    %v10777 = vpack.c.b16 %v10233, %v10225
    %v10778 = vpack.c.b16 %v10242, %v10234
    %v10779 = vpack.c.b16 %v10243, %v10235
    %v10780 = vpack.c.b16 %v10244, %v10236
    %v10781 = vpack.c.b16 %v10245, %v10237
    %v10782 = vpack.c.b16 %v10246, %v10238
    %v10783 = vpack.c.b16 %v10247, %v10239
    %v10784 = vpack.c.b16 %v10248, %v10240
    %v10785 = vpack.c.b16 %v10249, %v10241
    %v10786 = vpack.c.b16 %v10258, %v10250
    %v10787 = vpack.c.b16 %v10259, %v10251
    %v10788 = vpack.c.b16 %v10260, %v10252
    %v10789 = vpack.c.b16 %v10261, %v10253
    %v10790 = vpack.c.b16 %v10262, %v10254
    %v10791 = vpack.c.b16 %v10263, %v10255
    %v10792 = vpack.c.b16 %v10264, %v10256
    %v10793 = vpack.c.b16 %v10265, %v10257
    %v10794 = vpack.c.b16 %v10274, %v10266
    %v10795 = vpack.c.b16 %v10275, %v10267
    %v10796 = vpack.c.b16 %v10276, %v10268
    %v10797 = vpack.c.b16 %v10277, %v10269
    %v10798 = vpack.c.b16 %v10278, %v10270
    %v10799 = vpack.c.b16 %v10279, %v10271
    %v10800 = vpack.c.b16 %v10280, %v10272
    %v10801 = vpack.c.b16 %v10281, %v10273
    %v10802 = vpack.c.b16 %v10290, %v10282
    %v10803 = vpack.c.b16 %v10291, %v10283
    %v10804 = vpack.c.b16 %v10292, %v10284
    %v10805 = vpack.c.b16 %v10293, %v10285
    %v10806 = vpack.c.b16 %v10294, %v10286
    %v10807 = vpack.c.b16 %v10295, %v10287
    %v10808 = vpack.c.b16 %v10296, %v10288
    %v10809 = vpack.c.b16 %v10297, %v10289
    %11322 = vmatpush.bf16.msra.mxu0 %v10354
    %11323 = vmatpush.bf16.msra.mxu0 %v10346
    %11324 = vmatpush.bf16.msra.mxu0 %v10338
    %11325 = vmatpush.bf16.msra.mxu0 %v10330
    %11326 = vmatpush.bf16.msra.mxu0 %v10322
    %11327 = vmatpush.bf16.msra.mxu0 %v10314
    %11328 = vmatpush.bf16.msra.mxu0 %v10306
    %11329 = vmatpush.bf16.msra.mxu0 %v10298
    %11330 = vmatmul.bf16.gmra.mxu0 %v8224
    %v11331 = vpop.f32.mrf.mxu0
    %v11332 = vadd.f32 %v8746, %v11331
    %v11333 = vpop.f32.mrf.mxu0
    %v11334 = vadd.f32 %v8746, %v11333
    %11335 = vdwg.mxu0
    %11336 = vmatpush.bf16.msra.mxu0 %v10418
    %11337 = vmatpush.bf16.msra.mxu0 %v10410
    %11338 = vmatpush.bf16.msra.mxu0 %v10402
    %11339 = vmatpush.bf16.msra.mxu0 %v10394
    %11340 = vmatpush.bf16.msra.mxu0 %v10386
    %11341 = vmatpush.bf16.msra.mxu0 %v10378
    %11342 = vmatpush.bf16.msra.mxu0 %v10370
    %11343 = vmatpush.bf16.msra.mxu0 %v10362
    %11344 = vmatmul.bf16.gmra.mxu0 %v8225
    %v11345 = vpop.f32.mrf.mxu0
    %v11346 = vadd.f32 %v11332, %v11345
    %v11347 = vpop.f32.mrf.mxu0
    %v11348 = vadd.f32 %v11334, %v11347
    %11349 = vdwg.mxu0
    %11350 = vmatpush.bf16.msra.mxu0 %v10482
    %11351 = vmatpush.bf16.msra.mxu0 %v10474
    %11352 = vmatpush.bf16.msra.mxu0 %v10466
    %11353 = vmatpush.bf16.msra.mxu0 %v10458
    %11354 = vmatpush.bf16.msra.mxu0 %v10450
    %11355 = vmatpush.bf16.msra.mxu0 %v10442
    %11356 = vmatpush.bf16.msra.mxu0 %v10434
    %11357 = vmatpush.bf16.msra.mxu0 %v10426
    %11358 = vmatmul.bf16.gmra.mxu0 %v8226
    %v11359 = vpop.f32.mrf.mxu0
    %v11360 = vadd.f32 %v11346, %v11359
    %v11361 = vpop.f32.mrf.mxu0
    %v11362 = vadd.f32 %v11348, %v11361
    %11363 = vdwg.mxu0
    %11364 = vmatpush.bf16.msra.mxu0 %v10546
    %11365 = vmatpush.bf16.msra.mxu0 %v10538
    %11366 = vmatpush.bf16.msra.mxu0 %v10530
    %11367 = vmatpush.bf16.msra.mxu0 %v10522
    %11368 = vmatpush.bf16.msra.mxu0 %v10514
    %11369 = vmatpush.bf16.msra.mxu0 %v10506
    %11370 = vmatpush.bf16.msra.mxu0 %v10498
    %11371 = vmatpush.bf16.msra.mxu0 %v10490
    %11372 = vmatmul.bf16.gmra.mxu0 %v8227
    %v11373 = vpop.f32.mrf.mxu0
    %v11374 = vadd.f32 %v11360, %v11373
    %v11375 = vpop.f32.mrf.mxu0
    %v11376 = vadd.f32 %v11362, %v11375
    %11377 = vdwg.mxu0
    %11378 = vmatpush.bf16.msra.mxu0 %v10610
    %11379 = vmatpush.bf16.msra.mxu0 %v10602
    %11380 = vmatpush.bf16.msra.mxu0 %v10594
    %11381 = vmatpush.bf16.msra.mxu0 %v10586
    %11382 = vmatpush.bf16.msra.mxu0 %v10578
    %11383 = vmatpush.bf16.msra.mxu0 %v10570
    %11384 = vmatpush.bf16.msra.mxu0 %v10562
    %11385 = vmatpush.bf16.msra.mxu0 %v10554
    %11386 = vmatmul.bf16.gmra.mxu0 %v8228
    %v11387 = vpop.f32.mrf.mxu0
    %v11388 = vadd.f32 %v11374, %v11387
    %v11389 = vpop.f32.mrf.mxu0
    %v11390 = vadd.f32 %v11376, %v11389
    %11391 = vdwg.mxu0
    %11392 = vmatpush.bf16.msra.mxu0 %v10674
    %11393 = vmatpush.bf16.msra.mxu0 %v10666
    %11394 = vmatpush.bf16.msra.mxu0 %v10658
    %11395 = vmatpush.bf16.msra.mxu0 %v10650
    %11396 = vmatpush.bf16.msra.mxu0 %v10642
    %11397 = vmatpush.bf16.msra.mxu0 %v10634
    %11398 = vmatpush.bf16.msra.mxu0 %v10626
    %11399 = vmatpush.bf16.msra.mxu0 %v10618
    %11400 = vmatmul.bf16.gmra.mxu0 %v8229
    %v11401 = vpop.f32.mrf.mxu0
    %v11402 = vadd.f32 %v11388, %v11401
    %v11403 = vpop.f32.mrf.mxu0
    %v11404 = vadd.f32 %v11390, %v11403
    %11405 = vdwg.mxu0
    %11406 = vmatpush.bf16.msra.mxu0 %v10738
    %11407 = vmatpush.bf16.msra.mxu0 %v10730
    %11408 = vmatpush.bf16.msra.mxu0 %v10722
    %11409 = vmatpush.bf16.msra.mxu0 %v10714
    %11410 = vmatpush.bf16.msra.mxu0 %v10706
    %11411 = vmatpush.bf16.msra.mxu0 %v10698
    %11412 = vmatpush.bf16.msra.mxu0 %v10690
    %11413 = vmatpush.bf16.msra.mxu0 %v10682
    %11414 = vmatmul.bf16.gmra.mxu0 %v8230
    %v11415 = vpop.f32.mrf.mxu0
    %v11416 = vadd.f32 %v11402, %v11415
    %v11417 = vpop.f32.mrf.mxu0
    %v11418 = vadd.f32 %v11404, %v11417
    %11419 = vdwg.mxu0
    %11420 = vmatpush.bf16.msra.mxu0 %v10802
    %11421 = vmatpush.bf16.msra.mxu0 %v10794
    %11422 = vmatpush.bf16.msra.mxu0 %v10786
    %11423 = vmatpush.bf16.msra.mxu0 %v10778
    %11424 = vmatpush.bf16.msra.mxu0 %v10770
    %11425 = vmatpush.bf16.msra.mxu0 %v10762
    %11426 = vmatpush.bf16.msra.mxu0 %v10754
    %11427 = vmatpush.bf16.msra.mxu0 %v10746
    %11428 = vmatmul.bf16.gmra.mxu0 %v8231
    %v11429 = vpop.f32.mrf.mxu0
    %v11430 = vadd.f32 %v11416, %v11429
    %v11431 = vpop.f32.mrf.mxu0
    %v11432 = vadd.f32 %v11418, %v11431
    %11433 = vdwg.mxu0
    %11434 = vmatpush.bf16.msra.mxu0 %v10355
    %11435 = vmatpush.bf16.msra.mxu0 %v10347
    %11436 = vmatpush.bf16.msra.mxu0 %v10339
    %11437 = vmatpush.bf16.msra.mxu0 %v10331
    %11438 = vmatpush.bf16.msra.mxu0 %v10323
    %11439 = vmatpush.bf16.msra.mxu0 %v10315
    %11440 = vmatpush.bf16.msra.mxu0 %v10307
    %11441 = vmatpush.bf16.msra.mxu0 %v10299
    %11442 = vmatmul.bf16.gmra.mxu0 %v8224
    %v11443 = vpop.f32.mrf.mxu0
    %v11444 = vadd.f32 %v8747, %v11443
    %v11445 = vpop.f32.mrf.mxu0
    %v11446 = vadd.f32 %v8747, %v11445
    %11447 = vdwg.mxu0
    %11448 = vmatpush.bf16.msra.mxu0 %v10419
    %11449 = vmatpush.bf16.msra.mxu0 %v10411
    %11450 = vmatpush.bf16.msra.mxu0 %v10403
    %11451 = vmatpush.bf16.msra.mxu0 %v10395
    %11452 = vmatpush.bf16.msra.mxu0 %v10387
    %11453 = vmatpush.bf16.msra.mxu0 %v10379
    %11454 = vmatpush.bf16.msra.mxu0 %v10371
    %11455 = vmatpush.bf16.msra.mxu0 %v10363
    %11456 = vmatmul.bf16.gmra.mxu0 %v8225
    %v11457 = vpop.f32.mrf.mxu0
    %v11458 = vadd.f32 %v11444, %v11457
    %v11459 = vpop.f32.mrf.mxu0
    %v11460 = vadd.f32 %v11446, %v11459
    %11461 = vdwg.mxu0
    %11462 = vmatpush.bf16.msra.mxu0 %v10483
    %11463 = vmatpush.bf16.msra.mxu0 %v10475
    %11464 = vmatpush.bf16.msra.mxu0 %v10467
    %11465 = vmatpush.bf16.msra.mxu0 %v10459
    %11466 = vmatpush.bf16.msra.mxu0 %v10451
    %11467 = vmatpush.bf16.msra.mxu0 %v10443
    %11468 = vmatpush.bf16.msra.mxu0 %v10435
    %11469 = vmatpush.bf16.msra.mxu0 %v10427
    %11470 = vmatmul.bf16.gmra.mxu0 %v8226
    %v11471 = vpop.f32.mrf.mxu0
    %v11472 = vadd.f32 %v11458, %v11471
    %v11473 = vpop.f32.mrf.mxu0
    %v11474 = vadd.f32 %v11460, %v11473
    %11475 = vdwg.mxu0
    %11476 = vmatpush.bf16.msra.mxu0 %v10547
    %11477 = vmatpush.bf16.msra.mxu0 %v10539
    %11478 = vmatpush.bf16.msra.mxu0 %v10531
    %11479 = vmatpush.bf16.msra.mxu0 %v10523
    %11480 = vmatpush.bf16.msra.mxu0 %v10515
    %11481 = vmatpush.bf16.msra.mxu0 %v10507
    %11482 = vmatpush.bf16.msra.mxu0 %v10499
    %11483 = vmatpush.bf16.msra.mxu0 %v10491
    %11484 = vmatmul.bf16.gmra.mxu0 %v8227
    %v11485 = vpop.f32.mrf.mxu0
    %v11486 = vadd.f32 %v11472, %v11485
    %v11487 = vpop.f32.mrf.mxu0
    %v11488 = vadd.f32 %v11474, %v11487
    %11489 = vdwg.mxu0
    %11490 = vmatpush.bf16.msra.mxu0 %v10611
    %11491 = vmatpush.bf16.msra.mxu0 %v10603
    %11492 = vmatpush.bf16.msra.mxu0 %v10595
    %11493 = vmatpush.bf16.msra.mxu0 %v10587
    %11494 = vmatpush.bf16.msra.mxu0 %v10579
    %11495 = vmatpush.bf16.msra.mxu0 %v10571
    %11496 = vmatpush.bf16.msra.mxu0 %v10563
    %11497 = vmatpush.bf16.msra.mxu0 %v10555
    %11498 = vmatmul.bf16.gmra.mxu0 %v8228
    %v11499 = vpop.f32.mrf.mxu0
    %v11500 = vadd.f32 %v11486, %v11499
    %v11501 = vpop.f32.mrf.mxu0
    %v11502 = vadd.f32 %v11488, %v11501
    %11503 = vdwg.mxu0
    %11504 = vmatpush.bf16.msra.mxu0 %v10675
    %11505 = vmatpush.bf16.msra.mxu0 %v10667
    %11506 = vmatpush.bf16.msra.mxu0 %v10659
    %11507 = vmatpush.bf16.msra.mxu0 %v10651
    %11508 = vmatpush.bf16.msra.mxu0 %v10643
    %11509 = vmatpush.bf16.msra.mxu0 %v10635
    %11510 = vmatpush.bf16.msra.mxu0 %v10627
    %11511 = vmatpush.bf16.msra.mxu0 %v10619
    %11512 = vmatmul.bf16.gmra.mxu0 %v8229
    %v11513 = vpop.f32.mrf.mxu0
    %v11514 = vadd.f32 %v11500, %v11513
    %v11515 = vpop.f32.mrf.mxu0
    %v11516 = vadd.f32 %v11502, %v11515
    %11517 = vdwg.mxu0
    %11518 = vmatpush.bf16.msra.mxu0 %v10739
    %11519 = vmatpush.bf16.msra.mxu0 %v10731
    %11520 = vmatpush.bf16.msra.mxu0 %v10723
    %11521 = vmatpush.bf16.msra.mxu0 %v10715
    %11522 = vmatpush.bf16.msra.mxu0 %v10707
    %11523 = vmatpush.bf16.msra.mxu0 %v10699
    %11524 = vmatpush.bf16.msra.mxu0 %v10691
    %11525 = vmatpush.bf16.msra.mxu0 %v10683
    %11526 = vmatmul.bf16.gmra.mxu0 %v8230
    %v11527 = vpop.f32.mrf.mxu0
    %v11528 = vadd.f32 %v11514, %v11527
    %v11529 = vpop.f32.mrf.mxu0
    %v11530 = vadd.f32 %v11516, %v11529
    %11531 = vdwg.mxu0
    %11532 = vmatpush.bf16.msra.mxu0 %v10803
    %11533 = vmatpush.bf16.msra.mxu0 %v10795
    %11534 = vmatpush.bf16.msra.mxu0 %v10787
    %11535 = vmatpush.bf16.msra.mxu0 %v10779
    %11536 = vmatpush.bf16.msra.mxu0 %v10771
    %11537 = vmatpush.bf16.msra.mxu0 %v10763
    %11538 = vmatpush.bf16.msra.mxu0 %v10755
    %11539 = vmatpush.bf16.msra.mxu0 %v10747
    %11540 = vmatmul.bf16.gmra.mxu0 %v8231
    %v11541 = vpop.f32.mrf.mxu0
    %v11542 = vadd.f32 %v11528, %v11541
    %v11543 = vpop.f32.mrf.mxu0
    %v11544 = vadd.f32 %v11530, %v11543
    %11545 = vdwg.mxu0
    %11546 = vmatpush.bf16.msra.mxu0 %v10356
    %11547 = vmatpush.bf16.msra.mxu0 %v10348
    %11548 = vmatpush.bf16.msra.mxu0 %v10340
    %11549 = vmatpush.bf16.msra.mxu0 %v10332
    %11550 = vmatpush.bf16.msra.mxu0 %v10324
    %11551 = vmatpush.bf16.msra.mxu0 %v10316
    %11552 = vmatpush.bf16.msra.mxu0 %v10308
    %11553 = vmatpush.bf16.msra.mxu0 %v10300
    %11554 = vmatmul.bf16.gmra.mxu0 %v8224
    %v11555 = vpop.f32.mrf.mxu0
    %v11556 = vadd.f32 %v8748, %v11555
    %v11557 = vpop.f32.mrf.mxu0
    %v11558 = vadd.f32 %v8748, %v11557
    %11559 = vdwg.mxu0
    %11560 = vmatpush.bf16.msra.mxu0 %v10420
    %11561 = vmatpush.bf16.msra.mxu0 %v10412
    %11562 = vmatpush.bf16.msra.mxu0 %v10404
    %11563 = vmatpush.bf16.msra.mxu0 %v10396
    %11564 = vmatpush.bf16.msra.mxu0 %v10388
    %11565 = vmatpush.bf16.msra.mxu0 %v10380
    %11566 = vmatpush.bf16.msra.mxu0 %v10372
    %11567 = vmatpush.bf16.msra.mxu0 %v10364
    %11568 = vmatmul.bf16.gmra.mxu0 %v8225
    %v11569 = vpop.f32.mrf.mxu0
    %v11570 = vadd.f32 %v11556, %v11569
    %v11571 = vpop.f32.mrf.mxu0
    %v11572 = vadd.f32 %v11558, %v11571
    %11573 = vdwg.mxu0
    %11574 = vmatpush.bf16.msra.mxu0 %v10484
    %11575 = vmatpush.bf16.msra.mxu0 %v10476
    %11576 = vmatpush.bf16.msra.mxu0 %v10468
    %11577 = vmatpush.bf16.msra.mxu0 %v10460
    %11578 = vmatpush.bf16.msra.mxu0 %v10452
    %11579 = vmatpush.bf16.msra.mxu0 %v10444
    %11580 = vmatpush.bf16.msra.mxu0 %v10436
    %11581 = vmatpush.bf16.msra.mxu0 %v10428
    %11582 = vmatmul.bf16.gmra.mxu0 %v8226
    %v11583 = vpop.f32.mrf.mxu0
    %v11584 = vadd.f32 %v11570, %v11583
    %v11585 = vpop.f32.mrf.mxu0
    %v11586 = vadd.f32 %v11572, %v11585
    %11587 = vdwg.mxu0
    %11588 = vmatpush.bf16.msra.mxu0 %v10548
    %11589 = vmatpush.bf16.msra.mxu0 %v10540
    %11590 = vmatpush.bf16.msra.mxu0 %v10532
    %11591 = vmatpush.bf16.msra.mxu0 %v10524
    %11592 = vmatpush.bf16.msra.mxu0 %v10516
    %11593 = vmatpush.bf16.msra.mxu0 %v10508
    %11594 = vmatpush.bf16.msra.mxu0 %v10500
    %11595 = vmatpush.bf16.msra.mxu0 %v10492
    %11596 = vmatmul.bf16.gmra.mxu0 %v8227
    %v11597 = vpop.f32.mrf.mxu0
    %v11598 = vadd.f32 %v11584, %v11597
    %v11599 = vpop.f32.mrf.mxu0
    %v11600 = vadd.f32 %v11586, %v11599
    %11601 = vdwg.mxu0
    %11602 = vmatpush.bf16.msra.mxu0 %v10612
    %11603 = vmatpush.bf16.msra.mxu0 %v10604
    %11604 = vmatpush.bf16.msra.mxu0 %v10596
    %11605 = vmatpush.bf16.msra.mxu0 %v10588
    %11606 = vmatpush.bf16.msra.mxu0 %v10580
    %11607 = vmatpush.bf16.msra.mxu0 %v10572
    %11608 = vmatpush.bf16.msra.mxu0 %v10564
    %11609 = vmatpush.bf16.msra.mxu0 %v10556
    %11610 = vmatmul.bf16.gmra.mxu0 %v8228
    %v11611 = vpop.f32.mrf.mxu0
    %v11612 = vadd.f32 %v11598, %v11611
    %v11613 = vpop.f32.mrf.mxu0
    %v11614 = vadd.f32 %v11600, %v11613
    %11615 = vdwg.mxu0
    %11616 = vmatpush.bf16.msra.mxu0 %v10676
    %11617 = vmatpush.bf16.msra.mxu0 %v10668
    %11618 = vmatpush.bf16.msra.mxu0 %v10660
    %11619 = vmatpush.bf16.msra.mxu0 %v10652
    %11620 = vmatpush.bf16.msra.mxu0 %v10644
    %11621 = vmatpush.bf16.msra.mxu0 %v10636
    %11622 = vmatpush.bf16.msra.mxu0 %v10628
    %11623 = vmatpush.bf16.msra.mxu0 %v10620
    %11624 = vmatmul.bf16.gmra.mxu0 %v8229
    %v11625 = vpop.f32.mrf.mxu0
    %v11626 = vadd.f32 %v11612, %v11625
    %v11627 = vpop.f32.mrf.mxu0
    %v11628 = vadd.f32 %v11614, %v11627
    %11629 = vdwg.mxu0
    %11630 = vmatpush.bf16.msra.mxu0 %v10740
    %11631 = vmatpush.bf16.msra.mxu0 %v10732
    %11632 = vmatpush.bf16.msra.mxu0 %v10724
    %11633 = vmatpush.bf16.msra.mxu0 %v10716
    %11634 = vmatpush.bf16.msra.mxu0 %v10708
    %11635 = vmatpush.bf16.msra.mxu0 %v10700
    %11636 = vmatpush.bf16.msra.mxu0 %v10692
    %11637 = vmatpush.bf16.msra.mxu0 %v10684
    %11638 = vmatmul.bf16.gmra.mxu0 %v8230
    %v11639 = vpop.f32.mrf.mxu0
    %v11640 = vadd.f32 %v11626, %v11639
    %v11641 = vpop.f32.mrf.mxu0
    %v11642 = vadd.f32 %v11628, %v11641
    %11643 = vdwg.mxu0
    %11644 = vmatpush.bf16.msra.mxu0 %v10804
    %11645 = vmatpush.bf16.msra.mxu0 %v10796
    %11646 = vmatpush.bf16.msra.mxu0 %v10788
    %11647 = vmatpush.bf16.msra.mxu0 %v10780
    %11648 = vmatpush.bf16.msra.mxu0 %v10772
    %11649 = vmatpush.bf16.msra.mxu0 %v10764
    %11650 = vmatpush.bf16.msra.mxu0 %v10756
    %11651 = vmatpush.bf16.msra.mxu0 %v10748
    %11652 = vmatmul.bf16.gmra.mxu0 %v8231
    %v11653 = vpop.f32.mrf.mxu0
    %v11654 = vadd.f32 %v11640, %v11653
    %v11655 = vpop.f32.mrf.mxu0
    %v11656 = vadd.f32 %v11642, %v11655
    %11657 = vdwg.mxu0
    %11658 = vmatpush.bf16.msra.mxu0 %v10357
    %11659 = vmatpush.bf16.msra.mxu0 %v10349
    %11660 = vmatpush.bf16.msra.mxu0 %v10341
    %11661 = vmatpush.bf16.msra.mxu0 %v10333
    %11662 = vmatpush.bf16.msra.mxu0 %v10325
    %11663 = vmatpush.bf16.msra.mxu0 %v10317
    %11664 = vmatpush.bf16.msra.mxu0 %v10309
    %11665 = vmatpush.bf16.msra.mxu0 %v10301
    %11666 = vmatmul.bf16.gmra.mxu0 %v8224
    %v11667 = vpop.f32.mrf.mxu0
    %v11668 = vadd.f32 %v8749, %v11667
    %v11669 = vpop.f32.mrf.mxu0
    %v11670 = vadd.f32 %v8749, %v11669
    %11671 = vdwg.mxu0
    %11672 = vmatpush.bf16.msra.mxu0 %v10421
    %11673 = vmatpush.bf16.msra.mxu0 %v10413
    %11674 = vmatpush.bf16.msra.mxu0 %v10405
    %11675 = vmatpush.bf16.msra.mxu0 %v10397
    %11676 = vmatpush.bf16.msra.mxu0 %v10389
    %11677 = vmatpush.bf16.msra.mxu0 %v10381
    %11678 = vmatpush.bf16.msra.mxu0 %v10373
    %11679 = vmatpush.bf16.msra.mxu0 %v10365
    %11680 = vmatmul.bf16.gmra.mxu0 %v8225
    %v11681 = vpop.f32.mrf.mxu0
    %v11682 = vadd.f32 %v11668, %v11681
    %v11683 = vpop.f32.mrf.mxu0
    %v11684 = vadd.f32 %v11670, %v11683
    %11685 = vdwg.mxu0
    %11686 = vmatpush.bf16.msra.mxu0 %v10485
    %11687 = vmatpush.bf16.msra.mxu0 %v10477
    %11688 = vmatpush.bf16.msra.mxu0 %v10469
    %11689 = vmatpush.bf16.msra.mxu0 %v10461
    %11690 = vmatpush.bf16.msra.mxu0 %v10453
    %11691 = vmatpush.bf16.msra.mxu0 %v10445
    %11692 = vmatpush.bf16.msra.mxu0 %v10437
    %11693 = vmatpush.bf16.msra.mxu0 %v10429
    %11694 = vmatmul.bf16.gmra.mxu0 %v8226
    %v11695 = vpop.f32.mrf.mxu0
    %v11696 = vadd.f32 %v11682, %v11695
    %v11697 = vpop.f32.mrf.mxu0
    %v11698 = vadd.f32 %v11684, %v11697
    %11699 = vdwg.mxu0
    %11700 = vmatpush.bf16.msra.mxu0 %v10549
    %11701 = vmatpush.bf16.msra.mxu0 %v10541
    %11702 = vmatpush.bf16.msra.mxu0 %v10533
    %11703 = vmatpush.bf16.msra.mxu0 %v10525
    %11704 = vmatpush.bf16.msra.mxu0 %v10517
    %11705 = vmatpush.bf16.msra.mxu0 %v10509
    %11706 = vmatpush.bf16.msra.mxu0 %v10501
    %11707 = vmatpush.bf16.msra.mxu0 %v10493
    %11708 = vmatmul.bf16.gmra.mxu0 %v8227
    %v11709 = vpop.f32.mrf.mxu0
    %v11710 = vadd.f32 %v11696, %v11709
    %v11711 = vpop.f32.mrf.mxu0
    %v11712 = vadd.f32 %v11698, %v11711
    %11713 = vdwg.mxu0
    %11714 = vmatpush.bf16.msra.mxu0 %v10613
    %11715 = vmatpush.bf16.msra.mxu0 %v10605
    %11716 = vmatpush.bf16.msra.mxu0 %v10597
    %11717 = vmatpush.bf16.msra.mxu0 %v10589
    %11718 = vmatpush.bf16.msra.mxu0 %v10581
    %11719 = vmatpush.bf16.msra.mxu0 %v10573
    %11720 = vmatpush.bf16.msra.mxu0 %v10565
    %11721 = vmatpush.bf16.msra.mxu0 %v10557
    %11722 = vmatmul.bf16.gmra.mxu0 %v8228
    %v11723 = vpop.f32.mrf.mxu0
    %v11724 = vadd.f32 %v11710, %v11723
    %v11725 = vpop.f32.mrf.mxu0
    %v11726 = vadd.f32 %v11712, %v11725
    %11727 = vdwg.mxu0
    %11728 = vmatpush.bf16.msra.mxu0 %v10677
    %11729 = vmatpush.bf16.msra.mxu0 %v10669
    %11730 = vmatpush.bf16.msra.mxu0 %v10661
    %11731 = vmatpush.bf16.msra.mxu0 %v10653
    %11732 = vmatpush.bf16.msra.mxu0 %v10645
    %11733 = vmatpush.bf16.msra.mxu0 %v10637
    %11734 = vmatpush.bf16.msra.mxu0 %v10629
    %11735 = vmatpush.bf16.msra.mxu0 %v10621
    %11736 = vmatmul.bf16.gmra.mxu0 %v8229
    %v11737 = vpop.f32.mrf.mxu0
    %v11738 = vadd.f32 %v11724, %v11737
    %v11739 = vpop.f32.mrf.mxu0
    %v11740 = vadd.f32 %v11726, %v11739
    %11741 = vdwg.mxu0
    %11742 = vmatpush.bf16.msra.mxu0 %v10741
    %11743 = vmatpush.bf16.msra.mxu0 %v10733
    %11744 = vmatpush.bf16.msra.mxu0 %v10725
    %11745 = vmatpush.bf16.msra.mxu0 %v10717
    %11746 = vmatpush.bf16.msra.mxu0 %v10709
    %11747 = vmatpush.bf16.msra.mxu0 %v10701
    %11748 = vmatpush.bf16.msra.mxu0 %v10693
    %11749 = vmatpush.bf16.msra.mxu0 %v10685
    %11750 = vmatmul.bf16.gmra.mxu0 %v8230
    %v11751 = vpop.f32.mrf.mxu0
    %v11752 = vadd.f32 %v11738, %v11751
    %v11753 = vpop.f32.mrf.mxu0
    %v11754 = vadd.f32 %v11740, %v11753
    %11755 = vdwg.mxu0
    %11756 = vmatpush.bf16.msra.mxu0 %v10805
    %11757 = vmatpush.bf16.msra.mxu0 %v10797
    %11758 = vmatpush.bf16.msra.mxu0 %v10789
    %11759 = vmatpush.bf16.msra.mxu0 %v10781
    %11760 = vmatpush.bf16.msra.mxu0 %v10773
    %11761 = vmatpush.bf16.msra.mxu0 %v10765
    %11762 = vmatpush.bf16.msra.mxu0 %v10757
    %11763 = vmatpush.bf16.msra.mxu0 %v10749
    %11764 = vmatmul.bf16.gmra.mxu0 %v8231
    %v11765 = vpop.f32.mrf.mxu0
    %v11766 = vadd.f32 %v11752, %v11765
    %v11767 = vpop.f32.mrf.mxu0
    %v11768 = vadd.f32 %v11754, %v11767
    %11769 = vdwg.mxu0
    %11770 = vmatpush.bf16.msra.mxu0 %v10358
    %11771 = vmatpush.bf16.msra.mxu0 %v10350
    %11772 = vmatpush.bf16.msra.mxu0 %v10342
    %11773 = vmatpush.bf16.msra.mxu0 %v10334
    %11774 = vmatpush.bf16.msra.mxu0 %v10326
    %11775 = vmatpush.bf16.msra.mxu0 %v10318
    %11776 = vmatpush.bf16.msra.mxu0 %v10310
    %11777 = vmatpush.bf16.msra.mxu0 %v10302
    %11778 = vmatmul.bf16.gmra.mxu0 %v8224
    %v11779 = vpop.f32.mrf.mxu0
    %v11780 = vadd.f32 %v8750, %v11779
    %v11781 = vpop.f32.mrf.mxu0
    %v11782 = vadd.f32 %v8750, %v11781
    %11783 = vdwg.mxu0
    %11784 = vmatpush.bf16.msra.mxu0 %v10422
    %11785 = vmatpush.bf16.msra.mxu0 %v10414
    %11786 = vmatpush.bf16.msra.mxu0 %v10406
    %11787 = vmatpush.bf16.msra.mxu0 %v10398
    %11788 = vmatpush.bf16.msra.mxu0 %v10390
    %11789 = vmatpush.bf16.msra.mxu0 %v10382
    %11790 = vmatpush.bf16.msra.mxu0 %v10374
    %11791 = vmatpush.bf16.msra.mxu0 %v10366
    %11792 = vmatmul.bf16.gmra.mxu0 %v8225
    %v11793 = vpop.f32.mrf.mxu0
    %v11794 = vadd.f32 %v11780, %v11793
    %v11795 = vpop.f32.mrf.mxu0
    %v11796 = vadd.f32 %v11782, %v11795
    %11797 = vdwg.mxu0
    %11798 = vmatpush.bf16.msra.mxu0 %v10486
    %11799 = vmatpush.bf16.msra.mxu0 %v10478
    %11800 = vmatpush.bf16.msra.mxu0 %v10470
    %11801 = vmatpush.bf16.msra.mxu0 %v10462
    %11802 = vmatpush.bf16.msra.mxu0 %v10454
    %11803 = vmatpush.bf16.msra.mxu0 %v10446
    %11804 = vmatpush.bf16.msra.mxu0 %v10438
    %11805 = vmatpush.bf16.msra.mxu0 %v10430
    %11806 = vmatmul.bf16.gmra.mxu0 %v8226
    %v11807 = vpop.f32.mrf.mxu0
    %v11808 = vadd.f32 %v11794, %v11807
    %v11809 = vpop.f32.mrf.mxu0
    %v11810 = vadd.f32 %v11796, %v11809
    %11811 = vdwg.mxu0
    %11812 = vmatpush.bf16.msra.mxu0 %v10550
    %11813 = vmatpush.bf16.msra.mxu0 %v10542
    %11814 = vmatpush.bf16.msra.mxu0 %v10534
    %11815 = vmatpush.bf16.msra.mxu0 %v10526
    %11816 = vmatpush.bf16.msra.mxu0 %v10518
    %11817 = vmatpush.bf16.msra.mxu0 %v10510
    %11818 = vmatpush.bf16.msra.mxu0 %v10502
    %11819 = vmatpush.bf16.msra.mxu0 %v10494
    %11820 = vmatmul.bf16.gmra.mxu0 %v8227
    %v11821 = vpop.f32.mrf.mxu0
    %v11822 = vadd.f32 %v11808, %v11821
    %v11823 = vpop.f32.mrf.mxu0
    %v11824 = vadd.f32 %v11810, %v11823
    %11825 = vdwg.mxu0
    %11826 = vmatpush.bf16.msra.mxu0 %v10614
    %11827 = vmatpush.bf16.msra.mxu0 %v10606
    %11828 = vmatpush.bf16.msra.mxu0 %v10598
    %11829 = vmatpush.bf16.msra.mxu0 %v10590
    %11830 = vmatpush.bf16.msra.mxu0 %v10582
    %11831 = vmatpush.bf16.msra.mxu0 %v10574
    %11832 = vmatpush.bf16.msra.mxu0 %v10566
    %11833 = vmatpush.bf16.msra.mxu0 %v10558
    %11834 = vmatmul.bf16.gmra.mxu0 %v8228
    %v11835 = vpop.f32.mrf.mxu0
    %v11836 = vadd.f32 %v11822, %v11835
    %v11837 = vpop.f32.mrf.mxu0
    %v11838 = vadd.f32 %v11824, %v11837
    %11839 = vdwg.mxu0
    %11840 = vmatpush.bf16.msra.mxu0 %v10678
    %11841 = vmatpush.bf16.msra.mxu0 %v10670
    %11842 = vmatpush.bf16.msra.mxu0 %v10662
    %11843 = vmatpush.bf16.msra.mxu0 %v10654
    %11844 = vmatpush.bf16.msra.mxu0 %v10646
    %11845 = vmatpush.bf16.msra.mxu0 %v10638
    %11846 = vmatpush.bf16.msra.mxu0 %v10630
    %11847 = vmatpush.bf16.msra.mxu0 %v10622
    %11848 = vmatmul.bf16.gmra.mxu0 %v8229
    %v11849 = vpop.f32.mrf.mxu0
    %v11850 = vadd.f32 %v11836, %v11849
    %v11851 = vpop.f32.mrf.mxu0
    %v11852 = vadd.f32 %v11838, %v11851
    %11853 = vdwg.mxu0
    %11854 = vmatpush.bf16.msra.mxu0 %v10742
    %11855 = vmatpush.bf16.msra.mxu0 %v10734
    %11856 = vmatpush.bf16.msra.mxu0 %v10726
    %11857 = vmatpush.bf16.msra.mxu0 %v10718
    %11858 = vmatpush.bf16.msra.mxu0 %v10710
    %11859 = vmatpush.bf16.msra.mxu0 %v10702
    %11860 = vmatpush.bf16.msra.mxu0 %v10694
    %11861 = vmatpush.bf16.msra.mxu0 %v10686
    %11862 = vmatmul.bf16.gmra.mxu0 %v8230
    %v11863 = vpop.f32.mrf.mxu0
    %v11864 = vadd.f32 %v11850, %v11863
    %v11865 = vpop.f32.mrf.mxu0
    %v11866 = vadd.f32 %v11852, %v11865
    %11867 = vdwg.mxu0
    %11868 = vmatpush.bf16.msra.mxu0 %v10806
    %11869 = vmatpush.bf16.msra.mxu0 %v10798
    %11870 = vmatpush.bf16.msra.mxu0 %v10790
    %11871 = vmatpush.bf16.msra.mxu0 %v10782
    %11872 = vmatpush.bf16.msra.mxu0 %v10774
    %11873 = vmatpush.bf16.msra.mxu0 %v10766
    %11874 = vmatpush.bf16.msra.mxu0 %v10758
    %11875 = vmatpush.bf16.msra.mxu0 %v10750
    %11876 = vmatmul.bf16.gmra.mxu0 %v8231
    %v11877 = vpop.f32.mrf.mxu0
    %v11878 = vadd.f32 %v11864, %v11877
    %v11879 = vpop.f32.mrf.mxu0
    %v11880 = vadd.f32 %v11866, %v11879
    %11881 = vdwg.mxu0
    %11882 = vmatpush.bf16.msra.mxu0 %v10359
    %11883 = vmatpush.bf16.msra.mxu0 %v10351
    %11884 = vmatpush.bf16.msra.mxu0 %v10343
    %11885 = vmatpush.bf16.msra.mxu0 %v10335
    %11886 = vmatpush.bf16.msra.mxu0 %v10327
    %11887 = vmatpush.bf16.msra.mxu0 %v10319
    %11888 = vmatpush.bf16.msra.mxu0 %v10311
    %11889 = vmatpush.bf16.msra.mxu0 %v10303
    %11890 = vmatmul.bf16.gmra.mxu0 %v8224
    %v11891 = vpop.f32.mrf.mxu0
    %v11892 = vadd.f32 %v8751, %v11891
    %v11893 = vpop.f32.mrf.mxu0
    %v11894 = vadd.f32 %v8751, %v11893
    %11895 = vdwg.mxu0
    %11896 = vmatpush.bf16.msra.mxu0 %v10423
    %11897 = vmatpush.bf16.msra.mxu0 %v10415
    %11898 = vmatpush.bf16.msra.mxu0 %v10407
    %11899 = vmatpush.bf16.msra.mxu0 %v10399
    %11900 = vmatpush.bf16.msra.mxu0 %v10391
    %11901 = vmatpush.bf16.msra.mxu0 %v10383
    %11902 = vmatpush.bf16.msra.mxu0 %v10375
    %11903 = vmatpush.bf16.msra.mxu0 %v10367
    %11904 = vmatmul.bf16.gmra.mxu0 %v8225
    %v11905 = vpop.f32.mrf.mxu0
    %v11906 = vadd.f32 %v11892, %v11905
    %v11907 = vpop.f32.mrf.mxu0
    %v11908 = vadd.f32 %v11894, %v11907
    %11909 = vdwg.mxu0
    %11910 = vmatpush.bf16.msra.mxu0 %v10487
    %11911 = vmatpush.bf16.msra.mxu0 %v10479
    %11912 = vmatpush.bf16.msra.mxu0 %v10471
    %11913 = vmatpush.bf16.msra.mxu0 %v10463
    %11914 = vmatpush.bf16.msra.mxu0 %v10455
    %11915 = vmatpush.bf16.msra.mxu0 %v10447
    %11916 = vmatpush.bf16.msra.mxu0 %v10439
    %11917 = vmatpush.bf16.msra.mxu0 %v10431
    %11918 = vmatmul.bf16.gmra.mxu0 %v8226
    %v11919 = vpop.f32.mrf.mxu0
    %v11920 = vadd.f32 %v11906, %v11919
    %v11921 = vpop.f32.mrf.mxu0
    %v11922 = vadd.f32 %v11908, %v11921
    %11923 = vdwg.mxu0
    %11924 = vmatpush.bf16.msra.mxu0 %v10551
    %11925 = vmatpush.bf16.msra.mxu0 %v10543
    %11926 = vmatpush.bf16.msra.mxu0 %v10535
    %11927 = vmatpush.bf16.msra.mxu0 %v10527
    %11928 = vmatpush.bf16.msra.mxu0 %v10519
    %11929 = vmatpush.bf16.msra.mxu0 %v10511
    %11930 = vmatpush.bf16.msra.mxu0 %v10503
    %11931 = vmatpush.bf16.msra.mxu0 %v10495
    %11932 = vmatmul.bf16.gmra.mxu0 %v8227
    %v11933 = vpop.f32.mrf.mxu0
    %v11934 = vadd.f32 %v11920, %v11933
    %v11935 = vpop.f32.mrf.mxu0
    %v11936 = vadd.f32 %v11922, %v11935
    %11937 = vdwg.mxu0
    %11938 = vmatpush.bf16.msra.mxu0 %v10615
    %11939 = vmatpush.bf16.msra.mxu0 %v10607
    %11940 = vmatpush.bf16.msra.mxu0 %v10599
    %11941 = vmatpush.bf16.msra.mxu0 %v10591
    %11942 = vmatpush.bf16.msra.mxu0 %v10583
    %11943 = vmatpush.bf16.msra.mxu0 %v10575
    %11944 = vmatpush.bf16.msra.mxu0 %v10567
    %11945 = vmatpush.bf16.msra.mxu0 %v10559
    %11946 = vmatmul.bf16.gmra.mxu0 %v8228
    %v11947 = vpop.f32.mrf.mxu0
    %v11948 = vadd.f32 %v11934, %v11947
    %v11949 = vpop.f32.mrf.mxu0
    %v11950 = vadd.f32 %v11936, %v11949
    %11951 = vdwg.mxu0
    %11952 = vmatpush.bf16.msra.mxu0 %v10679
    %11953 = vmatpush.bf16.msra.mxu0 %v10671
    %11954 = vmatpush.bf16.msra.mxu0 %v10663
    %11955 = vmatpush.bf16.msra.mxu0 %v10655
    %11956 = vmatpush.bf16.msra.mxu0 %v10647
    %11957 = vmatpush.bf16.msra.mxu0 %v10639
    %11958 = vmatpush.bf16.msra.mxu0 %v10631
    %11959 = vmatpush.bf16.msra.mxu0 %v10623
    %11960 = vmatmul.bf16.gmra.mxu0 %v8229
    %v11961 = vpop.f32.mrf.mxu0
    %v11962 = vadd.f32 %v11948, %v11961
    %v11963 = vpop.f32.mrf.mxu0
    %v11964 = vadd.f32 %v11950, %v11963
    %11965 = vdwg.mxu0
    %11966 = vmatpush.bf16.msra.mxu0 %v10743
    %11967 = vmatpush.bf16.msra.mxu0 %v10735
    %11968 = vmatpush.bf16.msra.mxu0 %v10727
    %11969 = vmatpush.bf16.msra.mxu0 %v10719
    %11970 = vmatpush.bf16.msra.mxu0 %v10711
    %11971 = vmatpush.bf16.msra.mxu0 %v10703
    %11972 = vmatpush.bf16.msra.mxu0 %v10695
    %11973 = vmatpush.bf16.msra.mxu0 %v10687
    %11974 = vmatmul.bf16.gmra.mxu0 %v8230
    %v11975 = vpop.f32.mrf.mxu0
    %v11976 = vadd.f32 %v11962, %v11975
    %v11977 = vpop.f32.mrf.mxu0
    %v11978 = vadd.f32 %v11964, %v11977
    %11979 = vdwg.mxu0
    %11980 = vmatpush.bf16.msra.mxu0 %v10807
    %11981 = vmatpush.bf16.msra.mxu0 %v10799
    %11982 = vmatpush.bf16.msra.mxu0 %v10791
    %11983 = vmatpush.bf16.msra.mxu0 %v10783
    %11984 = vmatpush.bf16.msra.mxu0 %v10775
    %11985 = vmatpush.bf16.msra.mxu0 %v10767
    %11986 = vmatpush.bf16.msra.mxu0 %v10759
    %11987 = vmatpush.bf16.msra.mxu0 %v10751
    %11988 = vmatmul.bf16.gmra.mxu0 %v8231
    %v11989 = vpop.f32.mrf.mxu0
    %v11990 = vadd.f32 %v11976, %v11989
    %v11991 = vpop.f32.mrf.mxu0
    %v11992 = vadd.f32 %v11978, %v11991
    %11993 = vdwg.mxu0
    %11994 = vmatpush.bf16.msra.mxu0 %v10360
    %11995 = vmatpush.bf16.msra.mxu0 %v10352
    %11996 = vmatpush.bf16.msra.mxu0 %v10344
    %11997 = vmatpush.bf16.msra.mxu0 %v10336
    %11998 = vmatpush.bf16.msra.mxu0 %v10328
    %11999 = vmatpush.bf16.msra.mxu0 %v10320
    %12000 = vmatpush.bf16.msra.mxu0 %v10312
    %12001 = vmatpush.bf16.msra.mxu0 %v10304
    %12002 = vmatmul.bf16.gmra.mxu0 %v8224
    %v12003 = vpop.f32.mrf.mxu0
    %v12004 = vadd.f32 %v8752, %v12003
    %v12005 = vpop.f32.mrf.mxu0
    %v12006 = vadd.f32 %v8752, %v12005
    %12007 = vdwg.mxu0
    %12008 = vmatpush.bf16.msra.mxu0 %v10424
    %12009 = vmatpush.bf16.msra.mxu0 %v10416
    %12010 = vmatpush.bf16.msra.mxu0 %v10408
    %12011 = vmatpush.bf16.msra.mxu0 %v10400
    %12012 = vmatpush.bf16.msra.mxu0 %v10392
    %12013 = vmatpush.bf16.msra.mxu0 %v10384
    %12014 = vmatpush.bf16.msra.mxu0 %v10376
    %12015 = vmatpush.bf16.msra.mxu0 %v10368
    %12016 = vmatmul.bf16.gmra.mxu0 %v8225
    %v12017 = vpop.f32.mrf.mxu0
    %v12018 = vadd.f32 %v12004, %v12017
    %v12019 = vpop.f32.mrf.mxu0
    %v12020 = vadd.f32 %v12006, %v12019
    %12021 = vdwg.mxu0
    %12022 = vmatpush.bf16.msra.mxu0 %v10488
    %12023 = vmatpush.bf16.msra.mxu0 %v10480
    %12024 = vmatpush.bf16.msra.mxu0 %v10472
    %12025 = vmatpush.bf16.msra.mxu0 %v10464
    %12026 = vmatpush.bf16.msra.mxu0 %v10456
    %12027 = vmatpush.bf16.msra.mxu0 %v10448
    %12028 = vmatpush.bf16.msra.mxu0 %v10440
    %12029 = vmatpush.bf16.msra.mxu0 %v10432
    %12030 = vmatmul.bf16.gmra.mxu0 %v8226
    %v12031 = vpop.f32.mrf.mxu0
    %v12032 = vadd.f32 %v12018, %v12031
    %v12033 = vpop.f32.mrf.mxu0
    %v12034 = vadd.f32 %v12020, %v12033
    %12035 = vdwg.mxu0
    %12036 = vmatpush.bf16.msra.mxu0 %v10552
    %12037 = vmatpush.bf16.msra.mxu0 %v10544
    %12038 = vmatpush.bf16.msra.mxu0 %v10536
    %12039 = vmatpush.bf16.msra.mxu0 %v10528
    %12040 = vmatpush.bf16.msra.mxu0 %v10520
    %12041 = vmatpush.bf16.msra.mxu0 %v10512
    %12042 = vmatpush.bf16.msra.mxu0 %v10504
    %12043 = vmatpush.bf16.msra.mxu0 %v10496
    %12044 = vmatmul.bf16.gmra.mxu0 %v8227
    %v12045 = vpop.f32.mrf.mxu0
    %v12046 = vadd.f32 %v12032, %v12045
    %v12047 = vpop.f32.mrf.mxu0
    %v12048 = vadd.f32 %v12034, %v12047
    %12049 = vdwg.mxu0
    %12050 = vmatpush.bf16.msra.mxu0 %v10616
    %12051 = vmatpush.bf16.msra.mxu0 %v10608
    %12052 = vmatpush.bf16.msra.mxu0 %v10600
    %12053 = vmatpush.bf16.msra.mxu0 %v10592
    %12054 = vmatpush.bf16.msra.mxu0 %v10584
    %12055 = vmatpush.bf16.msra.mxu0 %v10576
    %12056 = vmatpush.bf16.msra.mxu0 %v10568
    %12057 = vmatpush.bf16.msra.mxu0 %v10560
    %12058 = vmatmul.bf16.gmra.mxu0 %v8228
    %v12059 = vpop.f32.mrf.mxu0
    %v12060 = vadd.f32 %v12046, %v12059
    %v12061 = vpop.f32.mrf.mxu0
    %v12062 = vadd.f32 %v12048, %v12061
    %12063 = vdwg.mxu0
    %12064 = vmatpush.bf16.msra.mxu0 %v10680
    %12065 = vmatpush.bf16.msra.mxu0 %v10672
    %12066 = vmatpush.bf16.msra.mxu0 %v10664
    %12067 = vmatpush.bf16.msra.mxu0 %v10656
    %12068 = vmatpush.bf16.msra.mxu0 %v10648
    %12069 = vmatpush.bf16.msra.mxu0 %v10640
    %12070 = vmatpush.bf16.msra.mxu0 %v10632
    %12071 = vmatpush.bf16.msra.mxu0 %v10624
    %12072 = vmatmul.bf16.gmra.mxu0 %v8229
    %v12073 = vpop.f32.mrf.mxu0
    %v12074 = vadd.f32 %v12060, %v12073
    %v12075 = vpop.f32.mrf.mxu0
    %v12076 = vadd.f32 %v12062, %v12075
    %12077 = vdwg.mxu0
    %12078 = vmatpush.bf16.msra.mxu0 %v10744
    %12079 = vmatpush.bf16.msra.mxu0 %v10736
    %12080 = vmatpush.bf16.msra.mxu0 %v10728
    %12081 = vmatpush.bf16.msra.mxu0 %v10720
    %12082 = vmatpush.bf16.msra.mxu0 %v10712
    %12083 = vmatpush.bf16.msra.mxu0 %v10704
    %12084 = vmatpush.bf16.msra.mxu0 %v10696
    %12085 = vmatpush.bf16.msra.mxu0 %v10688
    %12086 = vmatmul.bf16.gmra.mxu0 %v8230
    %v12087 = vpop.f32.mrf.mxu0
    %v12088 = vadd.f32 %v12074, %v12087
    %v12089 = vpop.f32.mrf.mxu0
    %v12090 = vadd.f32 %v12076, %v12089
    %12091 = vdwg.mxu0
    %12092 = vmatpush.bf16.msra.mxu0 %v10808
    %12093 = vmatpush.bf16.msra.mxu0 %v10800
    %12094 = vmatpush.bf16.msra.mxu0 %v10792
    %12095 = vmatpush.bf16.msra.mxu0 %v10784
    %12096 = vmatpush.bf16.msra.mxu0 %v10776
    %12097 = vmatpush.bf16.msra.mxu0 %v10768
    %12098 = vmatpush.bf16.msra.mxu0 %v10760
    %12099 = vmatpush.bf16.msra.mxu0 %v10752
    %12100 = vmatmul.bf16.gmra.mxu0 %v8231
    %v12101 = vpop.f32.mrf.mxu0
    %v12102 = vadd.f32 %v12088, %v12101
    %v12103 = vpop.f32.mrf.mxu0
    %v12104 = vadd.f32 %v12090, %v12103
    %12105 = vdwg.mxu0
    %12106 = vmatpush.bf16.msra.mxu0 %v10361
    %12107 = vmatpush.bf16.msra.mxu0 %v10353
    %12108 = vmatpush.bf16.msra.mxu0 %v10345
    %12109 = vmatpush.bf16.msra.mxu0 %v10337
    %12110 = vmatpush.bf16.msra.mxu0 %v10329
    %12111 = vmatpush.bf16.msra.mxu0 %v10321
    %12112 = vmatpush.bf16.msra.mxu0 %v10313
    %12113 = vmatpush.bf16.msra.mxu0 %v10305
    %12114 = vmatmul.bf16.gmra.mxu0 %v8224
    %v12115 = vpop.f32.mrf.mxu0
    %v12116 = vadd.f32 %v8753, %v12115
    %v12117 = vpop.f32.mrf.mxu0
    %v12118 = vadd.f32 %v8753, %v12117
    %12119 = vdwg.mxu0
    %12120 = vmatpush.bf16.msra.mxu0 %v10425
    %12121 = vmatpush.bf16.msra.mxu0 %v10417
    %12122 = vmatpush.bf16.msra.mxu0 %v10409
    %12123 = vmatpush.bf16.msra.mxu0 %v10401
    %12124 = vmatpush.bf16.msra.mxu0 %v10393
    %12125 = vmatpush.bf16.msra.mxu0 %v10385
    %12126 = vmatpush.bf16.msra.mxu0 %v10377
    %12127 = vmatpush.bf16.msra.mxu0 %v10369
    %12128 = vmatmul.bf16.gmra.mxu0 %v8225
    %v12129 = vpop.f32.mrf.mxu0
    %v12130 = vadd.f32 %v12116, %v12129
    %v12131 = vpop.f32.mrf.mxu0
    %v12132 = vadd.f32 %v12118, %v12131
    %12133 = vdwg.mxu0
    %12134 = vmatpush.bf16.msra.mxu0 %v10489
    %12135 = vmatpush.bf16.msra.mxu0 %v10481
    %12136 = vmatpush.bf16.msra.mxu0 %v10473
    %12137 = vmatpush.bf16.msra.mxu0 %v10465
    %12138 = vmatpush.bf16.msra.mxu0 %v10457
    %12139 = vmatpush.bf16.msra.mxu0 %v10449
    %12140 = vmatpush.bf16.msra.mxu0 %v10441
    %12141 = vmatpush.bf16.msra.mxu0 %v10433
    %12142 = vmatmul.bf16.gmra.mxu0 %v8226
    %v12143 = vpop.f32.mrf.mxu0
    %v12144 = vadd.f32 %v12130, %v12143
    %v12145 = vpop.f32.mrf.mxu0
    %v12146 = vadd.f32 %v12132, %v12145
    %12147 = vdwg.mxu0
    %12148 = vmatpush.bf16.msra.mxu0 %v10553
    %12149 = vmatpush.bf16.msra.mxu0 %v10545
    %12150 = vmatpush.bf16.msra.mxu0 %v10537
    %12151 = vmatpush.bf16.msra.mxu0 %v10529
    %12152 = vmatpush.bf16.msra.mxu0 %v10521
    %12153 = vmatpush.bf16.msra.mxu0 %v10513
    %12154 = vmatpush.bf16.msra.mxu0 %v10505
    %12155 = vmatpush.bf16.msra.mxu0 %v10497
    %12156 = vmatmul.bf16.gmra.mxu0 %v8227
    %v12157 = vpop.f32.mrf.mxu0
    %v12158 = vadd.f32 %v12144, %v12157
    %v12159 = vpop.f32.mrf.mxu0
    %v12160 = vadd.f32 %v12146, %v12159
    %12161 = vdwg.mxu0
    %12162 = vmatpush.bf16.msra.mxu0 %v10617
    %12163 = vmatpush.bf16.msra.mxu0 %v10609
    %12164 = vmatpush.bf16.msra.mxu0 %v10601
    %12165 = vmatpush.bf16.msra.mxu0 %v10593
    %12166 = vmatpush.bf16.msra.mxu0 %v10585
    %12167 = vmatpush.bf16.msra.mxu0 %v10577
    %12168 = vmatpush.bf16.msra.mxu0 %v10569
    %12169 = vmatpush.bf16.msra.mxu0 %v10561
    %12170 = vmatmul.bf16.gmra.mxu0 %v8228
    %v12171 = vpop.f32.mrf.mxu0
    %v12172 = vadd.f32 %v12158, %v12171
    %v12173 = vpop.f32.mrf.mxu0
    %v12174 = vadd.f32 %v12160, %v12173
    %12175 = vdwg.mxu0
    %12176 = vmatpush.bf16.msra.mxu0 %v10681
    %12177 = vmatpush.bf16.msra.mxu0 %v10673
    %12178 = vmatpush.bf16.msra.mxu0 %v10665
    %12179 = vmatpush.bf16.msra.mxu0 %v10657
    %12180 = vmatpush.bf16.msra.mxu0 %v10649
    %12181 = vmatpush.bf16.msra.mxu0 %v10641
    %12182 = vmatpush.bf16.msra.mxu0 %v10633
    %12183 = vmatpush.bf16.msra.mxu0 %v10625
    %12184 = vmatmul.bf16.gmra.mxu0 %v8229
    %v12185 = vpop.f32.mrf.mxu0
    %v12186 = vadd.f32 %v12172, %v12185
    %v12187 = vpop.f32.mrf.mxu0
    %v12188 = vadd.f32 %v12174, %v12187
    %12189 = vdwg.mxu0
    %12190 = vmatpush.bf16.msra.mxu0 %v10745
    %12191 = vmatpush.bf16.msra.mxu0 %v10737
    %12192 = vmatpush.bf16.msra.mxu0 %v10729
    %12193 = vmatpush.bf16.msra.mxu0 %v10721
    %12194 = vmatpush.bf16.msra.mxu0 %v10713
    %12195 = vmatpush.bf16.msra.mxu0 %v10705
    %12196 = vmatpush.bf16.msra.mxu0 %v10697
    %12197 = vmatpush.bf16.msra.mxu0 %v10689
    %12198 = vmatmul.bf16.gmra.mxu0 %v8230
    %v12199 = vpop.f32.mrf.mxu0
    %v12200 = vadd.f32 %v12186, %v12199
    %v12201 = vpop.f32.mrf.mxu0
    %v12202 = vadd.f32 %v12188, %v12201
    %12203 = vdwg.mxu0
    %12204 = vmatpush.bf16.msra.mxu0 %v10809
    %12205 = vmatpush.bf16.msra.mxu0 %v10801
    %12206 = vmatpush.bf16.msra.mxu0 %v10793
    %12207 = vmatpush.bf16.msra.mxu0 %v10785
    %12208 = vmatpush.bf16.msra.mxu0 %v10777
    %12209 = vmatpush.bf16.msra.mxu0 %v10769
    %12210 = vmatpush.bf16.msra.mxu0 %v10761
    %12211 = vmatpush.bf16.msra.mxu0 %v10753
    %12212 = vmatmul.bf16.gmra.mxu0 %v8231
    %v12213 = vpop.f32.mrf.mxu0
    %v12214 = vadd.f32 %v12200, %v12213
    %v12215 = vpop.f32.mrf.mxu0
    %v12216 = vadd.f32 %v12202, %v12215
    %12217 = vdwg.mxu0
    %vm12218 = vcmp.gt.f32.partialorder %v11430, 0.0
    %vm12219 = vcmp.gt.f32.partialorder %v11542, 0.0
    %vm12220 = vcmp.gt.f32.partialorder %v11654, 0.0
    %vm12221 = vcmp.gt.f32.partialorder %v11766, 0.0
    %vm12222 = vcmp.gt.f32.partialorder %v11878, 0.0
    %vm12223 = vcmp.gt.f32.partialorder %v11990, 0.0
    %vm12224 = vcmp.gt.f32.partialorder %v12102, 0.0
    %vm12225 = vcmp.gt.f32.partialorder %v12214, 0.0
    %vm12226 = vcmp.gt.f32.partialorder %v11432, 0.0
    %vm12227 = vcmp.gt.f32.partialorder %v11544, 0.0
    %vm12228 = vcmp.gt.f32.partialorder %v11656, 0.0
    %vm12229 = vcmp.gt.f32.partialorder %v11768, 0.0
    %vm12230 = vcmp.gt.f32.partialorder %v11880, 0.0
    %vm12231 = vcmp.gt.f32.partialorder %v11992, 0.0
    %vm12232 = vcmp.gt.f32.partialorder %v12104, 0.0
    %vm12233 = vcmp.gt.f32.partialorder %v12216, 0.0
    %v12234 = vmin.f32 %v11430, 0.0
    %v12235 = vmin.f32 %v11542, 0.0
    %v12236 = vmin.f32 %v11654, 0.0
    %v12237 = vmin.f32 %v11766, 0.0
    %v12238 = vmin.f32 %v11878, 0.0
    %v12239 = vmin.f32 %v11990, 0.0
    %v12240 = vmin.f32 %v12102, 0.0
    %v12241 = vmin.f32 %v12214, 0.0
    %v12242 = vmin.f32 %v11432, 0.0
    %v12243 = vmin.f32 %v11544, 0.0
    %v12244 = vmin.f32 %v11656, 0.0
    %v12245 = vmin.f32 %v11768, 0.0
    %v12246 = vmin.f32 %v11880, 0.0
    %v12247 = vmin.f32 %v11992, 0.0
    %v12248 = vmin.f32 %v12104, 0.0
    %v12249 = vmin.f32 %v12216, 0.0
    %v12250 = vmul.f32 %v12234, 1.442695
    %v12251 = vpow.pop %v12250
    %v12252 = vmul.f32 %v12235, 1.442695
    %v12253 = vpow.pop %v12252
    %v12254 = vmul.f32 %v12236, 1.442695
    %v12255 = vpow.pop %v12254
    %v12256 = vmul.f32 %v12237, 1.442695
    %v12257 = vpow.pop %v12256
    %v12258 = vmul.f32 %v12238, 1.442695
    %v12259 = vpow.pop %v12258
    %v12260 = vmul.f32 %v12239, 1.442695
    %v12261 = vpow.pop %v12260
    %v12262 = vmul.f32 %v12240, 1.442695
    %v12263 = vpow.pop %v12262
    %v12264 = vmul.f32 %v12241, 1.442695
    %v12265 = vpow.pop %v12264
    %v12266 = vmul.f32 %v12242, 1.442695
    %v12267 = vpow.pop %v12266
    %v12268 = vmul.f32 %v12243, 1.442695
    %v12269 = vpow.pop %v12268
    %v12270 = vmul.f32 %v12244, 1.442695
    %v12271 = vpow.pop %v12270
    %v12272 = vmul.f32 %v12245, 1.442695
    %v12273 = vpow.pop %v12272
    %v12274 = vmul.f32 %v12246, 1.442695
    %v12275 = vpow.pop %v12274
    %v12276 = vmul.f32 %v12247, 1.442695
    %v12277 = vpow.pop %v12276
    %v12278 = vmul.f32 %v12248, 1.442695
    %v12279 = vpow.pop %v12278
    %v12280 = vmul.f32 %v12249, 1.442695
    %v12281 = vpow.pop %v12280
    %v12282 = vsub.f32 %v12251, 1.0
    %v12283 = vsub.f32 %v12253, 1.0
    %v12284 = vsub.f32 %v12255, 1.0
    %v12285 = vsub.f32 %v12257, 1.0
    %v12286 = vsub.f32 %v12259, 1.0
    %v12287 = vsub.f32 %v12261, 1.0
    %v12288 = vsub.f32 %v12263, 1.0
    %v12289 = vsub.f32 %v12265, 1.0
    %v12290 = vsub.f32 %v12267, 1.0
    %v12291 = vsub.f32 %v12269, 1.0
    %v12292 = vsub.f32 %v12271, 1.0
    %v12293 = vsub.f32 %v12273, 1.0
    %v12294 = vsub.f32 %v12275, 1.0
    %v12295 = vsub.f32 %v12277, 1.0
    %v12296 = vsub.f32 %v12279, 1.0
    %v12297 = vsub.f32 %v12281, 1.0
    %v12298 = vsel %vm12218, %v11430, %v12282
    %v12299 = vsel %vm12219, %v11542, %v12283
    %v12300 = vsel %vm12220, %v11654, %v12284
    %v12301 = vsel %vm12221, %v11766, %v12285
    %v12302 = vsel %vm12222, %v11878, %v12286
    %v12303 = vsel %vm12223, %v11990, %v12287
    %v12304 = vsel %vm12224, %v12102, %v12288
    %v12305 = vsel %vm12225, %v12214, %v12289
    %v12306 = vsel %vm12226, %v11432, %v12290
    %v12307 = vsel %vm12227, %v11544, %v12291
    %v12308 = vsel %vm12228, %v11656, %v12292
    %v12309 = vsel %vm12229, %v11768, %v12293
    %v12310 = vsel %vm12230, %v11880, %v12294
    %v12311 = vsel %vm12231, %v11992, %v12295
    %v12312 = vsel %vm12232, %v12104, %v12296
    %v12313 = vsel %vm12233, %v12216, %v12297
    %v12314 = vld [vmem:[#allocation17] sm:$0xff]
    %v12315 = vunpack.c.l.bf16 %v12314
    %v12316 = vunpack.c.h.bf16 %v12314
    %v12319 = vperm.slane %v12315, 0
    %v12320 = vperm.slane %v12315, 2
    %v12321 = vperm.slane %v12315, 4
    %v12322 = vperm.slane %v12315, 6
    %v12323 = vperm.slane %v12316, 0
    %v12324 = vperm.slane %v12316, 2
    %v12325 = vperm.slane %v12316, 4
    %v12326 = vperm.slane %v12316, 6
    %v12335 = vperm.slane %v12319, 0
    %v12336 = vperm.slane %v12320, 0
    %v12337 = vperm.slane %v12321, 0
    %v12338 = vperm.slane %v12322, 0
    %v12339 = vperm.slane %v12323, 0
    %v12340 = vperm.slane %v12324, 0
    %v12341 = vperm.slane %v12325, 0
    %v12342 = vperm.slane %v12326, 0
    %v12343 = vmul.f32 %v12298, %v12335
    %v12344 = vmul.f32 %v12299, %v12336
    %v12345 = vmul.f32 %v12300, %v12337
    %v12346 = vmul.f32 %v12301, %v12338
    %v12347 = vmul.f32 %v12302, %v12339
    %v12348 = vmul.f32 %v12303, %v12340
    %v12349 = vmul.f32 %v12304, %v12341
    %v12350 = vmul.f32 %v12305, %v12342
    %v12351 = vmul.f32 %v12306, %v12335
    %v12352 = vmul.f32 %v12307, %v12336
    %v12353 = vmul.f32 %v12308, %v12337
    %v12354 = vmul.f32 %v12309, %v12338
    %v12355 = vmul.f32 %v12310, %v12339
    %v12356 = vmul.f32 %v12311, %v12340
    %v12357 = vmul.f32 %v12312, %v12341
    %v12358 = vmul.f32 %v12313, %v12342
    %v12359 = vadd.f32 %v12343, %v12344
    %v12360 = vadd.f32 %v12359, %v12345
    %v12361 = vadd.f32 %v12360, %v12346
    %v12362 = vadd.f32 %v12361, %v12347
    %v12363 = vadd.f32 %v12362, %v12348
    %v12364 = vadd.f32 %v12363, %v12349
    %v12365 = vadd.f32 %v12364, %v12350
    %12366 = vadd.xlane.f32.xlu0 %v12365
    %v12367 = vpop.xlane.xlu0 %12366
    %v12368 = vadd.f32 %v12351, %v12352
    %v12369 = vadd.f32 %v12368, %v12353
    %v12370 = vadd.f32 %v12369, %v12354
    %v12371 = vadd.f32 %v12370, %v12355
    %v12372 = vadd.f32 %v12371, %v12356
    %v12373 = vadd.f32 %v12372, %v12357
    %v12374 = vadd.f32 %v12373, %v12358
    %12375 = vadd.xlane.f32.xlu0 %v12374
    %v12376 = vpop.xlane.xlu0 %12375
    %v12377 = vld [vmem:[#allocation4] sm:$0x1]
    %v12379 = vperm.slane %v12377, 0
    %v12381 = vadd.f32 %v12367, %v12379
    %v12382 = vadd.f32 %v12376, %v12379
    %v12383 = vmul.f32 %v12382, 1.442695
    %v12384 = vpow.pop %v12383
    %vm12385 = vcmask 7168
    %v12386 = vsel %vm12385, %v12381, 0.0
    %v12387 = vrot.slane %v12386, 4
    %v12388 = vadd.f32 %v12386, %v12387
    %v12389 = vrot.slane %v12388, 2
    %v12390 = vadd.f32 %v12388, %v12389
    %v12391 = vrot.slane %v12390, 1
    %v12392 = vadd.f32 %v12390, %v12391
    %v12393 = vrcp.pop 8.0
    %v12394 = vmul.f32 8.0, %v12393
    %v12395 = vsub.f32 1.0, %v12394
    %v12396 = vmul.f32 %v12393, %v12395
    %v12397 = vadd.f32 %v12393, %v12396
    %vm12398 = vweird.f32 %v12393
    %v12399 = vsel %vm12398, %v12393, %v12397
    %v12400 = vmul.f32 %v12392, %v12399
    %v12401 = vsel %vm12385, %v12384, 0.0
    %v12402 = vrot.slane %v12401, 4
    %v12403 = vadd.f32 %v12401, %v12402
    %v12404 = vrot.slane %v12403, 2
    %v12405 = vadd.f32 %v12403, %v12404
    %v12406 = vrot.slane %v12405, 1
    %v12407 = vadd.f32 %v12405, %v12406
    %v12408 = vmul.f32 %v12407, %v12399
    %v12409 = vmul.f32 %v12408, 0.01
    %v12410 = vadd.f32 %v12409, 0.99
    %v12411 = vrcp.pop %v12410
    %v12412 = vmul.f32 %v12410, %v12411
    %v12413 = vsub.f32 1.0, %v12412
    %v12414 = vmul.f32 %v12411, %v12413
    %v12415 = vadd.f32 %v12411, %v12414
    %vm12416 = vweird.f32 %v12410
    %vm12417 = vweird.f32 %v12411
    %vm12418 = vmor %vm12416, %vm12417
    %v12419 = vsel %vm12418, %v12411, %v12415
    %v12420 = vand.u32 2147483647, %v12410
    %vm12421 = vcmp.eq.f32.partialorder %v12420, 8.507059e+37
    %v12422 = vand.u32 %v12410, 2147483648
    %v12423 = vor.u32 1.1754944e-38, %v12422
    %v12424 = vsel %vm12421, %v12423, %v12419
    %v12425 = vmul.f32 %v12408, %v12424
    %v12426 = vlog2.pop %v12408
    %v12427 = vmul.f32 %v12426, 0.6931472
    %v12428 = vmul.f32 %v12425, %v12427
    %v12429 = vsub.f32 %v12400, %v12428
    %v12430 = vmul.f32 %v12429, -1.0
    %s12431 = vtos %v12430
    %s12432 = scalar_lea.smem [#allocation19], 0
    %12433 = sst [smem:[%s12432]] %s12431
    // Predicated region
    $region74: #{kl_loss.1} parent=1 // pred_check
      _
    $region75: #{kl_loss.1} parent=1 // pred_check_branch
      %12435 = sbr.rel (0) target = $region77
    $region76: #{kl_loss.1} parent=1 // pred_region
      %12437 = vsyncadd [#allocation7], 0
      %s12439 = sshll.u32 %s10, 4
      %s12440 = int_to_ptr.hbm [resolvable:$true] %s12439
      %12442 = dma.smem_to_hbm [#allocation19], 16, %s12440, [#allocation7]
    $region77: #{kl_loss.1} parent=1 // pred_fallthru
      _
    // Predicated region
    $region78: #{kl_loss.1} parent=1 // pred_check
      _
    $region79: #{kl_loss.1} parent=1 // pred_check_branch
      %12444 = sbr.rel (0) target = $region81
    $region80: #{kl_loss.1} parent=1 // pred_region
      %12446 = dma.done [#allocation7], 16
    $region81: #{kl_loss.1} parent=1 // pred_fallthru
      _
    %12447 = sfence
    %12448 = vsyncpa [#allocation6], 1
    %12449 = vsyncpa [#allocation9], 1
    %12450 = vsyncpa [#allocation12], 1
    %12451 = vsyncpa [#allocation15], 1
    %12452 = vsyncpa [#allocation18], 1
    %12453 = vsyncpa [#allocation7], 1
  %12454 = vsyncmov [#allocation3]
  %s12455 = vpop.sfrf %12454
  %p12456 = scmp.eq.s32.totalorder %s12455, 0
  %p12457 = pneg %p12456
  %12459 = shalt.err (%p12457)

</llo_original>
